<compile_context>
chip_gen: v7x
topology: tpu7x:2x2x1
jax: 0.10.0
libtpu: 0.0.40
codegen_flags: <defaults>
</compile_context>

<pallas_src>
import numpy as np
import jax
import jax.numpy as jnp
from jax import lax
from jax.experimental import pallas as pl
from jax.experimental.pallas import tpu as pltpu

# ----------------------------- constants (match module defaults) -------------
WIN_SIZE = 11
WIN_SIGMA = 1.5
WEIGHTS = [0.0448, 0.2856, 0.3001, 0.2363, 0.1333]
LEVELS = len(WEIGHTS)
K1, K2 = 0.01, 0.03
DATA_RANGE = 1.0
MIX_ALPHA = 0.9
C1 = (K1 * DATA_RANGE) ** 2
C2 = (K2 * DATA_RANGE) ** 2

L1_ROW = LEVELS           # row 5 of the (8, 128) stats tile holds the per-channel L1 mean
OUT_ROWS, OUT_LANES = 8, 128


def _fspecial_gauss_1d(size: int, sigma: float) -> np.ndarray:
    # Same as pytorch_msssim._fspecial_gauss_1d (deterministic, no checkpoint).
    coords = np.arange(size, dtype=np.float32) - size // 2
    g = np.exp(-(coords ** 2) / (2.0 * sigma ** 2))
    return (g / g.sum()).astype(np.float32)


_WIN = _fspecial_gauss_1d(WIN_SIZE, WIN_SIGMA)            # (11,) float32


# ----------------------------- host-side constant builders (numpy) -----------
def _gauss_band_right_np(w: int) -> np.ndarray:
    """(w, w-10): (X @ M)[r, j] = sum_k X[r, j+k] * win[k]  ("valid" filter along W)."""
    ow = w - WIN_SIZE + 1
    m = np.zeros((w, ow), np.float32)
    for j in range(ow):
        m[j:j + WIN_SIZE, j] = _WIN
    return m


def _gauss_band_left_np(h: int) -> np.ndarray:
    """(h-10, h): (M @ X)[i, c] = sum_k win[k] * X[i+k, c]  ("valid" filter along H)."""
    oh = h - WIN_SIZE + 1
    m = np.zeros((oh, h), np.float32)
    for i in range(oh):
        m[i, i:i + WIN_SIZE] = _WIN
    return m


def _pool_right_np(w: int) -> np.ndarray:
    """(w, w//2): X @ M == 1x2 average pool (stride 2) along W."""
    m = np.zeros((w, w // 2), np.float32)
    for j in range(w // 2):
        m[2 * j, j] = 0.5
        m[2 * j + 1, j] = 0.5
    return m


def _pool_left_np(h: int) -> np.ndarray:
    """(h//2, h): M @ X == 2x1 average pool (stride 2) along H."""
    return np.ascontiguousarray(_pool_right_np(h).T)


def _dotf(a, b):
    return jnp.dot(a, b, preferred_element_type=jnp.float32)


# ----------------------------- Pallas kernel ---------------------------------
def _mix_stats_kernel(x_ref, y_ref, *rest):
    # x_ref / y_ref: (H, W) f32 for one (batch, channel).
    # rest = [gw_0..gw_4, gh_0..gh_4, pw_0..pw_3, ph_0..ph_3, out_ref]
    gw_refs = rest[0:LEVELS]
    gh_refs = rest[LEVELS:2 * LEVELS]
    pw_refs = rest[2 * LEVELS:3 * LEVELS - 1]
    ph_refs = rest[3 * LEVELS - 1:4 * LEVELS - 2]
    out_ref = rest[4 * LEVELS - 2]

    xc = x_ref[...]
    yc = y_ref[...]

    scale_vals = []
    l1_val = None
    for s in range(LEVELS):
        h, w = xc.shape
        gw = gw_refs[s][...]          # (w, w-10)   lane-direction valid Gaussian
        gh = gh_refs[s][...]          # (h-10, h)   sublane-direction valid Gaussian

        xx, yy, xy = xc * xc, yc * yc, xc * yc
        if h % 8 == 0:
            # One (5h, w) @ (w, ow) MXU matmul for all five maps; re-splitting the
            # stack at sublane offsets that are multiples of 8 is free.
            t = _dotf(jnp.concatenate([xc, yc, xx, yy, xy], axis=0), gw)   # (5h, ow)
            maps = [_dotf(gh, t[k * h:(k + 1) * h, :]) for k in range(5)]
        else:
            maps = [_dotf(gh, _dotf(m, gw)) for m in (xc, yc, xx, yy, xy)]
        mu1, mu2, e_xx, e_yy, e_xy = maps

        mu1_sq, mu2_sq, mu1_mu2 = mu1 * mu1, mu2 * mu2, mu1 * mu2
        sigma1_sq = e_xx - mu1_sq
        sigma2_sq = e_yy - mu2_sq
        sigma12 = e_xy - mu1_mu2
        cs_map = (2.0 * sigma12 + C2) / (sigma1_sq + sigma2_sq + C2)

        if s < LEVELS - 1:
            scale_vals.append(jnp.mean(cs_map))                  # cs term only
        else:
            lum = (2.0 * mu1_mu2 + C1) / (mu1_sq + mu2_sq + C1)
            scale_vals.append(jnp.mean(lum * cs_map))            # full SSIM, last scale only

        if s == 0:
            l1_val = jnp.mean(jnp.abs(xc - yc))                  # L1 at full resolution only

        if s < LEVELS - 1:
            # 2x2 avg-pool (stride 2): x and y batched into one lane-direction matmul.
            pw = pw_refs[s][...]      # (w, w//2)
            ph = ph_refs[s][...]      # (h//2, h)
            if h % 8 == 0:
                t2 = _dotf(jnp.concatenate([xc, yc], axis=0), pw)    # (2h, w//2)
                xc = _dotf(ph, t2[0:h, :])
                yc = _dotf(ph, t2[h:2 * h, :])
            else:
                xc = _dotf(ph, _dotf(xc, pw))
                yc = _dotf(ph, _dotf(yc, pw))

    # Pack all 6 per-(b, c) scalars into one lane-dense (8, 128) tile -> single
    # unmasked output store.  (Only ~6 selects per grid step; negligible.)
    rows = lax.broadcasted_iota(jnp.int32, (OUT_ROWS, OUT_LANES), 0)
    cols = lax.broadcasted_iota(jnp.int32, (OUT_ROWS, OUT_LANES), 1)
    lane0 = cols == 0
    tile = jnp.where((rows == L1_ROW) & lane0, l1_val, jnp.float32(0.0))
    for s, v in enumerate(scale_vals):
        tile = jnp.where((rows == s) & lane0, v, tile)
    out_ref[...] = tile


def _mix_stats(x, y):
    b, c, h, w = x.shape

    # Host-built constants, passed as grid-invariant inputs: DMA'd to VMEM once and
    # kept resident across all (b, c) grid steps (no in-kernel iota/where rebuild).
    gw_l = [jnp.asarray(_gauss_band_right_np(w >> s)) for s in range(LEVELS)]
    gh_l = [jnp.asarray(_gauss_band_left_np(h >> s)) for s in range(LEVELS)]
    pw_l = [jnp.asarray(_pool_right_np(w >> s)) for s in range(LEVELS - 1)]
    ph_l = [jnp.asarray(_pool_left_np(h >> s)) for s in range(LEVELS - 1)]
    consts = gw_l + gh_l + pw_l + ph_l

    img_spec = pl.BlockSpec((None, None, h, w), lambda i, j: (i, j, 0, 0))
    const_specs = [pl.BlockSpec(a.shape, lambda i, j: (0, 0)) for a in consts]

    return pl.pallas_call(
        _mix_stats_kernel,
        grid=(b, c),
        in_specs=[img_spec, img_spec] + const_specs,
        out_specs=pl.BlockSpec((None, None, OUT_ROWS, OUT_LANES),
                               lambda i, j: (i, j, 0, 0)),
        out_shape=jax.ShapeDtypeStruct((b, c, OUT_ROWS, OUT_LANES), jnp.float32),
        compiler_params=pltpu.CompilerParams(
            dimension_semantics=("parallel", "parallel"),
            # ~6 MiB/step working set: above v5e's 16 MiB scoped default once
            # double buffering is counted, comfortably below v7x's 64 MiB physical.
            vmem_limit_bytes=32 * 1024 * 1024,
        ),
    )(x, y, *consts)


# ----------------------------- full forward ----------------------------------
def mix_reconstruction_loss(reconstructions, targets):
    # layout: NCHW; 5-D (B, T, C, H, W) inputs are folded to ((B*T), C, H, W).
    if reconstructions.ndim > 4:
        reconstructions = reconstructions.reshape((-1,) + reconstructions.shape[-3:])
    if targets.ndim > 4:
        targets = targets.reshape((-1,) + targets.shape[-3:])

    x = reconstructions.astype(jnp.float32)
    y = targets.astype(jnp.float32)
    _, _, h, w = x.shape

    # pytorch_msssim requirement for 5 scales with win_size=11.
    assert min(h, w) > (WIN_SIZE - 1) * 2 ** (LEVELS - 1), \
        "spatial dims too small for 5-scale MS-SSIM with win_size=11"
    # TODO(synk): odd spatial sizes (the avg_pool2d padding branch of pytorch_msssim) not implemented.
    assert h % (2 ** (LEVELS - 1)) == 0 and w % (2 ** (LEVELS - 1)) == 0, \
        "spatial dims must stay even across all scales"

    stats = _mix_stats(x, y)                       # (B, C, 8, 128)
    per_scale = stats[:, :, :LEVELS, 0]            # (B, C, LEVELS): cs for 0..3, ssim for 4
    l1_pc = stats[:, :, L1_ROW, 0]                 # (B, C)

    vals = jnp.maximum(jnp.moveaxis(per_scale, -1, 0), 0.0)       # relu, (LEVELS, B, C)
    w_exp = jnp.asarray(WEIGHTS, jnp.float32).reshape(-1, 1, 1)
    ms_ssim_val = jnp.prod(vals ** w_exp, axis=0).mean()          # size_average=True
    l1_loss = l1_pc.mean()                                        # == mean |x - y| over all elems

    ms_ssim_loss = 1.0 - ms_ssim_val
    return MIX_ALPHA * ms_ssim_loss + (1.0 - MIX_ALPHA) * l1_loss


if __name__ == "__main__":
    key = jax.random.PRNGKey(0)
    k1, k2 = jax.random.split(key)
    # 5-scale MS-SSIM with win_size=11 requires min(H, W) > 160 (and % 16 == 0 here),
    # so 192x192 is the smallest clean demo size; B*C = 6 keeps both v7x TCs busy.
    B, C, H, W = 2, 3, 192, 192
    recon = jax.random.uniform(k1, (B, C, H, W), dtype=jnp.float32)
    target = jax.random.uniform(k2, (B, C, H, W), dtype=jnp.float32)

    loss = jax.jit(mix_reconstruction_loss)(recon, target)
    jax.block_until_ready(loss)
    print("KERNEL_OK")
</pallas_src>

<mosaic_0001>
module attributes {stable_mosaic.version = 11 : i64} {
  func.func @_mix_stats_kernel(%arg0: i32, %arg1: i32, %arg2: memref<1x1x192x192xf32, #tpu.memory_space<vmem>>, %arg3: memref<1x1x192x192xf32, #tpu.memory_space<vmem>>, %arg4: memref<192x182xf32, #tpu.memory_space<vmem>>, %arg5: memref<96x86xf32, #tpu.memory_space<vmem>>, %arg6: memref<48x38xf32, #tpu.memory_space<vmem>>, %arg7: memref<24x14xf32, #tpu.memory_space<vmem>>, %arg8: memref<12x2xf32, #tpu.memory_space<vmem>>, %arg9: memref<182x192xf32, #tpu.memory_space<vmem>>, %arg10: memref<86x96xf32, #tpu.memory_space<vmem>>, %arg11: memref<38x48xf32, #tpu.memory_space<vmem>>, %arg12: memref<14x24xf32, #tpu.memory_space<vmem>>, %arg13: memref<2x12xf32, #tpu.memory_space<vmem>>, %arg14: memref<192x96xf32, #tpu.memory_space<vmem>>, %arg15: memref<96x48xf32, #tpu.memory_space<vmem>>, %arg16: memref<48x24xf32, #tpu.memory_space<vmem>>, %arg17: memref<24x12xf32, #tpu.memory_space<vmem>>, %arg18: memref<96x192xf32, #tpu.memory_space<vmem>>, %arg19: memref<48x96xf32, #tpu.memory_space<vmem>>, %arg20: memref<24x48xf32, #tpu.memory_space<vmem>>, %arg21: memref<12x24xf32, #tpu.memory_space<vmem>>, %arg22: memref<1x1x8x128xf32, #tpu.memory_space<vmem>>) attributes {dimension_semantics = [#tpu.dimension_semantics<parallel>, #tpu.dimension_semantics<parallel>], iteration_bounds = array<i64: 2, 3>, scalar_prefetch = 0 : i64, scratch_operands = 0 : i64, tpu.core_type = #tpu.core_type<tc>, window_params = [{transform_indices = @transform_0, window_bounds = array<i64: 1, 1, 192, 192>}, {transform_indices = @transform_1, window_bounds = array<i64: 1, 1, 192, 192>}, {pipeline_mode = #tpu.pipeline_mode<synchronous>, transform_indices = @transform_2, window_bounds = array<i64: 192, 182>}, {pipeline_mode = #tpu.pipeline_mode<synchronous>, transform_indices = @transform_3, window_bounds = array<i64: 96, 86>}, {pipeline_mode = #tpu.pipeline_mode<synchronous>, transform_indices = @transform_4, window_bounds = array<i64: 48, 38>}, {pipeline_mode = #tpu.pipeline_mode<synchronous>, transform_indices = @transform_5, window_bounds = array<i64: 24, 14>}, {pipeline_mode = #tpu.pipeline_mode<synchronous>, transform_indices = @transform_6, window_bounds = array<i64: 12, 2>}, {pipeline_mode = #tpu.pipeline_mode<synchronous>, transform_indices = @transform_7, window_bounds = array<i64: 182, 192>}, {pipeline_mode = #tpu.pipeline_mode<synchronous>, transform_indices = @transform_8, window_bounds = array<i64: 86, 96>}, {pipeline_mode = #tpu.pipeline_mode<synchronous>, transform_indices = @transform_9, window_bounds = array<i64: 38, 48>}, {pipeline_mode = #tpu.pipeline_mode<synchronous>, transform_indices = @transform_10, window_bounds = array<i64: 14, 24>}, {pipeline_mode = #tpu.pipeline_mode<synchronous>, transform_indices = @transform_11, window_bounds = array<i64: 2, 12>}, {pipeline_mode = #tpu.pipeline_mode<synchronous>, transform_indices = @transform_12, window_bounds = array<i64: 192, 96>}, {pipeline_mode = #tpu.pipeline_mode<synchronous>, transform_indices = @transform_13, window_bounds = array<i64: 96, 48>}, {pipeline_mode = #tpu.pipeline_mode<synchronous>, transform_indices = @transform_14, window_bounds = array<i64: 48, 24>}, {pipeline_mode = #tpu.pipeline_mode<synchronous>, transform_indices = @transform_15, window_bounds = array<i64: 24, 12>}, {pipeline_mode = #tpu.pipeline_mode<synchronous>, transform_indices = @transform_16, window_bounds = array<i64: 96, 192>}, {pipeline_mode = #tpu.pipeline_mode<synchronous>, transform_indices = @transform_17, window_bounds = array<i64: 48, 96>}, {pipeline_mode = #tpu.pipeline_mode<synchronous>, transform_indices = @transform_18, window_bounds = array<i64: 24, 48>}, {pipeline_mode = #tpu.pipeline_mode<synchronous>, transform_indices = @transform_19, window_bounds = array<i64: 12, 24>}, {transform_indices = @transform_20, window_bounds = array<i64: 1, 1, 8, 128>}]} {
    %c0 = arith.constant 0 : index
    %c0_0 = arith.constant 0 : index
    %c0_1 = arith.constant 0 : index
    %c0_2 = arith.constant 0 : index
    %0 = vector.load %arg2[%c0, %c0_0, %c0_1, %c0_2] : memref<1x1x192x192xf32, #tpu.memory_space<vmem>>, vector<1x1x192x192xf32>
    %1 = vector.shape_cast %0 : vector<1x1x192x192xf32> to vector<192x192xf32>
    %c0_3 = arith.constant 0 : index
    %c0_4 = arith.constant 0 : index
    %c0_5 = arith.constant 0 : index
    %c0_6 = arith.constant 0 : index
    %2 = vector.load %arg3[%c0_3, %c0_4, %c0_5, %c0_6] : memref<1x1x192x192xf32, #tpu.memory_space<vmem>>, vector<1x1x192x192xf32>
    %3 = vector.shape_cast %2 : vector<1x1x192x192xf32> to vector<192x192xf32>
    %c0_7 = arith.constant 0 : index
    %c0_8 = arith.constant 0 : index
    %4 = vector.load %arg4[%c0_7, %c0_8] : memref<192x182xf32, #tpu.memory_space<vmem>>, vector<192x182xf32>
    %c0_9 = arith.constant 0 : index
    %c0_10 = arith.constant 0 : index
    %5 = vector.load %arg9[%c0_9, %c0_10] : memref<182x192xf32, #tpu.memory_space<vmem>>, vector<182x192xf32>
    %6 = arith.mulf %1, %1 : vector<192x192xf32>
    %7 = arith.mulf %3, %3 : vector<192x192xf32>
    %8 = arith.mulf %1, %3 : vector<192x192xf32>
    %9 = tpu.concatenate %1, %3, %6, %7, %8 in 0 : vector<192x192xf32>, vector<192x192xf32>, vector<192x192xf32>, vector<192x192xf32>, vector<192x192xf32> -> vector<960x192xf32>
    %cst = arith.constant dense<0.000000e+00> : vector<960x182xf32>
    %10 = tpu.matmul %9, %4, %cst {dimension_numbers = #tpu.dot_dimension_numbers<[1], [0], [0], [1], [0, 0, 1, 1], [], []>} : vector<960x192xf32>, vector<192x182xf32>, vector<960x182xf32> -> vector<960x182xf32>
    %11 = vector.extract_strided_slice %10 {offsets = [0, 0], sizes = [192, 182], strides = [1, 1]} : vector<960x182xf32> to vector<192x182xf32>
    %cst_11 = arith.constant dense<0.000000e+00> : vector<182x182xf32>
    %12 = tpu.matmul %5, %11, %cst_11 {dimension_numbers = #tpu.dot_dimension_numbers<[1], [0], [0], [1], [0, 0, 1, 1], [], []>} : vector<182x192xf32>, vector<192x182xf32>, vector<182x182xf32> -> vector<182x182xf32>
    %13 = vector.extract_strided_slice %10 {offsets = [192, 0], sizes = [192, 182], strides = [1, 1]} : vector<960x182xf32> to vector<192x182xf32>
    %cst_12 = arith.constant dense<0.000000e+00> : vector<182x182xf32>
    %14 = tpu.matmul %5, %13, %cst_12 {dimension_numbers = #tpu.dot_dimension_numbers<[1], [0], [0], [1], [0, 0, 1, 1], [], []>} : vector<182x192xf32>, vector<192x182xf32>, vector<182x182xf32> -> vector<182x182xf32>
    %15 = vector.extract_strided_slice %10 {offsets = [384, 0], sizes = [192, 182], strides = [1, 1]} : vector<960x182xf32> to vector<192x182xf32>
    %cst_13 = arith.constant dense<0.000000e+00> : vector<182x182xf32>
    %16 = tpu.matmul %5, %15, %cst_13 {dimension_numbers = #tpu.dot_dimension_numbers<[1], [0], [0], [1], [0, 0, 1, 1], [], []>} : vector<182x192xf32>, vector<192x182xf32>, vector<182x182xf32> -> vector<182x182xf32>
    %17 = vector.extract_strided_slice %10 {offsets = [576, 0], sizes = [192, 182], strides = [1, 1]} : vector<960x182xf32> to vector<192x182xf32>
    %cst_14 = arith.constant dense<0.000000e+00> : vector<182x182xf32>
    %18 = tpu.matmul %5, %17, %cst_14 {dimension_numbers = #tpu.dot_dimension_numbers<[1], [0], [0], [1], [0, 0, 1, 1], [], []>} : vector<182x192xf32>, vector<192x182xf32>, vector<182x182xf32> -> vector<182x182xf32>
    %19 = vector.extract_strided_slice %10 {offsets = [768, 0], sizes = [192, 182], strides = [1, 1]} : vector<960x182xf32> to vector<192x182xf32>
    %cst_15 = arith.constant dense<0.000000e+00> : vector<182x182xf32>
    %20 = tpu.matmul %5, %19, %cst_15 {dimension_numbers = #tpu.dot_dimension_numbers<[1], [0], [0], [1], [0, 0, 1, 1], [], []>} : vector<182x192xf32>, vector<192x182xf32>, vector<182x182xf32> -> vector<182x182xf32>
    %21 = arith.mulf %12, %12 : vector<182x182xf32>
    %22 = arith.mulf %14, %14 : vector<182x182xf32>
    %23 = arith.mulf %12, %14 : vector<182x182xf32>
    %24 = arith.subf %16, %21 : vector<182x182xf32>
    %25 = arith.subf %18, %22 : vector<182x182xf32>
    %26 = arith.subf %20, %23 : vector<182x182xf32>
    %cst_16 = arith.constant 2.000000e+00 : f32
    %27 = vector.broadcast %cst_16 : f32 to vector<182x182xf32>
    %28 = arith.mulf %27, %26 : vector<182x182xf32>
    %cst_17 = arith.constant 8.99999984E-4 : f32
    %29 = vector.broadcast %cst_17 : f32 to vector<182x182xf32>
    %30 = arith.addf %28, %29 : vector<182x182xf32>
    %31 = arith.addf %24, %25 : vector<182x182xf32>
    %cst_18 = arith.constant 8.99999984E-4 : f32
    %32 = vector.broadcast %cst_18 : f32 to vector<182x182xf32>
    %33 = arith.addf %31, %32 : vector<182x182xf32>
    %34 = arith.divf %30, %33 : vector<182x182xf32>
    %35 = vector.shape_cast %34 : vector<182x182xf32> to vector<1x182x182xf32>
    %cst_19 = arith.constant dense<0.000000e+00> : vector<1xf32>
    %36 = vector.multi_reduction <add>, %35, %cst_19 [1, 2] : vector<1x182x182xf32> to vector<1xf32>
    %37 = vector.shape_cast %36 : vector<1xf32> to vector<1x1x1xf32>
    %38 = vector.extract %37[0, 0, 0] : f32 from vector<1x1x1xf32>
    %cst_20 = arith.constant 3.312400e+04 : f32
    %39 = arith.divf %38, %cst_20 : f32
    %40 = arith.subf %1, %3 : vector<192x192xf32>
    %41 = math.absf %40 : vector<192x192xf32>
    %42 = vector.shape_cast %41 : vector<192x192xf32> to vector<1x192x192xf32>
    %cst_21 = arith.constant dense<0.000000e+00> : vector<1xf32>
    %43 = vector.multi_reduction <add>, %42, %cst_21 [1, 2] : vector<1x192x192xf32> to vector<1xf32>
    %44 = vector.shape_cast %43 : vector<1xf32> to vector<1x1x1xf32>
    %45 = vector.extract %44[0, 0, 0] : f32 from vector<1x1x1xf32>
    %cst_22 = arith.constant 3.686400e+04 : f32
    %46 = arith.divf %45, %cst_22 : f32
    %c0_23 = arith.constant 0 : index
    %c0_24 = arith.constant 0 : index
    %47 = vector.load %arg14[%c0_23, %c0_24] : memref<192x96xf32, #tpu.memory_space<vmem>>, vector<192x96xf32>
    %c0_25 = arith.constant 0 : index
    %c0_26 = arith.constant 0 : index
    %48 = vector.load %arg18[%c0_25, %c0_26] : memref<96x192xf32, #tpu.memory_space<vmem>>, vector<96x192xf32>
    %49 = tpu.concatenate %1, %3 in 0 : vector<192x192xf32>, vector<192x192xf32> -> vector<384x192xf32>
    %cst_27 = arith.constant dense<0.000000e+00> : vector<384x96xf32>
    %50 = tpu.matmul %49, %47, %cst_27 {dimension_numbers = #tpu.dot_dimension_numbers<[1], [0], [0], [1], [0, 0, 1, 1], [], []>} : vector<384x192xf32>, vector<192x96xf32>, vector<384x96xf32> -> vector<384x96xf32>
    %51 = vector.extract_strided_slice %50 {offsets = [0, 0], sizes = [192, 96], strides = [1, 1]} : vector<384x96xf32> to vector<192x96xf32>
    %cst_28 = arith.constant dense<0.000000e+00> : vector<96x96xf32>
    %52 = tpu.matmul %48, %51, %cst_28 {dimension_numbers = #tpu.dot_dimension_numbers<[1], [0], [0], [1], [0, 0, 1, 1], [], []>} : vector<96x192xf32>, vector<192x96xf32>, vector<96x96xf32> -> vector<96x96xf32>
    %53 = vector.extract_strided_slice %50 {offsets = [192, 0], sizes = [192, 96], strides = [1, 1]} : vector<384x96xf32> to vector<192x96xf32>
    %cst_29 = arith.constant dense<0.000000e+00> : vector<96x96xf32>
    %54 = tpu.matmul %48, %53, %cst_29 {dimension_numbers = #tpu.dot_dimension_numbers<[1], [0], [0], [1], [0, 0, 1, 1], [], []>} : vector<96x192xf32>, vector<192x96xf32>, vector<96x96xf32> -> vector<96x96xf32>
    %c0_30 = arith.constant 0 : index
    %c0_31 = arith.constant 0 : index
    %55 = vector.load %arg5[%c0_30, %c0_31] : memref<96x86xf32, #tpu.memory_space<vmem>>, vector<96x86xf32>
    %c0_32 = arith.constant 0 : index
    %c0_33 = arith.constant 0 : index
    %56 = vector.load %arg10[%c0_32, %c0_33] : memref<86x96xf32, #tpu.memory_space<vmem>>, vector<86x96xf32>
    %57 = arith.mulf %52, %52 : vector<96x96xf32>
    %58 = arith.mulf %54, %54 : vector<96x96xf32>
    %59 = arith.mulf %52, %54 : vector<96x96xf32>
    %60 = tpu.concatenate %52, %54, %57, %58, %59 in 0 : vector<96x96xf32>, vector<96x96xf32>, vector<96x96xf32>, vector<96x96xf32>, vector<96x96xf32> -> vector<480x96xf32>
    %cst_34 = arith.constant dense<0.000000e+00> : vector<480x86xf32>
    %61 = tpu.matmul %60, %55, %cst_34 {dimension_numbers = #tpu.dot_dimension_numbers<[1], [0], [0], [1], [0, 0, 1, 1], [], []>} : vector<480x96xf32>, vector<96x86xf32>, vector<480x86xf32> -> vector<480x86xf32>
    %62 = vector.extract_strided_slice %61 {offsets = [0, 0], sizes = [96, 86], strides = [1, 1]} : vector<480x86xf32> to vector<96x86xf32>
    %cst_35 = arith.constant dense<0.000000e+00> : vector<86x86xf32>
    %63 = tpu.matmul %56, %62, %cst_35 {dimension_numbers = #tpu.dot_dimension_numbers<[1], [0], [0], [1], [0, 0, 1, 1], [], []>} : vector<86x96xf32>, vector<96x86xf32>, vector<86x86xf32> -> vector<86x86xf32>
    %64 = vector.extract_strided_slice %61 {offsets = [96, 0], sizes = [96, 86], strides = [1, 1]} : vector<480x86xf32> to vector<96x86xf32>
    %cst_36 = arith.constant dense<0.000000e+00> : vector<86x86xf32>
    %65 = tpu.matmul %56, %64, %cst_36 {dimension_numbers = #tpu.dot_dimension_numbers<[1], [0], [0], [1], [0, 0, 1, 1], [], []>} : vector<86x96xf32>, vector<96x86xf32>, vector<86x86xf32> -> vector<86x86xf32>
    %66 = vector.extract_strided_slice %61 {offsets = [192, 0], sizes = [96, 86], strides = [1, 1]} : vector<480x86xf32> to vector<96x86xf32>
    %cst_37 = arith.constant dense<0.000000e+00> : vector<86x86xf32>
    %67 = tpu.matmul %56, %66, %cst_37 {dimension_numbers = #tpu.dot_dimension_numbers<[1], [0], [0], [1], [0, 0, 1, 1], [], []>} : vector<86x96xf32>, vector<96x86xf32>, vector<86x86xf32> -> vector<86x86xf32>
    %68 = vector.extract_strided_slice %61 {offsets = [288, 0], sizes = [96, 86], strides = [1, 1]} : vector<480x86xf32> to vector<96x86xf32>
    %cst_38 = arith.constant dense<0.000000e+00> : vector<86x86xf32>
    %69 = tpu.matmul %56, %68, %cst_38 {dimension_numbers = #tpu.dot_dimension_numbers<[1], [0], [0], [1], [0, 0, 1, 1], [], []>} : vector<86x96xf32>, vector<96x86xf32>, vector<86x86xf32> -> vector<86x86xf32>
    %70 = vector.extract_strided_slice %61 {offsets = [384, 0], sizes = [96, 86], strides = [1, 1]} : vector<480x86xf32> to vector<96x86xf32>
    %cst_39 = arith.constant dense<0.000000e+00> : vector<86x86xf32>
    %71 = tpu.matmul %56, %70, %cst_39 {dimension_numbers = #tpu.dot_dimension_numbers<[1], [0], [0], [1], [0, 0, 1, 1], [], []>} : vector<86x96xf32>, vector<96x86xf32>, vector<86x86xf32> -> vector<86x86xf32>
    %72 = arith.mulf %63, %63 : vector<86x86xf32>
    %73 = arith.mulf %65, %65 : vector<86x86xf32>
    %74 = arith.mulf %63, %65 : vector<86x86xf32>
    %75 = arith.subf %67, %72 : vector<86x86xf32>
    %76 = arith.subf %69, %73 : vector<86x86xf32>
    %77 = arith.subf %71, %74 : vector<86x86xf32>
    %cst_40 = arith.constant 2.000000e+00 : f32
    %78 = vector.broadcast %cst_40 : f32 to vector<86x86xf32>
    %79 = arith.mulf %78, %77 : vector<86x86xf32>
    %cst_41 = arith.constant 8.99999984E-4 : f32
    %80 = vector.broadcast %cst_41 : f32 to vector<86x86xf32>
    %81 = arith.addf %79, %80 : vector<86x86xf32>
    %82 = arith.addf %75, %76 : vector<86x86xf32>
    %cst_42 = arith.constant 8.99999984E-4 : f32
    %83 = vector.broadcast %cst_42 : f32 to vector<86x86xf32>
    %84 = arith.addf %82, %83 : vector<86x86xf32>
    %85 = arith.divf %81, %84 : vector<86x86xf32>
    %86 = vector.shape_cast %85 : vector<86x86xf32> to vector<1x86x86xf32>
    %cst_43 = arith.constant dense<0.000000e+00> : vector<1xf32>
    %87 = vector.multi_reduction <add>, %86, %cst_43 [1, 2] : vector<1x86x86xf32> to vector<1xf32>
    %88 = vector.shape_cast %87 : vector<1xf32> to vector<1x1x1xf32>
    %89 = vector.extract %88[0, 0, 0] : f32 from vector<1x1x1xf32>
    %cst_44 = arith.constant 7.396000e+03 : f32
    %90 = arith.divf %89, %cst_44 : f32
    %c0_45 = arith.constant 0 : index
    %c0_46 = arith.constant 0 : index
    %91 = vector.load %arg15[%c0_45, %c0_46] : memref<96x48xf32, #tpu.memory_space<vmem>>, vector<96x48xf32>
    %c0_47 = arith.constant 0 : index
    %c0_48 = arith.constant 0 : index
    %92 = vector.load %arg19[%c0_47, %c0_48] : memref<48x96xf32, #tpu.memory_space<vmem>>, vector<48x96xf32>
    %93 = tpu.concatenate %52, %54 in 0 : vector<96x96xf32>, vector<96x96xf32> -> vector<192x96xf32>
    %cst_49 = arith.constant dense<0.000000e+00> : vector<192x48xf32>
    %94 = tpu.matmul %93, %91, %cst_49 {dimension_numbers = #tpu.dot_dimension_numbers<[1], [0], [0], [1], [0, 0, 1, 1], [], []>} : vector<192x96xf32>, vector<96x48xf32>, vector<192x48xf32> -> vector<192x48xf32>
    %95 = vector.extract_strided_slice %94 {offsets = [0, 0], sizes = [96, 48], strides = [1, 1]} : vector<192x48xf32> to vector<96x48xf32>
    %cst_50 = arith.constant dense<0.000000e+00> : vector<48x48xf32>
    %96 = tpu.matmul %92, %95, %cst_50 {dimension_numbers = #tpu.dot_dimension_numbers<[1], [0], [0], [1], [0, 0, 1, 1], [], []>} : vector<48x96xf32>, vector<96x48xf32>, vector<48x48xf32> -> vector<48x48xf32>
    %97 = vector.extract_strided_slice %94 {offsets = [96, 0], sizes = [96, 48], strides = [1, 1]} : vector<192x48xf32> to vector<96x48xf32>
    %cst_51 = arith.constant dense<0.000000e+00> : vector<48x48xf32>
    %98 = tpu.matmul %92, %97, %cst_51 {dimension_numbers = #tpu.dot_dimension_numbers<[1], [0], [0], [1], [0, 0, 1, 1], [], []>} : vector<48x96xf32>, vector<96x48xf32>, vector<48x48xf32> -> vector<48x48xf32>
    %c0_52 = arith.constant 0 : index
    %c0_53 = arith.constant 0 : index
    %99 = vector.load %arg6[%c0_52, %c0_53] : memref<48x38xf32, #tpu.memory_space<vmem>>, vector<48x38xf32>
    %c0_54 = arith.constant 0 : index
    %c0_55 = arith.constant 0 : index
    %100 = vector.load %arg11[%c0_54, %c0_55] : memref<38x48xf32, #tpu.memory_space<vmem>>, vector<38x48xf32>
    %101 = arith.mulf %96, %96 : vector<48x48xf32>
    %102 = arith.mulf %98, %98 : vector<48x48xf32>
    %103 = arith.mulf %96, %98 : vector<48x48xf32>
    %104 = tpu.concatenate %96, %98, %101, %102, %103 in 0 : vector<48x48xf32>, vector<48x48xf32>, vector<48x48xf32>, vector<48x48xf32>, vector<48x48xf32> -> vector<240x48xf32>
    %cst_56 = arith.constant dense<0.000000e+00> : vector<240x38xf32>
    %105 = tpu.matmul %104, %99, %cst_56 {dimension_numbers = #tpu.dot_dimension_numbers<[1], [0], [0], [1], [0, 0, 1, 1], [], []>} : vector<240x48xf32>, vector<48x38xf32>, vector<240x38xf32> -> vector<240x38xf32>
    %106 = vector.extract_strided_slice %105 {offsets = [0, 0], sizes = [48, 38], strides = [1, 1]} : vector<240x38xf32> to vector<48x38xf32>
    %cst_57 = arith.constant dense<0.000000e+00> : vector<38x38xf32>
    %107 = tpu.matmul %100, %106, %cst_57 {dimension_numbers = #tpu.dot_dimension_numbers<[1], [0], [0], [1], [0, 0, 1, 1], [], []>} : vector<38x48xf32>, vector<48x38xf32>, vector<38x38xf32> -> vector<38x38xf32>
    %108 = vector.extract_strided_slice %105 {offsets = [48, 0], sizes = [48, 38], strides = [1, 1]} : vector<240x38xf32> to vector<48x38xf32>
    %cst_58 = arith.constant dense<0.000000e+00> : vector<38x38xf32>
    %109 = tpu.matmul %100, %108, %cst_58 {dimension_numbers = #tpu.dot_dimension_numbers<[1], [0], [0], [1], [0, 0, 1, 1], [], []>} : vector<38x48xf32>, vector<48x38xf32>, vector<38x38xf32> -> vector<38x38xf32>
    %110 = vector.extract_strided_slice %105 {offsets = [96, 0], sizes = [48, 38], strides = [1, 1]} : vector<240x38xf32> to vector<48x38xf32>
    %cst_59 = arith.constant dense<0.000000e+00> : vector<38x38xf32>
    %111 = tpu.matmul %100, %110, %cst_59 {dimension_numbers = #tpu.dot_dimension_numbers<[1], [0], [0], [1], [0, 0, 1, 1], [], []>} : vector<38x48xf32>, vector<48x38xf32>, vector<38x38xf32> -> vector<38x38xf32>
    %112 = vector.extract_strided_slice %105 {offsets = [144, 0], sizes = [48, 38], strides = [1, 1]} : vector<240x38xf32> to vector<48x38xf32>
    %cst_60 = arith.constant dense<0.000000e+00> : vector<38x38xf32>
    %113 = tpu.matmul %100, %112, %cst_60 {dimension_numbers = #tpu.dot_dimension_numbers<[1], [0], [0], [1], [0, 0, 1, 1], [], []>} : vector<38x48xf32>, vector<48x38xf32>, vector<38x38xf32> -> vector<38x38xf32>
    %114 = vector.extract_strided_slice %105 {offsets = [192, 0], sizes = [48, 38], strides = [1, 1]} : vector<240x38xf32> to vector<48x38xf32>
    %cst_61 = arith.constant dense<0.000000e+00> : vector<38x38xf32>
    %115 = tpu.matmul %100, %114, %cst_61 {dimension_numbers = #tpu.dot_dimension_numbers<[1], [0], [0], [1], [0, 0, 1, 1], [], []>} : vector<38x48xf32>, vector<48x38xf32>, vector<38x38xf32> -> vector<38x38xf32>
    %116 = arith.mulf %107, %107 : vector<38x38xf32>
    %117 = arith.mulf %109, %109 : vector<38x38xf32>
    %118 = arith.mulf %107, %109 : vector<38x38xf32>
    %119 = arith.subf %111, %116 : vector<38x38xf32>
    %120 = arith.subf %113, %117 : vector<38x38xf32>
    %121 = arith.subf %115, %118 : vector<38x38xf32>
    %cst_62 = arith.constant 2.000000e+00 : f32
    %122 = vector.broadcast %cst_62 : f32 to vector<38x38xf32>
    %123 = arith.mulf %122, %121 : vector<38x38xf32>
    %cst_63 = arith.constant 8.99999984E-4 : f32
    %124 = vector.broadcast %cst_63 : f32 to vector<38x38xf32>
    %125 = arith.addf %123, %124 : vector<38x38xf32>
    %126 = arith.addf %119, %120 : vector<38x38xf32>
    %cst_64 = arith.constant 8.99999984E-4 : f32
    %127 = vector.broadcast %cst_64 : f32 to vector<38x38xf32>
    %128 = arith.addf %126, %127 : vector<38x38xf32>
    %129 = arith.divf %125, %128 : vector<38x38xf32>
    %130 = vector.shape_cast %129 : vector<38x38xf32> to vector<1x38x38xf32>
    %cst_65 = arith.constant dense<0.000000e+00> : vector<1xf32>
    %131 = vector.multi_reduction <add>, %130, %cst_65 [1, 2] : vector<1x38x38xf32> to vector<1xf32>
    %132 = vector.shape_cast %131 : vector<1xf32> to vector<1x1x1xf32>
    %133 = vector.extract %132[0, 0, 0] : f32 from vector<1x1x1xf32>
    %cst_66 = arith.constant 1.444000e+03 : f32
    %134 = arith.divf %133, %cst_66 : f32
    %c0_67 = arith.constant 0 : index
    %c0_68 = arith.constant 0 : index
    %135 = vector.load %arg16[%c0_67, %c0_68] : memref<48x24xf32, #tpu.memory_space<vmem>>, vector<48x24xf32>
    %c0_69 = arith.constant 0 : index
    %c0_70 = arith.constant 0 : index
    %136 = vector.load %arg20[%c0_69, %c0_70] : memref<24x48xf32, #tpu.memory_space<vmem>>, vector<24x48xf32>
    %137 = tpu.concatenate %96, %98 in 0 : vector<48x48xf32>, vector<48x48xf32> -> vector<96x48xf32>
    %cst_71 = arith.constant dense<0.000000e+00> : vector<96x24xf32>
    %138 = tpu.matmul %137, %135, %cst_71 {dimension_numbers = #tpu.dot_dimension_numbers<[1], [0], [0], [1], [0, 0, 1, 1], [], []>} : vector<96x48xf32>, vector<48x24xf32>, vector<96x24xf32> -> vector<96x24xf32>
    %139 = vector.extract_strided_slice %138 {offsets = [0, 0], sizes = [48, 24], strides = [1, 1]} : vector<96x24xf32> to vector<48x24xf32>
    %cst_72 = arith.constant dense<0.000000e+00> : vector<24x24xf32>
    %140 = tpu.matmul %136, %139, %cst_72 {dimension_numbers = #tpu.dot_dimension_numbers<[1], [0], [0], [1], [0, 0, 1, 1], [], []>} : vector<24x48xf32>, vector<48x24xf32>, vector<24x24xf32> -> vector<24x24xf32>
    %141 = vector.extract_strided_slice %138 {offsets = [48, 0], sizes = [48, 24], strides = [1, 1]} : vector<96x24xf32> to vector<48x24xf32>
    %cst_73 = arith.constant dense<0.000000e+00> : vector<24x24xf32>
    %142 = tpu.matmul %136, %141, %cst_73 {dimension_numbers = #tpu.dot_dimension_numbers<[1], [0], [0], [1], [0, 0, 1, 1], [], []>} : vector<24x48xf32>, vector<48x24xf32>, vector<24x24xf32> -> vector<24x24xf32>
    %c0_74 = arith.constant 0 : index
    %c0_75 = arith.constant 0 : index
    %143 = vector.load %arg7[%c0_74, %c0_75] : memref<24x14xf32, #tpu.memory_space<vmem>>, vector<24x14xf32>
    %c0_76 = arith.constant 0 : index
    %c0_77 = arith.constant 0 : index
    %144 = vector.load %arg12[%c0_76, %c0_77] : memref<14x24xf32, #tpu.memory_space<vmem>>, vector<14x24xf32>
    %145 = arith.mulf %140, %140 : vector<24x24xf32>
    %146 = arith.mulf %142, %142 : vector<24x24xf32>
    %147 = arith.mulf %140, %142 : vector<24x24xf32>
    %148 = tpu.concatenate %140, %142, %145, %146, %147 in 0 : vector<24x24xf32>, vector<24x24xf32>, vector<24x24xf32>, vector<24x24xf32>, vector<24x24xf32> -> vector<120x24xf32>
    %cst_78 = arith.constant dense<0.000000e+00> : vector<120x14xf32>
    %149 = tpu.matmul %148, %143, %cst_78 {dimension_numbers = #tpu.dot_dimension_numbers<[1], [0], [0], [1], [0, 0, 1, 1], [], []>} : vector<120x24xf32>, vector<24x14xf32>, vector<120x14xf32> -> vector<120x14xf32>
    %150 = vector.extract_strided_slice %149 {offsets = [0, 0], sizes = [24, 14], strides = [1, 1]} : vector<120x14xf32> to vector<24x14xf32>
    %cst_79 = arith.constant dense<0.000000e+00> : vector<14x14xf32>
    %151 = tpu.matmul %144, %150, %cst_79 {dimension_numbers = #tpu.dot_dimension_numbers<[1], [0], [0], [1], [0, 0, 1, 1], [], []>} : vector<14x24xf32>, vector<24x14xf32>, vector<14x14xf32> -> vector<14x14xf32>
    %152 = vector.extract_strided_slice %149 {offsets = [24, 0], sizes = [24, 14], strides = [1, 1]} : vector<120x14xf32> to vector<24x14xf32>
    %cst_80 = arith.constant dense<0.000000e+00> : vector<14x14xf32>
    %153 = tpu.matmul %144, %152, %cst_80 {dimension_numbers = #tpu.dot_dimension_numbers<[1], [0], [0], [1], [0, 0, 1, 1], [], []>} : vector<14x24xf32>, vector<24x14xf32>, vector<14x14xf32> -> vector<14x14xf32>
    %154 = vector.extract_strided_slice %149 {offsets = [48, 0], sizes = [24, 14], strides = [1, 1]} : vector<120x14xf32> to vector<24x14xf32>
    %cst_81 = arith.constant dense<0.000000e+00> : vector<14x14xf32>
    %155 = tpu.matmul %144, %154, %cst_81 {dimension_numbers = #tpu.dot_dimension_numbers<[1], [0], [0], [1], [0, 0, 1, 1], [], []>} : vector<14x24xf32>, vector<24x14xf32>, vector<14x14xf32> -> vector<14x14xf32>
    %156 = vector.extract_strided_slice %149 {offsets = [72, 0], sizes = [24, 14], strides = [1, 1]} : vector<120x14xf32> to vector<24x14xf32>
    %cst_82 = arith.constant dense<0.000000e+00> : vector<14x14xf32>
    %157 = tpu.matmul %144, %156, %cst_82 {dimension_numbers = #tpu.dot_dimension_numbers<[1], [0], [0], [1], [0, 0, 1, 1], [], []>} : vector<14x24xf32>, vector<24x14xf32>, vector<14x14xf32> -> vector<14x14xf32>
    %158 = vector.extract_strided_slice %149 {offsets = [96, 0], sizes = [24, 14], strides = [1, 1]} : vector<120x14xf32> to vector<24x14xf32>
    %cst_83 = arith.constant dense<0.000000e+00> : vector<14x14xf32>
    %159 = tpu.matmul %144, %158, %cst_83 {dimension_numbers = #tpu.dot_dimension_numbers<[1], [0], [0], [1], [0, 0, 1, 1], [], []>} : vector<14x24xf32>, vector<24x14xf32>, vector<14x14xf32> -> vector<14x14xf32>
    %160 = arith.mulf %151, %151 : vector<14x14xf32>
    %161 = arith.mulf %153, %153 : vector<14x14xf32>
    %162 = arith.mulf %151, %153 : vector<14x14xf32>
    %163 = arith.subf %155, %160 : vector<14x14xf32>
    %164 = arith.subf %157, %161 : vector<14x14xf32>
    %165 = arith.subf %159, %162 : vector<14x14xf32>
    %cst_84 = arith.constant 2.000000e+00 : f32
    %166 = vector.broadcast %cst_84 : f32 to vector<14x14xf32>
    %167 = arith.mulf %166, %165 : vector<14x14xf32>
    %cst_85 = arith.constant 8.99999984E-4 : f32
    %168 = vector.broadcast %cst_85 : f32 to vector<14x14xf32>
    %169 = arith.addf %167, %168 : vector<14x14xf32>
    %170 = arith.addf %163, %164 : vector<14x14xf32>
    %cst_86 = arith.constant 8.99999984E-4 : f32
    %171 = vector.broadcast %cst_86 : f32 to vector<14x14xf32>
    %172 = arith.addf %170, %171 : vector<14x14xf32>
    %173 = arith.divf %169, %172 : vector<14x14xf32>
    %174 = vector.shape_cast %173 : vector<14x14xf32> to vector<1x14x14xf32>
    %cst_87 = arith.constant dense<0.000000e+00> : vector<1xf32>
    %175 = vector.multi_reduction <add>, %174, %cst_87 [1, 2] : vector<1x14x14xf32> to vector<1xf32>
    %176 = vector.shape_cast %175 : vector<1xf32> to vector<1x1x1xf32>
    %177 = vector.extract %176[0, 0, 0] : f32 from vector<1x1x1xf32>
    %cst_88 = arith.constant 1.960000e+02 : f32
    %178 = arith.divf %177, %cst_88 : f32
    %c0_89 = arith.constant 0 : index
    %c0_90 = arith.constant 0 : index
    %179 = vector.load %arg17[%c0_89, %c0_90] : memref<24x12xf32, #tpu.memory_space<vmem>>, vector<24x12xf32>
    %c0_91 = arith.constant 0 : index
    %c0_92 = arith.constant 0 : index
    %180 = vector.load %arg21[%c0_91, %c0_92] : memref<12x24xf32, #tpu.memory_space<vmem>>, vector<12x24xf32>
    %181 = tpu.concatenate %140, %142 in 0 : vector<24x24xf32>, vector<24x24xf32> -> vector<48x24xf32>
    %cst_93 = arith.constant dense<0.000000e+00> : vector<48x12xf32>
    %182 = tpu.matmul %181, %179, %cst_93 {dimension_numbers = #tpu.dot_dimension_numbers<[1], [0], [0], [1], [0, 0, 1, 1], [], []>} : vector<48x24xf32>, vector<24x12xf32>, vector<48x12xf32> -> vector<48x12xf32>
    %183 = vector.extract_strided_slice %182 {offsets = [0, 0], sizes = [24, 12], strides = [1, 1]} : vector<48x12xf32> to vector<24x12xf32>
    %cst_94 = arith.constant dense<0.000000e+00> : vector<12x12xf32>
    %184 = tpu.matmul %180, %183, %cst_94 {dimension_numbers = #tpu.dot_dimension_numbers<[1], [0], [0], [1], [0, 0, 1, 1], [], []>} : vector<12x24xf32>, vector<24x12xf32>, vector<12x12xf32> -> vector<12x12xf32>
    %185 = vector.extract_strided_slice %182 {offsets = [24, 0], sizes = [24, 12], strides = [1, 1]} : vector<48x12xf32> to vector<24x12xf32>
    %cst_95 = arith.constant dense<0.000000e+00> : vector<12x12xf32>
    %186 = tpu.matmul %180, %185, %cst_95 {dimension_numbers = #tpu.dot_dimension_numbers<[1], [0], [0], [1], [0, 0, 1, 1], [], []>} : vector<12x24xf32>, vector<24x12xf32>, vector<12x12xf32> -> vector<12x12xf32>
    %c0_96 = arith.constant 0 : index
    %c0_97 = arith.constant 0 : index
    %187 = vector.load %arg8[%c0_96, %c0_97] : memref<12x2xf32, #tpu.memory_space<vmem>>, vector<12x2xf32>
    %c0_98 = arith.constant 0 : index
    %c0_99 = arith.constant 0 : index
    %188 = vector.load %arg13[%c0_98, %c0_99] : memref<2x12xf32, #tpu.memory_space<vmem>>, vector<2x12xf32>
    %189 = arith.mulf %184, %184 : vector<12x12xf32>
    %190 = arith.mulf %186, %186 : vector<12x12xf32>
    %191 = arith.mulf %184, %186 : vector<12x12xf32>
    %cst_100 = arith.constant dense<0.000000e+00> : vector<12x2xf32>
    %192 = tpu.matmul %184, %187, %cst_100 {dimension_numbers = #tpu.dot_dimension_numbers<[1], [0], [0], [1], [0, 0, 1, 1], [], []>} : vector<12x12xf32>, vector<12x2xf32>, vector<12x2xf32> -> vector<12x2xf32>
    %cst_101 = arith.constant dense<0.000000e+00> : vector<2x2xf32>
    %193 = tpu.matmul %188, %192, %cst_101 {dimension_numbers = #tpu.dot_dimension_numbers<[1], [0], [0], [1], [0, 0, 1, 1], [], []>} : vector<2x12xf32>, vector<12x2xf32>, vector<2x2xf32> -> vector<2x2xf32>
    %cst_102 = arith.constant dense<0.000000e+00> : vector<12x2xf32>
    %194 = tpu.matmul %186, %187, %cst_102 {dimension_numbers = #tpu.dot_dimension_numbers<[1], [0], [0], [1], [0, 0, 1, 1], [], []>} : vector<12x12xf32>, vector<12x2xf32>, vector<12x2xf32> -> vector<12x2xf32>
    %cst_103 = arith.constant dense<0.000000e+00> : vector<2x2xf32>
    %195 = tpu.matmul %188, %194, %cst_103 {dimension_numbers = #tpu.dot_dimension_numbers<[1], [0], [0], [1], [0, 0, 1, 1], [], []>} : vector<2x12xf32>, vector<12x2xf32>, vector<2x2xf32> -> vector<2x2xf32>
    %cst_104 = arith.constant dense<0.000000e+00> : vector<12x2xf32>
    %196 = tpu.matmul %189, %187, %cst_104 {dimension_numbers = #tpu.dot_dimension_numbers<[1], [0], [0], [1], [0, 0, 1, 1], [], []>} : vector<12x12xf32>, vector<12x2xf32>, vector<12x2xf32> -> vector<12x2xf32>
    %cst_105 = arith.constant dense<0.000000e+00> : vector<2x2xf32>
    %197 = tpu.matmul %188, %196, %cst_105 {dimension_numbers = #tpu.dot_dimension_numbers<[1], [0], [0], [1], [0, 0, 1, 1], [], []>} : vector<2x12xf32>, vector<12x2xf32>, vector<2x2xf32> -> vector<2x2xf32>
    %cst_106 = arith.constant dense<0.000000e+00> : vector<12x2xf32>
    %198 = tpu.matmul %190, %187, %cst_106 {dimension_numbers = #tpu.dot_dimension_numbers<[1], [0], [0], [1], [0, 0, 1, 1], [], []>} : vector<12x12xf32>, vector<12x2xf32>, vector<12x2xf32> -> vector<12x2xf32>
    %cst_107 = arith.constant dense<0.000000e+00> : vector<2x2xf32>
    %199 = tpu.matmul %188, %198, %cst_107 {dimension_numbers = #tpu.dot_dimension_numbers<[1], [0], [0], [1], [0, 0, 1, 1], [], []>} : vector<2x12xf32>, vector<12x2xf32>, vector<2x2xf32> -> vector<2x2xf32>
    %cst_108 = arith.constant dense<0.000000e+00> : vector<12x2xf32>
    %200 = tpu.matmul %191, %187, %cst_108 {dimension_numbers = #tpu.dot_dimension_numbers<[1], [0], [0], [1], [0, 0, 1, 1], [], []>} : vector<12x12xf32>, vector<12x2xf32>, vector<12x2xf32> -> vector<12x2xf32>
    %cst_109 = arith.constant dense<0.000000e+00> : vector<2x2xf32>
    %201 = tpu.matmul %188, %200, %cst_109 {dimension_numbers = #tpu.dot_dimension_numbers<[1], [0], [0], [1], [0, 0, 1, 1], [], []>} : vector<2x12xf32>, vector<12x2xf32>, vector<2x2xf32> -> vector<2x2xf32>
    %202 = arith.mulf %193, %193 : vector<2x2xf32>
    %203 = arith.mulf %195, %195 : vector<2x2xf32>
    %204 = arith.mulf %193, %195 : vector<2x2xf32>
    %205 = arith.subf %197, %202 : vector<2x2xf32>
    %206 = arith.subf %199, %203 : vector<2x2xf32>
    %207 = arith.subf %201, %204 : vector<2x2xf32>
    %cst_110 = arith.constant 2.000000e+00 : f32
    %208 = vector.broadcast %cst_110 : f32 to vector<2x2xf32>
    %209 = arith.mulf %208, %207 : vector<2x2xf32>
    %cst_111 = arith.constant 8.99999984E-4 : f32
    %210 = vector.broadcast %cst_111 : f32 to vector<2x2xf32>
    %211 = arith.addf %209, %210 : vector<2x2xf32>
    %212 = arith.addf %205, %206 : vector<2x2xf32>
    %cst_112 = arith.constant 8.99999984E-4 : f32
    %213 = vector.broadcast %cst_112 : f32 to vector<2x2xf32>
    %214 = arith.addf %212, %213 : vector<2x2xf32>
    %215 = arith.divf %211, %214 : vector<2x2xf32>
    %cst_113 = arith.constant 2.000000e+00 : f32
    %216 = vector.broadcast %cst_113 : f32 to vector<2x2xf32>
    %217 = arith.mulf %216, %204 : vector<2x2xf32>
    %cst_114 = arith.constant 9.99999974E-5 : f32
    %218 = vector.broadcast %cst_114 : f32 to vector<2x2xf32>
    %219 = arith.addf %217, %218 : vector<2x2xf32>
    %220 = arith.addf %202, %203 : vector<2x2xf32>
    %cst_115 = arith.constant 9.99999974E-5 : f32
    %221 = vector.broadcast %cst_115 : f32 to vector<2x2xf32>
    %222 = arith.addf %220, %221 : vector<2x2xf32>
    %223 = arith.divf %219, %222 : vector<2x2xf32>
    %224 = arith.mulf %223, %215 : vector<2x2xf32>
    %225 = vector.shape_cast %224 : vector<2x2xf32> to vector<1x2x2xf32>
    %cst_116 = arith.constant dense<0.000000e+00> : vector<1xf32>
    %226 = vector.multi_reduction <add>, %225, %cst_116 [1, 2] : vector<1x2x2xf32> to vector<1xf32>
    %227 = vector.shape_cast %226 : vector<1xf32> to vector<1x1x1xf32>
    %228 = vector.extract %227[0, 0, 0] : f32 from vector<1x1x1xf32>
    %cst_117 = arith.constant 4.000000e+00 : f32
    %229 = arith.divf %228, %cst_117 : f32
    %230 = tpu.iota {dimensions = array<i32: 0>} : vector<8x128xi32>
    %231 = tpu.iota {dimensions = array<i32: 1>} : vector<8x128xi32>
    %c0_i32 = arith.constant 0 : i32
    %232 = vector.broadcast %c0_i32 : i32 to vector<8x128xi32>
    %233 = arith.cmpi eq, %231, %232 : vector<8x128xi32>
    %c5_i32 = arith.constant 5 : i32
    %234 = vector.broadcast %c5_i32 : i32 to vector<8x128xi32>
    %235 = arith.cmpi eq, %230, %234 : vector<8x128xi32>
    %236 = arith.andi %235, %233 : vector<8x128xi1>
    %cst_118 = arith.constant 0.000000e+00 : f32
    %237 = vector.broadcast %46 : f32 to vector<8x128xf32>
    %238 = vector.broadcast %cst_118 : f32 to vector<8x128xf32>
    %239 = arith.select %236, %237, %238 : vector<8x128xi1>, vector<8x128xf32>
    %c0_i32_119 = arith.constant 0 : i32
    %240 = vector.broadcast %c0_i32_119 : i32 to vector<8x128xi32>
    %241 = arith.cmpi eq, %230, %240 : vector<8x128xi32>
    %242 = arith.andi %241, %233 : vector<8x128xi1>
    %243 = vector.broadcast %39 : f32 to vector<8x128xf32>
    %244 = arith.select %242, %243, %239 : vector<8x128xi1>, vector<8x128xf32>
    %c1_i32 = arith.constant 1 : i32
    %245 = vector.broadcast %c1_i32 : i32 to vector<8x128xi32>
    %246 = arith.cmpi eq, %230, %245 : vector<8x128xi32>
    %247 = arith.andi %246, %233 : vector<8x128xi1>
    %248 = vector.broadcast %90 : f32 to vector<8x128xf32>
    %249 = arith.select %247, %248, %244 : vector<8x128xi1>, vector<8x128xf32>
    %c2_i32 = arith.constant 2 : i32
    %250 = vector.broadcast %c2_i32 : i32 to vector<8x128xi32>
    %251 = arith.cmpi eq, %230, %250 : vector<8x128xi32>
    %252 = arith.andi %251, %233 : vector<8x128xi1>
    %253 = vector.broadcast %134 : f32 to vector<8x128xf32>
    %254 = arith.select %252, %253, %249 : vector<8x128xi1>, vector<8x128xf32>
    %c3_i32 = arith.constant 3 : i32
    %255 = vector.broadcast %c3_i32 : i32 to vector<8x128xi32>
    %256 = arith.cmpi eq, %230, %255 : vector<8x128xi32>
    %257 = arith.andi %256, %233 : vector<8x128xi1>
    %258 = vector.broadcast %178 : f32 to vector<8x128xf32>
    %259 = arith.select %257, %258, %254 : vector<8x128xi1>, vector<8x128xf32>
    %c4_i32 = arith.constant 4 : i32
    %260 = vector.broadcast %c4_i32 : i32 to vector<8x128xi32>
    %261 = arith.cmpi eq, %230, %260 : vector<8x128xi32>
    %262 = arith.andi %261, %233 : vector<8x128xi1>
    %263 = vector.broadcast %229 : f32 to vector<8x128xf32>
    %264 = arith.select %262, %263, %259 : vector<8x128xi1>, vector<8x128xf32>
    %c0_120 = arith.constant 0 : index
    %c0_121 = arith.constant 0 : index
    %c0_122 = arith.constant 0 : index
    %c0_123 = arith.constant 0 : index
    %265 = vector.load %arg22[%c0_120, %c0_121, %c0_122, %c0_123] : memref<1x1x8x128xf32, #tpu.memory_space<vmem>>, vector<1x1x8x128xf32>
    %266 = vector.shape_cast %265 : vector<1x1x8x128xf32> to vector<8x128xf32>
    %267 = vector.shape_cast %264 : vector<8x128xf32> to vector<1x1x8x128xf32>
    tpu.vector_store %arg22[%c0_120, %c0_121, %c0_122, %c0_123], %267 {strides = array<i32>} : memref<1x1x8x128xf32, #tpu.memory_space<vmem>>, vector<1x1x8x128xf32>,
    return
  }
  func.func @transform_0(%arg0: i32, %arg1: i32) -> (i32, i32, i32, i32) {
    %c0_i32 = arith.constant 0 : i32
    %c0_i32_0 = arith.constant 0 : i32
    %c0_i32_1 = arith.constant 0 : i32
    return %arg0, %arg1, %c0_i32, %c0_i32_0 : i32, i32, i32, i32
  }
  func.func @transform_1(%arg0: i32, %arg1: i32) -> (i32, i32, i32, i32) {
    %c0_i32 = arith.constant 0 : i32
    %c0_i32_0 = arith.constant 0 : i32
    %c0_i32_1 = arith.constant 0 : i32
    return %arg0, %arg1, %c0_i32, %c0_i32_0 : i32, i32, i32, i32
  }
  func.func @transform_2(%arg0: i32, %arg1: i32) -> (i32, i32) {
    %c0_i32 = arith.constant 0 : i32
    %c0_i32_0 = arith.constant 0 : i32
    %c0_i32_1 = arith.constant 0 : i32
    return %c0_i32, %c0_i32_0 : i32, i32
  }
  func.func @transform_3(%arg0: i32, %arg1: i32) -> (i32, i32) {
    %c0_i32 = arith.constant 0 : i32
    %c0_i32_0 = arith.constant 0 : i32
    %c0_i32_1 = arith.constant 0 : i32
    return %c0_i32, %c0_i32_0 : i32, i32
  }
  func.func @transform_4(%arg0: i32, %arg1: i32) -> (i32, i32) {
    %c0_i32 = arith.constant 0 : i32
    %c0_i32_0 = arith.constant 0 : i32
    %c0_i32_1 = arith.constant 0 : i32
    return %c0_i32, %c0_i32_0 : i32, i32
  }
  func.func @transform_5(%arg0: i32, %arg1: i32) -> (i32, i32) {
    %c0_i32 = arith.constant 0 : i32
    %c0_i32_0 = arith.constant 0 : i32
    %c0_i32_1 = arith.constant 0 : i32
    return %c0_i32, %c0_i32_0 : i32, i32
  }
  func.func @transform_6(%arg0: i32, %arg1: i32) -> (i32, i32) {
    %c0_i32 = arith.constant 0 : i32
    %c0_i32_0 = arith.constant 0 : i32
    %c0_i32_1 = arith.constant 0 : i32
    return %c0_i32, %c0_i32_0 : i32, i32
  }
  func.func @transform_7(%arg0: i32, %arg1: i32) -> (i32, i32) {
    %c0_i32 = arith.constant 0 : i32
    %c0_i32_0 = arith.constant 0 : i32
    %c0_i32_1 = arith.constant 0 : i32
    return %c0_i32, %c0_i32_0 : i32, i32
  }
  func.func @transform_8(%arg0: i32, %arg1: i32) -> (i32, i32) {
    %c0_i32 = arith.constant 0 : i32
    %c0_i32_0 = arith.constant 0 : i32
    %c0_i32_1 = arith.constant 0 : i32
    return %c0_i32, %c0_i32_0 : i32, i32
  }
  func.func @transform_9(%arg0: i32, %arg1: i32) -> (i32, i32) {
    %c0_i32 = arith.constant 0 : i32
    %c0_i32_0 = arith.constant 0 : i32
    %c0_i32_1 = arith.constant 0 : i32
    return %c0_i32, %c0_i32_0 : i32, i32
  }
  func.func @transform_10(%arg0: i32, %arg1: i32) -> (i32, i32) {
    %c0_i32 = arith.constant 0 : i32
    %c0_i32_0 = arith.constant 0 : i32
    %c0_i32_1 = arith.constant 0 : i32
    return %c0_i32, %c0_i32_0 : i32, i32
  }
  func.func @transform_11(%arg0: i32, %arg1: i32) -> (i32, i32) {
    %c0_i32 = arith.constant 0 : i32
    %c0_i32_0 = arith.constant 0 : i32
    %c0_i32_1 = arith.constant 0 : i32
    return %c0_i32, %c0_i32_0 : i32, i32
  }
  func.func @transform_12(%arg0: i32, %arg1: i32) -> (i32, i32) {
    %c0_i32 = arith.constant 0 : i32
    %c0_i32_0 = arith.constant 0 : i32
    %c0_i32_1 = arith.constant 0 : i32
    return %c0_i32, %c0_i32_0 : i32, i32
  }
  func.func @transform_13(%arg0: i32, %arg1: i32) -> (i32, i32) {
    %c0_i32 = arith.constant 0 : i32
    %c0_i32_0 = arith.constant 0 : i32
    %c0_i32_1 = arith.constant 0 : i32
    return %c0_i32, %c0_i32_0 : i32, i32
  }
  func.func @transform_14(%arg0: i32, %arg1: i32) -> (i32, i32) {
    %c0_i32 = arith.constant 0 : i32
    %c0_i32_0 = arith.constant 0 : i32
    %c0_i32_1 = arith.constant 0 : i32
    return %c0_i32, %c0_i32_0 : i32, i32
  }
  func.func @transform_15(%arg0: i32, %arg1: i32) -> (i32, i32) {
    %c0_i32 = arith.constant 0 : i32
    %c0_i32_0 = arith.constant 0 : i32
    %c0_i32_1 = arith.constant 0 : i32
    return %c0_i32, %c0_i32_0 : i32, i32
  }
  func.func @transform_16(%arg0: i32, %arg1: i32) -> (i32, i32) {
    %c0_i32 = arith.constant 0 : i32
    %c0_i32_0 = arith.constant 0 : i32
    %c0_i32_1 = arith.constant 0 : i32
    return %c0_i32, %c0_i32_0 : i32, i32
  }
  func.func @transform_17(%arg0: i32, %arg1: i32) -> (i32, i32) {
    %c0_i32 = arith.constant 0 : i32
    %c0_i32_0 = arith.constant 0 : i32
    %c0_i32_1 = arith.constant 0 : i32
    return %c0_i32, %c0_i32_0 : i32, i32
  }
  func.func @transform_18(%arg0: i32, %arg1: i32) -> (i32, i32) {
    %c0_i32 = arith.constant 0 : i32
    %c0_i32_0 = arith.constant 0 : i32
    %c0_i32_1 = arith.constant 0 : i32
    return %c0_i32, %c0_i32_0 : i32, i32
  }
  func.func @transform_19(%arg0: i32, %arg1: i32) -> (i32, i32) {
    %c0_i32 = arith.constant 0 : i32
    %c0_i32_0 = arith.constant 0 : i32
    %c0_i32_1 = arith.constant 0 : i32
    return %c0_i32, %c0_i32_0 : i32, i32
  }
  func.func @transform_20(%arg0: i32, %arg1: i32) -> (i32, i32, i32, i32) {
    %c0_i32 = arith.constant 0 : i32
    %c0_i32_0 = arith.constant 0 : i32
    %c0_i32_1 = arith.constant 0 : i32
    return %arg0, %arg1, %c0_i32, %c0_i32_0 : i32, i32, i32, i32
  }
}

</mosaic_0001>

<llo_original>
// kernel: mix_reconstruction_loss.1
$region0: #{mix_reconstruction_loss.1}
  #allocation0 [shape = 'u32[]', space=smem, size = 0x4, offset = 0x4, fixed_abs, tag = 'smem constant byte address 0x4 - core index']
  #allocation1 [shape = 'u32[144,128]{1,0:T(1,128)}', space=vmem, size = 0x12000, scoped, tag = 'internal scratch']
  %s0 = inlined_call_operand.hbm [shape: f32[2,3,192,192], index: 0, kind: input, shape index: {}]
  %s1 = inlined_call_operand.hbm [shape: f32[2,3,192,192], index: 1, kind: input, shape index: {}]
  %s2 = inlined_call_operand.hbm [shape: f32[192,182], index: 2, kind: input, shape index: {}]
  %s3 = inlined_call_operand.hbm [shape: f32[96,86], index: 3, kind: input, shape index: {}]
  %s4 = inlined_call_operand.hbm [shape: f32[48,38], index: 4, kind: input, shape index: {}]
  %s5 = inlined_call_operand.hbm [shape: f32[24,14], index: 5, kind: input, shape index: {}]
  %s6 = inlined_call_operand.hbm [shape: f32[12,2], index: 6, kind: input, shape index: {}]
  %s7 = inlined_call_operand.hbm [shape: f32[182,192], index: 7, kind: input, shape index: {}]
  %s8 = inlined_call_operand.hbm [shape: f32[86,96], index: 8, kind: input, shape index: {}]
  %s9 = inlined_call_operand.hbm [shape: f32[38,48], index: 9, kind: input, shape index: {}]
  %s10 = inlined_call_operand.hbm [shape: f32[14,24], index: 10, kind: input, shape index: {}]
  %s11 = inlined_call_operand.hbm [shape: f32[2,12], index: 11, kind: input, shape index: {}]
  %s12 = inlined_call_operand.hbm [shape: f32[192,96], index: 12, kind: input, shape index: {}]
  %s13 = inlined_call_operand.hbm [shape: f32[96,48], index: 13, kind: input, shape index: {}]
  %s14 = inlined_call_operand.hbm [shape: f32[48,24], index: 14, kind: input, shape index: {}]
  %s15 = inlined_call_operand.hbm [shape: f32[24,12], index: 15, kind: input, shape index: {}]
  %s16 = inlined_call_operand.hbm [shape: f32[96,192], index: 16, kind: input, shape index: {}]
  %s17 = inlined_call_operand.hbm [shape: f32[48,96], index: 17, kind: input, shape index: {}]
  %s18 = inlined_call_operand.hbm [shape: f32[24,48], index: 18, kind: input, shape index: {}]
  %s19 = inlined_call_operand.hbm [shape: f32[12,24], index: 19, kind: input, shape index: {}]
  %s20 = inlined_call_operand.vmem [shape: f32[2,3,8,128], index: 20, kind: output, shape index: {}]
  %s21 = sld [smem:[#allocation0]]
  $region193: #{mix_reconstruction_loss.1} parent=0
    _
  %s23 = ssub.s32 1, %s21
  %s24 = scalar_select 0, %s23, %s21
  $region1: #{mix_reconstruction_loss.1} parent=0
    #allocation2 [shape = 'u8[393216]{0}', space=vmem, size = 0x60000, scoped, tag = 'input window, operand 0']
    #allocation3 [shape = 's32[2]{0}', space=sflag, size = 0x8, scoped, tag = 'scoped memory for mix_reconstruction_loss.1']
    #allocation4 [shape = 'u8[393216]{0}', space=vmem, size = 0x60000, scoped, tag = 'input window, operand 1']
    #allocation5 [shape = 's32[2]{0}', space=sflag, size = 0x8, scoped, tag = 'scoped memory for mix_reconstruction_loss.1']
    #allocation6 [shape = 'u8[196608]{0}', space=vmem, size = 0x30000, scoped, tag = 'input window, operand 2, single buffered']
    #allocation7 [shape = 'u8[49152]{0}', space=vmem, size = 0xc000, scoped, tag = 'input window, operand 3, single buffered']
    #allocation8 [shape = 's32[1]{0}', space=sflag, size = 0x4, scoped, tag = 'scoped memory for mix_reconstruction_loss.1']
    #allocation9 [shape = 'u8[24576]{0}', space=vmem, size = 0x6000, scoped, tag = 'input window, operand 4, single buffered']
    #allocation10 [shape = 'u8[12288]{0}', space=vmem, size = 0x3000, scoped, tag = 'input window, operand 5, single buffered']
    #allocation11 [shape = 's32[1]{0}', space=sflag, size = 0x4, scoped, tag = 'scoped memory for mix_reconstruction_loss.1']
    #allocation12 [shape = 'u8[8192]{0}', space=vmem, size = 0x2000, scoped, tag = 'input window, operand 6, single buffered']
    #allocation13 [shape = 'u8[188416]{0}', space=vmem, size = 0x2e000, scoped, tag = 'input window, operand 7, single buffered']
    #allocation14 [shape = 's32[1]{0}', space=sflag, size = 0x4, scoped, tag = 'scoped memory for mix_reconstruction_loss.1']
    #allocation15 [shape = 'u8[45056]{0}', space=vmem, size = 0xb000, scoped, tag = 'input window, operand 8, single buffered']
    #allocation16 [shape = 'u8[20480]{0}', space=vmem, size = 0x5000, scoped, tag = 'input window, operand 9, single buffered']
    #allocation17 [shape = 's32[1]{0}', space=sflag, size = 0x4, scoped, tag = 'scoped memory for mix_reconstruction_loss.1']
    #allocation18 [shape = 'u8[8192]{0}', space=vmem, size = 0x2000, scoped, tag = 'input window, operand 10, single buffered']
    #allocation19 [shape = 'u8[1024]{0}', space=vmem, size = 0x400, scoped, tag = 'input window, operand 11, single buffered']
    #allocation20 [shape = 's32[1]{0}', space=sflag, size = 0x4, scoped, tag = 'scoped memory for mix_reconstruction_loss.1']
    #allocation21 [shape = 'u8[98304]{0}', space=vmem, size = 0x18000, scoped, tag = 'input window, operand 12, single buffered']
    #allocation22 [shape = 'u8[49152]{0}', space=vmem, size = 0xc000, scoped, tag = 'input window, operand 13, single buffered']
    #allocation23 [shape = 's32[1]{0}', space=sflag, size = 0x4, scoped, tag = 'scoped memory for mix_reconstruction_loss.1']
    #allocation24 [shape = 'u8[24576]{0}', space=vmem, size = 0x6000, scoped, tag = 'input window, operand 14, single buffered']
    #allocation25 [shape = 'u8[12288]{0}', space=vmem, size = 0x3000, scoped, tag = 'input window, operand 15, single buffered']
    #allocation26 [shape = 's32[1]{0}', space=sflag, size = 0x4, scoped, tag = 'scoped memory for mix_reconstruction_loss.1']
    #allocation27 [shape = 'u8[98304]{0}', space=vmem, size = 0x18000, scoped, tag = 'input window, operand 16, single buffered']
    #allocation28 [shape = 'u8[24576]{0}', space=vmem, size = 0x6000, scoped, tag = 'input window, operand 17, single buffered']
    #allocation29 [shape = 's32[1]{0}', space=sflag, size = 0x4, scoped, tag = 'scoped memory for mix_reconstruction_loss.1']
    #allocation30 [shape = 'u8[12288]{0}', space=vmem, size = 0x3000, scoped, tag = 'input window, operand 18, single buffered']
    #allocation31 [shape = 'u8[8192]{0}', space=vmem, size = 0x2000, scoped, tag = 'input window, operand 19, single buffered']
    #allocation32 [shape = 's32[1]{0}', space=sflag, size = 0x4, scoped, tag = 'scoped memory for mix_reconstruction_loss.1']
    %25 = vsyncpa [#allocation3], 0
    %s26 = scalar_lea.sflag [#allocation3], 1
    %27 = vsyncpa %s26, 0
    %28 = vsyncpa [#allocation5], 0
    %s29 = scalar_lea.sflag [#allocation5], 1
    %30 = vsyncpa %s29, 0
    %31 = vsyncpa [#allocation8], 0
    %32 = vsyncpa [#allocation11], 0
    %33 = vsyncpa [#allocation14], 0
    %34 = vsyncpa [#allocation17], 0
    %35 = vsyncpa [#allocation20], 0
    %36 = vsyncpa [#allocation23], 0
    %37 = vsyncpa [#allocation26], 0
    %38 = vsyncpa [#allocation29], 0
    %39 = vsyncpa [#allocation32], 0
    loop: start=0, step=1, limit=8
    $region2: #{mix_reconstruction_loss.1} parent=1 // loop_pre_header
      _
    $region3: #{mix_reconstruction_loss.1} parent=1 // loop_header
      %s41 = sphi 0, %s45
      %p42 = scmp.ge.s32.totalorder %s41, 8
      %s48 = sphi 0, %s60
      %s49 = sphi 0, %s56
      %s50 = sphi 0, %s48
      %s51 = sphi 0, %s49
      %s52 = sphi 0, %s50
      %s53 = sphi 0, %s51
      %s65 = sphi 0, %s67
      %s68 = sphi 0, %s65
      %s69 = sphi 0, %s68
      %s85 = sphi 0, %s69
      %s93 = sphi 0, %s95
      %s96 = sphi 0, %s93
      %s97 = sphi 0, %s96
      %s113 = sphi 0, %s97
      %s117 = sphi 0, %s117
      %s119 = sphi 0, %s117
      %s120 = sphi 0, %s119
      %s134 = sphi 0, %s120
      %s138 = sphi 0, %s138
      %s140 = sphi 0, %s138
      %s141 = sphi 0, %s140
      %s155 = sphi 0, %s141
      %s159 = sphi 0, %s159
      %s161 = sphi 0, %s159
      %s162 = sphi 0, %s161
      %s176 = sphi 0, %s162
      %s180 = sphi 0, %s180
      %s182 = sphi 0, %s180
      %s183 = sphi 0, %s182
      %s197 = sphi 0, %s183
      %s201 = sphi 0, %s201
      %s203 = sphi 0, %s201
      %s204 = sphi 0, %s203
      %s218 = sphi 0, %s204
      %s222 = sphi 0, %s222
      %s224 = sphi 0, %s222
      %s225 = sphi 0, %s224
      %s239 = sphi 0, %s225
      %s243 = sphi 0, %s243
      %s245 = sphi 0, %s243
      %s246 = sphi 0, %s245
      %s260 = sphi 0, %s246
      %s264 = sphi 0, %s264
      %s266 = sphi 0, %s264
      %s267 = sphi 0, %s266
      %s281 = sphi 0, %s267
      %s285 = sphi 0, %s285
      %s287 = sphi 0, %s285
      %s288 = sphi 0, %s287
      %s302 = sphi 0, %s288
      %s306 = sphi 0, %s306
      %s308 = sphi 0, %s306
      %s309 = sphi 0, %s308
      %s323 = sphi 0, %s309
      %s327 = sphi 0, %s327
      %s329 = sphi 0, %s327
      %s330 = sphi 0, %s329
      %s344 = sphi 0, %s330
      %s348 = sphi 0, %s348
      %s350 = sphi 0, %s348
      %s351 = sphi 0, %s350
      %s365 = sphi 0, %s351
      %s369 = sphi 0, %s369
      %s371 = sphi 0, %s369
      %s372 = sphi 0, %s371
      %s386 = sphi 0, %s372
      %s390 = sphi 0, %s390
      %s392 = sphi 0, %s390
      %s393 = sphi 0, %s392
      %s407 = sphi 0, %s393
      %s411 = sphi 0, %s411
      %s413 = sphi 0, %s411
      %s414 = sphi 0, %s413
      %s428 = sphi 0, %s414
      %s432 = sphi 0, %s432
      %s434 = sphi 0, %s432
      %s435 = sphi 0, %s434
      %s449 = sphi 0, %s435
      %s453 = sphi 0, %s453
      %s455 = sphi 0, %s453
      %s456 = sphi 0, %s455
      %s470 = sphi 0, %s456
      %s474 = sphi 0, %s474
      %s476 = sphi 0, %s474
      %s477 = sphi 0, %s476
      %s491 = sphi 0, %s477
      %s499 = sphi 0, %s501
      %s502 = sphi 0, %s499
      %s503 = sphi 0, %s502
      %s519 = sphi 0, %s503
    $region4: #{mix_reconstruction_loss.1} parent=1 // loop_header_branch
      %44 = sbr.rel (%p42) target = $region8
    $region5: #{mix_reconstruction_loss.1} parent=1 // loop_body
      %s46 = ssub.s32 %s41, 1
      %s47 = ssub.s32 %s41, 2
      %s54 = sadd.s32 1, %s49
      %p55 = scmp.ge.s32.totalorder %s54, 3
      %s56 = scalar_select %p55, 0, %s54
      %s57 = sadd.s32 1, %s48
      %s58 = scalar_select %p55, %s57, %s48
      %p59 = scmp.ge.s32.totalorder %s58, 2
      %s60 = scalar_select %p59, 0, %s58
      %s61 = ssub.s32 %s48, %s60
      %s62 = ssub.s32 %s49, %s56
      %s63 = sor.u32 %s61, %s62
      %p64 = scmp.eq.s32.totalorder %s63, 0
      %s66 = sadd.s32 %s65, 1
      %s67 = scalar_select %p64, %s65, %s66
      %p70 = pneg %p64
      %p71 = scmp.eq.s32.totalorder %s41, 5
      %p72 = por %p70, %p71
      %p73 = scmp.ne.s32.totalorder %s65, %s68
      %p74 = scmp.eq.s32.totalorder %s41, 0
      %p75 = por %p73, %p74
      %p76 = scmp.ne.s32.totalorder %s65, %s68
      %p77 = scmp.eq.s32.totalorder %s46, 5
      %p78 = por %p76, %p77
      %p79 = scmp.ne.s32.totalorder %s68, %s69
      %p80 = scmp.eq.s32.totalorder %s46, 0
      %p81 = por %p79, %p80
      %p82 = scmp.ne.s32.totalorder %s68, %s69
      %p83 = scmp.eq.s32.totalorder %s47, 5
      %p84 = por %p82, %p83
      %p86 = scmp.ne.s32.totalorder %s69, %s85
      %p87 = scmp.eq.s32.totalorder %s47, 0
      %p88 = por %p86, %p87
      %s89 = ssub.s32 %s48, %s60
      %s90 = ssub.s32 %s49, %s56
      %s91 = sor.u32 %s89, %s90
      %p92 = scmp.eq.s32.totalorder %s91, 0
      %s94 = sadd.s32 %s93, 1
      %s95 = scalar_select %p92, %s93, %s94
      %p98 = pneg %p92
      %p99 = scmp.eq.s32.totalorder %s41, 5
      %p100 = por %p98, %p99
      %p101 = scmp.ne.s32.totalorder %s93, %s96
      %p102 = scmp.eq.s32.totalorder %s41, 0
      %p103 = por %p101, %p102
      %p104 = scmp.ne.s32.totalorder %s93, %s96
      %p105 = scmp.eq.s32.totalorder %s46, 5
      %p106 = por %p104, %p105
      %p107 = scmp.ne.s32.totalorder %s96, %s97
      %p108 = scmp.eq.s32.totalorder %s46, 0
      %p109 = por %p107, %p108
      %p110 = scmp.ne.s32.totalorder %s96, %s97
      %p111 = scmp.eq.s32.totalorder %s47, 5
      %p112 = por %p110, %p111
      %p114 = scmp.ne.s32.totalorder %s97, %s113
      %p115 = scmp.eq.s32.totalorder %s47, 0
      %p116 = por %p114, %p115
      %s118 = sadd.s32 %s117, 1
      %p121 = scmp.eq.s32.totalorder %s41, 5
      %p122 = scmp.ne.s32.totalorder %s117, %s119
      %p123 = scmp.eq.s32.totalorder %s41, 0
      %p124 = por %p122, %p123
      %p125 = scmp.ne.s32.totalorder %s117, %s119
      %p126 = scmp.eq.s32.totalorder %s46, 5
      %p127 = por %p125, %p126
      %p128 = scmp.ne.s32.totalorder %s119, %s120
      %p129 = scmp.eq.s32.totalorder %s46, 0
      %p130 = por %p128, %p129
      %p131 = scmp.ne.s32.totalorder %s119, %s120
      %p132 = scmp.eq.s32.totalorder %s47, 5
      %p133 = por %p131, %p132
      %p135 = scmp.ne.s32.totalorder %s120, %s134
      %p136 = scmp.eq.s32.totalorder %s47, 0
      %p137 = por %p135, %p136
      %s139 = sadd.s32 %s138, 1
      %p142 = scmp.eq.s32.totalorder %s41, 5
      %p143 = scmp.ne.s32.totalorder %s138, %s140
      %p144 = scmp.eq.s32.totalorder %s41, 0
      %p145 = por %p143, %p144
      %p146 = scmp.ne.s32.totalorder %s138, %s140
      %p147 = scmp.eq.s32.totalorder %s46, 5
      %p148 = por %p146, %p147
      %p149 = scmp.ne.s32.totalorder %s140, %s141
      %p150 = scmp.eq.s32.totalorder %s46, 0
      %p151 = por %p149, %p150
      %p152 = scmp.ne.s32.totalorder %s140, %s141
      %p153 = scmp.eq.s32.totalorder %s47, 5
      %p154 = por %p152, %p153
      %p156 = scmp.ne.s32.totalorder %s141, %s155
      %p157 = scmp.eq.s32.totalorder %s47, 0
      %p158 = por %p156, %p157
      %s160 = sadd.s32 %s159, 1
      %p163 = scmp.eq.s32.totalorder %s41, 5
      %p164 = scmp.ne.s32.totalorder %s159, %s161
      %p165 = scmp.eq.s32.totalorder %s41, 0
      %p166 = por %p164, %p165
      %p167 = scmp.ne.s32.totalorder %s159, %s161
      %p168 = scmp.eq.s32.totalorder %s46, 5
      %p169 = por %p167, %p168
      %p170 = scmp.ne.s32.totalorder %s161, %s162
      %p171 = scmp.eq.s32.totalorder %s46, 0
      %p172 = por %p170, %p171
      %p173 = scmp.ne.s32.totalorder %s161, %s162
      %p174 = scmp.eq.s32.totalorder %s47, 5
      %p175 = por %p173, %p174
      %p177 = scmp.ne.s32.totalorder %s162, %s176
      %p178 = scmp.eq.s32.totalorder %s47, 0
      %p179 = por %p177, %p178
      %s181 = sadd.s32 %s180, 1
      %p184 = scmp.eq.s32.totalorder %s41, 5
      %p185 = scmp.ne.s32.totalorder %s180, %s182
      %p186 = scmp.eq.s32.totalorder %s41, 0
      %p187 = por %p185, %p186
      %p188 = scmp.ne.s32.totalorder %s180, %s182
      %p189 = scmp.eq.s32.totalorder %s46, 5
      %p190 = por %p188, %p189
      %p191 = scmp.ne.s32.totalorder %s182, %s183
      %p192 = scmp.eq.s32.totalorder %s46, 0
      %p193 = por %p191, %p192
      %p194 = scmp.ne.s32.totalorder %s182, %s183
      %p195 = scmp.eq.s32.totalorder %s47, 5
      %p196 = por %p194, %p195
      %p198 = scmp.ne.s32.totalorder %s183, %s197
      %p199 = scmp.eq.s32.totalorder %s47, 0
      %p200 = por %p198, %p199
      %s202 = sadd.s32 %s201, 1
      %p205 = scmp.eq.s32.totalorder %s41, 5
      %p206 = scmp.ne.s32.totalorder %s201, %s203
      %p207 = scmp.eq.s32.totalorder %s41, 0
      %p208 = por %p206, %p207
      %p209 = scmp.ne.s32.totalorder %s201, %s203
      %p210 = scmp.eq.s32.totalorder %s46, 5
      %p211 = por %p209, %p210
      %p212 = scmp.ne.s32.totalorder %s203, %s204
      %p213 = scmp.eq.s32.totalorder %s46, 0
      %p214 = por %p212, %p213
      %p215 = scmp.ne.s32.totalorder %s203, %s204
      %p216 = scmp.eq.s32.totalorder %s47, 5
      %p217 = por %p215, %p216
      %p219 = scmp.ne.s32.totalorder %s204, %s218
      %p220 = scmp.eq.s32.totalorder %s47, 0
      %p221 = por %p219, %p220
      %s223 = sadd.s32 %s222, 1
      %p226 = scmp.eq.s32.totalorder %s41, 5
      %p227 = scmp.ne.s32.totalorder %s222, %s224
      %p228 = scmp.eq.s32.totalorder %s41, 0
      %p229 = por %p227, %p228
      %p230 = scmp.ne.s32.totalorder %s222, %s224
      %p231 = scmp.eq.s32.totalorder %s46, 5
      %p232 = por %p230, %p231
      %p233 = scmp.ne.s32.totalorder %s224, %s225
      %p234 = scmp.eq.s32.totalorder %s46, 0
      %p235 = por %p233, %p234
      %p236 = scmp.ne.s32.totalorder %s224, %s225
      %p237 = scmp.eq.s32.totalorder %s47, 5
      %p238 = por %p236, %p237
      %p240 = scmp.ne.s32.totalorder %s225, %s239
      %p241 = scmp.eq.s32.totalorder %s47, 0
      %p242 = por %p240, %p241
      %s244 = sadd.s32 %s243, 1
      %p247 = scmp.eq.s32.totalorder %s41, 5
      %p248 = scmp.ne.s32.totalorder %s243, %s245
      %p249 = scmp.eq.s32.totalorder %s41, 0
      %p250 = por %p248, %p249
      %p251 = scmp.ne.s32.totalorder %s243, %s245
      %p252 = scmp.eq.s32.totalorder %s46, 5
      %p253 = por %p251, %p252
      %p254 = scmp.ne.s32.totalorder %s245, %s246
      %p255 = scmp.eq.s32.totalorder %s46, 0
      %p256 = por %p254, %p255
      %p257 = scmp.ne.s32.totalorder %s245, %s246
      %p258 = scmp.eq.s32.totalorder %s47, 5
      %p259 = por %p257, %p258
      %p261 = scmp.ne.s32.totalorder %s246, %s260
      %p262 = scmp.eq.s32.totalorder %s47, 0
      %p263 = por %p261, %p262
      %s265 = sadd.s32 %s264, 1
      %p268 = scmp.eq.s32.totalorder %s41, 5
      %p269 = scmp.ne.s32.totalorder %s264, %s266
      %p270 = scmp.eq.s32.totalorder %s41, 0
      %p271 = por %p269, %p270
      %p272 = scmp.ne.s32.totalorder %s264, %s266
      %p273 = scmp.eq.s32.totalorder %s46, 5
      %p274 = por %p272, %p273
      %p275 = scmp.ne.s32.totalorder %s266, %s267
      %p276 = scmp.eq.s32.totalorder %s46, 0
      %p277 = por %p275, %p276
      %p278 = scmp.ne.s32.totalorder %s266, %s267
      %p279 = scmp.eq.s32.totalorder %s47, 5
      %p280 = por %p278, %p279
      %p282 = scmp.ne.s32.totalorder %s267, %s281
      %p283 = scmp.eq.s32.totalorder %s47, 0
      %p284 = por %p282, %p283
      %s286 = sadd.s32 %s285, 1
      %p289 = scmp.eq.s32.totalorder %s41, 5
      %p290 = scmp.ne.s32.totalorder %s285, %s287
      %p291 = scmp.eq.s32.totalorder %s41, 0
      %p292 = por %p290, %p291
      %p293 = scmp.ne.s32.totalorder %s285, %s287
      %p294 = scmp.eq.s32.totalorder %s46, 5
      %p295 = por %p293, %p294
      %p296 = scmp.ne.s32.totalorder %s287, %s288
      %p297 = scmp.eq.s32.totalorder %s46, 0
      %p298 = por %p296, %p297
      %p299 = scmp.ne.s32.totalorder %s287, %s288
      %p300 = scmp.eq.s32.totalorder %s47, 5
      %p301 = por %p299, %p300
      %p303 = scmp.ne.s32.totalorder %s288, %s302
      %p304 = scmp.eq.s32.totalorder %s47, 0
      %p305 = por %p303, %p304
      %s307 = sadd.s32 %s306, 1
      %p310 = scmp.eq.s32.totalorder %s41, 5
      %p311 = scmp.ne.s32.totalorder %s306, %s308
      %p312 = scmp.eq.s32.totalorder %s41, 0
      %p313 = por %p311, %p312
      %p314 = scmp.ne.s32.totalorder %s306, %s308
      %p315 = scmp.eq.s32.totalorder %s46, 5
      %p316 = por %p314, %p315
      %p317 = scmp.ne.s32.totalorder %s308, %s309
      %p318 = scmp.eq.s32.totalorder %s46, 0
      %p319 = por %p317, %p318
      %p320 = scmp.ne.s32.totalorder %s308, %s309
      %p321 = scmp.eq.s32.totalorder %s47, 5
      %p322 = por %p320, %p321
      %p324 = scmp.ne.s32.totalorder %s309, %s323
      %p325 = scmp.eq.s32.totalorder %s47, 0
      %p326 = por %p324, %p325
      %s328 = sadd.s32 %s327, 1
      %p331 = scmp.eq.s32.totalorder %s41, 5
      %p332 = scmp.ne.s32.totalorder %s327, %s329
      %p333 = scmp.eq.s32.totalorder %s41, 0
      %p334 = por %p332, %p333
      %p335 = scmp.ne.s32.totalorder %s327, %s329
      %p336 = scmp.eq.s32.totalorder %s46, 5
      %p337 = por %p335, %p336
      %p338 = scmp.ne.s32.totalorder %s329, %s330
      %p339 = scmp.eq.s32.totalorder %s46, 0
      %p340 = por %p338, %p339
      %p341 = scmp.ne.s32.totalorder %s329, %s330
      %p342 = scmp.eq.s32.totalorder %s47, 5
      %p343 = por %p341, %p342
      %p345 = scmp.ne.s32.totalorder %s330, %s344
      %p346 = scmp.eq.s32.totalorder %s47, 0
      %p347 = por %p345, %p346
      %s349 = sadd.s32 %s348, 1
      %p352 = scmp.eq.s32.totalorder %s41, 5
      %p353 = scmp.ne.s32.totalorder %s348, %s350
      %p354 = scmp.eq.s32.totalorder %s41, 0
      %p355 = por %p353, %p354
      %p356 = scmp.ne.s32.totalorder %s348, %s350
      %p357 = scmp.eq.s32.totalorder %s46, 5
      %p358 = por %p356, %p357
      %p359 = scmp.ne.s32.totalorder %s350, %s351
      %p360 = scmp.eq.s32.totalorder %s46, 0
      %p361 = por %p359, %p360
      %p362 = scmp.ne.s32.totalorder %s350, %s351
      %p363 = scmp.eq.s32.totalorder %s47, 5
      %p364 = por %p362, %p363
      %p366 = scmp.ne.s32.totalorder %s351, %s365
      %p367 = scmp.eq.s32.totalorder %s47, 0
      %p368 = por %p366, %p367
      %s370 = sadd.s32 %s369, 1
      %p373 = scmp.eq.s32.totalorder %s41, 5
      %p374 = scmp.ne.s32.totalorder %s369, %s371
      %p375 = scmp.eq.s32.totalorder %s41, 0
      %p376 = por %p374, %p375
      %p377 = scmp.ne.s32.totalorder %s369, %s371
      %p378 = scmp.eq.s32.totalorder %s46, 5
      %p379 = por %p377, %p378
      %p380 = scmp.ne.s32.totalorder %s371, %s372
      %p381 = scmp.eq.s32.totalorder %s46, 0
      %p382 = por %p380, %p381
      %p383 = scmp.ne.s32.totalorder %s371, %s372
      %p384 = scmp.eq.s32.totalorder %s47, 5
      %p385 = por %p383, %p384
      %p387 = scmp.ne.s32.totalorder %s372, %s386
      %p388 = scmp.eq.s32.totalorder %s47, 0
      %p389 = por %p387, %p388
      %s391 = sadd.s32 %s390, 1
      %p394 = scmp.eq.s32.totalorder %s41, 5
      %p395 = scmp.ne.s32.totalorder %s390, %s392
      %p396 = scmp.eq.s32.totalorder %s41, 0
      %p397 = por %p395, %p396
      %p398 = scmp.ne.s32.totalorder %s390, %s392
      %p399 = scmp.eq.s32.totalorder %s46, 5
      %p400 = por %p398, %p399
      %p401 = scmp.ne.s32.totalorder %s392, %s393
      %p402 = scmp.eq.s32.totalorder %s46, 0
      %p403 = por %p401, %p402
      %p404 = scmp.ne.s32.totalorder %s392, %s393
      %p405 = scmp.eq.s32.totalorder %s47, 5
      %p406 = por %p404, %p405
      %p408 = scmp.ne.s32.totalorder %s393, %s407
      %p409 = scmp.eq.s32.totalorder %s47, 0
      %p410 = por %p408, %p409
      %s412 = sadd.s32 %s411, 1
      %p415 = scmp.eq.s32.totalorder %s41, 5
      %p416 = scmp.ne.s32.totalorder %s411, %s413
      %p417 = scmp.eq.s32.totalorder %s41, 0
      %p418 = por %p416, %p417
      %p419 = scmp.ne.s32.totalorder %s411, %s413
      %p420 = scmp.eq.s32.totalorder %s46, 5
      %p421 = por %p419, %p420
      %p422 = scmp.ne.s32.totalorder %s413, %s414
      %p423 = scmp.eq.s32.totalorder %s46, 0
      %p424 = por %p422, %p423
      %p425 = scmp.ne.s32.totalorder %s413, %s414
      %p426 = scmp.eq.s32.totalorder %s47, 5
      %p427 = por %p425, %p426
      %p429 = scmp.ne.s32.totalorder %s414, %s428
      %p430 = scmp.eq.s32.totalorder %s47, 0
      %p431 = por %p429, %p430
      %s433 = sadd.s32 %s432, 1
      %p436 = scmp.eq.s32.totalorder %s41, 5
      %p437 = scmp.ne.s32.totalorder %s432, %s434
      %p438 = scmp.eq.s32.totalorder %s41, 0
      %p439 = por %p437, %p438
      %p440 = scmp.ne.s32.totalorder %s432, %s434
      %p441 = scmp.eq.s32.totalorder %s46, 5
      %p442 = por %p440, %p441
      %p443 = scmp.ne.s32.totalorder %s434, %s435
      %p444 = scmp.eq.s32.totalorder %s46, 0
      %p445 = por %p443, %p444
      %p446 = scmp.ne.s32.totalorder %s434, %s435
      %p447 = scmp.eq.s32.totalorder %s47, 5
      %p448 = por %p446, %p447
      %p450 = scmp.ne.s32.totalorder %s435, %s449
      %p451 = scmp.eq.s32.totalorder %s47, 0
      %p452 = por %p450, %p451
      %s454 = sadd.s32 %s453, 1
      %p457 = scmp.eq.s32.totalorder %s41, 5
      %p458 = scmp.ne.s32.totalorder %s453, %s455
      %p459 = scmp.eq.s32.totalorder %s41, 0
      %p460 = por %p458, %p459
      %p461 = scmp.ne.s32.totalorder %s453, %s455
      %p462 = scmp.eq.s32.totalorder %s46, 5
      %p463 = por %p461, %p462
      %p464 = scmp.ne.s32.totalorder %s455, %s456
      %p465 = scmp.eq.s32.totalorder %s46, 0
      %p466 = por %p464, %p465
      %p467 = scmp.ne.s32.totalorder %s455, %s456
      %p468 = scmp.eq.s32.totalorder %s47, 5
      %p469 = por %p467, %p468
      %p471 = scmp.ne.s32.totalorder %s456, %s470
      %p472 = scmp.eq.s32.totalorder %s47, 0
      %p473 = por %p471, %p472
      %s475 = sadd.s32 %s474, 1
      %p478 = scmp.eq.s32.totalorder %s41, 5
      %p479 = scmp.ne.s32.totalorder %s474, %s476
      %p480 = scmp.eq.s32.totalorder %s41, 0
      %p481 = por %p479, %p480
      %p482 = scmp.ne.s32.totalorder %s474, %s476
      %p483 = scmp.eq.s32.totalorder %s46, 5
      %p484 = por %p482, %p483
      %p485 = scmp.ne.s32.totalorder %s476, %s477
      %p486 = scmp.eq.s32.totalorder %s46, 0
      %p487 = por %p485, %p486
      %p488 = scmp.ne.s32.totalorder %s476, %s477
      %p489 = scmp.eq.s32.totalorder %s47, 5
      %p490 = por %p488, %p489
      %p492 = scmp.ne.s32.totalorder %s477, %s491
      %p493 = scmp.eq.s32.totalorder %s47, 0
      %p494 = por %p492, %p493
      %s495 = ssub.s32 %s48, %s60
      %s496 = ssub.s32 %s49, %s56
      %s497 = sor.u32 %s495, %s496
      %p498 = scmp.eq.s32.totalorder %s497, 0
      %s500 = sadd.s32 %s499, 1
      %s501 = scalar_select %p498, %s499, %s500
      %p504 = pneg %p498
      %p505 = scmp.eq.s32.totalorder %s41, 5
      %p506 = por %p504, %p505
      %p507 = scmp.ne.s32.totalorder %s499, %s502
      %p508 = scmp.eq.s32.totalorder %s41, 0
      %p509 = por %p507, %p508
      %p510 = scmp.ne.s32.totalorder %s499, %s502
      %p511 = scmp.eq.s32.totalorder %s46, 5
      %p512 = por %p510, %p511
      %p513 = scmp.ne.s32.totalorder %s502, %s503
      %p514 = scmp.eq.s32.totalorder %s46, 0
      %p515 = por %p513, %p514
      %p516 = scmp.ne.s32.totalorder %s502, %s503
      %p517 = scmp.eq.s32.totalorder %s47, 5
      %p518 = por %p516, %p517
      %p520 = scmp.ne.s32.totalorder %s503, %s519
      %p521 = scmp.eq.s32.totalorder %s47, 0
      %p522 = por %p520, %p521
      %p523 = scmp.le.s32.totalorder 1, %s41
      %p524 = scmp.lt.s32.totalorder %s41, 7
      %p525 = pnand %p523, %p524
      %p526 = pneg %p525
      // Predicated region
      $region9: #{mix_reconstruction_loss.1} parent=5 // pred_check
        _
      $region10: #{mix_reconstruction_loss.1} parent=5 // pred_check_branch
        %528 = sbr.rel (%p525) target = $region12
      $region11: #{mix_reconstruction_loss.1} parent=5 // pred_region
        %s529 = ssub.s32 %s41, 1
        // Predicated region
        $region13: #{mix_reconstruction_loss.1} parent=11 // pred_check
          %p530 = pneg %p130
        $region14: #{mix_reconstruction_loss.1} parent=11 // pred_check_branch
          %532 = sbr.rel (%p530) target = $region16
        $region15: #{mix_reconstruction_loss.1} parent=11 // pred_region
          %s534 = ssub.s32 6144, 6144
          %535 = vsyncadd [#allocation5], %s534
          %s536 = sshll.u32 [#allocation6], 4
          %s537 = int_to_ptr.vmem [resolvable:$true] %s536
          %542 = dma.hbm_to_vmem [thread:$0]  %s2, 6144, %s537, [#allocation5], 256, 256, 16
        $region16: #{mix_reconstruction_loss.1} parent=11 // pred_fallthru
          _
        // Predicated region
        $region17: #{mix_reconstruction_loss.1} parent=11 // pred_check
          %p543 = pneg %p151
        $region18: #{mix_reconstruction_loss.1} parent=11 // pred_check_branch
          %545 = sbr.rel (%p543) target = $region20
        $region19: #{mix_reconstruction_loss.1} parent=11 // pred_region
          %s547 = ssub.s32 1536, 1536
          %548 = vsyncadd [#allocation8], %s547
          %s549 = sshll.u32 [#allocation7], 4
          %s550 = int_to_ptr.vmem [resolvable:$true] %s549
          %555 = dma.hbm_to_vmem [thread:$0]  %s3, 1536, %s550, [#allocation8], 128, 128, 8
        $region20: #{mix_reconstruction_loss.1} parent=11 // pred_fallthru
          _
        // Predicated region
        $region21: #{mix_reconstruction_loss.1} parent=11 // pred_check
          %p556 = pneg %p172
        $region22: #{mix_reconstruction_loss.1} parent=11 // pred_check_branch
          %558 = sbr.rel (%p556) target = $region24
        $region23: #{mix_reconstruction_loss.1} parent=11 // pred_region
          %s560 = ssub.s32 768, 768
          %561 = vsyncadd [#allocation8], %s560
          %s562 = sshll.u32 [#allocation9], 4
          %s563 = int_to_ptr.vmem [resolvable:$true] %s562
          %568 = dma.hbm_to_vmem [thread:$0]  %s4, 768, %s563, [#allocation8], 128, 128, 8
        $region24: #{mix_reconstruction_loss.1} parent=11 // pred_fallthru
          _
        // Predicated region
        $region25: #{mix_reconstruction_loss.1} parent=11 // pred_check
          %p569 = pneg %p193
        $region26: #{mix_reconstruction_loss.1} parent=11 // pred_check_branch
          %571 = sbr.rel (%p569) target = $region28
        $region27: #{mix_reconstruction_loss.1} parent=11 // pred_region
          %s573 = ssub.s32 384, 384
          %574 = vsyncadd [#allocation11], %s573
          %s575 = sshll.u32 [#allocation10], 4
          %s576 = int_to_ptr.vmem [resolvable:$true] %s575
          %581 = dma.hbm_to_vmem [thread:$0]  %s5, 384, %s576, [#allocation11], 128, 128, 8
        $region28: #{mix_reconstruction_loss.1} parent=11 // pred_fallthru
          _
        // Predicated region
        $region29: #{mix_reconstruction_loss.1} parent=11 // pred_check
          %p582 = pneg %p214
        $region30: #{mix_reconstruction_loss.1} parent=11 // pred_check_branch
          %584 = sbr.rel (%p582) target = $region32
        $region31: #{mix_reconstruction_loss.1} parent=11 // pred_region
          %s586 = ssub.s32 256, 256
          %587 = vsyncadd [#allocation11], %s586
          %s588 = sshll.u32 [#allocation12], 4
          %s589 = int_to_ptr.vmem [resolvable:$true] %s588
          %594 = dma.hbm_to_vmem [thread:$0]  %s6, 256, %s589, [#allocation11], 128, 128, 8
        $region32: #{mix_reconstruction_loss.1} parent=11 // pred_fallthru
          _
        // Predicated region
        $region33: #{mix_reconstruction_loss.1} parent=11 // pred_check
          %p595 = pneg %p235
        $region34: #{mix_reconstruction_loss.1} parent=11 // pred_check_branch
          %597 = sbr.rel (%p595) target = $region36
        $region35: #{mix_reconstruction_loss.1} parent=11 // pred_region
          %s599 = ssub.s32 5888, 5888
          %600 = vsyncadd [#allocation14], %s599
          %s601 = sshll.u32 [#allocation13], 4
          %s602 = int_to_ptr.vmem [resolvable:$true] %s601
          %607 = dma.hbm_to_vmem [thread:$0]  %s7, 5888, %s602, [#allocation14], 256, 256, 16
        $region36: #{mix_reconstruction_loss.1} parent=11 // pred_fallthru
          _
        // Predicated region
        $region37: #{mix_reconstruction_loss.1} parent=11 // pred_check
          %p608 = pneg %p256
        $region38: #{mix_reconstruction_loss.1} parent=11 // pred_check_branch
          %610 = sbr.rel (%p608) target = $region40
        $region39: #{mix_reconstruction_loss.1} parent=11 // pred_region
          %s612 = ssub.s32 1408, 1408
          %613 = vsyncadd [#allocation14], %s612
          %s614 = sshll.u32 [#allocation15], 4
          %s615 = int_to_ptr.vmem [resolvable:$true] %s614
          %620 = dma.hbm_to_vmem [thread:$0]  %s8, 1408, %s615, [#allocation14], 128, 128, 8
        $region40: #{mix_reconstruction_loss.1} parent=11 // pred_fallthru
          _
        // Predicated region
        $region41: #{mix_reconstruction_loss.1} parent=11 // pred_check
          %p621 = pneg %p277
        $region42: #{mix_reconstruction_loss.1} parent=11 // pred_check_branch
          %623 = sbr.rel (%p621) target = $region44
        $region43: #{mix_reconstruction_loss.1} parent=11 // pred_region
          %s625 = ssub.s32 640, 640
          %626 = vsyncadd [#allocation17], %s625
          %s627 = sshll.u32 [#allocation16], 4
          %s628 = int_to_ptr.vmem [resolvable:$true] %s627
          %633 = dma.hbm_to_vmem [thread:$0]  %s9, 640, %s628, [#allocation17], 128, 128, 8
        $region44: #{mix_reconstruction_loss.1} parent=11 // pred_fallthru
          _
        // Predicated region
        $region45: #{mix_reconstruction_loss.1} parent=11 // pred_check
          %p634 = pneg %p298
        $region46: #{mix_reconstruction_loss.1} parent=11 // pred_check_branch
          %636 = sbr.rel (%p634) target = $region48
        $region47: #{mix_reconstruction_loss.1} parent=11 // pred_region
          %s638 = ssub.s32 256, 256
          %639 = vsyncadd [#allocation17], %s638
          %s640 = sshll.u32 [#allocation18], 4
          %s641 = int_to_ptr.vmem [resolvable:$true] %s640
          %646 = dma.hbm_to_vmem [thread:$0]  %s10, 256, %s641, [#allocation17], 128, 128, 8
        $region48: #{mix_reconstruction_loss.1} parent=11 // pred_fallthru
          _
        // Predicated region
        $region49: #{mix_reconstruction_loss.1} parent=11 // pred_check
          %p647 = pneg %p319
        $region50: #{mix_reconstruction_loss.1} parent=11 // pred_check_branch
          %649 = sbr.rel (%p647) target = $region52
        $region51: #{mix_reconstruction_loss.1} parent=11 // pred_region
          %s651 = ssub.s32 32, 32
          %652 = vsyncadd [#allocation20], %s651
          %s654 = sshll.u32 [#allocation19], 4
          %s655 = int_to_ptr.vmem [resolvable:$true] %s654
          %657 = dma.hbm_to_vmem [thread:$0]  %s11, 32, %s655, [#allocation20]
        $region52: #{mix_reconstruction_loss.1} parent=11 // pred_fallthru
          _
        // Predicated region
        $region53: #{mix_reconstruction_loss.1} parent=11 // pred_check
          %p658 = pneg %p340
        $region54: #{mix_reconstruction_loss.1} parent=11 // pred_check_branch
          %660 = sbr.rel (%p658) target = $region56
        $region55: #{mix_reconstruction_loss.1} parent=11 // pred_region
          %s662 = ssub.s32 3072, 3072
          %663 = vsyncadd [#allocation20], %s662
          %s664 = sshll.u32 [#allocation21], 4
          %s665 = int_to_ptr.vmem [resolvable:$true] %s664
          %670 = dma.hbm_to_vmem [thread:$0]  %s12, 3072, %s665, [#allocation20], 128, 128, 8
        $region56: #{mix_reconstruction_loss.1} parent=11 // pred_fallthru
          _
        // Predicated region
        $region57: #{mix_reconstruction_loss.1} parent=11 // pred_check
          %p671 = pneg %p361
        $region58: #{mix_reconstruction_loss.1} parent=11 // pred_check_branch
          %673 = sbr.rel (%p671) target = $region60
        $region59: #{mix_reconstruction_loss.1} parent=11 // pred_region
          %s675 = ssub.s32 1536, 1536
          %676 = vsyncadd [#allocation23], %s675
          %s677 = sshll.u32 [#allocation22], 4
          %s678 = int_to_ptr.vmem [resolvable:$true] %s677
          %683 = dma.hbm_to_vmem [thread:$0]  %s13, 1536, %s678, [#allocation23], 128, 128, 8
        $region60: #{mix_reconstruction_loss.1} parent=11 // pred_fallthru
          _
        // Predicated region
        $region61: #{mix_reconstruction_loss.1} parent=11 // pred_check
          %p684 = pneg %p382
        $region62: #{mix_reconstruction_loss.1} parent=11 // pred_check_branch
          %686 = sbr.rel (%p684) target = $region64
        $region63: #{mix_reconstruction_loss.1} parent=11 // pred_region
          %s688 = ssub.s32 768, 768
          %689 = vsyncadd [#allocation23], %s688
          %s690 = sshll.u32 [#allocation24], 4
          %s691 = int_to_ptr.vmem [resolvable:$true] %s690
          %696 = dma.hbm_to_vmem [thread:$0]  %s14, 768, %s691, [#allocation23], 128, 128, 8
        $region64: #{mix_reconstruction_loss.1} parent=11 // pred_fallthru
          _
        // Predicated region
        $region65: #{mix_reconstruction_loss.1} parent=11 // pred_check
          %p697 = pneg %p403
        $region66: #{mix_reconstruction_loss.1} parent=11 // pred_check_branch
          %699 = sbr.rel (%p697) target = $region68
        $region67: #{mix_reconstruction_loss.1} parent=11 // pred_region
          %s701 = ssub.s32 384, 384
          %702 = vsyncadd [#allocation26], %s701
          %s703 = sshll.u32 [#allocation25], 4
          %s704 = int_to_ptr.vmem [resolvable:$true] %s703
          %709 = dma.hbm_to_vmem [thread:$0]  %s15, 384, %s704, [#allocation26], 128, 128, 8
        $region68: #{mix_reconstruction_loss.1} parent=11 // pred_fallthru
          _
        // Predicated region
        $region69: #{mix_reconstruction_loss.1} parent=11 // pred_check
          %p710 = pneg %p424
        $region70: #{mix_reconstruction_loss.1} parent=11 // pred_check_branch
          %712 = sbr.rel (%p710) target = $region72
        $region71: #{mix_reconstruction_loss.1} parent=11 // pred_region
          %s714 = ssub.s32 3072, 3072
          %715 = vsyncadd [#allocation26], %s714
          %s716 = sshll.u32 [#allocation27], 4
          %s717 = int_to_ptr.vmem [resolvable:$true] %s716
          %722 = dma.hbm_to_vmem [thread:$0]  %s16, 3072, %s717, [#allocation26], 256, 256, 16
        $region72: #{mix_reconstruction_loss.1} parent=11 // pred_fallthru
          _
        // Predicated region
        $region73: #{mix_reconstruction_loss.1} parent=11 // pred_check
          %p723 = pneg %p445
        $region74: #{mix_reconstruction_loss.1} parent=11 // pred_check_branch
          %725 = sbr.rel (%p723) target = $region76
        $region75: #{mix_reconstruction_loss.1} parent=11 // pred_region
          %s727 = ssub.s32 768, 768
          %728 = vsyncadd [#allocation29], %s727
          %s729 = sshll.u32 [#allocation28], 4
          %s730 = int_to_ptr.vmem [resolvable:$true] %s729
          %735 = dma.hbm_to_vmem [thread:$0]  %s17, 768, %s730, [#allocation29], 128, 128, 8
        $region76: #{mix_reconstruction_loss.1} parent=11 // pred_fallthru
          _
        // Predicated region
        $region77: #{mix_reconstruction_loss.1} parent=11 // pred_check
          %p736 = pneg %p466
        $region78: #{mix_reconstruction_loss.1} parent=11 // pred_check_branch
          %738 = sbr.rel (%p736) target = $region80
        $region79: #{mix_reconstruction_loss.1} parent=11 // pred_region
          %s740 = ssub.s32 384, 384
          %741 = vsyncadd [#allocation29], %s740
          %s742 = sshll.u32 [#allocation30], 4
          %s743 = int_to_ptr.vmem [resolvable:$true] %s742
          %748 = dma.hbm_to_vmem [thread:$0]  %s18, 384, %s743, [#allocation29], 128, 128, 8
        $region80: #{mix_reconstruction_loss.1} parent=11 // pred_fallthru
          _
        // Predicated region
        $region81: #{mix_reconstruction_loss.1} parent=11 // pred_check
          %p749 = pneg %p487
        $region82: #{mix_reconstruction_loss.1} parent=11 // pred_check_branch
          %751 = sbr.rel (%p749) target = $region84
        $region83: #{mix_reconstruction_loss.1} parent=11 // pred_region
          %s753 = ssub.s32 256, 256
          %754 = vsyncadd [#allocation32], %s753
          %s755 = sshll.u32 [#allocation31], 4
          %s756 = int_to_ptr.vmem [resolvable:$true] %s755
          %761 = dma.hbm_to_vmem [thread:$0]  %s19, 256, %s756, [#allocation32], 128, 128, 8
        $region84: #{mix_reconstruction_loss.1} parent=11 // pred_fallthru
          _
      $region12: #{mix_reconstruction_loss.1} parent=5 // pred_fallthru
        _
      %p762 = scmp.lt.s32.totalorder %s41, 6
      // Predicated region
      $region85: #{mix_reconstruction_loss.1} parent=5 // pred_check
        %p763 = pneg %p762
      $region86: #{mix_reconstruction_loss.1} parent=5 // pred_check_branch
        %765 = sbr.rel (%p763) target = $region88
      $region87: #{mix_reconstruction_loss.1} parent=5 // pred_region
        // Predicated region
        $region89: #{mix_reconstruction_loss.1} parent=87 // pred_check
          %p766 = pneg %p75
        $region90: #{mix_reconstruction_loss.1} parent=87 // pred_check_branch
          %768 = sbr.rel (%p766) target = $region92
        $region91: #{mix_reconstruction_loss.1} parent=87 // pred_region
          %s769 = sand.u32 %s65, 1
          %s770 = scalar_lea.sflag [#allocation3], %s769
          %s771 = sand.u32 %s65, 1
          %s772 = smul.addr %s771, 384
          %s773 = scalar_lea.vmem [#allocation2], %s772
          %s775 = ssub.s32 6144, 6144
          %776 = vsyncadd %s770, %s775
          %s777 = smul.addr %s49, 48
          %s778 = smul.addr %s48, 144
          %s779 = sadd.s32 %s777, %s778
          %s780 = smul.addr %s779, 128
          %s781 = scalar_lea.hbm %s0, %s780
          %s782 = sshll.u32 %s773, 4
          %s783 = int_to_ptr.vmem [resolvable:$true] %s782
          %788 = dma.hbm_to_vmem [thread:$0]  %s781, 6144, %s783, %s770, 256, 256, 16
        $region92: #{mix_reconstruction_loss.1} parent=87 // pred_fallthru
          _
        // Predicated region
        $region93: #{mix_reconstruction_loss.1} parent=87 // pred_check
          %p789 = pneg %p103
        $region94: #{mix_reconstruction_loss.1} parent=87 // pred_check_branch
          %791 = sbr.rel (%p789) target = $region96
        $region95: #{mix_reconstruction_loss.1} parent=87 // pred_region
          %s792 = sand.u32 %s41, 1
          %s793 = scalar_lea.sflag [#allocation5], %s792
          %s794 = sand.u32 %s93, 1
          %s795 = smul.addr %s794, 384
          %s796 = scalar_lea.vmem [#allocation4], %s795
          %s798 = ssub.s32 6144, 6144
          %799 = vsyncadd %s793, %s798
          %s800 = smul.addr %s49, 48
          %s801 = smul.addr %s48, 144
          %s802 = sadd.s32 %s800, %s801
          %s803 = smul.addr %s802, 128
          %s804 = scalar_lea.hbm %s1, %s803
          %s805 = sshll.u32 %s796, 4
          %s806 = int_to_ptr.vmem [resolvable:$true] %s805
          %811 = dma.hbm_to_vmem [thread:$0]  %s804, 6144, %s806, %s793, 256, 256, 16
        $region96: #{mix_reconstruction_loss.1} parent=87 // pred_fallthru
          _
      $region88: #{mix_reconstruction_loss.1} parent=5 // pred_fallthru
        _
      %p812 = scmp.le.s32.totalorder 1, %s41
      %p813 = scmp.lt.s32.totalorder %s41, 7
      %p814 = pnand %p812, %p813
      %p815 = pneg %p814
      // Predicated region
      $region97: #{mix_reconstruction_loss.1} parent=5 // pred_check
        _
      $region98: #{mix_reconstruction_loss.1} parent=5 // pred_check_branch
        %817 = sbr.rel (%p814) target = $region100
      $region99: #{mix_reconstruction_loss.1} parent=5 // pred_region
        %s818 = ssub.s32 %s41, 1
        %s819 = sand.u32 %s68, 1
        %s820 = scalar_lea.sflag [#allocation3], %s819
        %s821 = sand.u32 %s68, 1
        %s822 = smul.addr %s821, 384
        %s823 = scalar_lea.vmem [#allocation2], %s822
        // Predicated region
        $region101: #{mix_reconstruction_loss.1} parent=99 // pred_check
          %p824 = pneg %p81
        $region102: #{mix_reconstruction_loss.1} parent=99 // pred_check_branch
          %826 = sbr.rel (%p824) target = $region104
        $region103: #{mix_reconstruction_loss.1} parent=99 // pred_region
          %827 = dma.done %s820, 6144
        $region104: #{mix_reconstruction_loss.1} parent=99 // pred_fallthru
          _
        %s828 = sand.u32 %s46, 1
        %s829 = scalar_lea.sflag [#allocation5], %s828
        %s830 = sand.u32 %s96, 1
        %s831 = smul.addr %s830, 384
        %s832 = scalar_lea.vmem [#allocation4], %s831
        // Predicated region
        $region105: #{mix_reconstruction_loss.1} parent=99 // pred_check
          %p833 = pneg %p109
        $region106: #{mix_reconstruction_loss.1} parent=99 // pred_check_branch
          %835 = sbr.rel (%p833) target = $region108
        $region107: #{mix_reconstruction_loss.1} parent=99 // pred_region
          %836 = dma.done %s829, 6144
        $region108: #{mix_reconstruction_loss.1} parent=99 // pred_fallthru
          _
        // Predicated region
        $region109: #{mix_reconstruction_loss.1} parent=99 // pred_check
          %p837 = pneg %p130
        $region110: #{mix_reconstruction_loss.1} parent=99 // pred_check_branch
          %839 = sbr.rel (%p837) target = $region112
        $region111: #{mix_reconstruction_loss.1} parent=99 // pred_region
          %840 = dma.done [#allocation5], 6144
        $region112: #{mix_reconstruction_loss.1} parent=99 // pred_fallthru
          _
        // Predicated region
        $region113: #{mix_reconstruction_loss.1} parent=99 // pred_check
          %p841 = pneg %p151
        $region114: #{mix_reconstruction_loss.1} parent=99 // pred_check_branch
          %843 = sbr.rel (%p841) target = $region116
        $region115: #{mix_reconstruction_loss.1} parent=99 // pred_region
          %844 = dma.done [#allocation8], 1536
        $region116: #{mix_reconstruction_loss.1} parent=99 // pred_fallthru
          _
        // Predicated region
        $region117: #{mix_reconstruction_loss.1} parent=99 // pred_check
          %p845 = pneg %p172
        $region118: #{mix_reconstruction_loss.1} parent=99 // pred_check_branch
          %847 = sbr.rel (%p845) target = $region120
        $region119: #{mix_reconstruction_loss.1} parent=99 // pred_region
          %848 = dma.done [#allocation8], 768
        $region120: #{mix_reconstruction_loss.1} parent=99 // pred_fallthru
          _
        // Predicated region
        $region121: #{mix_reconstruction_loss.1} parent=99 // pred_check
          %p849 = pneg %p193
        $region122: #{mix_reconstruction_loss.1} parent=99 // pred_check_branch
          %851 = sbr.rel (%p849) target = $region124
        $region123: #{mix_reconstruction_loss.1} parent=99 // pred_region
          %852 = dma.done [#allocation11], 384
        $region124: #{mix_reconstruction_loss.1} parent=99 // pred_fallthru
          _
        // Predicated region
        $region125: #{mix_reconstruction_loss.1} parent=99 // pred_check
          %p853 = pneg %p214
        $region126: #{mix_reconstruction_loss.1} parent=99 // pred_check_branch
          %855 = sbr.rel (%p853) target = $region128
        $region127: #{mix_reconstruction_loss.1} parent=99 // pred_region
          %856 = dma.done [#allocation11], 256
        $region128: #{mix_reconstruction_loss.1} parent=99 // pred_fallthru
          _
        // Predicated region
        $region129: #{mix_reconstruction_loss.1} parent=99 // pred_check
          %p857 = pneg %p235
        $region130: #{mix_reconstruction_loss.1} parent=99 // pred_check_branch
          %859 = sbr.rel (%p857) target = $region132
        $region131: #{mix_reconstruction_loss.1} parent=99 // pred_region
          %860 = dma.done [#allocation14], 5888
        $region132: #{mix_reconstruction_loss.1} parent=99 // pred_fallthru
          _
        // Predicated region
        $region133: #{mix_reconstruction_loss.1} parent=99 // pred_check
          %p861 = pneg %p256
        $region134: #{mix_reconstruction_loss.1} parent=99 // pred_check_branch
          %863 = sbr.rel (%p861) target = $region136
        $region135: #{mix_reconstruction_loss.1} parent=99 // pred_region
          %864 = dma.done [#allocation14], 1408
        $region136: #{mix_reconstruction_loss.1} parent=99 // pred_fallthru
          _
        // Predicated region
        $region137: #{mix_reconstruction_loss.1} parent=99 // pred_check
          %p865 = pneg %p277
        $region138: #{mix_reconstruction_loss.1} parent=99 // pred_check_branch
          %867 = sbr.rel (%p865) target = $region140
        $region139: #{mix_reconstruction_loss.1} parent=99 // pred_region
          %868 = dma.done [#allocation17], 640
        $region140: #{mix_reconstruction_loss.1} parent=99 // pred_fallthru
          _
        // Predicated region
        $region141: #{mix_reconstruction_loss.1} parent=99 // pred_check
          %p869 = pneg %p298
        $region142: #{mix_reconstruction_loss.1} parent=99 // pred_check_branch
          %871 = sbr.rel (%p869) target = $region144
        $region143: #{mix_reconstruction_loss.1} parent=99 // pred_region
          %872 = dma.done [#allocation17], 256
        $region144: #{mix_reconstruction_loss.1} parent=99 // pred_fallthru
          _
        // Predicated region
        $region145: #{mix_reconstruction_loss.1} parent=99 // pred_check
          %p873 = pneg %p319
        $region146: #{mix_reconstruction_loss.1} parent=99 // pred_check_branch
          %875 = sbr.rel (%p873) target = $region148
        $region147: #{mix_reconstruction_loss.1} parent=99 // pred_region
          %876 = dma.done [#allocation20], 32
        $region148: #{mix_reconstruction_loss.1} parent=99 // pred_fallthru
          _
        // Predicated region
        $region149: #{mix_reconstruction_loss.1} parent=99 // pred_check
          %p877 = pneg %p340
        $region150: #{mix_reconstruction_loss.1} parent=99 // pred_check_branch
          %879 = sbr.rel (%p877) target = $region152
        $region151: #{mix_reconstruction_loss.1} parent=99 // pred_region
          %880 = dma.done [#allocation20], 3072
        $region152: #{mix_reconstruction_loss.1} parent=99 // pred_fallthru
          _
        // Predicated region
        $region153: #{mix_reconstruction_loss.1} parent=99 // pred_check
          %p881 = pneg %p361
        $region154: #{mix_reconstruction_loss.1} parent=99 // pred_check_branch
          %883 = sbr.rel (%p881) target = $region156
        $region155: #{mix_reconstruction_loss.1} parent=99 // pred_region
          %884 = dma.done [#allocation23], 1536
        $region156: #{mix_reconstruction_loss.1} parent=99 // pred_fallthru
          _
        // Predicated region
        $region157: #{mix_reconstruction_loss.1} parent=99 // pred_check
          %p885 = pneg %p382
        $region158: #{mix_reconstruction_loss.1} parent=99 // pred_check_branch
          %887 = sbr.rel (%p885) target = $region160
        $region159: #{mix_reconstruction_loss.1} parent=99 // pred_region
          %888 = dma.done [#allocation23], 768
        $region160: #{mix_reconstruction_loss.1} parent=99 // pred_fallthru
          _
        // Predicated region
        $region161: #{mix_reconstruction_loss.1} parent=99 // pred_check
          %p889 = pneg %p403
        $region162: #{mix_reconstruction_loss.1} parent=99 // pred_check_branch
          %891 = sbr.rel (%p889) target = $region164
        $region163: #{mix_reconstruction_loss.1} parent=99 // pred_region
          %892 = dma.done [#allocation26], 384
        $region164: #{mix_reconstruction_loss.1} parent=99 // pred_fallthru
          _
        // Predicated region
        $region165: #{mix_reconstruction_loss.1} parent=99 // pred_check
          %p893 = pneg %p424
        $region166: #{mix_reconstruction_loss.1} parent=99 // pred_check_branch
          %895 = sbr.rel (%p893) target = $region168
        $region167: #{mix_reconstruction_loss.1} parent=99 // pred_region
          %896 = dma.done [#allocation26], 3072
        $region168: #{mix_reconstruction_loss.1} parent=99 // pred_fallthru
          _
        // Predicated region
        $region169: #{mix_reconstruction_loss.1} parent=99 // pred_check
          %p897 = pneg %p445
        $region170: #{mix_reconstruction_loss.1} parent=99 // pred_check_branch
          %899 = sbr.rel (%p897) target = $region172
        $region171: #{mix_reconstruction_loss.1} parent=99 // pred_region
          %900 = dma.done [#allocation29], 768
        $region172: #{mix_reconstruction_loss.1} parent=99 // pred_fallthru
          _
        // Predicated region
        $region173: #{mix_reconstruction_loss.1} parent=99 // pred_check
          %p901 = pneg %p466
        $region174: #{mix_reconstruction_loss.1} parent=99 // pred_check_branch
          %903 = sbr.rel (%p901) target = $region176
        $region175: #{mix_reconstruction_loss.1} parent=99 // pred_region
          %904 = dma.done [#allocation29], 384
        $region176: #{mix_reconstruction_loss.1} parent=99 // pred_fallthru
          _
        // Predicated region
        $region177: #{mix_reconstruction_loss.1} parent=99 // pred_check
          %p905 = pneg %p487
        $region178: #{mix_reconstruction_loss.1} parent=99 // pred_check_branch
          %907 = sbr.rel (%p905) target = $region180
        $region179: #{mix_reconstruction_loss.1} parent=99 // pred_region
          %908 = dma.done [#allocation32], 256
        $region180: #{mix_reconstruction_loss.1} parent=99 // pred_fallthru
          _
        %s909 = sand.u32 %s68, 1
        %s910 = scalar_lea.sflag [#allocation3], %s909
        %s911 = sand.u32 %s68, 1
        %s912 = smul.addr %s911, 384
        %s913 = scalar_lea.vmem [#allocation2], %s912
        %p914 = pneg %p81
        %p915 = pneg %p78
        %s916 = sand.u32 %s46, 1
        %s917 = scalar_lea.sflag [#allocation5], %s916
        %s918 = sand.u32 %s96, 1
        %s919 = smul.addr %s918, 384
        %s920 = scalar_lea.vmem [#allocation4], %s919
        %p921 = pneg %p109
        %p922 = pneg %p106
        %p923 = pneg %p130
        %p924 = pneg %p127
        %p925 = pneg %p151
        %p926 = pneg %p148
        %p927 = pneg %p172
        %p928 = pneg %p169
        %p929 = pneg %p193
        %p930 = pneg %p190
        %p931 = pneg %p214
        %p932 = pneg %p211
        %p933 = pneg %p235
        %p934 = pneg %p232
        %p935 = pneg %p256
        %p936 = pneg %p253
        %p937 = pneg %p277
        %p938 = pneg %p274
        %p939 = pneg %p298
        %p940 = pneg %p295
        %p941 = pneg %p319
        %p942 = pneg %p316
        %p943 = pneg %p340
        %p944 = pneg %p337
        %p945 = pneg %p361
        %p946 = pneg %p358
        %p947 = pneg %p382
        %p948 = pneg %p379
        %p949 = pneg %p403
        %p950 = pneg %p400
        %p951 = pneg %p424
        %p952 = pneg %p421
        %p953 = pneg %p445
        %p954 = pneg %p442
        %p955 = pneg %p466
        %p956 = pneg %p463
        %p957 = pneg %p487
        %p958 = pneg %p484
        %p959 = pneg %p515
        %p960 = pneg %p512
        %p961 = scmp.lt.s32.totalorder %s50, 1
        %s962 = scalar_select %p961, %s50, 1
        %p963 = scmp.lt.s32.totalorder %s51, 2
        %s964 = scalar_select %p963, %s51, 2
        %s965 = smul.addr %s962, 3
        %s966 = sadd.s32 %s964, %s965
        %s967 = smul.addr %s966, 8
        %s968 = scalar_lea.vmem %s20, %s967
        %p969 = scmp.lt.s32.totalorder %s50, 1
        %s970 = scalar_select %p969, %s50, 1
        %p971 = scmp.lt.s32.totalorder %s51, 2
        %s972 = scalar_select %p971, %s51, 2
        %s973 = smul.addr %s970, 3
        %s974 = sadd.s32 %s972, %s973
        %s975 = smul.addr %s974, 8
        %s976 = scalar_lea.vmem %s20, %s975
        %v977 = vld [vmem:[%s823] sm:$0xff]
        %v978 = vld [vmem:[%s823 + $0x8] sm:$0xff]
        %v979 = vld [vmem:[%s823 + $0x10] sm:$0xff]
        %v980 = vld [vmem:[%s823 + $0x18] sm:$0xff]
        %v981 = vld [vmem:[%s823 + $0x20] sm:$0xff]
        %v982 = vld [vmem:[%s823 + $0x28] sm:$0xff]
        %v983 = vld [vmem:[%s823 + $0x30] sm:$0xff]
        %v984 = vld [vmem:[%s823 + $0x38] sm:$0xff]
        %v985 = vld [vmem:[%s823 + $0x40] sm:$0xff]
        %v986 = vld [vmem:[%s823 + $0x48] sm:$0xff]
        %v987 = vld [vmem:[%s823 + $0x50] sm:$0xff]
        %v988 = vld [vmem:[%s823 + $0x58] sm:$0xff]
        %v989 = vld [vmem:[%s823 + $0x60] sm:$0xff]
        %v990 = vld [vmem:[%s823 + $0x68] sm:$0xff]
        %v991 = vld [vmem:[%s823 + $0x70] sm:$0xff]
        %v992 = vld [vmem:[%s823 + $0x78] sm:$0xff]
        %v993 = vld [vmem:[%s823 + $0x80] sm:$0xff]
        %v994 = vld [vmem:[%s823 + $0x88] sm:$0xff]
        %v995 = vld [vmem:[%s823 + $0x90] sm:$0xff]
        %v996 = vld [vmem:[%s823 + $0x98] sm:$0xff]
        %v997 = vld [vmem:[%s823 + $0xa0] sm:$0xff]
        %v998 = vld [vmem:[%s823 + $0xa8] sm:$0xff]
        %v999 = vld [vmem:[%s823 + $0xb0] sm:$0xff]
        %v1000 = vld [vmem:[%s823 + $0xb8] sm:$0xff]
        %v1001 = vld [vmem:[%s823 + $0xc0] sm:$0xff]
        %v1002 = vld [vmem:[%s823 + $0xc8] sm:$0xff]
        %v1003 = vld [vmem:[%s823 + $0xd0] sm:$0xff]
        %v1004 = vld [vmem:[%s823 + $0xd8] sm:$0xff]
        %v1005 = vld [vmem:[%s823 + $0xe0] sm:$0xff]
        %v1006 = vld [vmem:[%s823 + $0xe8] sm:$0xff]
        %v1007 = vld [vmem:[%s823 + $0xf0] sm:$0xff]
        %v1008 = vld [vmem:[%s823 + $0xf8] sm:$0xff]
        %v1009 = vld [vmem:[%s823 + $0x100] sm:$0xff]
        %v1010 = vld [vmem:[%s823 + $0x108] sm:$0xff]
        %v1011 = vld [vmem:[%s823 + $0x110] sm:$0xff]
        %v1012 = vld [vmem:[%s823 + $0x118] sm:$0xff]
        %v1013 = vld [vmem:[%s823 + $0x120] sm:$0xff]
        %v1014 = vld [vmem:[%s823 + $0x128] sm:$0xff]
        %v1015 = vld [vmem:[%s823 + $0x130] sm:$0xff]
        %v1016 = vld [vmem:[%s823 + $0x138] sm:$0xff]
        %v1017 = vld [vmem:[%s823 + $0x140] sm:$0xff]
        %v1018 = vld [vmem:[%s823 + $0x148] sm:$0xff]
        %v1019 = vld [vmem:[%s823 + $0x150] sm:$0xff]
        %v1020 = vld [vmem:[%s823 + $0x158] sm:$0xff]
        %v1021 = vld [vmem:[%s823 + $0x160] sm:$0xff]
        %v1022 = vld [vmem:[%s823 + $0x168] sm:$0xff]
        %v1023 = vld [vmem:[%s823 + $0x170] sm:$0xff]
        %v1024 = vld [vmem:[%s823 + $0x178] sm:$0xff]
        %v1025 = vld [vmem:[%s832] sm:$0xff]
        %v1026 = vld [vmem:[%s832 + $0x8] sm:$0xff]
        %v1027 = vld [vmem:[%s832 + $0x10] sm:$0xff]
        %v1028 = vld [vmem:[%s832 + $0x18] sm:$0xff]
        %v1029 = vld [vmem:[%s832 + $0x20] sm:$0xff]
        %v1030 = vld [vmem:[%s832 + $0x28] sm:$0xff]
        %v1031 = vld [vmem:[%s832 + $0x30] sm:$0xff]
        %v1032 = vld [vmem:[%s832 + $0x38] sm:$0xff]
        %v1033 = vld [vmem:[%s832 + $0x40] sm:$0xff]
        %v1034 = vld [vmem:[%s832 + $0x48] sm:$0xff]
        %v1035 = vld [vmem:[%s832 + $0x50] sm:$0xff]
        %v1036 = vld [vmem:[%s832 + $0x58] sm:$0xff]
        %v1037 = vld [vmem:[%s832 + $0x60] sm:$0xff]
        %v1038 = vld [vmem:[%s832 + $0x68] sm:$0xff]
        %v1039 = vld [vmem:[%s832 + $0x70] sm:$0xff]
        %v1040 = vld [vmem:[%s832 + $0x78] sm:$0xff]
        %v1041 = vld [vmem:[%s832 + $0x80] sm:$0xff]
        %v1042 = vld [vmem:[%s832 + $0x88] sm:$0xff]
        %v1043 = vld [vmem:[%s832 + $0x90] sm:$0xff]
        %v1044 = vld [vmem:[%s832 + $0x98] sm:$0xff]
        %v1045 = vld [vmem:[%s832 + $0xa0] sm:$0xff]
        %v1046 = vld [vmem:[%s832 + $0xa8] sm:$0xff]
        %v1047 = vld [vmem:[%s832 + $0xb0] sm:$0xff]
        %v1048 = vld [vmem:[%s832 + $0xb8] sm:$0xff]
        %v1049 = vld [vmem:[%s832 + $0xc0] sm:$0xff]
        %v1050 = vld [vmem:[%s832 + $0xc8] sm:$0xff]
        %v1051 = vld [vmem:[%s832 + $0xd0] sm:$0xff]
        %v1052 = vld [vmem:[%s832 + $0xd8] sm:$0xff]
        %v1053 = vld [vmem:[%s832 + $0xe0] sm:$0xff]
        %v1054 = vld [vmem:[%s832 + $0xe8] sm:$0xff]
        %v1055 = vld [vmem:[%s832 + $0xf0] sm:$0xff]
        %v1056 = vld [vmem:[%s832 + $0xf8] sm:$0xff]
        %v1057 = vld [vmem:[%s832 + $0x100] sm:$0xff]
        %v1058 = vld [vmem:[%s832 + $0x108] sm:$0xff]
        %v1059 = vld [vmem:[%s832 + $0x110] sm:$0xff]
        %v1060 = vld [vmem:[%s832 + $0x118] sm:$0xff]
        %v1061 = vld [vmem:[%s832 + $0x120] sm:$0xff]
        %v1062 = vld [vmem:[%s832 + $0x128] sm:$0xff]
        %v1063 = vld [vmem:[%s832 + $0x130] sm:$0xff]
        %v1064 = vld [vmem:[%s832 + $0x138] sm:$0xff]
        %v1065 = vld [vmem:[%s832 + $0x140] sm:$0xff]
        %v1066 = vld [vmem:[%s832 + $0x148] sm:$0xff]
        %v1067 = vld [vmem:[%s832 + $0x150] sm:$0xff]
        %v1068 = vld [vmem:[%s832 + $0x158] sm:$0xff]
        %v1069 = vld [vmem:[%s832 + $0x160] sm:$0xff]
        %v1070 = vld [vmem:[%s832 + $0x168] sm:$0xff]
        %v1071 = vld [vmem:[%s832 + $0x170] sm:$0xff]
        %v1072 = vld [vmem:[%s832 + $0x178] sm:$0xff]
        %v1073 = vld [vmem:[#allocation6] sm:$0xff]
        %v1074 = vld [vmem:[#allocation6 + $0x8] sm:$0xff]
        %v1075 = vld [vmem:[#allocation6 + $0x10] sm:$0xff]
        %v1076 = vld [vmem:[#allocation6 + $0x18] sm:$0xff]
        %v1077 = vld [vmem:[#allocation6 + $0x20] sm:$0xff]
        %v1078 = vld [vmem:[#allocation6 + $0x28] sm:$0xff]
        %v1079 = vld [vmem:[#allocation6 + $0x30] sm:$0xff]
        %v1080 = vld [vmem:[#allocation6 + $0x38] sm:$0xff]
        %v1081 = vld [vmem:[#allocation6 + $0x40] sm:$0xff]
        %v1082 = vld [vmem:[#allocation6 + $0x48] sm:$0xff]
        %v1083 = vld [vmem:[#allocation6 + $0x50] sm:$0xff]
        %v1084 = vld [vmem:[#allocation6 + $0x58] sm:$0xff]
        %v1085 = vld [vmem:[#allocation6 + $0x60] sm:$0xff]
        %v1086 = vld [vmem:[#allocation6 + $0x68] sm:$0xff]
        %v1087 = vld [vmem:[#allocation6 + $0x70] sm:$0xff]
        %v1088 = vld [vmem:[#allocation6 + $0x78] sm:$0xff]
        %v1089 = vld [vmem:[#allocation6 + $0x80] sm:$0xff]
        %v1090 = vld [vmem:[#allocation6 + $0x88] sm:$0xff]
        %v1091 = vld [vmem:[#allocation6 + $0x90] sm:$0xff]
        %v1092 = vld [vmem:[#allocation6 + $0x98] sm:$0xff]
        %v1093 = vld [vmem:[#allocation6 + $0xa0] sm:$0xff]
        %v1094 = vld [vmem:[#allocation6 + $0xa8] sm:$0xff]
        %v1095 = vld [vmem:[#allocation6 + $0xb0] sm:$0xff]
        %v1096 = vld [vmem:[#allocation6 + $0xb8] sm:$0xff]
        %v1097 = vld [vmem:[#allocation6 + $0xc0] sm:$0xff]
        %v1098 = vld [vmem:[#allocation6 + $0xc8] sm:$0xff]
        %v1099 = vld [vmem:[#allocation6 + $0xd0] sm:$0xff]
        %v1100 = vld [vmem:[#allocation6 + $0xd8] sm:$0xff]
        %v1101 = vld [vmem:[#allocation6 + $0xe0] sm:$0xff]
        %v1102 = vld [vmem:[#allocation6 + $0xe8] sm:$0xff]
        %v1103 = vld [vmem:[#allocation6 + $0xf0] sm:$0xff]
        %v1104 = vld [vmem:[#allocation6 + $0xf8] sm:$0xff]
        %v1105 = vld [vmem:[#allocation6 + $0x100] sm:$0xff]
        %v1106 = vld [vmem:[#allocation6 + $0x108] sm:$0xff]
        %v1107 = vld [vmem:[#allocation6 + $0x110] sm:$0xff]
        %v1108 = vld [vmem:[#allocation6 + $0x118] sm:$0xff]
        %v1109 = vld [vmem:[#allocation6 + $0x120] sm:$0xff]
        %v1110 = vld [vmem:[#allocation6 + $0x128] sm:$0xff]
        %v1111 = vld [vmem:[#allocation6 + $0x130] sm:$0xff]
        %v1112 = vld [vmem:[#allocation6 + $0x138] sm:$0xff]
        %v1113 = vld [vmem:[#allocation6 + $0x140] sm:$0xff]
        %v1114 = vld [vmem:[#allocation6 + $0x148] sm:$0xff]
        %v1115 = vld [vmem:[#allocation6 + $0x150] sm:$0xff]
        %v1116 = vld [vmem:[#allocation6 + $0x158] sm:$0xff]
        %v1117 = vld [vmem:[#allocation6 + $0x160] sm:$0xff]
        %v1118 = vld [vmem:[#allocation6 + $0x168] sm:$0xff]
        %v1119 = vld [vmem:[#allocation6 + $0x170] sm:$0xff]
        %v1120 = vld [vmem:[#allocation6 + $0x178] sm:$0xff]
        %v1121 = vld [vmem:[#allocation13] sm:$0xff]
        %v1122 = vld [vmem:[#allocation13 + $0x8] sm:$0xff]
        %v1123 = vld [vmem:[#allocation13 + $0x10] sm:$0xff]
        %v1124 = vld [vmem:[#allocation13 + $0x18] sm:$0xff]
        %v1125 = vld [vmem:[#allocation13 + $0x20] sm:$0xff]
        %v1126 = vld [vmem:[#allocation13 + $0x28] sm:$0xff]
        %v1127 = vld [vmem:[#allocation13 + $0x30] sm:$0xff]
        %v1128 = vld [vmem:[#allocation13 + $0x38] sm:$0xff]
        %v1129 = vld [vmem:[#allocation13 + $0x40] sm:$0xff]
        %v1130 = vld [vmem:[#allocation13 + $0x48] sm:$0xff]
        %v1131 = vld [vmem:[#allocation13 + $0x50] sm:$0xff]
        %v1132 = vld [vmem:[#allocation13 + $0x58] sm:$0xff]
        %v1133 = vld [vmem:[#allocation13 + $0x60] sm:$0xff]
        %v1134 = vld [vmem:[#allocation13 + $0x68] sm:$0xff]
        %v1135 = vld [vmem:[#allocation13 + $0x70] sm:$0xff]
        %v1136 = vld [vmem:[#allocation13 + $0x78] sm:$0xff]
        %v1137 = vld [vmem:[#allocation13 + $0x80] sm:$0xff]
        %v1138 = vld [vmem:[#allocation13 + $0x88] sm:$0xff]
        %v1139 = vld [vmem:[#allocation13 + $0x90] sm:$0xff]
        %v1140 = vld [vmem:[#allocation13 + $0x98] sm:$0xff]
        %v1141 = vld [vmem:[#allocation13 + $0xa0] sm:$0xff]
        %v1142 = vld [vmem:[#allocation13 + $0xa8] sm:$0xff]
        %v1143 = vld [vmem:[#allocation13 + $0xb0] sm:$0xff]
        %v1144 = vld [vmem:[#allocation13 + $0xb8] sm:$0xff]
        %v1145 = vld [vmem:[#allocation13 + $0xc0] sm:$0xff]
        %v1146 = vld [vmem:[#allocation13 + $0xc8] sm:$0xff]
        %v1147 = vld [vmem:[#allocation13 + $0xd0] sm:$0xff]
        %v1148 = vld [vmem:[#allocation13 + $0xd8] sm:$0xff]
        %v1149 = vld [vmem:[#allocation13 + $0xe0] sm:$0xff]
        %v1150 = vld [vmem:[#allocation13 + $0xe8] sm:$0xff]
        %v1151 = vld [vmem:[#allocation13 + $0xf0] sm:$0xff]
        %v1152 = vld [vmem:[#allocation13 + $0xf8] sm:$0xff]
        %v1153 = vld [vmem:[#allocation13 + $0x100] sm:$0xff]
        %v1154 = vld [vmem:[#allocation13 + $0x108] sm:$0xff]
        %v1155 = vld [vmem:[#allocation13 + $0x110] sm:$0xff]
        %v1156 = vld [vmem:[#allocation13 + $0x118] sm:$0xff]
        %v1157 = vld [vmem:[#allocation13 + $0x120] sm:$0xff]
        %v1158 = vld [vmem:[#allocation13 + $0x128] sm:$0xff]
        %v1159 = vld [vmem:[#allocation13 + $0x130] sm:$0xff]
        %v1160 = vld [vmem:[#allocation13 + $0x138] sm:$0xff]
        %v1161 = vld [vmem:[#allocation13 + $0x140] sm:$0xff]
        %v1162 = vld [vmem:[#allocation13 + $0x148] sm:$0xff]
        %v1163 = vld [vmem:[#allocation13 + $0x150] sm:$0xff]
        %v1164 = vld [vmem:[#allocation13 + $0x158] sm:$0xff]
        %v1165 = vld [vmem:[#allocation13 + $0x160] sm:$0x3f]
        %v1166 = vld [vmem:[#allocation13 + $0x168] sm:$0x3f]
        %v1167 = vmul.f32 %v977, %v977
        %v1168 = vmul.f32 %v978, %v978
        %v1169 = vmul.f32 %v979, %v979
        %v1170 = vmul.f32 %v980, %v980
        %v1171 = vmul.f32 %v981, %v981
        %v1172 = vmul.f32 %v982, %v982
        %v1173 = vmul.f32 %v983, %v983
        %v1174 = vmul.f32 %v984, %v984
        %v1175 = vmul.f32 %v985, %v985
        %v1176 = vmul.f32 %v986, %v986
        %v1177 = vmul.f32 %v987, %v987
        %v1178 = vmul.f32 %v988, %v988
        %v1179 = vmul.f32 %v989, %v989
        %v1180 = vmul.f32 %v990, %v990
        %v1181 = vmul.f32 %v991, %v991
        %v1182 = vmul.f32 %v992, %v992
        %v1183 = vmul.f32 %v993, %v993
        %v1184 = vmul.f32 %v994, %v994
        %v1185 = vmul.f32 %v995, %v995
        %v1186 = vmul.f32 %v996, %v996
        %v1187 = vmul.f32 %v997, %v997
        %v1188 = vmul.f32 %v998, %v998
        %v1189 = vmul.f32 %v999, %v999
        %v1190 = vmul.f32 %v1000, %v1000
        %v1191 = vmul.f32 %v1001, %v1001
        %v1192 = vmul.f32 %v1002, %v1002
        %v1193 = vmul.f32 %v1003, %v1003
        %v1194 = vmul.f32 %v1004, %v1004
        %v1195 = vmul.f32 %v1005, %v1005
        %v1196 = vmul.f32 %v1006, %v1006
        %v1197 = vmul.f32 %v1007, %v1007
        %v1198 = vmul.f32 %v1008, %v1008
        %v1199 = vmul.f32 %v1009, %v1009
        %v1200 = vmul.f32 %v1010, %v1010
        %v1201 = vmul.f32 %v1011, %v1011
        %v1202 = vmul.f32 %v1012, %v1012
        %v1203 = vmul.f32 %v1013, %v1013
        %v1204 = vmul.f32 %v1014, %v1014
        %v1205 = vmul.f32 %v1015, %v1015
        %v1206 = vmul.f32 %v1016, %v1016
        %v1207 = vmul.f32 %v1017, %v1017
        %v1208 = vmul.f32 %v1018, %v1018
        %v1209 = vmul.f32 %v1019, %v1019
        %v1210 = vmul.f32 %v1020, %v1020
        %v1211 = vmul.f32 %v1021, %v1021
        %v1212 = vmul.f32 %v1022, %v1022
        %v1213 = vmul.f32 %v1023, %v1023
        %v1214 = vmul.f32 %v1024, %v1024
        %v1215 = vmul.f32 %v1025, %v1025
        %v1216 = vmul.f32 %v1026, %v1026
        %v1217 = vmul.f32 %v1027, %v1027
        %v1218 = vmul.f32 %v1028, %v1028
        %v1219 = vmul.f32 %v1029, %v1029
        %v1220 = vmul.f32 %v1030, %v1030
        %v1221 = vmul.f32 %v1031, %v1031
        %v1222 = vmul.f32 %v1032, %v1032
        %v1223 = vmul.f32 %v1033, %v1033
        %v1224 = vmul.f32 %v1034, %v1034
        %v1225 = vmul.f32 %v1035, %v1035
        %v1226 = vmul.f32 %v1036, %v1036
        %v1227 = vmul.f32 %v1037, %v1037
        %v1228 = vmul.f32 %v1038, %v1038
        %v1229 = vmul.f32 %v1039, %v1039
        %v1230 = vmul.f32 %v1040, %v1040
        %v1231 = vmul.f32 %v1041, %v1041
        %v1232 = vmul.f32 %v1042, %v1042
        %v1233 = vmul.f32 %v1043, %v1043
        %v1234 = vmul.f32 %v1044, %v1044
        %v1235 = vmul.f32 %v1045, %v1045
        %v1236 = vmul.f32 %v1046, %v1046
        %v1237 = vmul.f32 %v1047, %v1047
        %v1238 = vmul.f32 %v1048, %v1048
        %v1239 = vmul.f32 %v1049, %v1049
        %v1240 = vmul.f32 %v1050, %v1050
        %v1241 = vmul.f32 %v1051, %v1051
        %v1242 = vmul.f32 %v1052, %v1052
        %v1243 = vmul.f32 %v1053, %v1053
        %v1244 = vmul.f32 %v1054, %v1054
        %v1245 = vmul.f32 %v1055, %v1055
        %v1246 = vmul.f32 %v1056, %v1056
        %v1247 = vmul.f32 %v1057, %v1057
        %v1248 = vmul.f32 %v1058, %v1058
        %v1249 = vmul.f32 %v1059, %v1059
        %v1250 = vmul.f32 %v1060, %v1060
        %v1251 = vmul.f32 %v1061, %v1061
        %v1252 = vmul.f32 %v1062, %v1062
        %v1253 = vmul.f32 %v1063, %v1063
        %v1254 = vmul.f32 %v1064, %v1064
        %v1255 = vmul.f32 %v1065, %v1065
        %v1256 = vmul.f32 %v1066, %v1066
        %v1257 = vmul.f32 %v1067, %v1067
        %v1258 = vmul.f32 %v1068, %v1068
        %v1259 = vmul.f32 %v1069, %v1069
        %v1260 = vmul.f32 %v1070, %v1070
        %v1261 = vmul.f32 %v1071, %v1071
        %v1262 = vmul.f32 %v1072, %v1072
        %v1263 = vmul.f32 %v977, %v1025
        %v1264 = vmul.f32 %v978, %v1026
        %v1265 = vmul.f32 %v979, %v1027
        %v1266 = vmul.f32 %v980, %v1028
        %v1267 = vmul.f32 %v981, %v1029
        %v1268 = vmul.f32 %v982, %v1030
        %v1269 = vmul.f32 %v983, %v1031
        %v1270 = vmul.f32 %v984, %v1032
        %v1271 = vmul.f32 %v985, %v1033
        %v1272 = vmul.f32 %v986, %v1034
        %v1273 = vmul.f32 %v987, %v1035
        %v1274 = vmul.f32 %v988, %v1036
        %v1275 = vmul.f32 %v989, %v1037
        %v1276 = vmul.f32 %v990, %v1038
        %v1277 = vmul.f32 %v991, %v1039
        %v1278 = vmul.f32 %v992, %v1040
        %v1279 = vmul.f32 %v993, %v1041
        %v1280 = vmul.f32 %v994, %v1042
        %v1281 = vmul.f32 %v995, %v1043
        %v1282 = vmul.f32 %v996, %v1044
        %v1283 = vmul.f32 %v997, %v1045
        %v1284 = vmul.f32 %v998, %v1046
        %v1285 = vmul.f32 %v999, %v1047
        %v1286 = vmul.f32 %v1000, %v1048
        %v1287 = vmul.f32 %v1001, %v1049
        %v1288 = vmul.f32 %v1002, %v1050
        %v1289 = vmul.f32 %v1003, %v1051
        %v1290 = vmul.f32 %v1004, %v1052
        %v1291 = vmul.f32 %v1005, %v1053
        %v1292 = vmul.f32 %v1006, %v1054
        %v1293 = vmul.f32 %v1007, %v1055
        %v1294 = vmul.f32 %v1008, %v1056
        %v1295 = vmul.f32 %v1009, %v1057
        %v1296 = vmul.f32 %v1010, %v1058
        %v1297 = vmul.f32 %v1011, %v1059
        %v1298 = vmul.f32 %v1012, %v1060
        %v1299 = vmul.f32 %v1013, %v1061
        %v1300 = vmul.f32 %v1014, %v1062
        %v1301 = vmul.f32 %v1015, %v1063
        %v1302 = vmul.f32 %v1016, %v1064
        %v1303 = vmul.f32 %v1017, %v1065
        %v1304 = vmul.f32 %v1018, %v1066
        %v1305 = vmul.f32 %v1019, %v1067
        %v1306 = vmul.f32 %v1020, %v1068
        %v1307 = vmul.f32 %v1021, %v1069
        %v1308 = vmul.f32 %v1022, %v1070
        %v1309 = vmul.f32 %v1023, %v1071
        %v1310 = vmul.f32 %v1024, %v1072
        %vm1311 = vcmask 523264
        %v1313 = vsel %vm1311, %v978, 0
        %v1316 = vsel %vm1311, %v980, 0
        %v1319 = vsel %vm1311, %v982, 0
        %v1322 = vsel %vm1311, %v984, 0
        %v1325 = vsel %vm1311, %v986, 0
        %v1328 = vsel %vm1311, %v988, 0
        %v1331 = vsel %vm1311, %v990, 0
        %v1334 = vsel %vm1311, %v992, 0
        %v1337 = vsel %vm1311, %v994, 0
        %v1340 = vsel %vm1311, %v996, 0
        %v1343 = vsel %vm1311, %v998, 0
        %v1346 = vsel %vm1311, %v1000, 0
        %v1349 = vsel %vm1311, %v1002, 0
        %v1352 = vsel %vm1311, %v1004, 0
        %v1355 = vsel %vm1311, %v1006, 0
        %v1358 = vsel %vm1311, %v1008, 0
        %v1361 = vsel %vm1311, %v1010, 0
        %v1364 = vsel %vm1311, %v1012, 0
        %v1367 = vsel %vm1311, %v1014, 0
        %v1370 = vsel %vm1311, %v1016, 0
        %v1373 = vsel %vm1311, %v1018, 0
        %v1376 = vsel %vm1311, %v1020, 0
        %v1379 = vsel %vm1311, %v1022, 0
        %v1382 = vsel %vm1311, %v1024, 0
        %v1385 = vsel %vm1311, %v1026, 0
        %v1388 = vsel %vm1311, %v1028, 0
        %v1391 = vsel %vm1311, %v1030, 0
        %v1394 = vsel %vm1311, %v1032, 0
        %v1397 = vsel %vm1311, %v1034, 0
        %v1400 = vsel %vm1311, %v1036, 0
        %v1403 = vsel %vm1311, %v1038, 0
        %v1406 = vsel %vm1311, %v1040, 0
        %v1409 = vsel %vm1311, %v1042, 0
        %v1412 = vsel %vm1311, %v1044, 0
        %v1415 = vsel %vm1311, %v1046, 0
        %v1418 = vsel %vm1311, %v1048, 0
        %v1421 = vsel %vm1311, %v1050, 0
        %v1424 = vsel %vm1311, %v1052, 0
        %v1427 = vsel %vm1311, %v1054, 0
        %v1430 = vsel %vm1311, %v1056, 0
        %v1433 = vsel %vm1311, %v1058, 0
        %v1436 = vsel %vm1311, %v1060, 0
        %v1439 = vsel %vm1311, %v1062, 0
        %v1442 = vsel %vm1311, %v1064, 0
        %v1445 = vsel %vm1311, %v1066, 0
        %v1448 = vsel %vm1311, %v1068, 0
        %v1451 = vsel %vm1311, %v1070, 0
        %v1454 = vsel %vm1311, %v1072, 0
        %v1457 = vsel %vm1311, %v1168, 0
        %v1460 = vsel %vm1311, %v1170, 0
        %v1463 = vsel %vm1311, %v1172, 0
        %v1466 = vsel %vm1311, %v1174, 0
        %v1469 = vsel %vm1311, %v1176, 0
        %v1472 = vsel %vm1311, %v1178, 0
        %v1475 = vsel %vm1311, %v1180, 0
        %v1478 = vsel %vm1311, %v1182, 0
        %v1481 = vsel %vm1311, %v1184, 0
        %v1484 = vsel %vm1311, %v1186, 0
        %v1487 = vsel %vm1311, %v1188, 0
        %v1490 = vsel %vm1311, %v1190, 0
        %v1493 = vsel %vm1311, %v1192, 0
        %v1496 = vsel %vm1311, %v1194, 0
        %v1499 = vsel %vm1311, %v1196, 0
        %v1502 = vsel %vm1311, %v1198, 0
        %v1505 = vsel %vm1311, %v1200, 0
        %v1508 = vsel %vm1311, %v1202, 0
        %v1511 = vsel %vm1311, %v1204, 0
        %v1514 = vsel %vm1311, %v1206, 0
        %v1517 = vsel %vm1311, %v1208, 0
        %v1520 = vsel %vm1311, %v1210, 0
        %v1523 = vsel %vm1311, %v1212, 0
        %v1526 = vsel %vm1311, %v1214, 0
        %v1529 = vsel %vm1311, %v1216, 0
        %v1532 = vsel %vm1311, %v1218, 0
        %v1535 = vsel %vm1311, %v1220, 0
        %v1538 = vsel %vm1311, %v1222, 0
        %v1541 = vsel %vm1311, %v1224, 0
        %v1544 = vsel %vm1311, %v1226, 0
        %v1547 = vsel %vm1311, %v1228, 0
        %v1550 = vsel %vm1311, %v1230, 0
        %v1553 = vsel %vm1311, %v1232, 0
        %v1556 = vsel %vm1311, %v1234, 0
        %v1559 = vsel %vm1311, %v1236, 0
        %v1562 = vsel %vm1311, %v1238, 0
        %v1565 = vsel %vm1311, %v1240, 0
        %v1568 = vsel %vm1311, %v1242, 0
        %v1571 = vsel %vm1311, %v1244, 0
        %v1574 = vsel %vm1311, %v1246, 0
        %v1577 = vsel %vm1311, %v1248, 0
        %v1580 = vsel %vm1311, %v1250, 0
        %v1583 = vsel %vm1311, %v1252, 0
        %v1586 = vsel %vm1311, %v1254, 0
        %v1589 = vsel %vm1311, %v1256, 0
        %v1592 = vsel %vm1311, %v1258, 0
        %v1595 = vsel %vm1311, %v1260, 0
        %v1598 = vsel %vm1311, %v1262, 0
        %v1601 = vsel %vm1311, %v1264, 0
        %v1604 = vsel %vm1311, %v1266, 0
        %v1607 = vsel %vm1311, %v1268, 0
        %v1610 = vsel %vm1311, %v1270, 0
        %v1613 = vsel %vm1311, %v1272, 0
        %v1616 = vsel %vm1311, %v1274, 0
        %v1619 = vsel %vm1311, %v1276, 0
        %v1622 = vsel %vm1311, %v1278, 0
        %v1625 = vsel %vm1311, %v1280, 0
        %v1628 = vsel %vm1311, %v1282, 0
        %v1631 = vsel %vm1311, %v1284, 0
        %v1634 = vsel %vm1311, %v1286, 0
        %v1637 = vsel %vm1311, %v1288, 0
        %v1640 = vsel %vm1311, %v1290, 0
        %v1643 = vsel %vm1311, %v1292, 0
        %v1646 = vsel %vm1311, %v1294, 0
        %v1649 = vsel %vm1311, %v1296, 0
        %v1652 = vsel %vm1311, %v1298, 0
        %v1655 = vsel %vm1311, %v1300, 0
        %v1658 = vsel %vm1311, %v1302, 0
        %v1661 = vsel %vm1311, %v1304, 0
        %v1664 = vsel %vm1311, %v1306, 0
        %v1667 = vsel %vm1311, %v1308, 0
        %v1670 = vsel %vm1311, %v1310, 0
        %1672 = vmatprep.subr.mxu0 %v1074
        %1673 = vmatpush1.msra.mxu0 %v1073
        %1674 = vmatprep.subr.mxu0 %v1076
        %1675 = vmatpush1.msra.mxu0 %v1075
        %1676 = vmatprep.subr.mxu0 %v1078
        %1677 = vmatpush1.msra.mxu0 %v1077
        %1678 = vmatprep.subr.mxu0 %v1080
        %1679 = vmatpush1.msra.mxu0 %v1079
        %1680 = vmatprep.subr.mxu0 %v1082
        %1681 = vmatpush1.msra.mxu0 %v1081
        %1682 = vmatprep.subr.mxu0 %v1084
        %1683 = vmatpush1.msra.mxu0 %v1083
        %1684 = vmatprep.subr.mxu0 %v1086
        %1685 = vmatpush1.msra.mxu0 %v1085
        %1686 = vmatprep.subr.mxu0 %v1088
        %1687 = vmatpush1.msra.mxu0 %v1087
        %1688 = vmatprep.subr.mxu0 %v1090
        %1689 = vmatpush1.msra.mxu0 %v1089
        %1690 = vmatprep.subr.mxu0 %v1092
        %1691 = vmatpush1.msra.mxu0 %v1091
        %1692 = vmatprep.subr.mxu0 %v1094
        %1693 = vmatpush1.msra.mxu0 %v1093
        %1694 = vmatprep.subr.mxu0 %v1096
        %1695 = vmatpush1.msra.mxu0 %v1095
        %1696 = vmatprep.subr.mxu0 %v1098
        %1697 = vmatpush1.msra.mxu0 %v1097
        %1698 = vmatprep.subr.mxu0 %v1100
        %1699 = vmatpush1.msra.mxu0 %v1099
        %1700 = vmatprep.subr.mxu0 %v1102
        %1701 = vmatpush1.msra.mxu0 %v1101
        %1702 = vmatprep.subr.mxu0 %v1104
        %1703 = vmatpush1.msra.mxu0 %v1103
        %1704 = vmatprep.subr.mxu0 %v1106
        %1705 = vmatpush1.msra.mxu0 %v1105
        %1706 = vmatprep.subr.mxu0 %v1108
        %1707 = vmatpush1.msra.mxu0 %v1107
        %1708 = vmatprep.subr.mxu0 %v1110
        %1709 = vmatpush1.msra.mxu0 %v1109
        %1710 = vmatprep.subr.mxu0 %v1112
        %1711 = vmatpush1.msra.mxu0 %v1111
        %1712 = vmatprep.subr.mxu0 %v1114
        %1713 = vmatpush1.msra.mxu0 %v1113
        %1714 = vmatprep.subr.mxu0 %v1116
        %1715 = vmatpush1.msra.mxu0 %v1115
        %1716 = vmatprep.subr.mxu0 %v1118
        %1717 = vmatpush1.msra.mxu0 %v1117
        %1718 = vmatprep.subr.mxu0 %v1120
        %1719 = vmatpush1.msra.mxu0 %v1119
        %1720 = vmatprep.subr.mxu0 0.0
        %1721 = vmatpush1.msra.mxu0 0.0
        %1722 = vmatprep.subr.mxu0 0.0
        %1723 = vmatpush1.msra.mxu0 0.0
        %1724 = vmatprep.subr.mxu0 0.0
        %1725 = vmatpush1.msra.mxu0 0.0
        %1726 = vmatprep.subr.mxu0 0.0
        %1727 = vmatpush1.msra.mxu0 0.0
        %1728 = vmatprep.subr.mxu0 0.0
        %1729 = vmatpush1.msra.mxu0 0.0
        %1730 = vmatprep.subr.mxu0 0.0
        %1731 = vmatpush1.msra.mxu0 0.0
        %1732 = vmatprep.subr.mxu0 0.0
        %1733 = vmatpush1.msra.mxu0 0.0
        %1734 = vmatprep.subr.mxu0 0.0
        %1735 = vmatpush1.msra.mxu0 0.0
        %1736 = vmatprep.mubr.f32.mxu0 %v1313
        %1737 = vmatmul.mubr.f32.gmra.mrb[0].mxu0 %v977
        %v1738 = vpop.f32.mrb[0].mxu0
        %v1739 = vadd.f32 0.0, %v1738
        %v1740 = vpop.f32.mrb[0].mxu0
        %v1741 = vadd.f32 0.0, %v1740
        %1742 = vmatprep.mubr.f32.mxu0 %v1316
        %1743 = vmatmul.mubr.f32.gmra.mrb[0].mxu0 %v979
        %v1744 = vpop.f32.mrb[0].mxu0
        %v1745 = vadd.f32 0.0, %v1744
        %v1746 = vpop.f32.mrb[0].mxu0
        %v1747 = vadd.f32 0.0, %v1746
        %1748 = vmatprep.mubr.f32.mxu0 %v1319
        %1749 = vmatmul.mubr.f32.gmra.mrb[0].mxu0 %v981
        %v1750 = vpop.f32.mrb[0].mxu0
        %v1751 = vadd.f32 0.0, %v1750
        %v1752 = vpop.f32.mrb[0].mxu0
        %v1753 = vadd.f32 0.0, %v1752
        %1754 = vmatprep.mubr.f32.mxu0 %v1322
        %1755 = vmatmul.mubr.f32.gmra.mrb[0].mxu0 %v983
        %v1756 = vpop.f32.mrb[0].mxu0
        %v1757 = vadd.f32 0.0, %v1756
        %v1758 = vpop.f32.mrb[0].mxu0
        %v1759 = vadd.f32 0.0, %v1758
        %1760 = vmatprep.mubr.f32.mxu0 %v1325
        %1761 = vmatmul.mubr.f32.gmra.mrb[0].mxu0 %v985
        %v1762 = vpop.f32.mrb[0].mxu0
        %v1763 = vadd.f32 0.0, %v1762
        %v1764 = vpop.f32.mrb[0].mxu0
        %v1765 = vadd.f32 0.0, %v1764
        %1766 = vmatprep.mubr.f32.mxu0 %v1328
        %1767 = vmatmul.mubr.f32.gmra.mrb[0].mxu0 %v987
        %v1768 = vpop.f32.mrb[0].mxu0
        %v1769 = vadd.f32 0.0, %v1768
        %v1770 = vpop.f32.mrb[0].mxu0
        %v1771 = vadd.f32 0.0, %v1770
        %1772 = vmatprep.mubr.f32.mxu0 %v1331
        %1773 = vmatmul.mubr.f32.gmra.mrb[0].mxu0 %v989
        %v1774 = vpop.f32.mrb[0].mxu0
        %v1775 = vadd.f32 0.0, %v1774
        %v1776 = vpop.f32.mrb[0].mxu0
        %v1777 = vadd.f32 0.0, %v1776
        %1778 = vmatprep.mubr.f32.mxu0 %v1334
        %1779 = vmatmul.mubr.f32.gmra.mrb[0].mxu0 %v991
        %v1780 = vpop.f32.mrb[0].mxu0
        %v1781 = vadd.f32 0.0, %v1780
        %v1782 = vpop.f32.mrb[0].mxu0
        %v1783 = vadd.f32 0.0, %v1782
        %1784 = vmatprep.mubr.f32.mxu0 %v1337
        %1785 = vmatmul.mubr.f32.gmra.mrb[0].mxu0 %v993
        %v1786 = vpop.f32.mrb[0].mxu0
        %v1787 = vadd.f32 0.0, %v1786
        %v1788 = vpop.f32.mrb[0].mxu0
        %v1789 = vadd.f32 0.0, %v1788
        %1790 = vmatprep.mubr.f32.mxu0 %v1340
        %1791 = vmatmul.mubr.f32.gmra.mrb[0].mxu0 %v995
        %v1792 = vpop.f32.mrb[0].mxu0
        %v1793 = vadd.f32 0.0, %v1792
        %v1794 = vpop.f32.mrb[0].mxu0
        %v1795 = vadd.f32 0.0, %v1794
        %1796 = vmatprep.mubr.f32.mxu0 %v1343
        %1797 = vmatmul.mubr.f32.gmra.mrb[0].mxu0 %v997
        %v1798 = vpop.f32.mrb[0].mxu0
        %v1799 = vadd.f32 0.0, %v1798
        %v1800 = vpop.f32.mrb[0].mxu0
        %v1801 = vadd.f32 0.0, %v1800
        %1802 = vmatprep.mubr.f32.mxu0 %v1346
        %1803 = vmatmul.mubr.f32.gmra.mrb[0].mxu0 %v999
        %v1804 = vpop.f32.mrb[0].mxu0
        %v1805 = vadd.f32 0.0, %v1804
        %v1806 = vpop.f32.mrb[0].mxu0
        %v1807 = vadd.f32 0.0, %v1806
        %1808 = vmatprep.mubr.f32.mxu0 %v1349
        %1809 = vmatmul.mubr.f32.gmra.mrb[0].mxu0 %v1001
        %v1810 = vpop.f32.mrb[0].mxu0
        %v1811 = vadd.f32 0.0, %v1810
        %v1812 = vpop.f32.mrb[0].mxu0
        %v1813 = vadd.f32 0.0, %v1812
        %1814 = vmatprep.mubr.f32.mxu0 %v1352
        %1815 = vmatmul.mubr.f32.gmra.mrb[0].mxu0 %v1003
        %v1816 = vpop.f32.mrb[0].mxu0
        %v1817 = vadd.f32 0.0, %v1816
        %v1818 = vpop.f32.mrb[0].mxu0
        %v1819 = vadd.f32 0.0, %v1818
        %1820 = vmatprep.mubr.f32.mxu0 %v1355
        %1821 = vmatmul.mubr.f32.gmra.mrb[0].mxu0 %v1005
        %v1822 = vpop.f32.mrb[0].mxu0
        %v1823 = vadd.f32 0.0, %v1822
        %v1824 = vpop.f32.mrb[0].mxu0
        %v1825 = vadd.f32 0.0, %v1824
        %1826 = vmatprep.mubr.f32.mxu0 %v1358
        %1827 = vmatmul.mubr.f32.gmra.mrb[0].mxu0 %v1007
        %v1828 = vpop.f32.mrb[0].mxu0
        %v1829 = vadd.f32 0.0, %v1828
        %v1830 = vpop.f32.mrb[0].mxu0
        %v1831 = vadd.f32 0.0, %v1830
        %1832 = vmatprep.mubr.f32.mxu0 %v1361
        %1833 = vmatmul.mubr.f32.gmra.mrb[0].mxu0 %v1009
        %v1834 = vpop.f32.mrb[0].mxu0
        %v1835 = vadd.f32 0.0, %v1834
        %v1836 = vpop.f32.mrb[0].mxu0
        %v1837 = vadd.f32 0.0, %v1836
        %1838 = vmatprep.mubr.f32.mxu0 %v1364
        %1839 = vmatmul.mubr.f32.gmra.mrb[0].mxu0 %v1011
        %v1840 = vpop.f32.mrb[0].mxu0
        %v1841 = vadd.f32 0.0, %v1840
        %v1842 = vpop.f32.mrb[0].mxu0
        %v1843 = vadd.f32 0.0, %v1842
        %1844 = vmatprep.mubr.f32.mxu0 %v1367
        %1845 = vmatmul.mubr.f32.gmra.mrb[0].mxu0 %v1013
        %v1846 = vpop.f32.mrb[0].mxu0
        %v1847 = vadd.f32 0.0, %v1846
        %v1848 = vpop.f32.mrb[0].mxu0
        %v1849 = vadd.f32 0.0, %v1848
        %1850 = vmatprep.mubr.f32.mxu0 %v1370
        %1851 = vmatmul.mubr.f32.gmra.mrb[0].mxu0 %v1015
        %v1852 = vpop.f32.mrb[0].mxu0
        %v1853 = vadd.f32 0.0, %v1852
        %v1854 = vpop.f32.mrb[0].mxu0
        %v1855 = vadd.f32 0.0, %v1854
        %1856 = vmatprep.mubr.f32.mxu0 %v1373
        %1857 = vmatmul.mubr.f32.gmra.mrb[0].mxu0 %v1017
        %v1858 = vpop.f32.mrb[0].mxu0
        %v1859 = vadd.f32 0.0, %v1858
        %v1860 = vpop.f32.mrb[0].mxu0
        %v1861 = vadd.f32 0.0, %v1860
        %1862 = vmatprep.mubr.f32.mxu0 %v1376
        %1863 = vmatmul.mubr.f32.gmra.mrb[0].mxu0 %v1019
        %v1864 = vpop.f32.mrb[0].mxu0
        %v1865 = vadd.f32 0.0, %v1864
        %v1866 = vpop.f32.mrb[0].mxu0
        %v1867 = vadd.f32 0.0, %v1866
        %1868 = vmatprep.mubr.f32.mxu0 %v1379
        %1869 = vmatmul.mubr.f32.gmra.mrb[0].mxu0 %v1021
        %v1870 = vpop.f32.mrb[0].mxu0
        %v1871 = vadd.f32 0.0, %v1870
        %v1872 = vpop.f32.mrb[0].mxu0
        %v1873 = vadd.f32 0.0, %v1872
        %1874 = vmatprep.mubr.f32.mxu0 %v1382
        %1875 = vmatmul.mubr.f32.gmra.mrb[0].mxu0 %v1023
        %v1876 = vpop.f32.mrb[0].mxu0
        %v1877 = vadd.f32 0.0, %v1876
        %v1878 = vpop.f32.mrb[0].mxu0
        %v1879 = vadd.f32 0.0, %v1878
        %1880 = vmatprep.mubr.f32.mxu0 %v1385
        %1881 = vmatmul.mubr.f32.gmra.mrb[0].mxu0 %v1025
        %v1882 = vpop.f32.mrb[0].mxu0
        %v1883 = vadd.f32 0.0, %v1882
        %v1884 = vpop.f32.mrb[0].mxu0
        %v1885 = vadd.f32 0.0, %v1884
        %1886 = vmatprep.mubr.f32.mxu0 %v1388
        %1887 = vmatmul.mubr.f32.gmra.mrb[0].mxu0 %v1027
        %v1888 = vpop.f32.mrb[0].mxu0
        %v1889 = vadd.f32 0.0, %v1888
        %v1890 = vpop.f32.mrb[0].mxu0
        %v1891 = vadd.f32 0.0, %v1890
        %1892 = vmatprep.mubr.f32.mxu0 %v1391
        %1893 = vmatmul.mubr.f32.gmra.mrb[0].mxu0 %v1029
        %v1894 = vpop.f32.mrb[0].mxu0
        %v1895 = vadd.f32 0.0, %v1894
        %v1896 = vpop.f32.mrb[0].mxu0
        %v1897 = vadd.f32 0.0, %v1896
        %1898 = vmatprep.mubr.f32.mxu0 %v1394
        %1899 = vmatmul.mubr.f32.gmra.mrb[0].mxu0 %v1031
        %v1900 = vpop.f32.mrb[0].mxu0
        %v1901 = vadd.f32 0.0, %v1900
        %v1902 = vpop.f32.mrb[0].mxu0
        %v1903 = vadd.f32 0.0, %v1902
        %1904 = vmatprep.mubr.f32.mxu0 %v1397
        %1905 = vmatmul.mubr.f32.gmra.mrb[0].mxu0 %v1033
        %v1906 = vpop.f32.mrb[0].mxu0
        %v1907 = vadd.f32 0.0, %v1906
        %v1908 = vpop.f32.mrb[0].mxu0
        %v1909 = vadd.f32 0.0, %v1908
        %1910 = vmatprep.mubr.f32.mxu0 %v1400
        %1911 = vmatmul.mubr.f32.gmra.mrb[0].mxu0 %v1035
        %v1912 = vpop.f32.mrb[0].mxu0
        %v1913 = vadd.f32 0.0, %v1912
        %v1914 = vpop.f32.mrb[0].mxu0
        %v1915 = vadd.f32 0.0, %v1914
        %1916 = vmatprep.mubr.f32.mxu0 %v1403
        %1917 = vmatmul.mubr.f32.gmra.mrb[0].mxu0 %v1037
        %v1918 = vpop.f32.mrb[0].mxu0
        %v1919 = vadd.f32 0.0, %v1918
        %v1920 = vpop.f32.mrb[0].mxu0
        %v1921 = vadd.f32 0.0, %v1920
        %1922 = vmatprep.mubr.f32.mxu0 %v1406
        %1923 = vmatmul.mubr.f32.gmra.mrb[0].mxu0 %v1039
        %v1924 = vpop.f32.mrb[0].mxu0
        %v1925 = vadd.f32 0.0, %v1924
        %v1926 = vpop.f32.mrb[0].mxu0
        %v1927 = vadd.f32 0.0, %v1926
        %1928 = vmatprep.mubr.f32.mxu0 %v1409
        %1929 = vmatmul.mubr.f32.gmra.mrb[0].mxu0 %v1041
        %v1930 = vpop.f32.mrb[0].mxu0
        %v1931 = vadd.f32 0.0, %v1930
        %v1932 = vpop.f32.mrb[0].mxu0
        %v1933 = vadd.f32 0.0, %v1932
        %1934 = vmatprep.mubr.f32.mxu0 %v1412
        %1935 = vmatmul.mubr.f32.gmra.mrb[0].mxu0 %v1043
        %v1936 = vpop.f32.mrb[0].mxu0
        %v1937 = vadd.f32 0.0, %v1936
        %v1938 = vpop.f32.mrb[0].mxu0
        %v1939 = vadd.f32 0.0, %v1938
        %1940 = vmatprep.mubr.f32.mxu0 %v1415
        %1941 = vmatmul.mubr.f32.gmra.mrb[0].mxu0 %v1045
        %v1942 = vpop.f32.mrb[0].mxu0
        %v1943 = vadd.f32 0.0, %v1942
        %v1944 = vpop.f32.mrb[0].mxu0
        %v1945 = vadd.f32 0.0, %v1944
        %1946 = vmatprep.mubr.f32.mxu0 %v1418
        %1947 = vmatmul.mubr.f32.gmra.mrb[0].mxu0 %v1047
        %v1948 = vpop.f32.mrb[0].mxu0
        %v1949 = vadd.f32 0.0, %v1948
        %v1950 = vpop.f32.mrb[0].mxu0
        %v1951 = vadd.f32 0.0, %v1950
        %1952 = vmatprep.mubr.f32.mxu0 %v1421
        %1953 = vmatmul.mubr.f32.gmra.mrb[0].mxu0 %v1049
        %v1954 = vpop.f32.mrb[0].mxu0
        %v1955 = vadd.f32 0.0, %v1954
        %v1956 = vpop.f32.mrb[0].mxu0
        %v1957 = vadd.f32 0.0, %v1956
        %1958 = vmatprep.mubr.f32.mxu0 %v1424
        %1959 = vmatmul.mubr.f32.gmra.mrb[0].mxu0 %v1051
        %v1960 = vpop.f32.mrb[0].mxu0
        %v1961 = vadd.f32 0.0, %v1960
        %v1962 = vpop.f32.mrb[0].mxu0
        %v1963 = vadd.f32 0.0, %v1962
        %1964 = vmatprep.mubr.f32.mxu0 %v1427
        %1965 = vmatmul.mubr.f32.gmra.mrb[0].mxu0 %v1053
        %v1966 = vpop.f32.mrb[0].mxu0
        %v1967 = vadd.f32 0.0, %v1966
        %v1968 = vpop.f32.mrb[0].mxu0
        %v1969 = vadd.f32 0.0, %v1968
        %1970 = vmatprep.mubr.f32.mxu0 %v1430
        %1971 = vmatmul.mubr.f32.gmra.mrb[0].mxu0 %v1055
        %v1972 = vpop.f32.mrb[0].mxu0
        %v1973 = vadd.f32 0.0, %v1972
        %v1974 = vpop.f32.mrb[0].mxu0
        %v1975 = vadd.f32 0.0, %v1974
        %1976 = vmatprep.mubr.f32.mxu0 %v1433
        %1977 = vmatmul.mubr.f32.gmra.mrb[0].mxu0 %v1057
        %v1978 = vpop.f32.mrb[0].mxu0
        %v1979 = vadd.f32 0.0, %v1978
        %v1980 = vpop.f32.mrb[0].mxu0
        %v1981 = vadd.f32 0.0, %v1980
        %1982 = vmatprep.mubr.f32.mxu0 %v1436
        %1983 = vmatmul.mubr.f32.gmra.mrb[0].mxu0 %v1059
        %v1984 = vpop.f32.mrb[0].mxu0
        %v1985 = vadd.f32 0.0, %v1984
        %v1986 = vpop.f32.mrb[0].mxu0
        %v1987 = vadd.f32 0.0, %v1986
        %1988 = vmatprep.mubr.f32.mxu0 %v1439
        %1989 = vmatmul.mubr.f32.gmra.mrb[0].mxu0 %v1061
        %v1990 = vpop.f32.mrb[0].mxu0
        %v1991 = vadd.f32 0.0, %v1990
        %v1992 = vpop.f32.mrb[0].mxu0
        %v1993 = vadd.f32 0.0, %v1992
        %1994 = vmatprep.mubr.f32.mxu0 %v1442
        %1995 = vmatmul.mubr.f32.gmra.mrb[0].mxu0 %v1063
        %v1996 = vpop.f32.mrb[0].mxu0
        %v1997 = vadd.f32 0.0, %v1996
        %v1998 = vpop.f32.mrb[0].mxu0
        %v1999 = vadd.f32 0.0, %v1998
        %2000 = vmatprep.mubr.f32.mxu0 %v1445
        %2001 = vmatmul.mubr.f32.gmra.mrb[0].mxu0 %v1065
        %v2002 = vpop.f32.mrb[0].mxu0
        %v2003 = vadd.f32 0.0, %v2002
        %v2004 = vpop.f32.mrb[0].mxu0
        %v2005 = vadd.f32 0.0, %v2004
        %2006 = vmatprep.mubr.f32.mxu0 %v1448
        %2007 = vmatmul.mubr.f32.gmra.mrb[0].mxu0 %v1067
        %v2008 = vpop.f32.mrb[0].mxu0
        %v2009 = vadd.f32 0.0, %v2008
        %v2010 = vpop.f32.mrb[0].mxu0
        %v2011 = vadd.f32 0.0, %v2010
        %2012 = vmatprep.mubr.f32.mxu0 %v1451
        %2013 = vmatmul.mubr.f32.gmra.mrb[0].mxu0 %v1069
        %v2014 = vpop.f32.mrb[0].mxu0
        %v2015 = vadd.f32 0.0, %v2014
        %v2016 = vpop.f32.mrb[0].mxu0
        %v2017 = vadd.f32 0.0, %v2016
        %2018 = vmatprep.mubr.f32.mxu0 %v1454
        %2019 = vmatmul.mubr.f32.gmra.mrb[0].mxu0 %v1071
        %v2020 = vpop.f32.mrb[0].mxu0
        %v2021 = vadd.f32 0.0, %v2020
        %v2022 = vpop.f32.mrb[0].mxu0
        %v2023 = vadd.f32 0.0, %v2022
        %2024 = vmatprep.mubr.f32.mxu0 %v1457
        %2025 = vmatmul.mubr.f32.gmra.mrb[0].mxu0 %v1167
        %v2026 = vpop.f32.mrb[0].mxu0
        %v2027 = vadd.f32 0.0, %v2026
        %v2028 = vpop.f32.mrb[0].mxu0
        %v2029 = vadd.f32 0.0, %v2028
        %2030 = vmatprep.mubr.f32.mxu0 %v1460
        %2031 = vmatmul.mubr.f32.gmra.mrb[0].mxu0 %v1169
        %v2032 = vpop.f32.mrb[0].mxu0
        %v2033 = vadd.f32 0.0, %v2032
        %v2034 = vpop.f32.mrb[0].mxu0
        %v2035 = vadd.f32 0.0, %v2034
        %2036 = vmatprep.mubr.f32.mxu0 %v1463
        %2037 = vmatmul.mubr.f32.gmra.mrb[0].mxu0 %v1171
        %v2038 = vpop.f32.mrb[0].mxu0
        %v2039 = vadd.f32 0.0, %v2038
        %v2040 = vpop.f32.mrb[0].mxu0
        %v2041 = vadd.f32 0.0, %v2040
        %2042 = vmatprep.mubr.f32.mxu0 %v1466
        %2043 = vmatmul.mubr.f32.gmra.mrb[0].mxu0 %v1173
        %v2044 = vpop.f32.mrb[0].mxu0
        %v2045 = vadd.f32 0.0, %v2044
        %v2046 = vpop.f32.mrb[0].mxu0
        %v2047 = vadd.f32 0.0, %v2046
        %2048 = vmatprep.mubr.f32.mxu0 %v1469
        %2049 = vmatmul.mubr.f32.gmra.mrb[0].mxu0 %v1175
        %v2050 = vpop.f32.mrb[0].mxu0
        %v2051 = vadd.f32 0.0, %v2050
        %v2052 = vpop.f32.mrb[0].mxu0
        %v2053 = vadd.f32 0.0, %v2052
        %2054 = vmatprep.mubr.f32.mxu0 %v1472
        %2055 = vmatmul.mubr.f32.gmra.mrb[0].mxu0 %v1177
        %v2056 = vpop.f32.mrb[0].mxu0
        %v2057 = vadd.f32 0.0, %v2056
        %v2058 = vpop.f32.mrb[0].mxu0
        %v2059 = vadd.f32 0.0, %v2058
        %2060 = vmatprep.mubr.f32.mxu0 %v1475
        %2061 = vmatmul.mubr.f32.gmra.mrb[0].mxu0 %v1179
        %v2062 = vpop.f32.mrb[0].mxu0
        %v2063 = vadd.f32 0.0, %v2062
        %v2064 = vpop.f32.mrb[0].mxu0
        %v2065 = vadd.f32 0.0, %v2064
        %2066 = vmatprep.mubr.f32.mxu0 %v1478
        %2067 = vmatmul.mubr.f32.gmra.mrb[0].mxu0 %v1181
        %v2068 = vpop.f32.mrb[0].mxu0
        %v2069 = vadd.f32 0.0, %v2068
        %v2070 = vpop.f32.mrb[0].mxu0
        %v2071 = vadd.f32 0.0, %v2070
        %2072 = vmatprep.mubr.f32.mxu0 %v1481
        %2073 = vmatmul.mubr.f32.gmra.mrb[0].mxu0 %v1183
        %v2074 = vpop.f32.mrb[0].mxu0
        %v2075 = vadd.f32 0.0, %v2074
        %v2076 = vpop.f32.mrb[0].mxu0
        %v2077 = vadd.f32 0.0, %v2076
        %2078 = vmatprep.mubr.f32.mxu0 %v1484
        %2079 = vmatmul.mubr.f32.gmra.mrb[0].mxu0 %v1185
        %v2080 = vpop.f32.mrb[0].mxu0
        %v2081 = vadd.f32 0.0, %v2080
        %v2082 = vpop.f32.mrb[0].mxu0
        %v2083 = vadd.f32 0.0, %v2082
        %2084 = vmatprep.mubr.f32.mxu0 %v1487
        %2085 = vmatmul.mubr.f32.gmra.mrb[0].mxu0 %v1187
        %v2086 = vpop.f32.mrb[0].mxu0
        %v2087 = vadd.f32 0.0, %v2086
        %v2088 = vpop.f32.mrb[0].mxu0
        %v2089 = vadd.f32 0.0, %v2088
        %2090 = vmatprep.mubr.f32.mxu0 %v1490
        %2091 = vmatmul.mubr.f32.gmra.mrb[0].mxu0 %v1189
        %v2092 = vpop.f32.mrb[0].mxu0
        %v2093 = vadd.f32 0.0, %v2092
        %v2094 = vpop.f32.mrb[0].mxu0
        %v2095 = vadd.f32 0.0, %v2094
        %2096 = vmatprep.mubr.f32.mxu0 %v1493
        %2097 = vmatmul.mubr.f32.gmra.mrb[0].mxu0 %v1191
        %v2098 = vpop.f32.mrb[0].mxu0
        %v2099 = vadd.f32 0.0, %v2098
        %v2100 = vpop.f32.mrb[0].mxu0
        %v2101 = vadd.f32 0.0, %v2100
        %2102 = vmatprep.mubr.f32.mxu0 %v1496
        %2103 = vmatmul.mubr.f32.gmra.mrb[0].mxu0 %v1193
        %v2104 = vpop.f32.mrb[0].mxu0
        %v2105 = vadd.f32 0.0, %v2104
        %v2106 = vpop.f32.mrb[0].mxu0
        %v2107 = vadd.f32 0.0, %v2106
        %2108 = vmatprep.mubr.f32.mxu0 %v1499
        %2109 = vmatmul.mubr.f32.gmra.mrb[0].mxu0 %v1195
        %v2110 = vpop.f32.mrb[0].mxu0
        %v2111 = vadd.f32 0.0, %v2110
        %v2112 = vpop.f32.mrb[0].mxu0
        %v2113 = vadd.f32 0.0, %v2112
        %2114 = vmatprep.mubr.f32.mxu0 %v1502
        %2115 = vmatmul.mubr.f32.gmra.mrb[0].mxu0 %v1197
        %v2116 = vpop.f32.mrb[0].mxu0
        %v2117 = vadd.f32 0.0, %v2116
        %v2118 = vpop.f32.mrb[0].mxu0
        %v2119 = vadd.f32 0.0, %v2118
        %2120 = vmatprep.mubr.f32.mxu0 %v1505
        %2121 = vmatmul.mubr.f32.gmra.mrb[0].mxu0 %v1199
        %v2122 = vpop.f32.mrb[0].mxu0
        %v2123 = vadd.f32 0.0, %v2122
        %v2124 = vpop.f32.mrb[0].mxu0
        %v2125 = vadd.f32 0.0, %v2124
        %2126 = vmatprep.mubr.f32.mxu0 %v1508
        %2127 = vmatmul.mubr.f32.gmra.mrb[0].mxu0 %v1201
        %v2128 = vpop.f32.mrb[0].mxu0
        %v2129 = vadd.f32 0.0, %v2128
        %v2130 = vpop.f32.mrb[0].mxu0
        %v2131 = vadd.f32 0.0, %v2130
        %2132 = vmatprep.mubr.f32.mxu0 %v1511
        %2133 = vmatmul.mubr.f32.gmra.mrb[0].mxu0 %v1203
        %v2134 = vpop.f32.mrb[0].mxu0
        %v2135 = vadd.f32 0.0, %v2134
        %v2136 = vpop.f32.mrb[0].mxu0
        %v2137 = vadd.f32 0.0, %v2136
        %2138 = vmatprep.mubr.f32.mxu0 %v1514
        %2139 = vmatmul.mubr.f32.gmra.mrb[0].mxu0 %v1205
        %v2140 = vpop.f32.mrb[0].mxu0
        %v2141 = vadd.f32 0.0, %v2140
        %v2142 = vpop.f32.mrb[0].mxu0
        %v2143 = vadd.f32 0.0, %v2142
        %2144 = vmatprep.mubr.f32.mxu0 %v1517
        %2145 = vmatmul.mubr.f32.gmra.mrb[0].mxu0 %v1207
        %v2146 = vpop.f32.mrb[0].mxu0
        %v2147 = vadd.f32 0.0, %v2146
        %v2148 = vpop.f32.mrb[0].mxu0
        %v2149 = vadd.f32 0.0, %v2148
        %2150 = vmatprep.mubr.f32.mxu0 %v1520
        %2151 = vmatmul.mubr.f32.gmra.mrb[0].mxu0 %v1209
        %v2152 = vpop.f32.mrb[0].mxu0
        %v2153 = vadd.f32 0.0, %v2152
        %v2154 = vpop.f32.mrb[0].mxu0
        %v2155 = vadd.f32 0.0, %v2154
        %2156 = vmatprep.mubr.f32.mxu0 %v1523
        %2157 = vmatmul.mubr.f32.gmra.mrb[0].mxu0 %v1211
        %v2158 = vpop.f32.mrb[0].mxu0
        %v2159 = vadd.f32 0.0, %v2158
        %v2160 = vpop.f32.mrb[0].mxu0
        %v2161 = vadd.f32 0.0, %v2160
        %2162 = vmatprep.mubr.f32.mxu0 %v1526
        %2163 = vmatmul.mubr.f32.gmra.mrb[0].mxu0 %v1213
        %v2164 = vpop.f32.mrb[0].mxu0
        %v2165 = vadd.f32 0.0, %v2164
        %v2166 = vpop.f32.mrb[0].mxu0
        %v2167 = vadd.f32 0.0, %v2166
        %2168 = vmatprep.mubr.f32.mxu0 %v1529
        %2169 = vmatmul.mubr.f32.gmra.mrb[0].mxu0 %v1215
        %v2170 = vpop.f32.mrb[0].mxu0
        %v2171 = vadd.f32 0.0, %v2170
        %v2172 = vpop.f32.mrb[0].mxu0
        %v2173 = vadd.f32 0.0, %v2172
        %2174 = vmatprep.mubr.f32.mxu0 %v1532
        %2175 = vmatmul.mubr.f32.gmra.mrb[0].mxu0 %v1217
        %v2176 = vpop.f32.mrb[0].mxu0
        %v2177 = vadd.f32 0.0, %v2176
        %v2178 = vpop.f32.mrb[0].mxu0
        %v2179 = vadd.f32 0.0, %v2178
        %2180 = vmatprep.mubr.f32.mxu0 %v1535
        %2181 = vmatmul.mubr.f32.gmra.mrb[0].mxu0 %v1219
        %v2182 = vpop.f32.mrb[0].mxu0
        %v2183 = vadd.f32 0.0, %v2182
        %v2184 = vpop.f32.mrb[0].mxu0
        %v2185 = vadd.f32 0.0, %v2184
        %2186 = vmatprep.mubr.f32.mxu0 %v1538
        %2187 = vmatmul.mubr.f32.gmra.mrb[0].mxu0 %v1221
        %v2188 = vpop.f32.mrb[0].mxu0
        %v2189 = vadd.f32 0.0, %v2188
        %v2190 = vpop.f32.mrb[0].mxu0
        %v2191 = vadd.f32 0.0, %v2190
        %2192 = vmatprep.mubr.f32.mxu0 %v1541
        %2193 = vmatmul.mubr.f32.gmra.mrb[0].mxu0 %v1223
        %v2194 = vpop.f32.mrb[0].mxu0
        %v2195 = vadd.f32 0.0, %v2194
        %v2196 = vpop.f32.mrb[0].mxu0
        %v2197 = vadd.f32 0.0, %v2196
        %2198 = vmatprep.mubr.f32.mxu0 %v1544
        %2199 = vmatmul.mubr.f32.gmra.mrb[0].mxu0 %v1225
        %v2200 = vpop.f32.mrb[0].mxu0
        %v2201 = vadd.f32 0.0, %v2200
        %v2202 = vpop.f32.mrb[0].mxu0
        %v2203 = vadd.f32 0.0, %v2202
        %2204 = vmatprep.mubr.f32.mxu0 %v1547
        %2205 = vmatmul.mubr.f32.gmra.mrb[0].mxu0 %v1227
        %v2206 = vpop.f32.mrb[0].mxu0
        %v2207 = vadd.f32 0.0, %v2206
        %v2208 = vpop.f32.mrb[0].mxu0
        %v2209 = vadd.f32 0.0, %v2208
        %2210 = vmatprep.mubr.f32.mxu0 %v1550
        %2211 = vmatmul.mubr.f32.gmra.mrb[0].mxu0 %v1229
        %v2212 = vpop.f32.mrb[0].mxu0
        %v2213 = vadd.f32 0.0, %v2212
        %v2214 = vpop.f32.mrb[0].mxu0
        %v2215 = vadd.f32 0.0, %v2214
        %2216 = vmatprep.mubr.f32.mxu0 %v1553
        %2217 = vmatmul.mubr.f32.gmra.mrb[0].mxu0 %v1231
        %v2218 = vpop.f32.mrb[0].mxu0
        %v2219 = vadd.f32 0.0, %v2218
        %v2220 = vpop.f32.mrb[0].mxu0
        %v2221 = vadd.f32 0.0, %v2220
        %2222 = vmatprep.mubr.f32.mxu0 %v1556
        %2223 = vmatmul.mubr.f32.gmra.mrb[0].mxu0 %v1233
        %v2224 = vpop.f32.mrb[0].mxu0
        %v2225 = vadd.f32 0.0, %v2224
        %v2226 = vpop.f32.mrb[0].mxu0
        %v2227 = vadd.f32 0.0, %v2226
        %2228 = vmatprep.mubr.f32.mxu0 %v1559
        %2229 = vmatmul.mubr.f32.gmra.mrb[0].mxu0 %v1235
        %v2230 = vpop.f32.mrb[0].mxu0
        %v2231 = vadd.f32 0.0, %v2230
        %v2232 = vpop.f32.mrb[0].mxu0
        %v2233 = vadd.f32 0.0, %v2232
        %2234 = vmatprep.mubr.f32.mxu0 %v1562
        %2235 = vmatmul.mubr.f32.gmra.mrb[0].mxu0 %v1237
        %v2236 = vpop.f32.mrb[0].mxu0
        %v2237 = vadd.f32 0.0, %v2236
        %v2238 = vpop.f32.mrb[0].mxu0
        %v2239 = vadd.f32 0.0, %v2238
        %2240 = vmatprep.mubr.f32.mxu0 %v1565
        %2241 = vmatmul.mubr.f32.gmra.mrb[0].mxu0 %v1239
        %v2242 = vpop.f32.mrb[0].mxu0
        %v2243 = vadd.f32 0.0, %v2242
        %v2244 = vpop.f32.mrb[0].mxu0
        %v2245 = vadd.f32 0.0, %v2244
        %2246 = vmatprep.mubr.f32.mxu0 %v1568
        %2247 = vmatmul.mubr.f32.gmra.mrb[0].mxu0 %v1241
        %v2248 = vpop.f32.mrb[0].mxu0
        %v2249 = vadd.f32 0.0, %v2248
        %v2250 = vpop.f32.mrb[0].mxu0
        %v2251 = vadd.f32 0.0, %v2250
        %2252 = vmatprep.mubr.f32.mxu0 %v1571
        %2253 = vmatmul.mubr.f32.gmra.mrb[0].mxu0 %v1243
        %v2254 = vpop.f32.mrb[0].mxu0
        %v2255 = vadd.f32 0.0, %v2254
        %v2256 = vpop.f32.mrb[0].mxu0
        %v2257 = vadd.f32 0.0, %v2256
        %2258 = vmatprep.mubr.f32.mxu0 %v1574
        %2259 = vmatmul.mubr.f32.gmra.mrb[0].mxu0 %v1245
        %v2260 = vpop.f32.mrb[0].mxu0
        %v2261 = vadd.f32 0.0, %v2260
        %v2262 = vpop.f32.mrb[0].mxu0
        %v2263 = vadd.f32 0.0, %v2262
        %2264 = vmatprep.mubr.f32.mxu0 %v1577
        %2265 = vmatmul.mubr.f32.gmra.mrb[0].mxu0 %v1247
        %v2266 = vpop.f32.mrb[0].mxu0
        %v2267 = vadd.f32 0.0, %v2266
        %v2268 = vpop.f32.mrb[0].mxu0
        %v2269 = vadd.f32 0.0, %v2268
        %2270 = vmatprep.mubr.f32.mxu0 %v1580
        %2271 = vmatmul.mubr.f32.gmra.mrb[0].mxu0 %v1249
        %v2272 = vpop.f32.mrb[0].mxu0
        %v2273 = vadd.f32 0.0, %v2272
        %v2274 = vpop.f32.mrb[0].mxu0
        %v2275 = vadd.f32 0.0, %v2274
        %2276 = vmatprep.mubr.f32.mxu0 %v1583
        %2277 = vmatmul.mubr.f32.gmra.mrb[0].mxu0 %v1251
        %v2278 = vpop.f32.mrb[0].mxu0
        %v2279 = vadd.f32 0.0, %v2278
        %v2280 = vpop.f32.mrb[0].mxu0
        %v2281 = vadd.f32 0.0, %v2280
        %2282 = vmatprep.mubr.f32.mxu0 %v1586
        %2283 = vmatmul.mubr.f32.gmra.mrb[0].mxu0 %v1253
        %v2284 = vpop.f32.mrb[0].mxu0
        %v2285 = vadd.f32 0.0, %v2284
        %v2286 = vpop.f32.mrb[0].mxu0
        %v2287 = vadd.f32 0.0, %v2286
        %2288 = vmatprep.mubr.f32.mxu0 %v1589
        %2289 = vmatmul.mubr.f32.gmra.mrb[0].mxu0 %v1255
        %v2290 = vpop.f32.mrb[0].mxu0
        %v2291 = vadd.f32 0.0, %v2290
        %v2292 = vpop.f32.mrb[0].mxu0
        %v2293 = vadd.f32 0.0, %v2292
        %2294 = vmatprep.mubr.f32.mxu0 %v1592
        %2295 = vmatmul.mubr.f32.gmra.mrb[0].mxu0 %v1257
        %v2296 = vpop.f32.mrb[0].mxu0
        %v2297 = vadd.f32 0.0, %v2296
        %v2298 = vpop.f32.mrb[0].mxu0
        %v2299 = vadd.f32 0.0, %v2298
        %2300 = vmatprep.mubr.f32.mxu0 %v1595
        %2301 = vmatmul.mubr.f32.gmra.mrb[0].mxu0 %v1259
        %v2302 = vpop.f32.mrb[0].mxu0
        %v2303 = vadd.f32 0.0, %v2302
        %v2304 = vpop.f32.mrb[0].mxu0
        %v2305 = vadd.f32 0.0, %v2304
        %2306 = vmatprep.mubr.f32.mxu0 %v1598
        %2307 = vmatmul.mubr.f32.gmra.mrb[0].mxu0 %v1261
        %v2308 = vpop.f32.mrb[0].mxu0
        %v2309 = vadd.f32 0.0, %v2308
        %v2310 = vpop.f32.mrb[0].mxu0
        %v2311 = vadd.f32 0.0, %v2310
        %2312 = vmatprep.mubr.f32.mxu0 %v1601
        %2313 = vmatmul.mubr.f32.gmra.mrb[0].mxu0 %v1263
        %v2314 = vpop.f32.mrb[0].mxu0
        %v2315 = vadd.f32 0.0, %v2314
        %v2316 = vpop.f32.mrb[0].mxu0
        %v2317 = vadd.f32 0.0, %v2316
        %2318 = vmatprep.mubr.f32.mxu0 %v1604
        %2319 = vmatmul.mubr.f32.gmra.mrb[0].mxu0 %v1265
        %v2320 = vpop.f32.mrb[0].mxu0
        %v2321 = vadd.f32 0.0, %v2320
        %v2322 = vpop.f32.mrb[0].mxu0
        %v2323 = vadd.f32 0.0, %v2322
        %2324 = vmatprep.mubr.f32.mxu0 %v1607
        %2325 = vmatmul.mubr.f32.gmra.mrb[0].mxu0 %v1267
        %v2326 = vpop.f32.mrb[0].mxu0
        %v2327 = vadd.f32 0.0, %v2326
        %v2328 = vpop.f32.mrb[0].mxu0
        %v2329 = vadd.f32 0.0, %v2328
        %2330 = vmatprep.mubr.f32.mxu0 %v1610
        %2331 = vmatmul.mubr.f32.gmra.mrb[0].mxu0 %v1269
        %v2332 = vpop.f32.mrb[0].mxu0
        %v2333 = vadd.f32 0.0, %v2332
        %v2334 = vpop.f32.mrb[0].mxu0
        %v2335 = vadd.f32 0.0, %v2334
        %2336 = vmatprep.mubr.f32.mxu0 %v1613
        %2337 = vmatmul.mubr.f32.gmra.mrb[0].mxu0 %v1271
        %v2338 = vpop.f32.mrb[0].mxu0
        %v2339 = vadd.f32 0.0, %v2338
        %v2340 = vpop.f32.mrb[0].mxu0
        %v2341 = vadd.f32 0.0, %v2340
        %2342 = vmatprep.mubr.f32.mxu0 %v1616
        %2343 = vmatmul.mubr.f32.gmra.mrb[0].mxu0 %v1273
        %v2344 = vpop.f32.mrb[0].mxu0
        %v2345 = vadd.f32 0.0, %v2344
        %v2346 = vpop.f32.mrb[0].mxu0
        %v2347 = vadd.f32 0.0, %v2346
        %2348 = vmatprep.mubr.f32.mxu0 %v1619
        %2349 = vmatmul.mubr.f32.gmra.mrb[0].mxu0 %v1275
        %v2350 = vpop.f32.mrb[0].mxu0
        %v2351 = vadd.f32 0.0, %v2350
        %v2352 = vpop.f32.mrb[0].mxu0
        %v2353 = vadd.f32 0.0, %v2352
        %2354 = vmatprep.mubr.f32.mxu0 %v1622
        %2355 = vmatmul.mubr.f32.gmra.mrb[0].mxu0 %v1277
        %v2356 = vpop.f32.mrb[0].mxu0
        %v2357 = vadd.f32 0.0, %v2356
        %v2358 = vpop.f32.mrb[0].mxu0
        %v2359 = vadd.f32 0.0, %v2358
        %2360 = vmatprep.mubr.f32.mxu0 %v1625
        %2361 = vmatmul.mubr.f32.gmra.mrb[0].mxu0 %v1279
        %v2362 = vpop.f32.mrb[0].mxu0
        %v2363 = vadd.f32 0.0, %v2362
        %v2364 = vpop.f32.mrb[0].mxu0
        %v2365 = vadd.f32 0.0, %v2364
        %2366 = vmatprep.mubr.f32.mxu0 %v1628
        %2367 = vmatmul.mubr.f32.gmra.mrb[0].mxu0 %v1281
        %v2368 = vpop.f32.mrb[0].mxu0
        %v2369 = vadd.f32 0.0, %v2368
        %v2370 = vpop.f32.mrb[0].mxu0
        %v2371 = vadd.f32 0.0, %v2370
        %2372 = vmatprep.mubr.f32.mxu0 %v1631
        %2373 = vmatmul.mubr.f32.gmra.mrb[0].mxu0 %v1283
        %v2374 = vpop.f32.mrb[0].mxu0
        %v2375 = vadd.f32 0.0, %v2374
        %v2376 = vpop.f32.mrb[0].mxu0
        %v2377 = vadd.f32 0.0, %v2376
        %2378 = vmatprep.mubr.f32.mxu0 %v1634
        %2379 = vmatmul.mubr.f32.gmra.mrb[0].mxu0 %v1285
        %v2380 = vpop.f32.mrb[0].mxu0
        %v2381 = vadd.f32 0.0, %v2380
        %v2382 = vpop.f32.mrb[0].mxu0
        %v2383 = vadd.f32 0.0, %v2382
        %2384 = vmatprep.mubr.f32.mxu0 %v1637
        %2385 = vmatmul.mubr.f32.gmra.mrb[0].mxu0 %v1287
        %v2386 = vpop.f32.mrb[0].mxu0
        %v2387 = vadd.f32 0.0, %v2386
        %v2388 = vpop.f32.mrb[0].mxu0
        %v2389 = vadd.f32 0.0, %v2388
        %2390 = vmatprep.mubr.f32.mxu0 %v1640
        %2391 = vmatmul.mubr.f32.gmra.mrb[0].mxu0 %v1289
        %v2392 = vpop.f32.mrb[0].mxu0
        %v2393 = vadd.f32 0.0, %v2392
        %v2394 = vpop.f32.mrb[0].mxu0
        %v2395 = vadd.f32 0.0, %v2394
        %2396 = vmatprep.mubr.f32.mxu0 %v1643
        %2397 = vmatmul.mubr.f32.gmra.mrb[0].mxu0 %v1291
        %v2398 = vpop.f32.mrb[0].mxu0
        %v2399 = vadd.f32 0.0, %v2398
        %v2400 = vpop.f32.mrb[0].mxu0
        %v2401 = vadd.f32 0.0, %v2400
        %2402 = vmatprep.mubr.f32.mxu0 %v1646
        %2403 = vmatmul.mubr.f32.gmra.mrb[0].mxu0 %v1293
        %v2404 = vpop.f32.mrb[0].mxu0
        %v2405 = vadd.f32 0.0, %v2404
        %v2406 = vpop.f32.mrb[0].mxu0
        %v2407 = vadd.f32 0.0, %v2406
        %2408 = vmatprep.mubr.f32.mxu0 %v1649
        %2409 = vmatmul.mubr.f32.gmra.mrb[0].mxu0 %v1295
        %v2410 = vpop.f32.mrb[0].mxu0
        %v2411 = vadd.f32 0.0, %v2410
        %v2412 = vpop.f32.mrb[0].mxu0
        %v2413 = vadd.f32 0.0, %v2412
        %2414 = vmatprep.mubr.f32.mxu0 %v1652
        %2415 = vmatmul.mubr.f32.gmra.mrb[0].mxu0 %v1297
        %v2416 = vpop.f32.mrb[0].mxu0
        %v2417 = vadd.f32 0.0, %v2416
        %v2418 = vpop.f32.mrb[0].mxu0
        %v2419 = vadd.f32 0.0, %v2418
        %2420 = vmatprep.mubr.f32.mxu0 %v1655
        %2421 = vmatmul.mubr.f32.gmra.mrb[0].mxu0 %v1299
        %v2422 = vpop.f32.mrb[0].mxu0
        %v2423 = vadd.f32 0.0, %v2422
        %v2424 = vpop.f32.mrb[0].mxu0
        %v2425 = vadd.f32 0.0, %v2424
        %2426 = vmatprep.mubr.f32.mxu0 %v1658
        %2427 = vmatmul.mubr.f32.gmra.mrb[0].mxu0 %v1301
        %v2428 = vpop.f32.mrb[0].mxu0
        %v2429 = vadd.f32 0.0, %v2428
        %v2430 = vpop.f32.mrb[0].mxu0
        %v2431 = vadd.f32 0.0, %v2430
        %2432 = vmatprep.mubr.f32.mxu0 %v1661
        %2433 = vmatmul.mubr.f32.gmra.mrb[0].mxu0 %v1303
        %v2434 = vpop.f32.mrb[0].mxu0
        %v2435 = vadd.f32 0.0, %v2434
        %v2436 = vpop.f32.mrb[0].mxu0
        %v2437 = vadd.f32 0.0, %v2436
        %2438 = vmatprep.mubr.f32.mxu0 %v1664
        %2439 = vmatmul.mubr.f32.gmra.mrb[0].mxu0 %v1305
        %v2440 = vpop.f32.mrb[0].mxu0
        %v2441 = vadd.f32 0.0, %v2440
        %v2442 = vpop.f32.mrb[0].mxu0
        %v2443 = vadd.f32 0.0, %v2442
        %2444 = vmatprep.mubr.f32.mxu0 %v1667
        %2445 = vmatmul.mubr.f32.gmra.mrb[0].mxu0 %v1307
        %v2446 = vpop.f32.mrb[0].mxu0
        %v2447 = vadd.f32 0.0, %v2446
        %v2448 = vpop.f32.mrb[0].mxu0
        %v2449 = vadd.f32 0.0, %v2448
        %2450 = vmatprep.mubr.f32.mxu0 %v1670
        %2451 = vmatmul.mubr.f32.gmra.mrb[0].mxu0 %v1309
        %v2452 = vpop.f32.mrb[0].mxu0
        %v2453 = vadd.f32 0.0, %v2452
        %v2454 = vpop.f32.mrb[0].mxu0
        %v2455 = vadd.f32 0.0, %v2454
        %2456 = vdwg.mxu0
        %v2458 = vsel %vm1311, %v1122, 0
        %v2461 = vsel %vm1311, %v1124, 0
        %v2464 = vsel %vm1311, %v1126, 0
        %v2467 = vsel %vm1311, %v1128, 0
        %v2470 = vsel %vm1311, %v1130, 0
        %v2473 = vsel %vm1311, %v1132, 0
        %v2476 = vsel %vm1311, %v1134, 0
        %v2479 = vsel %vm1311, %v1136, 0
        %v2482 = vsel %vm1311, %v1138, 0
        %v2485 = vsel %vm1311, %v1140, 0
        %v2488 = vsel %vm1311, %v1142, 0
        %v2491 = vsel %vm1311, %v1144, 0
        %v2494 = vsel %vm1311, %v1146, 0
        %v2497 = vsel %vm1311, %v1148, 0
        %v2500 = vsel %vm1311, %v1150, 0
        %v2503 = vsel %vm1311, %v1152, 0
        %v2506 = vsel %vm1311, %v1154, 0
        %v2509 = vsel %vm1311, %v1156, 0
        %v2512 = vsel %vm1311, %v1158, 0
        %v2515 = vsel %vm1311, %v1160, 0
        %v2518 = vsel %vm1311, %v1162, 0
        %v2521 = vsel %vm1311, %v1164, 0
        %v2524 = vsel %vm1311, %v1166, 0
        %2526 = vmatprep.subr.mxu0 %v1741
        %2527 = vmatpush1.msra.mxu0 %v1739
        %2528 = vmatprep.subr.mxu0 %v1747
        %2529 = vmatpush1.msra.mxu0 %v1745
        %2530 = vmatprep.subr.mxu0 %v1753
        %2531 = vmatpush1.msra.mxu0 %v1751
        %2532 = vmatprep.subr.mxu0 %v1759
        %2533 = vmatpush1.msra.mxu0 %v1757
        %2534 = vmatprep.subr.mxu0 %v1765
        %2535 = vmatpush1.msra.mxu0 %v1763
        %2536 = vmatprep.subr.mxu0 %v1771
        %2537 = vmatpush1.msra.mxu0 %v1769
        %2538 = vmatprep.subr.mxu0 %v1777
        %2539 = vmatpush1.msra.mxu0 %v1775
        %2540 = vmatprep.subr.mxu0 %v1783
        %2541 = vmatpush1.msra.mxu0 %v1781
        %2542 = vmatprep.subr.mxu0 %v1789
        %2543 = vmatpush1.msra.mxu0 %v1787
        %2544 = vmatprep.subr.mxu0 %v1795
        %2545 = vmatpush1.msra.mxu0 %v1793
        %2546 = vmatprep.subr.mxu0 %v1801
        %2547 = vmatpush1.msra.mxu0 %v1799
        %2548 = vmatprep.subr.mxu0 %v1807
        %2549 = vmatpush1.msra.mxu0 %v1805
        %2550 = vmatprep.subr.mxu0 %v1813
        %2551 = vmatpush1.msra.mxu0 %v1811
        %2552 = vmatprep.subr.mxu0 %v1819
        %2553 = vmatpush1.msra.mxu0 %v1817
        %2554 = vmatprep.subr.mxu0 %v1825
        %2555 = vmatpush1.msra.mxu0 %v1823
        %2556 = vmatprep.subr.mxu0 %v1831
        %2557 = vmatpush1.msra.mxu0 %v1829
        %2558 = vmatprep.subr.mxu0 %v1837
        %2559 = vmatpush1.msra.mxu0 %v1835
        %2560 = vmatprep.subr.mxu0 %v1843
        %2561 = vmatpush1.msra.mxu0 %v1841
        %2562 = vmatprep.subr.mxu0 %v1849
        %2563 = vmatpush1.msra.mxu0 %v1847
        %2564 = vmatprep.subr.mxu0 %v1855
        %2565 = vmatpush1.msra.mxu0 %v1853
        %2566 = vmatprep.subr.mxu0 %v1861
        %2567 = vmatpush1.msra.mxu0 %v1859
        %2568 = vmatprep.subr.mxu0 %v1867
        %2569 = vmatpush1.msra.mxu0 %v1865
        %2570 = vmatprep.subr.mxu0 %v1873
        %2571 = vmatpush1.msra.mxu0 %v1871
        %2572 = vmatprep.subr.mxu0 %v1879
        %2573 = vmatpush1.msra.mxu0 %v1877
        %2574 = vmatprep.subr.mxu0 0.0
        %2575 = vmatpush1.msra.mxu0 0.0
        %2576 = vmatprep.subr.mxu0 0.0
        %2577 = vmatpush1.msra.mxu0 0.0
        %2578 = vmatprep.subr.mxu0 0.0
        %2579 = vmatpush1.msra.mxu0 0.0
        %2580 = vmatprep.subr.mxu0 0.0
        %2581 = vmatpush1.msra.mxu0 0.0
        %2582 = vmatprep.subr.mxu0 0.0
        %2583 = vmatpush1.msra.mxu0 0.0
        %2584 = vmatprep.subr.mxu0 0.0
        %2585 = vmatpush1.msra.mxu0 0.0
        %2586 = vmatprep.subr.mxu0 0.0
        %2587 = vmatpush1.msra.mxu0 0.0
        %2588 = vmatprep.subr.mxu0 0.0
        %2589 = vmatpush1.msra.mxu0 0.0
        %2590 = vmatprep.mubr.f32.mxu0 %v2458
        %2591 = vmatmul.mubr.f32.gmra.mrb[0].mxu0 %v1121
        %v2592 = vpop.f32.mrb[0].mxu0
        %v2593 = vadd.f32 0.0, %v2592
        %v2594 = vpop.f32.mrb[0].mxu0
        %v2595 = vadd.f32 0.0, %v2594
        %2596 = vmatprep.mubr.f32.mxu0 %v2461
        %2597 = vmatmul.mubr.f32.gmra.mrb[0].mxu0 %v1123
        %v2598 = vpop.f32.mrb[0].mxu0
        %v2599 = vadd.f32 0.0, %v2598
        %v2600 = vpop.f32.mrb[0].mxu0
        %v2601 = vadd.f32 0.0, %v2600
        %2602 = vmatprep.mubr.f32.mxu0 %v2464
        %2603 = vmatmul.mubr.f32.gmra.mrb[0].mxu0 %v1125
        %v2604 = vpop.f32.mrb[0].mxu0
        %v2605 = vadd.f32 0.0, %v2604
        %v2606 = vpop.f32.mrb[0].mxu0
        %v2607 = vadd.f32 0.0, %v2606
        %2608 = vmatprep.mubr.f32.mxu0 %v2467
        %2609 = vmatmul.mubr.f32.gmra.mrb[0].mxu0 %v1127
        %v2610 = vpop.f32.mrb[0].mxu0
        %v2611 = vadd.f32 0.0, %v2610
        %v2612 = vpop.f32.mrb[0].mxu0
        %v2613 = vadd.f32 0.0, %v2612
        %2614 = vmatprep.mubr.f32.mxu0 %v2470
        %2615 = vmatmul.mubr.f32.gmra.mrb[0].mxu0 %v1129
        %v2616 = vpop.f32.mrb[0].mxu0
        %v2617 = vadd.f32 0.0, %v2616
        %v2618 = vpop.f32.mrb[0].mxu0
        %v2619 = vadd.f32 0.0, %v2618
        %2620 = vmatprep.mubr.f32.mxu0 %v2473
        %2621 = vmatmul.mubr.f32.gmra.mrb[0].mxu0 %v1131
        %v2622 = vpop.f32.mrb[0].mxu0
        %v2623 = vadd.f32 0.0, %v2622
        %v2624 = vpop.f32.mrb[0].mxu0
        %v2625 = vadd.f32 0.0, %v2624
        %2626 = vmatprep.mubr.f32.mxu0 %v2476
        %2627 = vmatmul.mubr.f32.gmra.mrb[0].mxu0 %v1133
        %v2628 = vpop.f32.mrb[0].mxu0
        %v2629 = vadd.f32 0.0, %v2628
        %v2630 = vpop.f32.mrb[0].mxu0
        %v2631 = vadd.f32 0.0, %v2630
        %2632 = vmatprep.mubr.f32.mxu0 %v2479
        %2633 = vmatmul.mubr.f32.gmra.mrb[0].mxu0 %v1135
        %v2634 = vpop.f32.mrb[0].mxu0
        %v2635 = vadd.f32 0.0, %v2634
        %v2636 = vpop.f32.mrb[0].mxu0
        %v2637 = vadd.f32 0.0, %v2636
        %2638 = vmatprep.mubr.f32.mxu0 %v2482
        %2639 = vmatmul.mubr.f32.gmra.mrb[0].mxu0 %v1137
        %v2640 = vpop.f32.mrb[0].mxu0
        %v2641 = vadd.f32 0.0, %v2640
        %v2642 = vpop.f32.mrb[0].mxu0
        %v2643 = vadd.f32 0.0, %v2642
        %2644 = vmatprep.mubr.f32.mxu0 %v2485
        %2645 = vmatmul.mubr.f32.gmra.mrb[0].mxu0 %v1139
        %v2646 = vpop.f32.mrb[0].mxu0
        %v2647 = vadd.f32 0.0, %v2646
        %v2648 = vpop.f32.mrb[0].mxu0
        %v2649 = vadd.f32 0.0, %v2648
        %2650 = vmatprep.mubr.f32.mxu0 %v2488
        %2651 = vmatmul.mubr.f32.gmra.mrb[0].mxu0 %v1141
        %v2652 = vpop.f32.mrb[0].mxu0
        %v2653 = vadd.f32 0.0, %v2652
        %v2654 = vpop.f32.mrb[0].mxu0
        %v2655 = vadd.f32 0.0, %v2654
        %2656 = vmatprep.mubr.f32.mxu0 %v2491
        %2657 = vmatmul.mubr.f32.gmra.mrb[0].mxu0 %v1143
        %v2658 = vpop.f32.mrb[0].mxu0
        %v2659 = vadd.f32 0.0, %v2658
        %v2660 = vpop.f32.mrb[0].mxu0
        %v2661 = vadd.f32 0.0, %v2660
        %2662 = vmatprep.mubr.f32.mxu0 %v2494
        %2663 = vmatmul.mubr.f32.gmra.mrb[0].mxu0 %v1145
        %v2664 = vpop.f32.mrb[0].mxu0
        %v2665 = vadd.f32 0.0, %v2664
        %v2666 = vpop.f32.mrb[0].mxu0
        %v2667 = vadd.f32 0.0, %v2666
        %2668 = vmatprep.mubr.f32.mxu0 %v2497
        %2669 = vmatmul.mubr.f32.gmra.mrb[0].mxu0 %v1147
        %v2670 = vpop.f32.mrb[0].mxu0
        %v2671 = vadd.f32 0.0, %v2670
        %v2672 = vpop.f32.mrb[0].mxu0
        %v2673 = vadd.f32 0.0, %v2672
        %2674 = vmatprep.mubr.f32.mxu0 %v2500
        %2675 = vmatmul.mubr.f32.gmra.mrb[0].mxu0 %v1149
        %v2676 = vpop.f32.mrb[0].mxu0
        %v2677 = vadd.f32 0.0, %v2676
        %v2678 = vpop.f32.mrb[0].mxu0
        %v2679 = vadd.f32 0.0, %v2678
        %2680 = vmatprep.mubr.f32.mxu0 %v2503
        %2681 = vmatmul.mubr.f32.gmra.mrb[0].mxu0 %v1151
        %v2682 = vpop.f32.mrb[0].mxu0
        %v2683 = vadd.f32 0.0, %v2682
        %v2684 = vpop.f32.mrb[0].mxu0
        %v2685 = vadd.f32 0.0, %v2684
        %2686 = vmatprep.mubr.f32.mxu0 %v2506
        %2687 = vmatmul.mubr.f32.gmra.mrb[0].mxu0 %v1153
        %v2688 = vpop.f32.mrb[0].mxu0
        %v2689 = vadd.f32 0.0, %v2688
        %v2690 = vpop.f32.mrb[0].mxu0
        %v2691 = vadd.f32 0.0, %v2690
        %2692 = vmatprep.mubr.f32.mxu0 %v2509
        %2693 = vmatmul.mubr.f32.gmra.mrb[0].mxu0 %v1155
        %v2694 = vpop.f32.mrb[0].mxu0
        %v2695 = vadd.f32 0.0, %v2694
        %v2696 = vpop.f32.mrb[0].mxu0
        %v2697 = vadd.f32 0.0, %v2696
        %2698 = vmatprep.mubr.f32.mxu0 %v2512
        %2699 = vmatmul.mubr.f32.gmra.mrb[0].mxu0 %v1157
        %v2700 = vpop.f32.mrb[0].mxu0
        %v2701 = vadd.f32 0.0, %v2700
        %v2702 = vpop.f32.mrb[0].mxu0
        %v2703 = vadd.f32 0.0, %v2702
        %2704 = vmatprep.mubr.f32.mxu0 %v2515
        %2705 = vmatmul.mubr.f32.gmra.mrb[0].mxu0 %v1159
        %v2706 = vpop.f32.mrb[0].mxu0
        %v2707 = vadd.f32 0.0, %v2706
        %v2708 = vpop.f32.mrb[0].mxu0
        %v2709 = vadd.f32 0.0, %v2708
        %2710 = vmatprep.mubr.f32.mxu0 %v2518
        %2711 = vmatmul.mubr.f32.gmra.mrb[0].mxu0 %v1161
        %v2712 = vpop.f32.mrb[0].mxu0
        %v2713 = vadd.f32 0.0, %v2712
        %v2714 = vpop.f32.mrb[0].mxu0
        %v2715 = vadd.f32 0.0, %v2714
        %2716 = vmatprep.mubr.f32.mxu0 %v2521
        %2717 = vmatmul.mubr.f32.gmra.mrb[0].mxu0 %v1163
        %v2718 = vpop.f32.mrb[0].mxu0
        %v2719 = vadd.f32 0.0, %v2718
        %v2720 = vpop.f32.mrb[0].mxu0
        %v2721 = vadd.f32 0.0, %v2720
        %2722 = vmatprep.mubr.f32.mxu0 %v2524
        %2723 = vmatmul.mubr.f32.gmra.mrb[0].mxu0 %v1165
        %v2724 = vpop.f32.mrb[0].mxu0
        %v2725 = vadd.f32 0.0, %v2724
        %v2726 = vpop.f32.mrb[0].mxu0
        %v2727 = vadd.f32 0.0, %v2726
        %2728 = vdwg.mxu0
        %2729 = vmatprep.subr.mxu0 %v1885
        %2730 = vmatpush1.msra.mxu0 %v1883
        %2731 = vmatprep.subr.mxu0 %v1891
        %2732 = vmatpush1.msra.mxu0 %v1889
        %2733 = vmatprep.subr.mxu0 %v1897
        %2734 = vmatpush1.msra.mxu0 %v1895
        %2735 = vmatprep.subr.mxu0 %v1903
        %2736 = vmatpush1.msra.mxu0 %v1901
        %2737 = vmatprep.subr.mxu0 %v1909
        %2738 = vmatpush1.msra.mxu0 %v1907
        %2739 = vmatprep.subr.mxu0 %v1915
        %2740 = vmatpush1.msra.mxu0 %v1913
        %2741 = vmatprep.subr.mxu0 %v1921
        %2742 = vmatpush1.msra.mxu0 %v1919
        %2743 = vmatprep.subr.mxu0 %v1927
        %2744 = vmatpush1.msra.mxu0 %v1925
        %2745 = vmatprep.subr.mxu0 %v1933
        %2746 = vmatpush1.msra.mxu0 %v1931
        %2747 = vmatprep.subr.mxu0 %v1939
        %2748 = vmatpush1.msra.mxu0 %v1937
        %2749 = vmatprep.subr.mxu0 %v1945
        %2750 = vmatpush1.msra.mxu0 %v1943
        %2751 = vmatprep.subr.mxu0 %v1951
        %2752 = vmatpush1.msra.mxu0 %v1949
        %2753 = vmatprep.subr.mxu0 %v1957
        %2754 = vmatpush1.msra.mxu0 %v1955
        %2755 = vmatprep.subr.mxu0 %v1963
        %2756 = vmatpush1.msra.mxu0 %v1961
        %2757 = vmatprep.subr.mxu0 %v1969
        %2758 = vmatpush1.msra.mxu0 %v1967
        %2759 = vmatprep.subr.mxu0 %v1975
        %2760 = vmatpush1.msra.mxu0 %v1973
        %2761 = vmatprep.subr.mxu0 %v1981
        %2762 = vmatpush1.msra.mxu0 %v1979
        %2763 = vmatprep.subr.mxu0 %v1987
        %2764 = vmatpush1.msra.mxu0 %v1985
        %2765 = vmatprep.subr.mxu0 %v1993
        %2766 = vmatpush1.msra.mxu0 %v1991
        %2767 = vmatprep.subr.mxu0 %v1999
        %2768 = vmatpush1.msra.mxu0 %v1997
        %2769 = vmatprep.subr.mxu0 %v2005
        %2770 = vmatpush1.msra.mxu0 %v2003
        %2771 = vmatprep.subr.mxu0 %v2011
        %2772 = vmatpush1.msra.mxu0 %v2009
        %2773 = vmatprep.subr.mxu0 %v2017
        %2774 = vmatpush1.msra.mxu0 %v2015
        %2775 = vmatprep.subr.mxu0 %v2023
        %2776 = vmatpush1.msra.mxu0 %v2021
        %2777 = vmatprep.subr.mxu0 0.0
        %2778 = vmatpush1.msra.mxu0 0.0
        %2779 = vmatprep.subr.mxu0 0.0
        %2780 = vmatpush1.msra.mxu0 0.0
        %2781 = vmatprep.subr.mxu0 0.0
        %2782 = vmatpush1.msra.mxu0 0.0
        %2783 = vmatprep.subr.mxu0 0.0
        %2784 = vmatpush1.msra.mxu0 0.0
        %2785 = vmatprep.subr.mxu0 0.0
        %2786 = vmatpush1.msra.mxu0 0.0
        %2787 = vmatprep.subr.mxu0 0.0
        %2788 = vmatpush1.msra.mxu0 0.0
        %2789 = vmatprep.subr.mxu0 0.0
        %2790 = vmatpush1.msra.mxu0 0.0
        %2791 = vmatprep.subr.mxu0 0.0
        %2792 = vmatpush1.msra.mxu0 0.0
        %2793 = vmatprep.mubr.f32.mxu0 %v2458
        %2794 = vmatmul.mubr.f32.gmra.mrb[0].mxu0 %v1121
        %v2795 = vpop.f32.mrb[0].mxu0
        %v2796 = vadd.f32 0.0, %v2795
        %v2797 = vpop.f32.mrb[0].mxu0
        %v2798 = vadd.f32 0.0, %v2797
        %2799 = vmatprep.mubr.f32.mxu0 %v2461
        %2800 = vmatmul.mubr.f32.gmra.mrb[0].mxu0 %v1123
        %v2801 = vpop.f32.mrb[0].mxu0
        %v2802 = vadd.f32 0.0, %v2801
        %v2803 = vpop.f32.mrb[0].mxu0
        %v2804 = vadd.f32 0.0, %v2803
        %2805 = vmatprep.mubr.f32.mxu0 %v2464
        %2806 = vmatmul.mubr.f32.gmra.mrb[0].mxu0 %v1125
        %v2807 = vpop.f32.mrb[0].mxu0
        %v2808 = vadd.f32 0.0, %v2807
        %v2809 = vpop.f32.mrb[0].mxu0
        %v2810 = vadd.f32 0.0, %v2809
        %2811 = vmatprep.mubr.f32.mxu0 %v2467
        %2812 = vmatmul.mubr.f32.gmra.mrb[0].mxu0 %v1127
        %v2813 = vpop.f32.mrb[0].mxu0
        %v2814 = vadd.f32 0.0, %v2813
        %v2815 = vpop.f32.mrb[0].mxu0
        %v2816 = vadd.f32 0.0, %v2815
        %2817 = vmatprep.mubr.f32.mxu0 %v2470
        %2818 = vmatmul.mubr.f32.gmra.mrb[0].mxu0 %v1129
        %v2819 = vpop.f32.mrb[0].mxu0
        %v2820 = vadd.f32 0.0, %v2819
        %v2821 = vpop.f32.mrb[0].mxu0
        %v2822 = vadd.f32 0.0, %v2821
        %2823 = vmatprep.mubr.f32.mxu0 %v2473
        %2824 = vmatmul.mubr.f32.gmra.mrb[0].mxu0 %v1131
        %v2825 = vpop.f32.mrb[0].mxu0
        %v2826 = vadd.f32 0.0, %v2825
        %v2827 = vpop.f32.mrb[0].mxu0
        %v2828 = vadd.f32 0.0, %v2827
        %2829 = vmatprep.mubr.f32.mxu0 %v2476
        %2830 = vmatmul.mubr.f32.gmra.mrb[0].mxu0 %v1133
        %v2831 = vpop.f32.mrb[0].mxu0
        %v2832 = vadd.f32 0.0, %v2831
        %v2833 = vpop.f32.mrb[0].mxu0
        %v2834 = vadd.f32 0.0, %v2833
        %2835 = vmatprep.mubr.f32.mxu0 %v2479
        %2836 = vmatmul.mubr.f32.gmra.mrb[0].mxu0 %v1135
        %v2837 = vpop.f32.mrb[0].mxu0
        %v2838 = vadd.f32 0.0, %v2837
        %v2839 = vpop.f32.mrb[0].mxu0
        %v2840 = vadd.f32 0.0, %v2839
        %2841 = vmatprep.mubr.f32.mxu0 %v2482
        %2842 = vmatmul.mubr.f32.gmra.mrb[0].mxu0 %v1137
        %v2843 = vpop.f32.mrb[0].mxu0
        %v2844 = vadd.f32 0.0, %v2843
        %v2845 = vpop.f32.mrb[0].mxu0
        %v2846 = vadd.f32 0.0, %v2845
        %2847 = vmatprep.mubr.f32.mxu0 %v2485
        %2848 = vmatmul.mubr.f32.gmra.mrb[0].mxu0 %v1139
        %v2849 = vpop.f32.mrb[0].mxu0
        %v2850 = vadd.f32 0.0, %v2849
        %v2851 = vpop.f32.mrb[0].mxu0
        %v2852 = vadd.f32 0.0, %v2851
        %2853 = vmatprep.mubr.f32.mxu0 %v2488
        %2854 = vmatmul.mubr.f32.gmra.mrb[0].mxu0 %v1141
        %v2855 = vpop.f32.mrb[0].mxu0
        %v2856 = vadd.f32 0.0, %v2855
        %v2857 = vpop.f32.mrb[0].mxu0
        %v2858 = vadd.f32 0.0, %v2857
        %2859 = vmatprep.mubr.f32.mxu0 %v2491
        %2860 = vmatmul.mubr.f32.gmra.mrb[0].mxu0 %v1143
        %v2861 = vpop.f32.mrb[0].mxu0
        %v2862 = vadd.f32 0.0, %v2861
        %v2863 = vpop.f32.mrb[0].mxu0
        %v2864 = vadd.f32 0.0, %v2863
        %2865 = vmatprep.mubr.f32.mxu0 %v2494
        %2866 = vmatmul.mubr.f32.gmra.mrb[0].mxu0 %v1145
        %v2867 = vpop.f32.mrb[0].mxu0
        %v2868 = vadd.f32 0.0, %v2867
        %v2869 = vpop.f32.mrb[0].mxu0
        %v2870 = vadd.f32 0.0, %v2869
        %2871 = vmatprep.mubr.f32.mxu0 %v2497
        %2872 = vmatmul.mubr.f32.gmra.mrb[0].mxu0 %v1147
        %v2873 = vpop.f32.mrb[0].mxu0
        %v2874 = vadd.f32 0.0, %v2873
        %v2875 = vpop.f32.mrb[0].mxu0
        %v2876 = vadd.f32 0.0, %v2875
        %2877 = vmatprep.mubr.f32.mxu0 %v2500
        %2878 = vmatmul.mubr.f32.gmra.mrb[0].mxu0 %v1149
        %v2879 = vpop.f32.mrb[0].mxu0
        %v2880 = vadd.f32 0.0, %v2879
        %v2881 = vpop.f32.mrb[0].mxu0
        %v2882 = vadd.f32 0.0, %v2881
        %2883 = vmatprep.mubr.f32.mxu0 %v2503
        %2884 = vmatmul.mubr.f32.gmra.mrb[0].mxu0 %v1151
        %v2885 = vpop.f32.mrb[0].mxu0
        %v2886 = vadd.f32 0.0, %v2885
        %v2887 = vpop.f32.mrb[0].mxu0
        %v2888 = vadd.f32 0.0, %v2887
        %2889 = vmatprep.mubr.f32.mxu0 %v2506
        %2890 = vmatmul.mubr.f32.gmra.mrb[0].mxu0 %v1153
        %v2891 = vpop.f32.mrb[0].mxu0
        %v2892 = vadd.f32 0.0, %v2891
        %v2893 = vpop.f32.mrb[0].mxu0
        %v2894 = vadd.f32 0.0, %v2893
        %2895 = vmatprep.mubr.f32.mxu0 %v2509
        %2896 = vmatmul.mubr.f32.gmra.mrb[0].mxu0 %v1155
        %v2897 = vpop.f32.mrb[0].mxu0
        %v2898 = vadd.f32 0.0, %v2897
        %v2899 = vpop.f32.mrb[0].mxu0
        %v2900 = vadd.f32 0.0, %v2899
        %2901 = vmatprep.mubr.f32.mxu0 %v2512
        %2902 = vmatmul.mubr.f32.gmra.mrb[0].mxu0 %v1157
        %v2903 = vpop.f32.mrb[0].mxu0
        %v2904 = vadd.f32 0.0, %v2903
        %v2905 = vpop.f32.mrb[0].mxu0
        %v2906 = vadd.f32 0.0, %v2905
        %2907 = vmatprep.mubr.f32.mxu0 %v2515
        %2908 = vmatmul.mubr.f32.gmra.mrb[0].mxu0 %v1159
        %v2909 = vpop.f32.mrb[0].mxu0
        %v2910 = vadd.f32 0.0, %v2909
        %v2911 = vpop.f32.mrb[0].mxu0
        %v2912 = vadd.f32 0.0, %v2911
        %2913 = vmatprep.mubr.f32.mxu0 %v2518
        %2914 = vmatmul.mubr.f32.gmra.mrb[0].mxu0 %v1161
        %v2915 = vpop.f32.mrb[0].mxu0
        %v2916 = vadd.f32 0.0, %v2915
        %v2917 = vpop.f32.mrb[0].mxu0
        %v2918 = vadd.f32 0.0, %v2917
        %2919 = vmatprep.mubr.f32.mxu0 %v2521
        %2920 = vmatmul.mubr.f32.gmra.mrb[0].mxu0 %v1163
        %v2921 = vpop.f32.mrb[0].mxu0
        %v2922 = vadd.f32 0.0, %v2921
        %v2923 = vpop.f32.mrb[0].mxu0
        %v2924 = vadd.f32 0.0, %v2923
        %2925 = vmatprep.mubr.f32.mxu0 %v2524
        %2926 = vmatmul.mubr.f32.gmra.mrb[0].mxu0 %v1165
        %v2927 = vpop.f32.mrb[0].mxu0
        %v2928 = vadd.f32 0.0, %v2927
        %v2929 = vpop.f32.mrb[0].mxu0
        %v2930 = vadd.f32 0.0, %v2929
        %2931 = vdwg.mxu0
        %2932 = vmatprep.subr.mxu0 %v2029
        %2933 = vmatpush1.msra.mxu0 %v2027
        %2934 = vmatprep.subr.mxu0 %v2035
        %2935 = vmatpush1.msra.mxu0 %v2033
        %2936 = vmatprep.subr.mxu0 %v2041
        %2937 = vmatpush1.msra.mxu0 %v2039
        %2938 = vmatprep.subr.mxu0 %v2047
        %2939 = vmatpush1.msra.mxu0 %v2045
        %2940 = vmatprep.subr.mxu0 %v2053
        %2941 = vmatpush1.msra.mxu0 %v2051
        %2942 = vmatprep.subr.mxu0 %v2059
        %2943 = vmatpush1.msra.mxu0 %v2057
        %2944 = vmatprep.subr.mxu0 %v2065
        %2945 = vmatpush1.msra.mxu0 %v2063
        %2946 = vmatprep.subr.mxu0 %v2071
        %2947 = vmatpush1.msra.mxu0 %v2069
        %2948 = vmatprep.subr.mxu0 %v2077
        %2949 = vmatpush1.msra.mxu0 %v2075
        %2950 = vmatprep.subr.mxu0 %v2083
        %2951 = vmatpush1.msra.mxu0 %v2081
        %2952 = vmatprep.subr.mxu0 %v2089
        %2953 = vmatpush1.msra.mxu0 %v2087
        %2954 = vmatprep.subr.mxu0 %v2095
        %2955 = vmatpush1.msra.mxu0 %v2093
        %2956 = vmatprep.subr.mxu0 %v2101
        %2957 = vmatpush1.msra.mxu0 %v2099
        %2958 = vmatprep.subr.mxu0 %v2107
        %2959 = vmatpush1.msra.mxu0 %v2105
        %2960 = vmatprep.subr.mxu0 %v2113
        %2961 = vmatpush1.msra.mxu0 %v2111
        %2962 = vmatprep.subr.mxu0 %v2119
        %2963 = vmatpush1.msra.mxu0 %v2117
        %2964 = vmatprep.subr.mxu0 %v2125
        %2965 = vmatpush1.msra.mxu0 %v2123
        %2966 = vmatprep.subr.mxu0 %v2131
        %2967 = vmatpush1.msra.mxu0 %v2129
        %2968 = vmatprep.subr.mxu0 %v2137
        %2969 = vmatpush1.msra.mxu0 %v2135
        %2970 = vmatprep.subr.mxu0 %v2143
        %2971 = vmatpush1.msra.mxu0 %v2141
        %2972 = vmatprep.subr.mxu0 %v2149
        %2973 = vmatpush1.msra.mxu0 %v2147
        %2974 = vmatprep.subr.mxu0 %v2155
        %2975 = vmatpush1.msra.mxu0 %v2153
        %2976 = vmatprep.subr.mxu0 %v2161
        %2977 = vmatpush1.msra.mxu0 %v2159
        %2978 = vmatprep.subr.mxu0 %v2167
        %2979 = vmatpush1.msra.mxu0 %v2165
        %2980 = vmatprep.subr.mxu0 0.0
        %2981 = vmatpush1.msra.mxu0 0.0
        %2982 = vmatprep.subr.mxu0 0.0
        %2983 = vmatpush1.msra.mxu0 0.0
        %2984 = vmatprep.subr.mxu0 0.0
        %2985 = vmatpush1.msra.mxu0 0.0
        %2986 = vmatprep.subr.mxu0 0.0
        %2987 = vmatpush1.msra.mxu0 0.0
        %2988 = vmatprep.subr.mxu0 0.0
        %2989 = vmatpush1.msra.mxu0 0.0
        %2990 = vmatprep.subr.mxu0 0.0
        %2991 = vmatpush1.msra.mxu0 0.0
        %2992 = vmatprep.subr.mxu0 0.0
        %2993 = vmatpush1.msra.mxu0 0.0
        %2994 = vmatprep.subr.mxu0 0.0
        %2995 = vmatpush1.msra.mxu0 0.0
        %2996 = vmatprep.mubr.f32.mxu0 %v2458
        %2997 = vmatmul.mubr.f32.gmra.mrb[0].mxu0 %v1121
        %v2998 = vpop.f32.mrb[0].mxu0
        %v2999 = vadd.f32 0.0, %v2998
        %v3000 = vpop.f32.mrb[0].mxu0
        %v3001 = vadd.f32 0.0, %v3000
        %3002 = vmatprep.mubr.f32.mxu0 %v2461
        %3003 = vmatmul.mubr.f32.gmra.mrb[0].mxu0 %v1123
        %v3004 = vpop.f32.mrb[0].mxu0
        %v3005 = vadd.f32 0.0, %v3004
        %v3006 = vpop.f32.mrb[0].mxu0
        %v3007 = vadd.f32 0.0, %v3006
        %3008 = vmatprep.mubr.f32.mxu0 %v2464
        %3009 = vmatmul.mubr.f32.gmra.mrb[0].mxu0 %v1125
        %v3010 = vpop.f32.mrb[0].mxu0
        %v3011 = vadd.f32 0.0, %v3010
        %v3012 = vpop.f32.mrb[0].mxu0
        %v3013 = vadd.f32 0.0, %v3012
        %3014 = vmatprep.mubr.f32.mxu0 %v2467
        %3015 = vmatmul.mubr.f32.gmra.mrb[0].mxu0 %v1127
        %v3016 = vpop.f32.mrb[0].mxu0
        %v3017 = vadd.f32 0.0, %v3016
        %v3018 = vpop.f32.mrb[0].mxu0
        %v3019 = vadd.f32 0.0, %v3018
        %3020 = vmatprep.mubr.f32.mxu0 %v2470
        %3021 = vmatmul.mubr.f32.gmra.mrb[0].mxu0 %v1129
        %v3022 = vpop.f32.mrb[0].mxu0
        %v3023 = vadd.f32 0.0, %v3022
        %v3024 = vpop.f32.mrb[0].mxu0
        %v3025 = vadd.f32 0.0, %v3024
        %3026 = vmatprep.mubr.f32.mxu0 %v2473
        %3027 = vmatmul.mubr.f32.gmra.mrb[0].mxu0 %v1131
        %v3028 = vpop.f32.mrb[0].mxu0
        %v3029 = vadd.f32 0.0, %v3028
        %v3030 = vpop.f32.mrb[0].mxu0
        %v3031 = vadd.f32 0.0, %v3030
        %3032 = vmatprep.mubr.f32.mxu0 %v2476
        %3033 = vmatmul.mubr.f32.gmra.mrb[0].mxu0 %v1133
        %v3034 = vpop.f32.mrb[0].mxu0
        %v3035 = vadd.f32 0.0, %v3034
        %v3036 = vpop.f32.mrb[0].mxu0
        %v3037 = vadd.f32 0.0, %v3036
        %3038 = vmatprep.mubr.f32.mxu0 %v2479
        %3039 = vmatmul.mubr.f32.gmra.mrb[0].mxu0 %v1135
        %v3040 = vpop.f32.mrb[0].mxu0
        %v3041 = vadd.f32 0.0, %v3040
        %v3042 = vpop.f32.mrb[0].mxu0
        %v3043 = vadd.f32 0.0, %v3042
        %3044 = vmatprep.mubr.f32.mxu0 %v2482
        %3045 = vmatmul.mubr.f32.gmra.mrb[0].mxu0 %v1137
        %v3046 = vpop.f32.mrb[0].mxu0
        %v3047 = vadd.f32 0.0, %v3046
        %v3048 = vpop.f32.mrb[0].mxu0
        %v3049 = vadd.f32 0.0, %v3048
        %3050 = vmatprep.mubr.f32.mxu0 %v2485
        %3051 = vmatmul.mubr.f32.gmra.mrb[0].mxu0 %v1139
        %v3052 = vpop.f32.mrb[0].mxu0
        %v3053 = vadd.f32 0.0, %v3052
        %v3054 = vpop.f32.mrb[0].mxu0
        %v3055 = vadd.f32 0.0, %v3054
        %3056 = vmatprep.mubr.f32.mxu0 %v2488
        %3057 = vmatmul.mubr.f32.gmra.mrb[0].mxu0 %v1141
        %v3058 = vpop.f32.mrb[0].mxu0
        %v3059 = vadd.f32 0.0, %v3058
        %v3060 = vpop.f32.mrb[0].mxu0
        %v3061 = vadd.f32 0.0, %v3060
        %3062 = vmatprep.mubr.f32.mxu0 %v2491
        %3063 = vmatmul.mubr.f32.gmra.mrb[0].mxu0 %v1143
        %v3064 = vpop.f32.mrb[0].mxu0
        %v3065 = vadd.f32 0.0, %v3064
        %v3066 = vpop.f32.mrb[0].mxu0
        %v3067 = vadd.f32 0.0, %v3066
        %3068 = vmatprep.mubr.f32.mxu0 %v2494
        %3069 = vmatmul.mubr.f32.gmra.mrb[0].mxu0 %v1145
        %v3070 = vpop.f32.mrb[0].mxu0
        %v3071 = vadd.f32 0.0, %v3070
        %v3072 = vpop.f32.mrb[0].mxu0
        %v3073 = vadd.f32 0.0, %v3072
        %3074 = vmatprep.mubr.f32.mxu0 %v2497
        %3075 = vmatmul.mubr.f32.gmra.mrb[0].mxu0 %v1147
        %v3076 = vpop.f32.mrb[0].mxu0
        %v3077 = vadd.f32 0.0, %v3076
        %v3078 = vpop.f32.mrb[0].mxu0
        %v3079 = vadd.f32 0.0, %v3078
        %3080 = vmatprep.mubr.f32.mxu0 %v2500
        %3081 = vmatmul.mubr.f32.gmra.mrb[0].mxu0 %v1149
        %v3082 = vpop.f32.mrb[0].mxu0
        %v3083 = vadd.f32 0.0, %v3082
        %v3084 = vpop.f32.mrb[0].mxu0
        %v3085 = vadd.f32 0.0, %v3084
        %3086 = vmatprep.mubr.f32.mxu0 %v2503
        %3087 = vmatmul.mubr.f32.gmra.mrb[0].mxu0 %v1151
        %v3088 = vpop.f32.mrb[0].mxu0
        %v3089 = vadd.f32 0.0, %v3088
        %v3090 = vpop.f32.mrb[0].mxu0
        %v3091 = vadd.f32 0.0, %v3090
        %3092 = vmatprep.mubr.f32.mxu0 %v2506
        %3093 = vmatmul.mubr.f32.gmra.mrb[0].mxu0 %v1153
        %v3094 = vpop.f32.mrb[0].mxu0
        %v3095 = vadd.f32 0.0, %v3094
        %v3096 = vpop.f32.mrb[0].mxu0
        %v3097 = vadd.f32 0.0, %v3096
        %3098 = vmatprep.mubr.f32.mxu0 %v2509
        %3099 = vmatmul.mubr.f32.gmra.mrb[0].mxu0 %v1155
        %v3100 = vpop.f32.mrb[0].mxu0
        %v3101 = vadd.f32 0.0, %v3100
        %v3102 = vpop.f32.mrb[0].mxu0
        %v3103 = vadd.f32 0.0, %v3102
        %3104 = vmatprep.mubr.f32.mxu0 %v2512
        %3105 = vmatmul.mubr.f32.gmra.mrb[0].mxu0 %v1157
        %v3106 = vpop.f32.mrb[0].mxu0
        %v3107 = vadd.f32 0.0, %v3106
        %v3108 = vpop.f32.mrb[0].mxu0
        %v3109 = vadd.f32 0.0, %v3108
        %3110 = vmatprep.mubr.f32.mxu0 %v2515
        %3111 = vmatmul.mubr.f32.gmra.mrb[0].mxu0 %v1159
        %v3112 = vpop.f32.mrb[0].mxu0
        %v3113 = vadd.f32 0.0, %v3112
        %v3114 = vpop.f32.mrb[0].mxu0
        %v3115 = vadd.f32 0.0, %v3114
        %3116 = vmatprep.mubr.f32.mxu0 %v2518
        %3117 = vmatmul.mubr.f32.gmra.mrb[0].mxu0 %v1161
        %v3118 = vpop.f32.mrb[0].mxu0
        %v3119 = vadd.f32 0.0, %v3118
        %v3120 = vpop.f32.mrb[0].mxu0
        %v3121 = vadd.f32 0.0, %v3120
        %3122 = vmatprep.mubr.f32.mxu0 %v2521
        %3123 = vmatmul.mubr.f32.gmra.mrb[0].mxu0 %v1163
        %v3124 = vpop.f32.mrb[0].mxu0
        %v3125 = vadd.f32 0.0, %v3124
        %v3126 = vpop.f32.mrb[0].mxu0
        %v3127 = vadd.f32 0.0, %v3126
        %3128 = vmatprep.mubr.f32.mxu0 %v2524
        %3129 = vmatmul.mubr.f32.gmra.mrb[0].mxu0 %v1165
        %v3130 = vpop.f32.mrb[0].mxu0
        %v3131 = vadd.f32 0.0, %v3130
        %v3132 = vpop.f32.mrb[0].mxu0
        %v3133 = vadd.f32 0.0, %v3132
        %3134 = vdwg.mxu0
        %3135 = vmatprep.subr.mxu0 %v2173
        %3136 = vmatpush1.msra.mxu0 %v2171
        %3137 = vmatprep.subr.mxu0 %v2179
        %3138 = vmatpush1.msra.mxu0 %v2177
        %3139 = vmatprep.subr.mxu0 %v2185
        %3140 = vmatpush1.msra.mxu0 %v2183
        %3141 = vmatprep.subr.mxu0 %v2191
        %3142 = vmatpush1.msra.mxu0 %v2189
        %3143 = vmatprep.subr.mxu0 %v2197
        %3144 = vmatpush1.msra.mxu0 %v2195
        %3145 = vmatprep.subr.mxu0 %v2203
        %3146 = vmatpush1.msra.mxu0 %v2201
        %3147 = vmatprep.subr.mxu0 %v2209
        %3148 = vmatpush1.msra.mxu0 %v2207
        %3149 = vmatprep.subr.mxu0 %v2215
        %3150 = vmatpush1.msra.mxu0 %v2213
        %3151 = vmatprep.subr.mxu0 %v2221
        %3152 = vmatpush1.msra.mxu0 %v2219
        %3153 = vmatprep.subr.mxu0 %v2227
        %3154 = vmatpush1.msra.mxu0 %v2225
        %3155 = vmatprep.subr.mxu0 %v2233
        %3156 = vmatpush1.msra.mxu0 %v2231
        %3157 = vmatprep.subr.mxu0 %v2239
        %3158 = vmatpush1.msra.mxu0 %v2237
        %3159 = vmatprep.subr.mxu0 %v2245
        %3160 = vmatpush1.msra.mxu0 %v2243
        %3161 = vmatprep.subr.mxu0 %v2251
        %3162 = vmatpush1.msra.mxu0 %v2249
        %3163 = vmatprep.subr.mxu0 %v2257
        %3164 = vmatpush1.msra.mxu0 %v2255
        %3165 = vmatprep.subr.mxu0 %v2263
        %3166 = vmatpush1.msra.mxu0 %v2261
        %3167 = vmatprep.subr.mxu0 %v2269
        %3168 = vmatpush1.msra.mxu0 %v2267
        %3169 = vmatprep.subr.mxu0 %v2275
        %3170 = vmatpush1.msra.mxu0 %v2273
        %3171 = vmatprep.subr.mxu0 %v2281
        %3172 = vmatpush1.msra.mxu0 %v2279
        %3173 = vmatprep.subr.mxu0 %v2287
        %3174 = vmatpush1.msra.mxu0 %v2285
        %3175 = vmatprep.subr.mxu0 %v2293
        %3176 = vmatpush1.msra.mxu0 %v2291
        %3177 = vmatprep.subr.mxu0 %v2299
        %3178 = vmatpush1.msra.mxu0 %v2297
        %3179 = vmatprep.subr.mxu0 %v2305
        %3180 = vmatpush1.msra.mxu0 %v2303
        %3181 = vmatprep.subr.mxu0 %v2311
        %3182 = vmatpush1.msra.mxu0 %v2309
        %3183 = vmatprep.subr.mxu0 0.0
        %3184 = vmatpush1.msra.mxu0 0.0
        %3185 = vmatprep.subr.mxu0 0.0
        %3186 = vmatpush1.msra.mxu0 0.0
        %3187 = vmatprep.subr.mxu0 0.0
        %3188 = vmatpush1.msra.mxu0 0.0
        %3189 = vmatprep.subr.mxu0 0.0
        %3190 = vmatpush1.msra.mxu0 0.0
        %3191 = vmatprep.subr.mxu0 0.0
        %3192 = vmatpush1.msra.mxu0 0.0
        %3193 = vmatprep.subr.mxu0 0.0
        %3194 = vmatpush1.msra.mxu0 0.0
        %3195 = vmatprep.subr.mxu0 0.0
        %3196 = vmatpush1.msra.mxu0 0.0
        %3197 = vmatprep.subr.mxu0 0.0
        %3198 = vmatpush1.msra.mxu0 0.0
        %3199 = vmatprep.mubr.f32.mxu0 %v2458
        %3200 = vmatmul.mubr.f32.gmra.mrb[0].mxu0 %v1121
        %v3201 = vpop.f32.mrb[0].mxu0
        %v3202 = vadd.f32 0.0, %v3201
        %v3203 = vpop.f32.mrb[0].mxu0
        %v3204 = vadd.f32 0.0, %v3203
        %3205 = vmatprep.mubr.f32.mxu0 %v2461
        %3206 = vmatmul.mubr.f32.gmra.mrb[0].mxu0 %v1123
        %v3207 = vpop.f32.mrb[0].mxu0
        %v3208 = vadd.f32 0.0, %v3207
        %v3209 = vpop.f32.mrb[0].mxu0
        %v3210 = vadd.f32 0.0, %v3209
        %3211 = vmatprep.mubr.f32.mxu0 %v2464
        %3212 = vmatmul.mubr.f32.gmra.mrb[0].mxu0 %v1125
        %v3213 = vpop.f32.mrb[0].mxu0
        %v3214 = vadd.f32 0.0, %v3213
        %v3215 = vpop.f32.mrb[0].mxu0
        %v3216 = vadd.f32 0.0, %v3215
        %3217 = vmatprep.mubr.f32.mxu0 %v2467
        %3218 = vmatmul.mubr.f32.gmra.mrb[0].mxu0 %v1127
        %v3219 = vpop.f32.mrb[0].mxu0
        %v3220 = vadd.f32 0.0, %v3219
        %v3221 = vpop.f32.mrb[0].mxu0
        %v3222 = vadd.f32 0.0, %v3221
        %3223 = vmatprep.mubr.f32.mxu0 %v2470
        %3224 = vmatmul.mubr.f32.gmra.mrb[0].mxu0 %v1129
        %v3225 = vpop.f32.mrb[0].mxu0
        %v3226 = vadd.f32 0.0, %v3225
        %v3227 = vpop.f32.mrb[0].mxu0
        %v3228 = vadd.f32 0.0, %v3227
        %3229 = vmatprep.mubr.f32.mxu0 %v2473
        %3230 = vmatmul.mubr.f32.gmra.mrb[0].mxu0 %v1131
        %v3231 = vpop.f32.mrb[0].mxu0
        %v3232 = vadd.f32 0.0, %v3231
        %v3233 = vpop.f32.mrb[0].mxu0
        %v3234 = vadd.f32 0.0, %v3233
        %3235 = vmatprep.mubr.f32.mxu0 %v2476
        %3236 = vmatmul.mubr.f32.gmra.mrb[0].mxu0 %v1133
        %v3237 = vpop.f32.mrb[0].mxu0
        %v3238 = vadd.f32 0.0, %v3237
        %v3239 = vpop.f32.mrb[0].mxu0
        %v3240 = vadd.f32 0.0, %v3239
        %3241 = vmatprep.mubr.f32.mxu0 %v2479
        %3242 = vmatmul.mubr.f32.gmra.mrb[0].mxu0 %v1135
        %v3243 = vpop.f32.mrb[0].mxu0
        %v3244 = vadd.f32 0.0, %v3243
        %v3245 = vpop.f32.mrb[0].mxu0
        %v3246 = vadd.f32 0.0, %v3245
        %3247 = vmatprep.mubr.f32.mxu0 %v2482
        %3248 = vmatmul.mubr.f32.gmra.mrb[0].mxu0 %v1137
        %v3249 = vpop.f32.mrb[0].mxu0
        %v3250 = vadd.f32 0.0, %v3249
        %v3251 = vpop.f32.mrb[0].mxu0
        %v3252 = vadd.f32 0.0, %v3251
        %3253 = vmatprep.mubr.f32.mxu0 %v2485
        %3254 = vmatmul.mubr.f32.gmra.mrb[0].mxu0 %v1139
        %v3255 = vpop.f32.mrb[0].mxu0
        %v3256 = vadd.f32 0.0, %v3255
        %v3257 = vpop.f32.mrb[0].mxu0
        %v3258 = vadd.f32 0.0, %v3257
        %3259 = vmatprep.mubr.f32.mxu0 %v2488
        %3260 = vmatmul.mubr.f32.gmra.mrb[0].mxu0 %v1141
        %v3261 = vpop.f32.mrb[0].mxu0
        %v3262 = vadd.f32 0.0, %v3261
        %v3263 = vpop.f32.mrb[0].mxu0
        %v3264 = vadd.f32 0.0, %v3263
        %3265 = vmatprep.mubr.f32.mxu0 %v2491
        %3266 = vmatmul.mubr.f32.gmra.mrb[0].mxu0 %v1143
        %v3267 = vpop.f32.mrb[0].mxu0
        %v3268 = vadd.f32 0.0, %v3267
        %v3269 = vpop.f32.mrb[0].mxu0
        %v3270 = vadd.f32 0.0, %v3269
        %3271 = vmatprep.mubr.f32.mxu0 %v2494
        %3272 = vmatmul.mubr.f32.gmra.mrb[0].mxu0 %v1145
        %v3273 = vpop.f32.mrb[0].mxu0
        %v3274 = vadd.f32 0.0, %v3273
        %v3275 = vpop.f32.mrb[0].mxu0
        %v3276 = vadd.f32 0.0, %v3275
        %3277 = vmatprep.mubr.f32.mxu0 %v2497
        %3278 = vmatmul.mubr.f32.gmra.mrb[0].mxu0 %v1147
        %v3279 = vpop.f32.mrb[0].mxu0
        %v3280 = vadd.f32 0.0, %v3279
        %v3281 = vpop.f32.mrb[0].mxu0
        %v3282 = vadd.f32 0.0, %v3281
        %3283 = vmatprep.mubr.f32.mxu0 %v2500
        %3284 = vmatmul.mubr.f32.gmra.mrb[0].mxu0 %v1149
        %v3285 = vpop.f32.mrb[0].mxu0
        %v3286 = vadd.f32 0.0, %v3285
        %v3287 = vpop.f32.mrb[0].mxu0
        %v3288 = vadd.f32 0.0, %v3287
        %3289 = vmatprep.mubr.f32.mxu0 %v2503
        %3290 = vmatmul.mubr.f32.gmra.mrb[0].mxu0 %v1151
        %v3291 = vpop.f32.mrb[0].mxu0
        %v3292 = vadd.f32 0.0, %v3291
        %v3293 = vpop.f32.mrb[0].mxu0
        %v3294 = vadd.f32 0.0, %v3293
        %3295 = vmatprep.mubr.f32.mxu0 %v2506
        %3296 = vmatmul.mubr.f32.gmra.mrb[0].mxu0 %v1153
        %v3297 = vpop.f32.mrb[0].mxu0
        %v3298 = vadd.f32 0.0, %v3297
        %v3299 = vpop.f32.mrb[0].mxu0
        %v3300 = vadd.f32 0.0, %v3299
        %3301 = vmatprep.mubr.f32.mxu0 %v2509
        %3302 = vmatmul.mubr.f32.gmra.mrb[0].mxu0 %v1155
        %v3303 = vpop.f32.mrb[0].mxu0
        %v3304 = vadd.f32 0.0, %v3303
        %v3305 = vpop.f32.mrb[0].mxu0
        %v3306 = vadd.f32 0.0, %v3305
        %3307 = vmatprep.mubr.f32.mxu0 %v2512
        %3308 = vmatmul.mubr.f32.gmra.mrb[0].mxu0 %v1157
        %v3309 = vpop.f32.mrb[0].mxu0
        %v3310 = vadd.f32 0.0, %v3309
        %v3311 = vpop.f32.mrb[0].mxu0
        %v3312 = vadd.f32 0.0, %v3311
        %3313 = vmatprep.mubr.f32.mxu0 %v2515
        %3314 = vmatmul.mubr.f32.gmra.mrb[0].mxu0 %v1159
        %v3315 = vpop.f32.mrb[0].mxu0
        %v3316 = vadd.f32 0.0, %v3315
        %v3317 = vpop.f32.mrb[0].mxu0
        %v3318 = vadd.f32 0.0, %v3317
        %3319 = vmatprep.mubr.f32.mxu0 %v2518
        %3320 = vmatmul.mubr.f32.gmra.mrb[0].mxu0 %v1161
        %v3321 = vpop.f32.mrb[0].mxu0
        %v3322 = vadd.f32 0.0, %v3321
        %v3323 = vpop.f32.mrb[0].mxu0
        %v3324 = vadd.f32 0.0, %v3323
        %3325 = vmatprep.mubr.f32.mxu0 %v2521
        %3326 = vmatmul.mubr.f32.gmra.mrb[0].mxu0 %v1163
        %v3327 = vpop.f32.mrb[0].mxu0
        %v3328 = vadd.f32 0.0, %v3327
        %v3329 = vpop.f32.mrb[0].mxu0
        %v3330 = vadd.f32 0.0, %v3329
        %3331 = vmatprep.mubr.f32.mxu0 %v2524
        %3332 = vmatmul.mubr.f32.gmra.mrb[0].mxu0 %v1165
        %v3333 = vpop.f32.mrb[0].mxu0
        %v3334 = vadd.f32 0.0, %v3333
        %v3335 = vpop.f32.mrb[0].mxu0
        %v3336 = vadd.f32 0.0, %v3335
        %3337 = vdwg.mxu0
        %3338 = vmatprep.subr.mxu0 %v2317
        %3339 = vmatpush1.msra.mxu0 %v2315
        %3340 = vmatprep.subr.mxu0 %v2323
        %3341 = vmatpush1.msra.mxu0 %v2321
        %3342 = vmatprep.subr.mxu0 %v2329
        %3343 = vmatpush1.msra.mxu0 %v2327
        %3344 = vmatprep.subr.mxu0 %v2335
        %3345 = vmatpush1.msra.mxu0 %v2333
        %3346 = vmatprep.subr.mxu0 %v2341
        %3347 = vmatpush1.msra.mxu0 %v2339
        %3348 = vmatprep.subr.mxu0 %v2347
        %3349 = vmatpush1.msra.mxu0 %v2345
        %3350 = vmatprep.subr.mxu0 %v2353
        %3351 = vmatpush1.msra.mxu0 %v2351
        %3352 = vmatprep.subr.mxu0 %v2359
        %3353 = vmatpush1.msra.mxu0 %v2357
        %3354 = vmatprep.subr.mxu0 %v2365
        %3355 = vmatpush1.msra.mxu0 %v2363
        %3356 = vmatprep.subr.mxu0 %v2371
        %3357 = vmatpush1.msra.mxu0 %v2369
        %3358 = vmatprep.subr.mxu0 %v2377
        %3359 = vmatpush1.msra.mxu0 %v2375
        %3360 = vmatprep.subr.mxu0 %v2383
        %3361 = vmatpush1.msra.mxu0 %v2381
        %3362 = vmatprep.subr.mxu0 %v2389
        %3363 = vmatpush1.msra.mxu0 %v2387
        %3364 = vmatprep.subr.mxu0 %v2395
        %3365 = vmatpush1.msra.mxu0 %v2393
        %3366 = vmatprep.subr.mxu0 %v2401
        %3367 = vmatpush1.msra.mxu0 %v2399
        %3368 = vmatprep.subr.mxu0 %v2407
        %3369 = vmatpush1.msra.mxu0 %v2405
        %3370 = vmatprep.subr.mxu0 %v2413
        %3371 = vmatpush1.msra.mxu0 %v2411
        %3372 = vmatprep.subr.mxu0 %v2419
        %3373 = vmatpush1.msra.mxu0 %v2417
        %3374 = vmatprep.subr.mxu0 %v2425
        %3375 = vmatpush1.msra.mxu0 %v2423
        %3376 = vmatprep.subr.mxu0 %v2431
        %3377 = vmatpush1.msra.mxu0 %v2429
        %3378 = vmatprep.subr.mxu0 %v2437
        %3379 = vmatpush1.msra.mxu0 %v2435
        %3380 = vmatprep.subr.mxu0 %v2443
        %3381 = vmatpush1.msra.mxu0 %v2441
        %3382 = vmatprep.subr.mxu0 %v2449
        %3383 = vmatpush1.msra.mxu0 %v2447
        %3384 = vmatprep.subr.mxu0 %v2455
        %3385 = vmatpush1.msra.mxu0 %v2453
        %3386 = vmatprep.subr.mxu0 0.0
        %3387 = vmatpush1.msra.mxu0 0.0
        %3388 = vmatprep.subr.mxu0 0.0
        %3389 = vmatpush1.msra.mxu0 0.0
        %3390 = vmatprep.subr.mxu0 0.0
        %3391 = vmatpush1.msra.mxu0 0.0
        %3392 = vmatprep.subr.mxu0 0.0
        %3393 = vmatpush1.msra.mxu0 0.0
        %3394 = vmatprep.subr.mxu0 0.0
        %3395 = vmatpush1.msra.mxu0 0.0
        %3396 = vmatprep.subr.mxu0 0.0
        %3397 = vmatpush1.msra.mxu0 0.0
        %3398 = vmatprep.subr.mxu0 0.0
        %3399 = vmatpush1.msra.mxu0 0.0
        %3400 = vmatprep.subr.mxu0 0.0
        %3401 = vmatpush1.msra.mxu0 0.0
        %3402 = vmatprep.mubr.f32.mxu0 %v2458
        %3403 = vmatmul.mubr.f32.gmra.mrb[0].mxu0 %v1121
        %v3404 = vpop.f32.mrb[0].mxu0
        %v3405 = vadd.f32 0.0, %v3404
        %v3406 = vpop.f32.mrb[0].mxu0
        %v3407 = vadd.f32 0.0, %v3406
        %3408 = vmatprep.mubr.f32.mxu0 %v2461
        %3409 = vmatmul.mubr.f32.gmra.mrb[0].mxu0 %v1123
        %v3410 = vpop.f32.mrb[0].mxu0
        %v3411 = vadd.f32 0.0, %v3410
        %v3412 = vpop.f32.mrb[0].mxu0
        %v3413 = vadd.f32 0.0, %v3412
        %3414 = vmatprep.mubr.f32.mxu0 %v2464
        %3415 = vmatmul.mubr.f32.gmra.mrb[0].mxu0 %v1125
        %v3416 = vpop.f32.mrb[0].mxu0
        %v3417 = vadd.f32 0.0, %v3416
        %v3418 = vpop.f32.mrb[0].mxu0
        %v3419 = vadd.f32 0.0, %v3418
        %3420 = vmatprep.mubr.f32.mxu0 %v2467
        %3421 = vmatmul.mubr.f32.gmra.mrb[0].mxu0 %v1127
        %v3422 = vpop.f32.mrb[0].mxu0
        %v3423 = vadd.f32 0.0, %v3422
        %v3424 = vpop.f32.mrb[0].mxu0
        %v3425 = vadd.f32 0.0, %v3424
        %3426 = vmatprep.mubr.f32.mxu0 %v2470
        %3427 = vmatmul.mubr.f32.gmra.mrb[0].mxu0 %v1129
        %v3428 = vpop.f32.mrb[0].mxu0
        %v3429 = vadd.f32 0.0, %v3428
        %v3430 = vpop.f32.mrb[0].mxu0
        %v3431 = vadd.f32 0.0, %v3430
        %3432 = vmatprep.mubr.f32.mxu0 %v2473
        %3433 = vmatmul.mubr.f32.gmra.mrb[0].mxu0 %v1131
        %v3434 = vpop.f32.mrb[0].mxu0
        %v3435 = vadd.f32 0.0, %v3434
        %v3436 = vpop.f32.mrb[0].mxu0
        %v3437 = vadd.f32 0.0, %v3436
        %3438 = vmatprep.mubr.f32.mxu0 %v2476
        %3439 = vmatmul.mubr.f32.gmra.mrb[0].mxu0 %v1133
        %v3440 = vpop.f32.mrb[0].mxu0
        %v3441 = vadd.f32 0.0, %v3440
        %v3442 = vpop.f32.mrb[0].mxu0
        %v3443 = vadd.f32 0.0, %v3442
        %3444 = vmatprep.mubr.f32.mxu0 %v2479
        %3445 = vmatmul.mubr.f32.gmra.mrb[0].mxu0 %v1135
        %v3446 = vpop.f32.mrb[0].mxu0
        %v3447 = vadd.f32 0.0, %v3446
        %v3448 = vpop.f32.mrb[0].mxu0
        %v3449 = vadd.f32 0.0, %v3448
        %3450 = vmatprep.mubr.f32.mxu0 %v2482
        %3451 = vmatmul.mubr.f32.gmra.mrb[0].mxu0 %v1137
        %v3452 = vpop.f32.mrb[0].mxu0
        %v3453 = vadd.f32 0.0, %v3452
        %v3454 = vpop.f32.mrb[0].mxu0
        %v3455 = vadd.f32 0.0, %v3454
        %3456 = vmatprep.mubr.f32.mxu0 %v2485
        %3457 = vmatmul.mubr.f32.gmra.mrb[0].mxu0 %v1139
        %v3458 = vpop.f32.mrb[0].mxu0
        %v3459 = vadd.f32 0.0, %v3458
        %v3460 = vpop.f32.mrb[0].mxu0
        %v3461 = vadd.f32 0.0, %v3460
        %3462 = vmatprep.mubr.f32.mxu0 %v2488
        %3463 = vmatmul.mubr.f32.gmra.mrb[0].mxu0 %v1141
        %v3464 = vpop.f32.mrb[0].mxu0
        %v3465 = vadd.f32 0.0, %v3464
        %v3466 = vpop.f32.mrb[0].mxu0
        %v3467 = vadd.f32 0.0, %v3466
        %3468 = vmatprep.mubr.f32.mxu0 %v2491
        %3469 = vmatmul.mubr.f32.gmra.mrb[0].mxu0 %v1143
        %v3470 = vpop.f32.mrb[0].mxu0
        %v3471 = vadd.f32 0.0, %v3470
        %v3472 = vpop.f32.mrb[0].mxu0
        %v3473 = vadd.f32 0.0, %v3472
        %3474 = vmatprep.mubr.f32.mxu0 %v2494
        %3475 = vmatmul.mubr.f32.gmra.mrb[0].mxu0 %v1145
        %v3476 = vpop.f32.mrb[0].mxu0
        %v3477 = vadd.f32 0.0, %v3476
        %v3478 = vpop.f32.mrb[0].mxu0
        %v3479 = vadd.f32 0.0, %v3478
        %3480 = vmatprep.mubr.f32.mxu0 %v2497
        %3481 = vmatmul.mubr.f32.gmra.mrb[0].mxu0 %v1147
        %v3482 = vpop.f32.mrb[0].mxu0
        %v3483 = vadd.f32 0.0, %v3482
        %v3484 = vpop.f32.mrb[0].mxu0
        %v3485 = vadd.f32 0.0, %v3484
        %3486 = vmatprep.mubr.f32.mxu0 %v2500
        %3487 = vmatmul.mubr.f32.gmra.mrb[0].mxu0 %v1149
        %v3488 = vpop.f32.mrb[0].mxu0
        %v3489 = vadd.f32 0.0, %v3488
        %v3490 = vpop.f32.mrb[0].mxu0
        %v3491 = vadd.f32 0.0, %v3490
        %3492 = vmatprep.mubr.f32.mxu0 %v2503
        %3493 = vmatmul.mubr.f32.gmra.mrb[0].mxu0 %v1151
        %v3494 = vpop.f32.mrb[0].mxu0
        %v3495 = vadd.f32 0.0, %v3494
        %v3496 = vpop.f32.mrb[0].mxu0
        %v3497 = vadd.f32 0.0, %v3496
        %3498 = vmatprep.mubr.f32.mxu0 %v2506
        %3499 = vmatmul.mubr.f32.gmra.mrb[0].mxu0 %v1153
        %v3500 = vpop.f32.mrb[0].mxu0
        %v3501 = vadd.f32 0.0, %v3500
        %v3502 = vpop.f32.mrb[0].mxu0
        %v3503 = vadd.f32 0.0, %v3502
        %3504 = vmatprep.mubr.f32.mxu0 %v2509
        %3505 = vmatmul.mubr.f32.gmra.mrb[0].mxu0 %v1155
        %v3506 = vpop.f32.mrb[0].mxu0
        %v3507 = vadd.f32 0.0, %v3506
        %v3508 = vpop.f32.mrb[0].mxu0
        %v3509 = vadd.f32 0.0, %v3508
        %3510 = vmatprep.mubr.f32.mxu0 %v2512
        %3511 = vmatmul.mubr.f32.gmra.mrb[0].mxu0 %v1157
        %v3512 = vpop.f32.mrb[0].mxu0
        %v3513 = vadd.f32 0.0, %v3512
        %v3514 = vpop.f32.mrb[0].mxu0
        %v3515 = vadd.f32 0.0, %v3514
        %3516 = vmatprep.mubr.f32.mxu0 %v2515
        %3517 = vmatmul.mubr.f32.gmra.mrb[0].mxu0 %v1159
        %v3518 = vpop.f32.mrb[0].mxu0
        %v3519 = vadd.f32 0.0, %v3518
        %v3520 = vpop.f32.mrb[0].mxu0
        %v3521 = vadd.f32 0.0, %v3520
        %3522 = vmatprep.mubr.f32.mxu0 %v2518
        %3523 = vmatmul.mubr.f32.gmra.mrb[0].mxu0 %v1161
        %v3524 = vpop.f32.mrb[0].mxu0
        %v3525 = vadd.f32 0.0, %v3524
        %v3526 = vpop.f32.mrb[0].mxu0
        %v3527 = vadd.f32 0.0, %v3526
        %3528 = vmatprep.mubr.f32.mxu0 %v2521
        %3529 = vmatmul.mubr.f32.gmra.mrb[0].mxu0 %v1163
        %v3530 = vpop.f32.mrb[0].mxu0
        %v3531 = vadd.f32 0.0, %v3530
        %v3532 = vpop.f32.mrb[0].mxu0
        %v3533 = vadd.f32 0.0, %v3532
        %3534 = vmatprep.mubr.f32.mxu0 %v2524
        %3535 = vmatmul.mubr.f32.gmra.mrb[0].mxu0 %v1165
        %v3536 = vpop.f32.mrb[0].mxu0
        %v3537 = vadd.f32 0.0, %v3536
        %v3538 = vpop.f32.mrb[0].mxu0
        %v3539 = vadd.f32 0.0, %v3538
        %3540 = vdwg.mxu0
        %v3541 = vmul.f32 %v2593, %v2593
        %v3542 = vmul.f32 %v2595, %v2595
        %v3543 = vmul.f32 %v2599, %v2599
        %v3544 = vmul.f32 %v2601, %v2601
        %v3545 = vmul.f32 %v2605, %v2605
        %v3546 = vmul.f32 %v2607, %v2607
        %v3547 = vmul.f32 %v2611, %v2611
        %v3548 = vmul.f32 %v2613, %v2613
        %v3549 = vmul.f32 %v2617, %v2617
        %v3550 = vmul.f32 %v2619, %v2619
        %v3551 = vmul.f32 %v2623, %v2623
        %v3552 = vmul.f32 %v2625, %v2625
        %v3553 = vmul.f32 %v2629, %v2629
        %v3554 = vmul.f32 %v2631, %v2631
        %v3555 = vmul.f32 %v2635, %v2635
        %v3556 = vmul.f32 %v2637, %v2637
        %v3557 = vmul.f32 %v2641, %v2641
        %v3558 = vmul.f32 %v2643, %v2643
        %v3559 = vmul.f32 %v2647, %v2647
        %v3560 = vmul.f32 %v2649, %v2649
        %v3561 = vmul.f32 %v2653, %v2653
        %v3562 = vmul.f32 %v2655, %v2655
        %v3563 = vmul.f32 %v2659, %v2659
        %v3564 = vmul.f32 %v2661, %v2661
        %v3565 = vmul.f32 %v2665, %v2665
        %v3566 = vmul.f32 %v2667, %v2667
        %v3567 = vmul.f32 %v2671, %v2671
        %v3568 = vmul.f32 %v2673, %v2673
        %v3569 = vmul.f32 %v2677, %v2677
        %v3570 = vmul.f32 %v2679, %v2679
        %v3571 = vmul.f32 %v2683, %v2683
        %v3572 = vmul.f32 %v2685, %v2685
        %v3573 = vmul.f32 %v2689, %v2689
        %v3574 = vmul.f32 %v2691, %v2691
        %v3575 = vmul.f32 %v2695, %v2695
        %v3576 = vmul.f32 %v2697, %v2697
        %v3577 = vmul.f32 %v2701, %v2701
        %v3578 = vmul.f32 %v2703, %v2703
        %v3579 = vmul.f32 %v2707, %v2707
        %v3580 = vmul.f32 %v2709, %v2709
        %v3581 = vmul.f32 %v2713, %v2713
        %v3582 = vmul.f32 %v2715, %v2715
        %v3583 = vmul.f32 %v2719, %v2719
        %v3584 = vmul.f32 %v2721, %v2721
        %v3585 = vmul.f32 %v2725, %v2725
        %v3586 = vmul.f32 %v2727, %v2727
        %v3587 = vmul.f32 %v2796, %v2796
        %v3588 = vmul.f32 %v2798, %v2798
        %v3589 = vmul.f32 %v2802, %v2802
        %v3590 = vmul.f32 %v2804, %v2804
        %v3591 = vmul.f32 %v2808, %v2808
        %v3592 = vmul.f32 %v2810, %v2810
        %v3593 = vmul.f32 %v2814, %v2814
        %v3594 = vmul.f32 %v2816, %v2816
        %v3595 = vmul.f32 %v2820, %v2820
        %v3596 = vmul.f32 %v2822, %v2822
        %v3597 = vmul.f32 %v2826, %v2826
        %v3598 = vmul.f32 %v2828, %v2828
        %v3599 = vmul.f32 %v2832, %v2832
        %v3600 = vmul.f32 %v2834, %v2834
        %v3601 = vmul.f32 %v2838, %v2838
        %v3602 = vmul.f32 %v2840, %v2840
        %v3603 = vmul.f32 %v2844, %v2844
        %v3604 = vmul.f32 %v2846, %v2846
        %v3605 = vmul.f32 %v2850, %v2850
        %v3606 = vmul.f32 %v2852, %v2852
        %v3607 = vmul.f32 %v2856, %v2856
        %v3608 = vmul.f32 %v2858, %v2858
        %v3609 = vmul.f32 %v2862, %v2862
        %v3610 = vmul.f32 %v2864, %v2864
        %v3611 = vmul.f32 %v2868, %v2868
        %v3612 = vmul.f32 %v2870, %v2870
        %v3613 = vmul.f32 %v2874, %v2874
        %v3614 = vmul.f32 %v2876, %v2876
        %v3615 = vmul.f32 %v2880, %v2880
        %v3616 = vmul.f32 %v2882, %v2882
        %v3617 = vmul.f32 %v2886, %v2886
        %v3618 = vmul.f32 %v2888, %v2888
        %v3619 = vmul.f32 %v2892, %v2892
        %v3620 = vmul.f32 %v2894, %v2894
        %v3621 = vmul.f32 %v2898, %v2898
        %v3622 = vmul.f32 %v2900, %v2900
        %v3623 = vmul.f32 %v2904, %v2904
        %v3624 = vmul.f32 %v2906, %v2906
        %v3625 = vmul.f32 %v2910, %v2910
        %v3626 = vmul.f32 %v2912, %v2912
        %v3627 = vmul.f32 %v2916, %v2916
        %v3628 = vmul.f32 %v2918, %v2918
        %v3629 = vmul.f32 %v2922, %v2922
        %v3630 = vmul.f32 %v2924, %v2924
        %v3631 = vmul.f32 %v2928, %v2928
        %v3632 = vmul.f32 %v2930, %v2930
        %v3633 = vmul.f32 %v2593, %v2796
        %v3634 = vmul.f32 %v2595, %v2798
        %v3635 = vmul.f32 %v2599, %v2802
        %v3636 = vmul.f32 %v2601, %v2804
        %v3637 = vmul.f32 %v2605, %v2808
        %v3638 = vmul.f32 %v2607, %v2810
        %v3639 = vmul.f32 %v2611, %v2814
        %v3640 = vmul.f32 %v2613, %v2816
        %v3641 = vmul.f32 %v2617, %v2820
        %v3642 = vmul.f32 %v2619, %v2822
        %v3643 = vmul.f32 %v2623, %v2826
        %v3644 = vmul.f32 %v2625, %v2828
        %v3645 = vmul.f32 %v2629, %v2832
        %v3646 = vmul.f32 %v2631, %v2834
        %v3647 = vmul.f32 %v2635, %v2838
        %v3648 = vmul.f32 %v2637, %v2840
        %v3649 = vmul.f32 %v2641, %v2844
        %v3650 = vmul.f32 %v2643, %v2846
        %v3651 = vmul.f32 %v2647, %v2850
        %v3652 = vmul.f32 %v2649, %v2852
        %v3653 = vmul.f32 %v2653, %v2856
        %v3654 = vmul.f32 %v2655, %v2858
        %v3655 = vmul.f32 %v2659, %v2862
        %v3656 = vmul.f32 %v2661, %v2864
        %v3657 = vmul.f32 %v2665, %v2868
        %v3658 = vmul.f32 %v2667, %v2870
        %v3659 = vmul.f32 %v2671, %v2874
        %v3660 = vmul.f32 %v2673, %v2876
        %v3661 = vmul.f32 %v2677, %v2880
        %v3662 = vmul.f32 %v2679, %v2882
        %v3663 = vmul.f32 %v2683, %v2886
        %v3664 = vmul.f32 %v2685, %v2888
        %v3665 = vmul.f32 %v2689, %v2892
        %v3666 = vmul.f32 %v2691, %v2894
        %v3667 = vmul.f32 %v2695, %v2898
        %v3668 = vmul.f32 %v2697, %v2900
        %v3669 = vmul.f32 %v2701, %v2904
        %v3670 = vmul.f32 %v2703, %v2906
        %v3671 = vmul.f32 %v2707, %v2910
        %v3672 = vmul.f32 %v2709, %v2912
        %v3673 = vmul.f32 %v2713, %v2916
        %v3674 = vmul.f32 %v2715, %v2918
        %v3675 = vmul.f32 %v2719, %v2922
        %v3676 = vmul.f32 %v2721, %v2924
        %v3677 = vmul.f32 %v2725, %v2928
        %v3678 = vmul.f32 %v2727, %v2930
        %v3679 = vsub.f32 %v2999, %v3541
        %v3680 = vsub.f32 %v3001, %v3542
        %v3681 = vsub.f32 %v3005, %v3543
        %v3682 = vsub.f32 %v3007, %v3544
        %v3683 = vsub.f32 %v3011, %v3545
        %v3684 = vsub.f32 %v3013, %v3546
        %v3685 = vsub.f32 %v3017, %v3547
        %v3686 = vsub.f32 %v3019, %v3548
        %v3687 = vsub.f32 %v3023, %v3549
        %v3688 = vsub.f32 %v3025, %v3550
        %v3689 = vsub.f32 %v3029, %v3551
        %v3690 = vsub.f32 %v3031, %v3552
        %v3691 = vsub.f32 %v3035, %v3553
        %v3692 = vsub.f32 %v3037, %v3554
        %v3693 = vsub.f32 %v3041, %v3555
        %v3694 = vsub.f32 %v3043, %v3556
        %v3695 = vsub.f32 %v3047, %v3557
        %v3696 = vsub.f32 %v3049, %v3558
        %v3697 = vsub.f32 %v3053, %v3559
        %v3698 = vsub.f32 %v3055, %v3560
        %v3699 = vsub.f32 %v3059, %v3561
        %v3700 = vsub.f32 %v3061, %v3562
        %v3701 = vsub.f32 %v3065, %v3563
        %v3702 = vsub.f32 %v3067, %v3564
        %v3703 = vsub.f32 %v3071, %v3565
        %v3704 = vsub.f32 %v3073, %v3566
        %v3705 = vsub.f32 %v3077, %v3567
        %v3706 = vsub.f32 %v3079, %v3568
        %v3707 = vsub.f32 %v3083, %v3569
        %v3708 = vsub.f32 %v3085, %v3570
        %v3709 = vsub.f32 %v3089, %v3571
        %v3710 = vsub.f32 %v3091, %v3572
        %v3711 = vsub.f32 %v3095, %v3573
        %v3712 = vsub.f32 %v3097, %v3574
        %v3713 = vsub.f32 %v3101, %v3575
        %v3714 = vsub.f32 %v3103, %v3576
        %v3715 = vsub.f32 %v3107, %v3577
        %v3716 = vsub.f32 %v3109, %v3578
        %v3717 = vsub.f32 %v3113, %v3579
        %v3718 = vsub.f32 %v3115, %v3580
        %v3719 = vsub.f32 %v3119, %v3581
        %v3720 = vsub.f32 %v3121, %v3582
        %v3721 = vsub.f32 %v3125, %v3583
        %v3722 = vsub.f32 %v3127, %v3584
        %v3723 = vsub.f32 %v3131, %v3585
        %v3724 = vsub.f32 %v3133, %v3586
        %v3725 = vsub.f32 %v3202, %v3587
        %v3726 = vsub.f32 %v3204, %v3588
        %v3727 = vsub.f32 %v3208, %v3589
        %v3728 = vsub.f32 %v3210, %v3590
        %v3729 = vsub.f32 %v3214, %v3591
        %v3730 = vsub.f32 %v3216, %v3592
        %v3731 = vsub.f32 %v3220, %v3593
        %v3732 = vsub.f32 %v3222, %v3594
        %v3733 = vsub.f32 %v3226, %v3595
        %v3734 = vsub.f32 %v3228, %v3596
        %v3735 = vsub.f32 %v3232, %v3597
        %v3736 = vsub.f32 %v3234, %v3598
        %v3737 = vsub.f32 %v3238, %v3599
        %v3738 = vsub.f32 %v3240, %v3600
        %v3739 = vsub.f32 %v3244, %v3601
        %v3740 = vsub.f32 %v3246, %v3602
        %v3741 = vsub.f32 %v3250, %v3603
        %v3742 = vsub.f32 %v3252, %v3604
        %v3743 = vsub.f32 %v3256, %v3605
        %v3744 = vsub.f32 %v3258, %v3606
        %v3745 = vsub.f32 %v3262, %v3607
        %v3746 = vsub.f32 %v3264, %v3608
        %v3747 = vsub.f32 %v3268, %v3609
        %v3748 = vsub.f32 %v3270, %v3610
        %v3749 = vsub.f32 %v3274, %v3611
        %v3750 = vsub.f32 %v3276, %v3612
        %v3751 = vsub.f32 %v3280, %v3613
        %v3752 = vsub.f32 %v3282, %v3614
        %v3753 = vsub.f32 %v3286, %v3615
        %v3754 = vsub.f32 %v3288, %v3616
        %v3755 = vsub.f32 %v3292, %v3617
        %v3756 = vsub.f32 %v3294, %v3618
        %v3757 = vsub.f32 %v3298, %v3619
        %v3758 = vsub.f32 %v3300, %v3620
        %v3759 = vsub.f32 %v3304, %v3621
        %v3760 = vsub.f32 %v3306, %v3622
        %v3761 = vsub.f32 %v3310, %v3623
        %v3762 = vsub.f32 %v3312, %v3624
        %v3763 = vsub.f32 %v3316, %v3625
        %v3764 = vsub.f32 %v3318, %v3626
        %v3765 = vsub.f32 %v3322, %v3627
        %v3766 = vsub.f32 %v3324, %v3628
        %v3767 = vsub.f32 %v3328, %v3629
        %v3768 = vsub.f32 %v3330, %v3630
        %v3769 = vsub.f32 %v3334, %v3631
        %v3770 = vsub.f32 %v3336, %v3632
        %v3771 = vsub.f32 %v3405, %v3633
        %v3772 = vsub.f32 %v3407, %v3634
        %v3773 = vsub.f32 %v3411, %v3635
        %v3774 = vsub.f32 %v3413, %v3636
        %v3775 = vsub.f32 %v3417, %v3637
        %v3776 = vsub.f32 %v3419, %v3638
        %v3777 = vsub.f32 %v3423, %v3639
        %v3778 = vsub.f32 %v3425, %v3640
        %v3779 = vsub.f32 %v3429, %v3641
        %v3780 = vsub.f32 %v3431, %v3642
        %v3781 = vsub.f32 %v3435, %v3643
        %v3782 = vsub.f32 %v3437, %v3644
        %v3783 = vsub.f32 %v3441, %v3645
        %v3784 = vsub.f32 %v3443, %v3646
        %v3785 = vsub.f32 %v3447, %v3647
        %v3786 = vsub.f32 %v3449, %v3648
        %v3787 = vsub.f32 %v3453, %v3649
        %v3788 = vsub.f32 %v3455, %v3650
        %v3789 = vsub.f32 %v3459, %v3651
        %v3790 = vsub.f32 %v3461, %v3652
        %v3791 = vsub.f32 %v3465, %v3653
        %v3792 = vsub.f32 %v3467, %v3654
        %v3793 = vsub.f32 %v3471, %v3655
        %v3794 = vsub.f32 %v3473, %v3656
        %v3795 = vsub.f32 %v3477, %v3657
        %v3796 = vsub.f32 %v3479, %v3658
        %v3797 = vsub.f32 %v3483, %v3659
        %v3798 = vsub.f32 %v3485, %v3660
        %v3799 = vsub.f32 %v3489, %v3661
        %v3800 = vsub.f32 %v3491, %v3662
        %v3801 = vsub.f32 %v3495, %v3663
        %v3802 = vsub.f32 %v3497, %v3664
        %v3803 = vsub.f32 %v3501, %v3665
        %v3804 = vsub.f32 %v3503, %v3666
        %v3805 = vsub.f32 %v3507, %v3667
        %v3806 = vsub.f32 %v3509, %v3668
        %v3807 = vsub.f32 %v3513, %v3669
        %v3808 = vsub.f32 %v3515, %v3670
        %v3809 = vsub.f32 %v3519, %v3671
        %v3810 = vsub.f32 %v3521, %v3672
        %v3811 = vsub.f32 %v3525, %v3673
        %v3812 = vsub.f32 %v3527, %v3674
        %v3813 = vsub.f32 %v3531, %v3675
        %v3814 = vsub.f32 %v3533, %v3676
        %v3815 = vsub.f32 %v3537, %v3677
        %v3816 = vsub.f32 %v3539, %v3678
        %v3817 = vmul.f32 %v3771, 2.0
        %v3818 = vmul.f32 %v3772, 2.0
        %v3819 = vmul.f32 %v3773, 2.0
        %v3820 = vmul.f32 %v3774, 2.0
        %v3821 = vmul.f32 %v3775, 2.0
        %v3822 = vmul.f32 %v3776, 2.0
        %v3823 = vmul.f32 %v3777, 2.0
        %v3824 = vmul.f32 %v3778, 2.0
        %v3825 = vmul.f32 %v3779, 2.0
        %v3826 = vmul.f32 %v3780, 2.0
        %v3827 = vmul.f32 %v3781, 2.0
        %v3828 = vmul.f32 %v3782, 2.0
        %v3829 = vmul.f32 %v3783, 2.0
        %v3830 = vmul.f32 %v3784, 2.0
        %v3831 = vmul.f32 %v3785, 2.0
        %v3832 = vmul.f32 %v3786, 2.0
        %v3833 = vmul.f32 %v3787, 2.0
        %v3834 = vmul.f32 %v3788, 2.0
        %v3835 = vmul.f32 %v3789, 2.0
        %v3836 = vmul.f32 %v3790, 2.0
        %v3837 = vmul.f32 %v3791, 2.0
        %v3838 = vmul.f32 %v3792, 2.0
        %v3839 = vmul.f32 %v3793, 2.0
        %v3840 = vmul.f32 %v3794, 2.0
        %v3841 = vmul.f32 %v3795, 2.0
        %v3842 = vmul.f32 %v3796, 2.0
        %v3843 = vmul.f32 %v3797, 2.0
        %v3844 = vmul.f32 %v3798, 2.0
        %v3845 = vmul.f32 %v3799, 2.0
        %v3846 = vmul.f32 %v3800, 2.0
        %v3847 = vmul.f32 %v3801, 2.0
        %v3848 = vmul.f32 %v3802, 2.0
        %v3849 = vmul.f32 %v3803, 2.0
        %v3850 = vmul.f32 %v3804, 2.0
        %v3851 = vmul.f32 %v3805, 2.0
        %v3852 = vmul.f32 %v3806, 2.0
        %v3853 = vmul.f32 %v3807, 2.0
        %v3854 = vmul.f32 %v3808, 2.0
        %v3855 = vmul.f32 %v3809, 2.0
        %v3856 = vmul.f32 %v3810, 2.0
        %v3857 = vmul.f32 %v3811, 2.0
        %v3858 = vmul.f32 %v3812, 2.0
        %v3859 = vmul.f32 %v3813, 2.0
        %v3860 = vmul.f32 %v3814, 2.0
        %v3861 = vmul.f32 %v3815, 2.0
        %v3862 = vmul.f32 %v3816, 2.0
        %v3863 = vadd.f32 %v3817, 0.0009
        %v3864 = vadd.f32 %v3818, 0.0009
        %v3865 = vadd.f32 %v3819, 0.0009
        %v3866 = vadd.f32 %v3820, 0.0009
        %v3867 = vadd.f32 %v3821, 0.0009
        %v3868 = vadd.f32 %v3822, 0.0009
        %v3869 = vadd.f32 %v3823, 0.0009
        %v3870 = vadd.f32 %v3824, 0.0009
        %v3871 = vadd.f32 %v3825, 0.0009
        %v3872 = vadd.f32 %v3826, 0.0009
        %v3873 = vadd.f32 %v3827, 0.0009
        %v3874 = vadd.f32 %v3828, 0.0009
        %v3875 = vadd.f32 %v3829, 0.0009
        %v3876 = vadd.f32 %v3830, 0.0009
        %v3877 = vadd.f32 %v3831, 0.0009
        %v3878 = vadd.f32 %v3832, 0.0009
        %v3879 = vadd.f32 %v3833, 0.0009
        %v3880 = vadd.f32 %v3834, 0.0009
        %v3881 = vadd.f32 %v3835, 0.0009
        %v3882 = vadd.f32 %v3836, 0.0009
        %v3883 = vadd.f32 %v3837, 0.0009
        %v3884 = vadd.f32 %v3838, 0.0009
        %v3885 = vadd.f32 %v3839, 0.0009
        %v3886 = vadd.f32 %v3840, 0.0009
        %v3887 = vadd.f32 %v3841, 0.0009
        %v3888 = vadd.f32 %v3842, 0.0009
        %v3889 = vadd.f32 %v3843, 0.0009
        %v3890 = vadd.f32 %v3844, 0.0009
        %v3891 = vadd.f32 %v3845, 0.0009
        %v3892 = vadd.f32 %v3846, 0.0009
        %v3893 = vadd.f32 %v3847, 0.0009
        %v3894 = vadd.f32 %v3848, 0.0009
        %v3895 = vadd.f32 %v3849, 0.0009
        %v3896 = vadd.f32 %v3850, 0.0009
        %v3897 = vadd.f32 %v3851, 0.0009
        %v3898 = vadd.f32 %v3852, 0.0009
        %v3899 = vadd.f32 %v3853, 0.0009
        %v3900 = vadd.f32 %v3854, 0.0009
        %v3901 = vadd.f32 %v3855, 0.0009
        %v3902 = vadd.f32 %v3856, 0.0009
        %v3903 = vadd.f32 %v3857, 0.0009
        %v3904 = vadd.f32 %v3858, 0.0009
        %v3905 = vadd.f32 %v3859, 0.0009
        %v3906 = vadd.f32 %v3860, 0.0009
        %v3907 = vadd.f32 %v3861, 0.0009
        %v3908 = vadd.f32 %v3862, 0.0009
        %v3909 = vadd.f32 %v3679, %v3725
        %v3910 = vadd.f32 %v3680, %v3726
        %v3911 = vadd.f32 %v3681, %v3727
        %v3912 = vadd.f32 %v3682, %v3728
        %v3913 = vadd.f32 %v3683, %v3729
        %v3914 = vadd.f32 %v3684, %v3730
        %v3915 = vadd.f32 %v3685, %v3731
        %v3916 = vadd.f32 %v3686, %v3732
        %v3917 = vadd.f32 %v3687, %v3733
        %v3918 = vadd.f32 %v3688, %v3734
        %v3919 = vadd.f32 %v3689, %v3735
        %v3920 = vadd.f32 %v3690, %v3736
        %v3921 = vadd.f32 %v3691, %v3737
        %v3922 = vadd.f32 %v3692, %v3738
        %v3923 = vadd.f32 %v3693, %v3739
        %v3924 = vadd.f32 %v3694, %v3740
        %v3925 = vadd.f32 %v3695, %v3741
        %v3926 = vadd.f32 %v3696, %v3742
        %v3927 = vadd.f32 %v3697, %v3743
        %v3928 = vadd.f32 %v3698, %v3744
        %v3929 = vadd.f32 %v3699, %v3745
        %v3930 = vadd.f32 %v3700, %v3746
        %v3931 = vadd.f32 %v3701, %v3747
        %v3932 = vadd.f32 %v3702, %v3748
        %v3933 = vadd.f32 %v3703, %v3749
        %v3934 = vadd.f32 %v3704, %v3750
        %v3935 = vadd.f32 %v3705, %v3751
        %v3936 = vadd.f32 %v3706, %v3752
        %v3937 = vadd.f32 %v3707, %v3753
        %v3938 = vadd.f32 %v3708, %v3754
        %v3939 = vadd.f32 %v3709, %v3755
        %v3940 = vadd.f32 %v3710, %v3756
        %v3941 = vadd.f32 %v3711, %v3757
        %v3942 = vadd.f32 %v3712, %v3758
        %v3943 = vadd.f32 %v3713, %v3759
        %v3944 = vadd.f32 %v3714, %v3760
        %v3945 = vadd.f32 %v3715, %v3761
        %v3946 = vadd.f32 %v3716, %v3762
        %v3947 = vadd.f32 %v3717, %v3763
        %v3948 = vadd.f32 %v3718, %v3764
        %v3949 = vadd.f32 %v3719, %v3765
        %v3950 = vadd.f32 %v3720, %v3766
        %v3951 = vadd.f32 %v3721, %v3767
        %v3952 = vadd.f32 %v3722, %v3768
        %v3953 = vadd.f32 %v3723, %v3769
        %v3954 = vadd.f32 %v3724, %v3770
        %v3955 = vadd.f32 %v3909, 0.0009
        %v3956 = vadd.f32 %v3910, 0.0009
        %v3957 = vadd.f32 %v3911, 0.0009
        %v3958 = vadd.f32 %v3912, 0.0009
        %v3959 = vadd.f32 %v3913, 0.0009
        %v3960 = vadd.f32 %v3914, 0.0009
        %v3961 = vadd.f32 %v3915, 0.0009
        %v3962 = vadd.f32 %v3916, 0.0009
        %v3963 = vadd.f32 %v3917, 0.0009
        %v3964 = vadd.f32 %v3918, 0.0009
        %v3965 = vadd.f32 %v3919, 0.0009
        %v3966 = vadd.f32 %v3920, 0.0009
        %v3967 = vadd.f32 %v3921, 0.0009
        %v3968 = vadd.f32 %v3922, 0.0009
        %v3969 = vadd.f32 %v3923, 0.0009
        %v3970 = vadd.f32 %v3924, 0.0009
        %v3971 = vadd.f32 %v3925, 0.0009
        %v3972 = vadd.f32 %v3926, 0.0009
        %v3973 = vadd.f32 %v3927, 0.0009
        %v3974 = vadd.f32 %v3928, 0.0009
        %v3975 = vadd.f32 %v3929, 0.0009
        %v3976 = vadd.f32 %v3930, 0.0009
        %v3977 = vadd.f32 %v3931, 0.0009
        %v3978 = vadd.f32 %v3932, 0.0009
        %v3979 = vadd.f32 %v3933, 0.0009
        %v3980 = vadd.f32 %v3934, 0.0009
        %v3981 = vadd.f32 %v3935, 0.0009
        %v3982 = vadd.f32 %v3936, 0.0009
        %v3983 = vadd.f32 %v3937, 0.0009
        %v3984 = vadd.f32 %v3938, 0.0009
        %v3985 = vadd.f32 %v3939, 0.0009
        %v3986 = vadd.f32 %v3940, 0.0009
        %v3987 = vadd.f32 %v3941, 0.0009
        %v3988 = vadd.f32 %v3942, 0.0009
        %v3989 = vadd.f32 %v3943, 0.0009
        %v3990 = vadd.f32 %v3944, 0.0009
        %v3991 = vadd.f32 %v3945, 0.0009
        %v3992 = vadd.f32 %v3946, 0.0009
        %v3993 = vadd.f32 %v3947, 0.0009
        %v3994 = vadd.f32 %v3948, 0.0009
        %v3995 = vadd.f32 %v3949, 0.0009
        %v3996 = vadd.f32 %v3950, 0.0009
        %v3997 = vadd.f32 %v3951, 0.0009
        %v3998 = vadd.f32 %v3952, 0.0009
        %v3999 = vadd.f32 %v3953, 0.0009
        %v4000 = vadd.f32 %v3954, 0.0009
        %v4001 = vrcp.pop %v3955
        %v4002 = vmul.f32 %v3863, %v4001
        %v4003 = vrcp.pop %v3956
        %v4004 = vmul.f32 %v3864, %v4003
        %v4005 = vrcp.pop %v3957
        %v4006 = vmul.f32 %v3865, %v4005
        %v4007 = vrcp.pop %v3958
        %v4008 = vmul.f32 %v3866, %v4007
        %v4009 = vrcp.pop %v3959
        %v4010 = vmul.f32 %v3867, %v4009
        %v4011 = vrcp.pop %v3960
        %v4012 = vmul.f32 %v3868, %v4011
        %v4013 = vrcp.pop %v3961
        %v4014 = vmul.f32 %v3869, %v4013
        %v4015 = vrcp.pop %v3962
        %v4016 = vmul.f32 %v3870, %v4015
        %v4017 = vrcp.pop %v3963
        %v4018 = vmul.f32 %v3871, %v4017
        %v4019 = vrcp.pop %v3964
        %v4020 = vmul.f32 %v3872, %v4019
        %v4021 = vrcp.pop %v3965
        %v4022 = vmul.f32 %v3873, %v4021
        %v4023 = vrcp.pop %v3966
        %v4024 = vmul.f32 %v3874, %v4023
        %v4025 = vrcp.pop %v3967
        %v4026 = vmul.f32 %v3875, %v4025
        %v4027 = vrcp.pop %v3968
        %v4028 = vmul.f32 %v3876, %v4027
        %v4029 = vrcp.pop %v3969
        %v4030 = vmul.f32 %v3877, %v4029
        %v4031 = vrcp.pop %v3970
        %v4032 = vmul.f32 %v3878, %v4031
        %v4033 = vrcp.pop %v3971
        %v4034 = vmul.f32 %v3879, %v4033
        %v4035 = vrcp.pop %v3972
        %v4036 = vmul.f32 %v3880, %v4035
        %v4037 = vrcp.pop %v3973
        %v4038 = vmul.f32 %v3881, %v4037
        %v4039 = vrcp.pop %v3974
        %v4040 = vmul.f32 %v3882, %v4039
        %v4041 = vrcp.pop %v3975
        %v4042 = vmul.f32 %v3883, %v4041
        %v4043 = vrcp.pop %v3976
        %v4044 = vmul.f32 %v3884, %v4043
        %v4045 = vrcp.pop %v3977
        %v4046 = vmul.f32 %v3885, %v4045
        %v4047 = vrcp.pop %v3978
        %v4048 = vmul.f32 %v3886, %v4047
        %v4049 = vrcp.pop %v3979
        %v4050 = vmul.f32 %v3887, %v4049
        %v4051 = vrcp.pop %v3980
        %v4052 = vmul.f32 %v3888, %v4051
        %v4053 = vrcp.pop %v3981
        %v4054 = vmul.f32 %v3889, %v4053
        %v4055 = vrcp.pop %v3982
        %v4056 = vmul.f32 %v3890, %v4055
        %v4057 = vrcp.pop %v3983
        %v4058 = vmul.f32 %v3891, %v4057
        %v4059 = vrcp.pop %v3984
        %v4060 = vmul.f32 %v3892, %v4059
        %v4061 = vrcp.pop %v3985
        %v4062 = vmul.f32 %v3893, %v4061
        %v4063 = vrcp.pop %v3986
        %v4064 = vmul.f32 %v3894, %v4063
        %v4065 = vrcp.pop %v3987
        %v4066 = vmul.f32 %v3895, %v4065
        %v4067 = vrcp.pop %v3988
        %v4068 = vmul.f32 %v3896, %v4067
        %v4069 = vrcp.pop %v3989
        %v4070 = vmul.f32 %v3897, %v4069
        %v4071 = vrcp.pop %v3990
        %v4072 = vmul.f32 %v3898, %v4071
        %v4073 = vrcp.pop %v3991
        %v4074 = vmul.f32 %v3899, %v4073
        %v4075 = vrcp.pop %v3992
        %v4076 = vmul.f32 %v3900, %v4075
        %v4077 = vrcp.pop %v3993
        %v4078 = vmul.f32 %v3901, %v4077
        %v4079 = vrcp.pop %v3994
        %v4080 = vmul.f32 %v3902, %v4079
        %v4081 = vrcp.pop %v3995
        %v4082 = vmul.f32 %v3903, %v4081
        %v4083 = vrcp.pop %v3996
        %v4084 = vmul.f32 %v3904, %v4083
        %v4085 = vrcp.pop %v3997
        %v4086 = vmul.f32 %v3905, %v4085
        %v4087 = vrcp.pop %v3998
        %v4088 = vmul.f32 %v3906, %v4087
        %v4089 = vrcp.pop %v3999
        %v4090 = vmul.f32 %v3907, %v4089
        %v4091 = vrcp.pop %v4000
        %v4092 = vmul.f32 %v3908, %v4091
        %vm4093 = vcmask 441344
        %v4094 = vsel %vm4093, %v4004, 0.0
        %v4095 = vadd.f32 %v4002, %v4094
        %v4096 = vadd.f32 %v4095, %v4006
        %v4097 = vsel %vm4093, %v4008, 0.0
        %v4098 = vadd.f32 %v4096, %v4097
        %v4099 = vadd.f32 %v4098, %v4010
        %v4100 = vsel %vm4093, %v4012, 0.0
        %v4101 = vadd.f32 %v4099, %v4100
        %v4102 = vadd.f32 %v4101, %v4014
        %v4103 = vsel %vm4093, %v4016, 0.0
        %v4104 = vadd.f32 %v4102, %v4103
        %v4105 = vadd.f32 %v4104, %v4018
        %v4106 = vsel %vm4093, %v4020, 0.0
        %v4107 = vadd.f32 %v4105, %v4106
        %v4108 = vadd.f32 %v4107, %v4022
        %v4109 = vsel %vm4093, %v4024, 0.0
        %v4110 = vadd.f32 %v4108, %v4109
        %v4111 = vadd.f32 %v4110, %v4026
        %v4112 = vsel %vm4093, %v4028, 0.0
        %v4113 = vadd.f32 %v4111, %v4112
        %v4114 = vadd.f32 %v4113, %v4030
        %v4115 = vsel %vm4093, %v4032, 0.0
        %v4116 = vadd.f32 %v4114, %v4115
        %v4117 = vadd.f32 %v4116, %v4034
        %v4118 = vsel %vm4093, %v4036, 0.0
        %v4119 = vadd.f32 %v4117, %v4118
        %v4120 = vadd.f32 %v4119, %v4038
        %v4121 = vsel %vm4093, %v4040, 0.0
        %v4122 = vadd.f32 %v4120, %v4121
        %v4123 = vadd.f32 %v4122, %v4042
        %v4124 = vsel %vm4093, %v4044, 0.0
        %v4125 = vadd.f32 %v4123, %v4124
        %v4126 = vadd.f32 %v4125, %v4046
        %v4127 = vsel %vm4093, %v4048, 0.0
        %v4128 = vadd.f32 %v4126, %v4127
        %v4129 = vadd.f32 %v4128, %v4050
        %v4130 = vsel %vm4093, %v4052, 0.0
        %v4131 = vadd.f32 %v4129, %v4130
        %v4132 = vadd.f32 %v4131, %v4054
        %v4133 = vsel %vm4093, %v4056, 0.0
        %v4134 = vadd.f32 %v4132, %v4133
        %v4135 = vadd.f32 %v4134, %v4058
        %v4136 = vsel %vm4093, %v4060, 0.0
        %v4137 = vadd.f32 %v4135, %v4136
        %v4138 = vadd.f32 %v4137, %v4062
        %v4139 = vsel %vm4093, %v4064, 0.0
        %v4140 = vadd.f32 %v4138, %v4139
        %v4141 = vadd.f32 %v4140, %v4066
        %v4142 = vsel %vm4093, %v4068, 0.0
        %v4143 = vadd.f32 %v4141, %v4142
        %v4144 = vadd.f32 %v4143, %v4070
        %v4145 = vsel %vm4093, %v4072, 0.0
        %v4146 = vadd.f32 %v4144, %v4145
        %v4147 = vadd.f32 %v4146, %v4074
        %v4148 = vsel %vm4093, %v4076, 0.0
        %v4149 = vadd.f32 %v4147, %v4148
        %v4150 = vadd.f32 %v4149, %v4078
        %v4151 = vsel %vm4093, %v4080, 0.0
        %v4152 = vadd.f32 %v4150, %v4151
        %v4153 = vadd.f32 %v4152, %v4082
        %v4154 = vsel %vm4093, %v4084, 0.0
        %v4155 = vadd.f32 %v4153, %v4154
        %v4156 = vadd.f32 %v4155, %v4086
        %v4157 = vsel %vm4093, %v4088, 0.0
        %v4158 = vadd.f32 %v4156, %v4157
        %vm4159 = vcmask 1045504
        %v4160 = vsel %vm4159, %v4090, 0.0
        %v4161 = vadd.f32 %v4158, %v4160
        %vm4162 = vcmask 439296
        %v4163 = vsel %vm4162, %v4092, 0.0
        %v4164 = vadd.f32 %v4161, %v4163
        %4165 = vadd.xlane.f32.xlu0 %v4164
        %v4166 = vpop.xlane.xlu0 %4165
        %v4167 = vrot.slane %v4166, 4
        %v4168 = vadd.f32 %v4166, %v4167
        %v4169 = vrot.slane %v4168, 2
        %v4170 = vadd.f32 %v4168, %v4169
        %v4171 = vrot.slane %v4170, 1
        %v4172 = vadd.f32 %v4170, %v4171
        %s4173 = vtos %v4172
        %v4174 = vrcp.pop 33124.0
        %s4175 = vtos %v4174
        %s4176 = smul.f32 %s4173, %s4175
        %v4177 = vsub.f32 %v977, %v1025
        %v4178 = vsub.f32 %v978, %v1026
        %v4179 = vsub.f32 %v979, %v1027
        %v4180 = vsub.f32 %v980, %v1028
        %v4181 = vsub.f32 %v981, %v1029
        %v4182 = vsub.f32 %v982, %v1030
        %v4183 = vsub.f32 %v983, %v1031
        %v4184 = vsub.f32 %v984, %v1032
        %v4185 = vsub.f32 %v985, %v1033
        %v4186 = vsub.f32 %v986, %v1034
        %v4187 = vsub.f32 %v987, %v1035
        %v4188 = vsub.f32 %v988, %v1036
        %v4189 = vsub.f32 %v989, %v1037
        %v4190 = vsub.f32 %v990, %v1038
        %v4191 = vsub.f32 %v991, %v1039
        %v4192 = vsub.f32 %v992, %v1040
        %v4193 = vsub.f32 %v993, %v1041
        %v4194 = vsub.f32 %v994, %v1042
        %v4195 = vsub.f32 %v995, %v1043
        %v4196 = vsub.f32 %v996, %v1044
        %v4197 = vsub.f32 %v997, %v1045
        %v4198 = vsub.f32 %v998, %v1046
        %v4199 = vsub.f32 %v999, %v1047
        %v4200 = vsub.f32 %v1000, %v1048
        %v4201 = vsub.f32 %v1001, %v1049
        %v4202 = vsub.f32 %v1002, %v1050
        %v4203 = vsub.f32 %v1003, %v1051
        %v4204 = vsub.f32 %v1004, %v1052
        %v4205 = vsub.f32 %v1005, %v1053
        %v4206 = vsub.f32 %v1006, %v1054
        %v4207 = vsub.f32 %v1007, %v1055
        %v4208 = vsub.f32 %v1008, %v1056
        %v4209 = vsub.f32 %v1009, %v1057
        %v4210 = vsub.f32 %v1010, %v1058
        %v4211 = vsub.f32 %v1011, %v1059
        %v4212 = vsub.f32 %v1012, %v1060
        %v4213 = vsub.f32 %v1013, %v1061
        %v4214 = vsub.f32 %v1014, %v1062
        %v4215 = vsub.f32 %v1015, %v1063
        %v4216 = vsub.f32 %v1016, %v1064
        %v4217 = vsub.f32 %v1017, %v1065
        %v4218 = vsub.f32 %v1018, %v1066
        %v4219 = vsub.f32 %v1019, %v1067
        %v4220 = vsub.f32 %v1020, %v1068
        %v4221 = vsub.f32 %v1021, %v1069
        %v4222 = vsub.f32 %v1022, %v1070
        %v4223 = vsub.f32 %v1023, %v1071
        %v4224 = vsub.f32 %v1024, %v1072
        %v4225 = vand.u32 2147483647, %v4177
        %v4226 = vand.u32 2147483647, %v4178
        %v4227 = vand.u32 2147483647, %v4179
        %v4228 = vand.u32 2147483647, %v4180
        %v4229 = vand.u32 2147483647, %v4181
        %v4230 = vand.u32 2147483647, %v4182
        %v4231 = vand.u32 2147483647, %v4183
        %v4232 = vand.u32 2147483647, %v4184
        %v4233 = vand.u32 2147483647, %v4185
        %v4234 = vand.u32 2147483647, %v4186
        %v4235 = vand.u32 2147483647, %v4187
        %v4236 = vand.u32 2147483647, %v4188
        %v4237 = vand.u32 2147483647, %v4189
        %v4238 = vand.u32 2147483647, %v4190
        %v4239 = vand.u32 2147483647, %v4191
        %v4240 = vand.u32 2147483647, %v4192
        %v4241 = vand.u32 2147483647, %v4193
        %v4242 = vand.u32 2147483647, %v4194
        %v4243 = vand.u32 2147483647, %v4195
        %v4244 = vand.u32 2147483647, %v4196
        %v4245 = vand.u32 2147483647, %v4197
        %v4246 = vand.u32 2147483647, %v4198
        %v4247 = vand.u32 2147483647, %v4199
        %v4248 = vand.u32 2147483647, %v4200
        %v4249 = vand.u32 2147483647, %v4201
        %v4250 = vand.u32 2147483647, %v4202
        %v4251 = vand.u32 2147483647, %v4203
        %v4252 = vand.u32 2147483647, %v4204
        %v4253 = vand.u32 2147483647, %v4205
        %v4254 = vand.u32 2147483647, %v4206
        %v4255 = vand.u32 2147483647, %v4207
        %v4256 = vand.u32 2147483647, %v4208
        %v4257 = vand.u32 2147483647, %v4209
        %v4258 = vand.u32 2147483647, %v4210
        %v4259 = vand.u32 2147483647, %v4211
        %v4260 = vand.u32 2147483647, %v4212
        %v4261 = vand.u32 2147483647, %v4213
        %v4262 = vand.u32 2147483647, %v4214
        %v4263 = vand.u32 2147483647, %v4215
        %v4264 = vand.u32 2147483647, %v4216
        %v4265 = vand.u32 2147483647, %v4217
        %v4266 = vand.u32 2147483647, %v4218
        %v4267 = vand.u32 2147483647, %v4219
        %v4268 = vand.u32 2147483647, %v4220
        %v4269 = vand.u32 2147483647, %v4221
        %v4270 = vand.u32 2147483647, %v4222
        %v4271 = vand.u32 2147483647, %v4223
        %v4272 = vand.u32 2147483647, %v4224
        %v4273 = vsel %vm1311, %v4226, 0.0
        %v4274 = vadd.f32 %v4225, %v4273
        %v4275 = vadd.f32 %v4274, %v4227
        %v4276 = vsel %vm1311, %v4228, 0.0
        %v4277 = vadd.f32 %v4275, %v4276
        %v4278 = vadd.f32 %v4277, %v4229
        %v4279 = vsel %vm1311, %v4230, 0.0
        %v4280 = vadd.f32 %v4278, %v4279
        %v4281 = vadd.f32 %v4280, %v4231
        %v4282 = vsel %vm1311, %v4232, 0.0
        %v4283 = vadd.f32 %v4281, %v4282
        %v4284 = vadd.f32 %v4283, %v4233
        %v4285 = vsel %vm1311, %v4234, 0.0
        %v4286 = vadd.f32 %v4284, %v4285
        %v4287 = vadd.f32 %v4286, %v4235
        %v4288 = vsel %vm1311, %v4236, 0.0
        %v4289 = vadd.f32 %v4287, %v4288
        %v4290 = vadd.f32 %v4289, %v4237
        %v4291 = vsel %vm1311, %v4238, 0.0
        %v4292 = vadd.f32 %v4290, %v4291
        %v4293 = vadd.f32 %v4292, %v4239
        %v4294 = vsel %vm1311, %v4240, 0.0
        %v4295 = vadd.f32 %v4293, %v4294
        %v4296 = vadd.f32 %v4295, %v4241
        %v4297 = vsel %vm1311, %v4242, 0.0
        %v4298 = vadd.f32 %v4296, %v4297
        %v4299 = vadd.f32 %v4298, %v4243
        %v4300 = vsel %vm1311, %v4244, 0.0
        %v4301 = vadd.f32 %v4299, %v4300
        %v4302 = vadd.f32 %v4301, %v4245
        %v4303 = vsel %vm1311, %v4246, 0.0
        %v4304 = vadd.f32 %v4302, %v4303
        %v4305 = vadd.f32 %v4304, %v4247
        %v4306 = vsel %vm1311, %v4248, 0.0
        %v4307 = vadd.f32 %v4305, %v4306
        %v4308 = vadd.f32 %v4307, %v4249
        %v4309 = vsel %vm1311, %v4250, 0.0
        %v4310 = vadd.f32 %v4308, %v4309
        %v4311 = vadd.f32 %v4310, %v4251
        %v4312 = vsel %vm1311, %v4252, 0.0
        %v4313 = vadd.f32 %v4311, %v4312
        %v4314 = vadd.f32 %v4313, %v4253
        %v4315 = vsel %vm1311, %v4254, 0.0
        %v4316 = vadd.f32 %v4314, %v4315
        %v4317 = vadd.f32 %v4316, %v4255
        %v4318 = vsel %vm1311, %v4256, 0.0
        %v4319 = vadd.f32 %v4317, %v4318
        %v4320 = vadd.f32 %v4319, %v4257
        %v4321 = vsel %vm1311, %v4258, 0.0
        %v4322 = vadd.f32 %v4320, %v4321
        %v4323 = vadd.f32 %v4322, %v4259
        %v4324 = vsel %vm1311, %v4260, 0.0
        %v4325 = vadd.f32 %v4323, %v4324
        %v4326 = vadd.f32 %v4325, %v4261
        %v4327 = vsel %vm1311, %v4262, 0.0
        %v4328 = vadd.f32 %v4326, %v4327
        %v4329 = vadd.f32 %v4328, %v4263
        %v4330 = vsel %vm1311, %v4264, 0.0
        %v4331 = vadd.f32 %v4329, %v4330
        %v4332 = vadd.f32 %v4331, %v4265
        %v4333 = vsel %vm1311, %v4266, 0.0
        %v4334 = vadd.f32 %v4332, %v4333
        %v4335 = vadd.f32 %v4334, %v4267
        %v4336 = vsel %vm1311, %v4268, 0.0
        %v4337 = vadd.f32 %v4335, %v4336
        %v4338 = vadd.f32 %v4337, %v4269
        %v4339 = vsel %vm1311, %v4270, 0.0
        %v4340 = vadd.f32 %v4338, %v4339
        %v4341 = vadd.f32 %v4340, %v4271
        %v4342 = vsel %vm1311, %v4272, 0.0
        %v4343 = vadd.f32 %v4341, %v4342
        %4344 = vadd.xlane.f32.xlu0 %v4343
        %v4345 = vpop.xlane.xlu0 %4344
        %v4346 = vrot.slane %v4345, 4
        %v4347 = vadd.f32 %v4345, %v4346
        %v4348 = vrot.slane %v4347, 2
        %v4349 = vadd.f32 %v4347, %v4348
        %v4350 = vrot.slane %v4349, 1
        %v4351 = vadd.f32 %v4349, %v4350
        %s4352 = vtos %v4351
        %v4353 = vrcp.pop 36864.0
        %s4354 = vtos %v4353
        %s4355 = smul.f32 %s4352, %s4354
        %v4356 = vld [vmem:[#allocation21] sm:$0xff]
        %v4357 = vld [vmem:[#allocation21 + $0x8] sm:$0xff]
        %v4358 = vld [vmem:[#allocation21 + $0x10] sm:$0xff]
        %v4359 = vld [vmem:[#allocation21 + $0x18] sm:$0xff]
        %v4360 = vld [vmem:[#allocation21 + $0x20] sm:$0xff]
        %v4361 = vld [vmem:[#allocation21 + $0x28] sm:$0xff]
        %v4362 = vld [vmem:[#allocation21 + $0x30] sm:$0xff]
        %v4363 = vld [vmem:[#allocation21 + $0x38] sm:$0xff]
        %v4364 = vld [vmem:[#allocation21 + $0x40] sm:$0xff]
        %v4365 = vld [vmem:[#allocation21 + $0x48] sm:$0xff]
        %v4366 = vld [vmem:[#allocation21 + $0x50] sm:$0xff]
        %v4367 = vld [vmem:[#allocation21 + $0x58] sm:$0xff]
        %v4368 = vld [vmem:[#allocation21 + $0x60] sm:$0xff]
        %v4369 = vld [vmem:[#allocation21 + $0x68] sm:$0xff]
        %v4370 = vld [vmem:[#allocation21 + $0x70] sm:$0xff]
        %v4371 = vld [vmem:[#allocation21 + $0x78] sm:$0xff]
        %v4372 = vld [vmem:[#allocation21 + $0x80] sm:$0xff]
        %v4373 = vld [vmem:[#allocation21 + $0x88] sm:$0xff]
        %v4374 = vld [vmem:[#allocation21 + $0x90] sm:$0xff]
        %v4375 = vld [vmem:[#allocation21 + $0x98] sm:$0xff]
        %v4376 = vld [vmem:[#allocation21 + $0xa0] sm:$0xff]
        %v4377 = vld [vmem:[#allocation21 + $0xa8] sm:$0xff]
        %v4378 = vld [vmem:[#allocation21 + $0xb0] sm:$0xff]
        %v4379 = vld [vmem:[#allocation21 + $0xb8] sm:$0xff]
        %v4380 = vld [vmem:[#allocation27] sm:$0xff]
        %v4381 = vld [vmem:[#allocation27 + $0x8] sm:$0xff]
        %v4382 = vld [vmem:[#allocation27 + $0x10] sm:$0xff]
        %v4383 = vld [vmem:[#allocation27 + $0x18] sm:$0xff]
        %v4384 = vld [vmem:[#allocation27 + $0x20] sm:$0xff]
        %v4385 = vld [vmem:[#allocation27 + $0x28] sm:$0xff]
        %v4386 = vld [vmem:[#allocation27 + $0x30] sm:$0xff]
        %v4387 = vld [vmem:[#allocation27 + $0x38] sm:$0xff]
        %v4388 = vld [vmem:[#allocation27 + $0x40] sm:$0xff]
        %v4389 = vld [vmem:[#allocation27 + $0x48] sm:$0xff]
        %v4390 = vld [vmem:[#allocation27 + $0x50] sm:$0xff]
        %v4391 = vld [vmem:[#allocation27 + $0x58] sm:$0xff]
        %v4392 = vld [vmem:[#allocation27 + $0x60] sm:$0xff]
        %v4393 = vld [vmem:[#allocation27 + $0x68] sm:$0xff]
        %v4394 = vld [vmem:[#allocation27 + $0x70] sm:$0xff]
        %v4395 = vld [vmem:[#allocation27 + $0x78] sm:$0xff]
        %v4396 = vld [vmem:[#allocation27 + $0x80] sm:$0xff]
        %v4397 = vld [vmem:[#allocation27 + $0x88] sm:$0xff]
        %v4398 = vld [vmem:[#allocation27 + $0x90] sm:$0xff]
        %v4399 = vld [vmem:[#allocation27 + $0x98] sm:$0xff]
        %v4400 = vld [vmem:[#allocation27 + $0xa0] sm:$0xff]
        %v4401 = vld [vmem:[#allocation27 + $0xa8] sm:$0xff]
        %v4402 = vld [vmem:[#allocation27 + $0xb0] sm:$0xff]
        %v4403 = vld [vmem:[#allocation27 + $0xb8] sm:$0xff]
        %4404 = vmatprep.subr.mxu0 0.0
        %4405 = vmatpush1.msra.mxu0 %v4356
        %4406 = vmatprep.subr.mxu0 0.0
        %4407 = vmatpush1.msra.mxu0 %v4357
        %4408 = vmatprep.subr.mxu0 0.0
        %4409 = vmatpush1.msra.mxu0 %v4358
        %4410 = vmatprep.subr.mxu0 0.0
        %4411 = vmatpush1.msra.mxu0 %v4359
        %4412 = vmatprep.subr.mxu0 0.0
        %4413 = vmatpush1.msra.mxu0 %v4360
        %4414 = vmatprep.subr.mxu0 0.0
        %4415 = vmatpush1.msra.mxu0 %v4361
        %4416 = vmatprep.subr.mxu0 0.0
        %4417 = vmatpush1.msra.mxu0 %v4362
        %4418 = vmatprep.subr.mxu0 0.0
        %4419 = vmatpush1.msra.mxu0 %v4363
        %4420 = vmatprep.subr.mxu0 0.0
        %4421 = vmatpush1.msra.mxu0 %v4364
        %4422 = vmatprep.subr.mxu0 0.0
        %4423 = vmatpush1.msra.mxu0 %v4365
        %4424 = vmatprep.subr.mxu0 0.0
        %4425 = vmatpush1.msra.mxu0 %v4366
        %4426 = vmatprep.subr.mxu0 0.0
        %4427 = vmatpush1.msra.mxu0 %v4367
        %4428 = vmatprep.subr.mxu0 0.0
        %4429 = vmatpush1.msra.mxu0 %v4368
        %4430 = vmatprep.subr.mxu0 0.0
        %4431 = vmatpush1.msra.mxu0 %v4369
        %4432 = vmatprep.subr.mxu0 0.0
        %4433 = vmatpush1.msra.mxu0 %v4370
        %4434 = vmatprep.subr.mxu0 0.0
        %4435 = vmatpush1.msra.mxu0 %v4371
        %4436 = vmatprep.subr.mxu0 0.0
        %4437 = vmatpush1.msra.mxu0 %v4372
        %4438 = vmatprep.subr.mxu0 0.0
        %4439 = vmatpush1.msra.mxu0 %v4373
        %4440 = vmatprep.subr.mxu0 0.0
        %4441 = vmatpush1.msra.mxu0 %v4374
        %4442 = vmatprep.subr.mxu0 0.0
        %4443 = vmatpush1.msra.mxu0 %v4375
        %4444 = vmatprep.subr.mxu0 0.0
        %4445 = vmatpush1.msra.mxu0 %v4376
        %4446 = vmatprep.subr.mxu0 0.0
        %4447 = vmatpush1.msra.mxu0 %v4377
        %4448 = vmatprep.subr.mxu0 0.0
        %4449 = vmatpush1.msra.mxu0 %v4378
        %4450 = vmatprep.subr.mxu0 0.0
        %4451 = vmatpush1.msra.mxu0 %v4379
        %4452 = vmatprep.subr.mxu0 0.0
        %4453 = vmatpush1.msra.mxu0 0.0
        %4454 = vmatprep.subr.mxu0 0.0
        %4455 = vmatpush1.msra.mxu0 0.0
        %4456 = vmatprep.subr.mxu0 0.0
        %4457 = vmatpush1.msra.mxu0 0.0
        %4458 = vmatprep.subr.mxu0 0.0
        %4459 = vmatpush1.msra.mxu0 0.0
        %4460 = vmatprep.subr.mxu0 0.0
        %4461 = vmatpush1.msra.mxu0 0.0
        %4462 = vmatprep.subr.mxu0 0.0
        %4463 = vmatpush1.msra.mxu0 0.0
        %4464 = vmatprep.subr.mxu0 0.0
        %4465 = vmatpush1.msra.mxu0 0.0
        %4466 = vmatprep.subr.mxu0 0.0
        %4467 = vmatpush1.msra.mxu0 0.0
        %4468 = vmatprep.mubr.f32.mxu0 %v1313
        %4469 = vmatmul.mubr.f32.gmra.mrb[0].mxu0 %v977
        %v4470 = vpop.f32.mrb[0].mxu0
        %v4471 = vadd.f32 0.0, %v4470
        %v4472 = vpop.f32.mrb[0].mxu0
        %4473 = vmatprep.mubr.f32.mxu0 %v1316
        %4474 = vmatmul.mubr.f32.gmra.mrb[0].mxu0 %v979
        %v4475 = vpop.f32.mrb[0].mxu0
        %v4476 = vadd.f32 0.0, %v4475
        %v4477 = vpop.f32.mrb[0].mxu0
        %4478 = vmatprep.mubr.f32.mxu0 %v1319
        %4479 = vmatmul.mubr.f32.gmra.mrb[0].mxu0 %v981
        %v4480 = vpop.f32.mrb[0].mxu0
        %v4481 = vadd.f32 0.0, %v4480
        %v4482 = vpop.f32.mrb[0].mxu0
        %4483 = vmatprep.mubr.f32.mxu0 %v1322
        %4484 = vmatmul.mubr.f32.gmra.mrb[0].mxu0 %v983
        %v4485 = vpop.f32.mrb[0].mxu0
        %v4486 = vadd.f32 0.0, %v4485
        %v4487 = vpop.f32.mrb[0].mxu0
        %4488 = vmatprep.mubr.f32.mxu0 %v1325
        %4489 = vmatmul.mubr.f32.gmra.mrb[0].mxu0 %v985
        %v4490 = vpop.f32.mrb[0].mxu0
        %v4491 = vadd.f32 0.0, %v4490
        %v4492 = vpop.f32.mrb[0].mxu0
        %4493 = vmatprep.mubr.f32.mxu0 %v1328
        %4494 = vmatmul.mubr.f32.gmra.mrb[0].mxu0 %v987
        %v4495 = vpop.f32.mrb[0].mxu0
        %v4496 = vadd.f32 0.0, %v4495
        %v4497 = vpop.f32.mrb[0].mxu0
        %4498 = vmatprep.mubr.f32.mxu0 %v1331
        %4499 = vmatmul.mubr.f32.gmra.mrb[0].mxu0 %v989
        %v4500 = vpop.f32.mrb[0].mxu0
        %v4501 = vadd.f32 0.0, %v4500
        %v4502 = vpop.f32.mrb[0].mxu0
        %4503 = vmatprep.mubr.f32.mxu0 %v1334
        %4504 = vmatmul.mubr.f32.gmra.mrb[0].mxu0 %v991
        %v4505 = vpop.f32.mrb[0].mxu0
        %v4506 = vadd.f32 0.0, %v4505
        %v4507 = vpop.f32.mrb[0].mxu0
        %4508 = vmatprep.mubr.f32.mxu0 %v1337
        %4509 = vmatmul.mubr.f32.gmra.mrb[0].mxu0 %v993
        %v4510 = vpop.f32.mrb[0].mxu0
        %v4511 = vadd.f32 0.0, %v4510
        %v4512 = vpop.f32.mrb[0].mxu0
        %4513 = vmatprep.mubr.f32.mxu0 %v1340
        %4514 = vmatmul.mubr.f32.gmra.mrb[0].mxu0 %v995
        %v4515 = vpop.f32.mrb[0].mxu0
        %v4516 = vadd.f32 0.0, %v4515
        %v4517 = vpop.f32.mrb[0].mxu0
        %4518 = vmatprep.mubr.f32.mxu0 %v1343
        %4519 = vmatmul.mubr.f32.gmra.mrb[0].mxu0 %v997
        %v4520 = vpop.f32.mrb[0].mxu0
        %v4521 = vadd.f32 0.0, %v4520
        %v4522 = vpop.f32.mrb[0].mxu0
        %4523 = vmatprep.mubr.f32.mxu0 %v1346
        %4524 = vmatmul.mubr.f32.gmra.mrb[0].mxu0 %v999
        %v4525 = vpop.f32.mrb[0].mxu0
        %v4526 = vadd.f32 0.0, %v4525
        %v4527 = vpop.f32.mrb[0].mxu0
        %4528 = vmatprep.mubr.f32.mxu0 %v1349
        %4529 = vmatmul.mubr.f32.gmra.mrb[0].mxu0 %v1001
        %v4530 = vpop.f32.mrb[0].mxu0
        %v4531 = vadd.f32 0.0, %v4530
        %v4532 = vpop.f32.mrb[0].mxu0
        %4533 = vmatprep.mubr.f32.mxu0 %v1352
        %4534 = vmatmul.mubr.f32.gmra.mrb[0].mxu0 %v1003
        %v4535 = vpop.f32.mrb[0].mxu0
        %v4536 = vadd.f32 0.0, %v4535
        %v4537 = vpop.f32.mrb[0].mxu0
        %4538 = vmatprep.mubr.f32.mxu0 %v1355
        %4539 = vmatmul.mubr.f32.gmra.mrb[0].mxu0 %v1005
        %v4540 = vpop.f32.mrb[0].mxu0
        %v4541 = vadd.f32 0.0, %v4540
        %v4542 = vpop.f32.mrb[0].mxu0
        %4543 = vmatprep.mubr.f32.mxu0 %v1358
        %4544 = vmatmul.mubr.f32.gmra.mrb[0].mxu0 %v1007
        %v4545 = vpop.f32.mrb[0].mxu0
        %v4546 = vadd.f32 0.0, %v4545
        %v4547 = vpop.f32.mrb[0].mxu0
        %4548 = vmatprep.mubr.f32.mxu0 %v1361
        %4549 = vmatmul.mubr.f32.gmra.mrb[0].mxu0 %v1009
        %v4550 = vpop.f32.mrb[0].mxu0
        %v4551 = vadd.f32 0.0, %v4550
        %v4552 = vpop.f32.mrb[0].mxu0
        %4553 = vmatprep.mubr.f32.mxu0 %v1364
        %4554 = vmatmul.mubr.f32.gmra.mrb[0].mxu0 %v1011
        %v4555 = vpop.f32.mrb[0].mxu0
        %v4556 = vadd.f32 0.0, %v4555
        %v4557 = vpop.f32.mrb[0].mxu0
        %4558 = vmatprep.mubr.f32.mxu0 %v1367
        %4559 = vmatmul.mubr.f32.gmra.mrb[0].mxu0 %v1013
        %v4560 = vpop.f32.mrb[0].mxu0
        %v4561 = vadd.f32 0.0, %v4560
        %v4562 = vpop.f32.mrb[0].mxu0
        %4563 = vmatprep.mubr.f32.mxu0 %v1370
        %4564 = vmatmul.mubr.f32.gmra.mrb[0].mxu0 %v1015
        %v4565 = vpop.f32.mrb[0].mxu0
        %v4566 = vadd.f32 0.0, %v4565
        %v4567 = vpop.f32.mrb[0].mxu0
        %4568 = vmatprep.mubr.f32.mxu0 %v1373
        %4569 = vmatmul.mubr.f32.gmra.mrb[0].mxu0 %v1017
        %v4570 = vpop.f32.mrb[0].mxu0
        %v4571 = vadd.f32 0.0, %v4570
        %v4572 = vpop.f32.mrb[0].mxu0
        %4573 = vmatprep.mubr.f32.mxu0 %v1376
        %4574 = vmatmul.mubr.f32.gmra.mrb[0].mxu0 %v1019
        %v4575 = vpop.f32.mrb[0].mxu0
        %v4576 = vadd.f32 0.0, %v4575
        %v4577 = vpop.f32.mrb[0].mxu0
        %4578 = vmatprep.mubr.f32.mxu0 %v1379
        %4579 = vmatmul.mubr.f32.gmra.mrb[0].mxu0 %v1021
        %v4580 = vpop.f32.mrb[0].mxu0
        %v4581 = vadd.f32 0.0, %v4580
        %v4582 = vpop.f32.mrb[0].mxu0
        %4583 = vmatprep.mubr.f32.mxu0 %v1382
        %4584 = vmatmul.mubr.f32.gmra.mrb[0].mxu0 %v1023
        %v4585 = vpop.f32.mrb[0].mxu0
        %v4586 = vadd.f32 0.0, %v4585
        %v4587 = vpop.f32.mrb[0].mxu0
        %4588 = vmatprep.mubr.f32.mxu0 %v1385
        %4589 = vmatmul.mubr.f32.gmra.mrb[0].mxu0 %v1025
        %v4590 = vpop.f32.mrb[0].mxu0
        %v4591 = vadd.f32 0.0, %v4590
        %v4592 = vpop.f32.mrb[0].mxu0
        %4593 = vmatprep.mubr.f32.mxu0 %v1388
        %4594 = vmatmul.mubr.f32.gmra.mrb[0].mxu0 %v1027
        %v4595 = vpop.f32.mrb[0].mxu0
        %v4596 = vadd.f32 0.0, %v4595
        %v4597 = vpop.f32.mrb[0].mxu0
        %4598 = vmatprep.mubr.f32.mxu0 %v1391
        %4599 = vmatmul.mubr.f32.gmra.mrb[0].mxu0 %v1029
        %v4600 = vpop.f32.mrb[0].mxu0
        %v4601 = vadd.f32 0.0, %v4600
        %v4602 = vpop.f32.mrb[0].mxu0
        %4603 = vmatprep.mubr.f32.mxu0 %v1394
        %4604 = vmatmul.mubr.f32.gmra.mrb[0].mxu0 %v1031
        %v4605 = vpop.f32.mrb[0].mxu0
        %v4606 = vadd.f32 0.0, %v4605
        %v4607 = vpop.f32.mrb[0].mxu0
        %4608 = vmatprep.mubr.f32.mxu0 %v1397
        %4609 = vmatmul.mubr.f32.gmra.mrb[0].mxu0 %v1033
        %v4610 = vpop.f32.mrb[0].mxu0
        %v4611 = vadd.f32 0.0, %v4610
        %v4612 = vpop.f32.mrb[0].mxu0
        %4613 = vmatprep.mubr.f32.mxu0 %v1400
        %4614 = vmatmul.mubr.f32.gmra.mrb[0].mxu0 %v1035
        %v4615 = vpop.f32.mrb[0].mxu0
        %v4616 = vadd.f32 0.0, %v4615
        %v4617 = vpop.f32.mrb[0].mxu0
        %4618 = vmatprep.mubr.f32.mxu0 %v1403
        %4619 = vmatmul.mubr.f32.gmra.mrb[0].mxu0 %v1037
        %v4620 = vpop.f32.mrb[0].mxu0
        %v4621 = vadd.f32 0.0, %v4620
        %v4622 = vpop.f32.mrb[0].mxu0
        %4623 = vmatprep.mubr.f32.mxu0 %v1406
        %4624 = vmatmul.mubr.f32.gmra.mrb[0].mxu0 %v1039
        %v4625 = vpop.f32.mrb[0].mxu0
        %v4626 = vadd.f32 0.0, %v4625
        %v4627 = vpop.f32.mrb[0].mxu0
        %4628 = vmatprep.mubr.f32.mxu0 %v1409
        %4629 = vmatmul.mubr.f32.gmra.mrb[0].mxu0 %v1041
        %v4630 = vpop.f32.mrb[0].mxu0
        %v4631 = vadd.f32 0.0, %v4630
        %v4632 = vpop.f32.mrb[0].mxu0
        %4633 = vmatprep.mubr.f32.mxu0 %v1412
        %4634 = vmatmul.mubr.f32.gmra.mrb[0].mxu0 %v1043
        %v4635 = vpop.f32.mrb[0].mxu0
        %v4636 = vadd.f32 0.0, %v4635
        %v4637 = vpop.f32.mrb[0].mxu0
        %4638 = vmatprep.mubr.f32.mxu0 %v1415
        %4639 = vmatmul.mubr.f32.gmra.mrb[0].mxu0 %v1045
        %v4640 = vpop.f32.mrb[0].mxu0
        %v4641 = vadd.f32 0.0, %v4640
        %v4642 = vpop.f32.mrb[0].mxu0
        %4643 = vmatprep.mubr.f32.mxu0 %v1418
        %4644 = vmatmul.mubr.f32.gmra.mrb[0].mxu0 %v1047
        %v4645 = vpop.f32.mrb[0].mxu0
        %v4646 = vadd.f32 0.0, %v4645
        %v4647 = vpop.f32.mrb[0].mxu0
        %4648 = vmatprep.mubr.f32.mxu0 %v1421
        %4649 = vmatmul.mubr.f32.gmra.mrb[0].mxu0 %v1049
        %v4650 = vpop.f32.mrb[0].mxu0
        %v4651 = vadd.f32 0.0, %v4650
        %v4652 = vpop.f32.mrb[0].mxu0
        %4653 = vmatprep.mubr.f32.mxu0 %v1424
        %4654 = vmatmul.mubr.f32.gmra.mrb[0].mxu0 %v1051
        %v4655 = vpop.f32.mrb[0].mxu0
        %v4656 = vadd.f32 0.0, %v4655
        %v4657 = vpop.f32.mrb[0].mxu0
        %4658 = vmatprep.mubr.f32.mxu0 %v1427
        %4659 = vmatmul.mubr.f32.gmra.mrb[0].mxu0 %v1053
        %v4660 = vpop.f32.mrb[0].mxu0
        %v4661 = vadd.f32 0.0, %v4660
        %v4662 = vpop.f32.mrb[0].mxu0
        %4663 = vmatprep.mubr.f32.mxu0 %v1430
        %4664 = vmatmul.mubr.f32.gmra.mrb[0].mxu0 %v1055
        %v4665 = vpop.f32.mrb[0].mxu0
        %v4666 = vadd.f32 0.0, %v4665
        %v4667 = vpop.f32.mrb[0].mxu0
        %4668 = vmatprep.mubr.f32.mxu0 %v1433
        %4669 = vmatmul.mubr.f32.gmra.mrb[0].mxu0 %v1057
        %v4670 = vpop.f32.mrb[0].mxu0
        %v4671 = vadd.f32 0.0, %v4670
        %v4672 = vpop.f32.mrb[0].mxu0
        %4673 = vmatprep.mubr.f32.mxu0 %v1436
        %4674 = vmatmul.mubr.f32.gmra.mrb[0].mxu0 %v1059
        %v4675 = vpop.f32.mrb[0].mxu0
        %v4676 = vadd.f32 0.0, %v4675
        %v4677 = vpop.f32.mrb[0].mxu0
        %4678 = vmatprep.mubr.f32.mxu0 %v1439
        %4679 = vmatmul.mubr.f32.gmra.mrb[0].mxu0 %v1061
        %v4680 = vpop.f32.mrb[0].mxu0
        %v4681 = vadd.f32 0.0, %v4680
        %v4682 = vpop.f32.mrb[0].mxu0
        %4683 = vmatprep.mubr.f32.mxu0 %v1442
        %4684 = vmatmul.mubr.f32.gmra.mrb[0].mxu0 %v1063
        %v4685 = vpop.f32.mrb[0].mxu0
        %v4686 = vadd.f32 0.0, %v4685
        %v4687 = vpop.f32.mrb[0].mxu0
        %4688 = vmatprep.mubr.f32.mxu0 %v1445
        %4689 = vmatmul.mubr.f32.gmra.mrb[0].mxu0 %v1065
        %v4690 = vpop.f32.mrb[0].mxu0
        %v4691 = vadd.f32 0.0, %v4690
        %v4692 = vpop.f32.mrb[0].mxu0
        %4693 = vmatprep.mubr.f32.mxu0 %v1448
        %4694 = vmatmul.mubr.f32.gmra.mrb[0].mxu0 %v1067
        %v4695 = vpop.f32.mrb[0].mxu0
        %v4696 = vadd.f32 0.0, %v4695
        %v4697 = vpop.f32.mrb[0].mxu0
        %4698 = vmatprep.mubr.f32.mxu0 %v1451
        %4699 = vmatmul.mubr.f32.gmra.mrb[0].mxu0 %v1069
        %v4700 = vpop.f32.mrb[0].mxu0
        %v4701 = vadd.f32 0.0, %v4700
        %v4702 = vpop.f32.mrb[0].mxu0
        %4703 = vmatprep.mubr.f32.mxu0 %v1454
        %4704 = vmatmul.mubr.f32.gmra.mrb[0].mxu0 %v1071
        %v4705 = vpop.f32.mrb[0].mxu0
        %v4706 = vadd.f32 0.0, %v4705
        %v4707 = vpop.f32.mrb[0].mxu0
        %4708 = vdwg.mxu0
        %v4710 = vsel %vm1311, %v4381, 0
        %v4713 = vsel %vm1311, %v4383, 0
        %v4716 = vsel %vm1311, %v4385, 0
        %v4719 = vsel %vm1311, %v4387, 0
        %v4722 = vsel %vm1311, %v4389, 0
        %v4725 = vsel %vm1311, %v4391, 0
        %v4728 = vsel %vm1311, %v4393, 0
        %v4731 = vsel %vm1311, %v4395, 0
        %v4734 = vsel %vm1311, %v4397, 0
        %v4737 = vsel %vm1311, %v4399, 0
        %v4740 = vsel %vm1311, %v4401, 0
        %v4743 = vsel %vm1311, %v4403, 0
        %4745 = vmatprep.subr.mxu0 0.0
        %4746 = vmatpush1.msra.mxu0 %v4471
        %4747 = vmatprep.subr.mxu0 0.0
        %4748 = vmatpush1.msra.mxu0 %v4476
        %4749 = vmatprep.subr.mxu0 0.0
        %4750 = vmatpush1.msra.mxu0 %v4481
        %4751 = vmatprep.subr.mxu0 0.0
        %4752 = vmatpush1.msra.mxu0 %v4486
        %4753 = vmatprep.subr.mxu0 0.0
        %4754 = vmatpush1.msra.mxu0 %v4491
        %4755 = vmatprep.subr.mxu0 0.0
        %4756 = vmatpush1.msra.mxu0 %v4496
        %4757 = vmatprep.subr.mxu0 0.0
        %4758 = vmatpush1.msra.mxu0 %v4501
        %4759 = vmatprep.subr.mxu0 0.0
        %4760 = vmatpush1.msra.mxu0 %v4506
        %4761 = vmatprep.subr.mxu0 0.0
        %4762 = vmatpush1.msra.mxu0 %v4511
        %4763 = vmatprep.subr.mxu0 0.0
        %4764 = vmatpush1.msra.mxu0 %v4516
        %4765 = vmatprep.subr.mxu0 0.0
        %4766 = vmatpush1.msra.mxu0 %v4521
        %4767 = vmatprep.subr.mxu0 0.0
        %4768 = vmatpush1.msra.mxu0 %v4526
        %4769 = vmatprep.subr.mxu0 0.0
        %4770 = vmatpush1.msra.mxu0 %v4531
        %4771 = vmatprep.subr.mxu0 0.0
        %4772 = vmatpush1.msra.mxu0 %v4536
        %4773 = vmatprep.subr.mxu0 0.0
        %4774 = vmatpush1.msra.mxu0 %v4541
        %4775 = vmatprep.subr.mxu0 0.0
        %4776 = vmatpush1.msra.mxu0 %v4546
        %4777 = vmatprep.subr.mxu0 0.0
        %4778 = vmatpush1.msra.mxu0 %v4551
        %4779 = vmatprep.subr.mxu0 0.0
        %4780 = vmatpush1.msra.mxu0 %v4556
        %4781 = vmatprep.subr.mxu0 0.0
        %4782 = vmatpush1.msra.mxu0 %v4561
        %4783 = vmatprep.subr.mxu0 0.0
        %4784 = vmatpush1.msra.mxu0 %v4566
        %4785 = vmatprep.subr.mxu0 0.0
        %4786 = vmatpush1.msra.mxu0 %v4571
        %4787 = vmatprep.subr.mxu0 0.0
        %4788 = vmatpush1.msra.mxu0 %v4576
        %4789 = vmatprep.subr.mxu0 0.0
        %4790 = vmatpush1.msra.mxu0 %v4581
        %4791 = vmatprep.subr.mxu0 0.0
        %4792 = vmatpush1.msra.mxu0 %v4586
        %4793 = vmatprep.subr.mxu0 0.0
        %4794 = vmatpush1.msra.mxu0 0.0
        %4795 = vmatprep.subr.mxu0 0.0
        %4796 = vmatpush1.msra.mxu0 0.0
        %4797 = vmatprep.subr.mxu0 0.0
        %4798 = vmatpush1.msra.mxu0 0.0
        %4799 = vmatprep.subr.mxu0 0.0
        %4800 = vmatpush1.msra.mxu0 0.0
        %4801 = vmatprep.subr.mxu0 0.0
        %4802 = vmatpush1.msra.mxu0 0.0
        %4803 = vmatprep.subr.mxu0 0.0
        %4804 = vmatpush1.msra.mxu0 0.0
        %4805 = vmatprep.subr.mxu0 0.0
        %4806 = vmatpush1.msra.mxu0 0.0
        %4807 = vmatprep.subr.mxu0 0.0
        %4808 = vmatpush1.msra.mxu0 0.0
        %4809 = vmatprep.mubr.f32.mxu0 %v4710
        %4810 = vmatmul.mubr.f32.gmra.mrb[0].mxu0 %v4380
        %v4811 = vpop.f32.mrb[0].mxu0
        %v4812 = vadd.f32 0.0, %v4811
        %v4813 = vpop.f32.mrb[0].mxu0
        %4814 = vmatprep.mubr.f32.mxu0 %v4713
        %4815 = vmatmul.mubr.f32.gmra.mrb[0].mxu0 %v4382
        %v4816 = vpop.f32.mrb[0].mxu0
        %v4817 = vadd.f32 0.0, %v4816
        %v4818 = vpop.f32.mrb[0].mxu0
        %4819 = vmatprep.mubr.f32.mxu0 %v4716
        %4820 = vmatmul.mubr.f32.gmra.mrb[0].mxu0 %v4384
        %v4821 = vpop.f32.mrb[0].mxu0
        %v4822 = vadd.f32 0.0, %v4821
        %v4823 = vpop.f32.mrb[0].mxu0
        %4824 = vmatprep.mubr.f32.mxu0 %v4719
        %4825 = vmatmul.mubr.f32.gmra.mrb[0].mxu0 %v4386
        %v4826 = vpop.f32.mrb[0].mxu0
        %v4827 = vadd.f32 0.0, %v4826
        %v4828 = vpop.f32.mrb[0].mxu0
        %4829 = vmatprep.mubr.f32.mxu0 %v4722
        %4830 = vmatmul.mubr.f32.gmra.mrb[0].mxu0 %v4388
        %v4831 = vpop.f32.mrb[0].mxu0
        %v4832 = vadd.f32 0.0, %v4831
        %v4833 = vpop.f32.mrb[0].mxu0
        %4834 = vmatprep.mubr.f32.mxu0 %v4725
        %4835 = vmatmul.mubr.f32.gmra.mrb[0].mxu0 %v4390
        %v4836 = vpop.f32.mrb[0].mxu0
        %v4837 = vadd.f32 0.0, %v4836
        %v4838 = vpop.f32.mrb[0].mxu0
        %4839 = vmatprep.mubr.f32.mxu0 %v4728
        %4840 = vmatmul.mubr.f32.gmra.mrb[0].mxu0 %v4392
        %v4841 = vpop.f32.mrb[0].mxu0
        %v4842 = vadd.f32 0.0, %v4841
        %v4843 = vpop.f32.mrb[0].mxu0
        %4844 = vmatprep.mubr.f32.mxu0 %v4731
        %4845 = vmatmul.mubr.f32.gmra.mrb[0].mxu0 %v4394
        %v4846 = vpop.f32.mrb[0].mxu0
        %v4847 = vadd.f32 0.0, %v4846
        %v4848 = vpop.f32.mrb[0].mxu0
        %4849 = vmatprep.mubr.f32.mxu0 %v4734
        %4850 = vmatmul.mubr.f32.gmra.mrb[0].mxu0 %v4396
        %v4851 = vpop.f32.mrb[0].mxu0
        %v4852 = vadd.f32 0.0, %v4851
        %v4853 = vpop.f32.mrb[0].mxu0
        %4854 = vmatprep.mubr.f32.mxu0 %v4737
        %4855 = vmatmul.mubr.f32.gmra.mrb[0].mxu0 %v4398
        %v4856 = vpop.f32.mrb[0].mxu0
        %v4857 = vadd.f32 0.0, %v4856
        %v4858 = vpop.f32.mrb[0].mxu0
        %4859 = vmatprep.mubr.f32.mxu0 %v4740
        %4860 = vmatmul.mubr.f32.gmra.mrb[0].mxu0 %v4400
        %v4861 = vpop.f32.mrb[0].mxu0
        %v4862 = vadd.f32 0.0, %v4861
        %v4863 = vpop.f32.mrb[0].mxu0
        %4864 = vmatprep.mubr.f32.mxu0 %v4743
        %4865 = vmatmul.mubr.f32.gmra.mrb[0].mxu0 %v4402
        %v4866 = vpop.f32.mrb[0].mxu0
        %v4867 = vadd.f32 0.0, %v4866
        %v4868 = vpop.f32.mrb[0].mxu0
        %4869 = vdwg.mxu0
        %4870 = vmatprep.subr.mxu0 0.0
        %4871 = vmatpush1.msra.mxu0 %v4591
        %4872 = vmatprep.subr.mxu0 0.0
        %4873 = vmatpush1.msra.mxu0 %v4596
        %4874 = vmatprep.subr.mxu0 0.0
        %4875 = vmatpush1.msra.mxu0 %v4601
        %4876 = vmatprep.subr.mxu0 0.0
        %4877 = vmatpush1.msra.mxu0 %v4606
        %4878 = vmatprep.subr.mxu0 0.0
        %4879 = vmatpush1.msra.mxu0 %v4611
        %4880 = vmatprep.subr.mxu0 0.0
        %4881 = vmatpush1.msra.mxu0 %v4616
        %4882 = vmatprep.subr.mxu0 0.0
        %4883 = vmatpush1.msra.mxu0 %v4621
        %4884 = vmatprep.subr.mxu0 0.0
        %4885 = vmatpush1.msra.mxu0 %v4626
        %4886 = vmatprep.subr.mxu0 0.0
        %4887 = vmatpush1.msra.mxu0 %v4631
        %4888 = vmatprep.subr.mxu0 0.0
        %4889 = vmatpush1.msra.mxu0 %v4636
        %4890 = vmatprep.subr.mxu0 0.0
        %4891 = vmatpush1.msra.mxu0 %v4641
        %4892 = vmatprep.subr.mxu0 0.0
        %4893 = vmatpush1.msra.mxu0 %v4646
        %4894 = vmatprep.subr.mxu0 0.0
        %4895 = vmatpush1.msra.mxu0 %v4651
        %4896 = vmatprep.subr.mxu0 0.0
        %4897 = vmatpush1.msra.mxu0 %v4656
        %4898 = vmatprep.subr.mxu0 0.0
        %4899 = vmatpush1.msra.mxu0 %v4661
        %4900 = vmatprep.subr.mxu0 0.0
        %4901 = vmatpush1.msra.mxu0 %v4666
        %4902 = vmatprep.subr.mxu0 0.0
        %4903 = vmatpush1.msra.mxu0 %v4671
        %4904 = vmatprep.subr.mxu0 0.0
        %4905 = vmatpush1.msra.mxu0 %v4676
        %4906 = vmatprep.subr.mxu0 0.0
        %4907 = vmatpush1.msra.mxu0 %v4681
        %4908 = vmatprep.subr.mxu0 0.0
        %4909 = vmatpush1.msra.mxu0 %v4686
        %4910 = vmatprep.subr.mxu0 0.0
        %4911 = vmatpush1.msra.mxu0 %v4691
        %4912 = vmatprep.subr.mxu0 0.0
        %4913 = vmatpush1.msra.mxu0 %v4696
        %4914 = vmatprep.subr.mxu0 0.0
        %4915 = vmatpush1.msra.mxu0 %v4701
        %4916 = vmatprep.subr.mxu0 0.0
        %4917 = vmatpush1.msra.mxu0 %v4706
        %4918 = vmatprep.subr.mxu0 0.0
        %4919 = vmatpush1.msra.mxu0 0.0
        %4920 = vmatprep.subr.mxu0 0.0
        %4921 = vmatpush1.msra.mxu0 0.0
        %4922 = vmatprep.subr.mxu0 0.0
        %4923 = vmatpush1.msra.mxu0 0.0
        %4924 = vmatprep.subr.mxu0 0.0
        %4925 = vmatpush1.msra.mxu0 0.0
        %4926 = vmatprep.subr.mxu0 0.0
        %4927 = vmatpush1.msra.mxu0 0.0
        %4928 = vmatprep.subr.mxu0 0.0
        %4929 = vmatpush1.msra.mxu0 0.0
        %4930 = vmatprep.subr.mxu0 0.0
        %4931 = vmatpush1.msra.mxu0 0.0
        %4932 = vmatprep.subr.mxu0 0.0
        %4933 = vmatpush1.msra.mxu0 0.0
        %4934 = vmatprep.mubr.f32.mxu0 %v4710
        %4935 = vmatmul.mubr.f32.gmra.mrb[0].mxu0 %v4380
        %v4936 = vpop.f32.mrb[0].mxu0
        %v4937 = vadd.f32 0.0, %v4936
        %v4938 = vpop.f32.mrb[0].mxu0
        %4939 = vmatprep.mubr.f32.mxu0 %v4713
        %4940 = vmatmul.mubr.f32.gmra.mrb[0].mxu0 %v4382
        %v4941 = vpop.f32.mrb[0].mxu0
        %v4942 = vadd.f32 0.0, %v4941
        %v4943 = vpop.f32.mrb[0].mxu0
        %4944 = vmatprep.mubr.f32.mxu0 %v4716
        %4945 = vmatmul.mubr.f32.gmra.mrb[0].mxu0 %v4384
        %v4946 = vpop.f32.mrb[0].mxu0
        %v4947 = vadd.f32 0.0, %v4946
        %v4948 = vpop.f32.mrb[0].mxu0
        %4949 = vmatprep.mubr.f32.mxu0 %v4719
        %4950 = vmatmul.mubr.f32.gmra.mrb[0].mxu0 %v4386
        %v4951 = vpop.f32.mrb[0].mxu0
        %v4952 = vadd.f32 0.0, %v4951
        %v4953 = vpop.f32.mrb[0].mxu0
        %4954 = vmatprep.mubr.f32.mxu0 %v4722
        %4955 = vmatmul.mubr.f32.gmra.mrb[0].mxu0 %v4388
        %v4956 = vpop.f32.mrb[0].mxu0
        %v4957 = vadd.f32 0.0, %v4956
        %v4958 = vpop.f32.mrb[0].mxu0
        %4959 = vmatprep.mubr.f32.mxu0 %v4725
        %4960 = vmatmul.mubr.f32.gmra.mrb[0].mxu0 %v4390
        %v4961 = vpop.f32.mrb[0].mxu0
        %v4962 = vadd.f32 0.0, %v4961
        %v4963 = vpop.f32.mrb[0].mxu0
        %4964 = vmatprep.mubr.f32.mxu0 %v4728
        %4965 = vmatmul.mubr.f32.gmra.mrb[0].mxu0 %v4392
        %v4966 = vpop.f32.mrb[0].mxu0
        %v4967 = vadd.f32 0.0, %v4966
        %v4968 = vpop.f32.mrb[0].mxu0
        %4969 = vmatprep.mubr.f32.mxu0 %v4731
        %4970 = vmatmul.mubr.f32.gmra.mrb[0].mxu0 %v4394
        %v4971 = vpop.f32.mrb[0].mxu0
        %v4972 = vadd.f32 0.0, %v4971
        %v4973 = vpop.f32.mrb[0].mxu0
        %4974 = vmatprep.mubr.f32.mxu0 %v4734
        %4975 = vmatmul.mubr.f32.gmra.mrb[0].mxu0 %v4396
        %v4976 = vpop.f32.mrb[0].mxu0
        %v4977 = vadd.f32 0.0, %v4976
        %v4978 = vpop.f32.mrb[0].mxu0
        %4979 = vmatprep.mubr.f32.mxu0 %v4737
        %4980 = vmatmul.mubr.f32.gmra.mrb[0].mxu0 %v4398
        %v4981 = vpop.f32.mrb[0].mxu0
        %v4982 = vadd.f32 0.0, %v4981
        %v4983 = vpop.f32.mrb[0].mxu0
        %4984 = vmatprep.mubr.f32.mxu0 %v4740
        %4985 = vmatmul.mubr.f32.gmra.mrb[0].mxu0 %v4400
        %v4986 = vpop.f32.mrb[0].mxu0
        %v4987 = vadd.f32 0.0, %v4986
        %v4988 = vpop.f32.mrb[0].mxu0
        %4989 = vmatprep.mubr.f32.mxu0 %v4743
        %4990 = vmatmul.mubr.f32.gmra.mrb[0].mxu0 %v4402
        %v4991 = vpop.f32.mrb[0].mxu0
        %v4992 = vadd.f32 0.0, %v4991
        %v4993 = vpop.f32.mrb[0].mxu0
        %4994 = vdwg.mxu0
        %v4995 = vld [vmem:[#allocation7] sm:$0xff]
        %v4996 = vld [vmem:[#allocation7 + $0x8] sm:$0xff]
        %v4997 = vld [vmem:[#allocation7 + $0x10] sm:$0xff]
        %v4998 = vld [vmem:[#allocation7 + $0x18] sm:$0xff]
        %v4999 = vld [vmem:[#allocation7 + $0x20] sm:$0xff]
        %v5000 = vld [vmem:[#allocation7 + $0x28] sm:$0xff]
        %v5001 = vld [vmem:[#allocation7 + $0x30] sm:$0xff]
        %v5002 = vld [vmem:[#allocation7 + $0x38] sm:$0xff]
        %v5003 = vld [vmem:[#allocation7 + $0x40] sm:$0xff]
        %v5004 = vld [vmem:[#allocation7 + $0x48] sm:$0xff]
        %v5005 = vld [vmem:[#allocation7 + $0x50] sm:$0xff]
        %v5006 = vld [vmem:[#allocation7 + $0x58] sm:$0xff]
        %v5007 = vld [vmem:[#allocation15] sm:$0xff]
        %v5008 = vld [vmem:[#allocation15 + $0x8] sm:$0xff]
        %v5009 = vld [vmem:[#allocation15 + $0x10] sm:$0xff]
        %v5010 = vld [vmem:[#allocation15 + $0x18] sm:$0xff]
        %v5011 = vld [vmem:[#allocation15 + $0x20] sm:$0xff]
        %v5012 = vld [vmem:[#allocation15 + $0x28] sm:$0xff]
        %v5013 = vld [vmem:[#allocation15 + $0x30] sm:$0xff]
        %v5014 = vld [vmem:[#allocation15 + $0x38] sm:$0xff]
        %v5015 = vld [vmem:[#allocation15 + $0x40] sm:$0xff]
        %v5016 = vld [vmem:[#allocation15 + $0x48] sm:$0xff]
        %v5017 = vld [vmem:[#allocation15 + $0x50] sm:$0x3f]
        %v5018 = vmul.f32 %v4812, %v4812
        %v5019 = vmul.f32 %v4817, %v4817
        %v5020 = vmul.f32 %v4822, %v4822
        %v5021 = vmul.f32 %v4827, %v4827
        %v5022 = vmul.f32 %v4832, %v4832
        %v5023 = vmul.f32 %v4837, %v4837
        %v5024 = vmul.f32 %v4842, %v4842
        %v5025 = vmul.f32 %v4847, %v4847
        %v5026 = vmul.f32 %v4852, %v4852
        %v5027 = vmul.f32 %v4857, %v4857
        %v5028 = vmul.f32 %v4862, %v4862
        %v5029 = vmul.f32 %v4867, %v4867
        %v5030 = vmul.f32 %v4937, %v4937
        %v5031 = vmul.f32 %v4942, %v4942
        %v5032 = vmul.f32 %v4947, %v4947
        %v5033 = vmul.f32 %v4952, %v4952
        %v5034 = vmul.f32 %v4957, %v4957
        %v5035 = vmul.f32 %v4962, %v4962
        %v5036 = vmul.f32 %v4967, %v4967
        %v5037 = vmul.f32 %v4972, %v4972
        %v5038 = vmul.f32 %v4977, %v4977
        %v5039 = vmul.f32 %v4982, %v4982
        %v5040 = vmul.f32 %v4987, %v4987
        %v5041 = vmul.f32 %v4992, %v4992
        %v5042 = vmul.f32 %v4812, %v4937
        %v5043 = vmul.f32 %v4817, %v4942
        %v5044 = vmul.f32 %v4822, %v4947
        %v5045 = vmul.f32 %v4827, %v4952
        %v5046 = vmul.f32 %v4832, %v4957
        %v5047 = vmul.f32 %v4837, %v4962
        %v5048 = vmul.f32 %v4842, %v4967
        %v5049 = vmul.f32 %v4847, %v4972
        %v5050 = vmul.f32 %v4852, %v4977
        %v5051 = vmul.f32 %v4857, %v4982
        %v5052 = vmul.f32 %v4862, %v4987
        %v5053 = vmul.f32 %v4867, %v4992
        %vm5054 = vcmask 785408
        %v5056 = vsel %vm5054, %v4812, 0
        %v5059 = vsel %vm5054, %v4817, 0
        %v5062 = vsel %vm5054, %v4822, 0
        %v5065 = vsel %vm5054, %v4827, 0
        %v5068 = vsel %vm5054, %v4832, 0
        %v5071 = vsel %vm5054, %v4837, 0
        %v5074 = vsel %vm5054, %v4842, 0
        %v5077 = vsel %vm5054, %v4847, 0
        %v5080 = vsel %vm5054, %v4852, 0
        %v5083 = vsel %vm5054, %v4857, 0
        %v5086 = vsel %vm5054, %v4862, 0
        %v5089 = vsel %vm5054, %v4867, 0
        %v5092 = vsel %vm5054, %v4937, 0
        %v5095 = vsel %vm5054, %v4942, 0
        %v5098 = vsel %vm5054, %v4947, 0
        %v5101 = vsel %vm5054, %v4952, 0
        %v5104 = vsel %vm5054, %v4957, 0
        %v5107 = vsel %vm5054, %v4962, 0
        %v5110 = vsel %vm5054, %v4967, 0
        %v5113 = vsel %vm5054, %v4972, 0
        %v5116 = vsel %vm5054, %v4977, 0
        %v5119 = vsel %vm5054, %v4982, 0
        %v5122 = vsel %vm5054, %v4987, 0
        %v5125 = vsel %vm5054, %v4992, 0
        %v5128 = vsel %vm5054, %v5018, 0
        %v5131 = vsel %vm5054, %v5019, 0
        %v5134 = vsel %vm5054, %v5020, 0
        %v5137 = vsel %vm5054, %v5021, 0
        %v5140 = vsel %vm5054, %v5022, 0
        %v5143 = vsel %vm5054, %v5023, 0
        %v5146 = vsel %vm5054, %v5024, 0
        %v5149 = vsel %vm5054, %v5025, 0
        %v5152 = vsel %vm5054, %v5026, 0
        %v5155 = vsel %vm5054, %v5027, 0
        %v5158 = vsel %vm5054, %v5028, 0
        %v5161 = vsel %vm5054, %v5029, 0
        %v5164 = vsel %vm5054, %v5030, 0
        %v5167 = vsel %vm5054, %v5031, 0
        %v5170 = vsel %vm5054, %v5032, 0
        %v5173 = vsel %vm5054, %v5033, 0
        %v5176 = vsel %vm5054, %v5034, 0
        %v5179 = vsel %vm5054, %v5035, 0
        %v5182 = vsel %vm5054, %v5036, 0
        %v5185 = vsel %vm5054, %v5037, 0
        %v5188 = vsel %vm5054, %v5038, 0
        %v5191 = vsel %vm5054, %v5039, 0
        %v5194 = vsel %vm5054, %v5040, 0
        %v5197 = vsel %vm5054, %v5041, 0
        %v5200 = vsel %vm5054, %v5042, 0
        %v5203 = vsel %vm5054, %v5043, 0
        %v5206 = vsel %vm5054, %v5044, 0
        %v5209 = vsel %vm5054, %v5045, 0
        %v5212 = vsel %vm5054, %v5046, 0
        %v5215 = vsel %vm5054, %v5047, 0
        %v5218 = vsel %vm5054, %v5048, 0
        %v5221 = vsel %vm5054, %v5049, 0
        %v5224 = vsel %vm5054, %v5050, 0
        %v5227 = vsel %vm5054, %v5051, 0
        %v5230 = vsel %vm5054, %v5052, 0
        %v5233 = vsel %vm5054, %v5053, 0
        %5235 = vmatprep.subr.mxu0 0.0
        %5236 = vmatpush1.msra.mxu0 %v4995
        %5237 = vmatprep.subr.mxu0 0.0
        %5238 = vmatpush1.msra.mxu0 %v4996
        %5239 = vmatprep.subr.mxu0 0.0
        %5240 = vmatpush1.msra.mxu0 %v4997
        %5241 = vmatprep.subr.mxu0 0.0
        %5242 = vmatpush1.msra.mxu0 %v4998
        %5243 = vmatprep.subr.mxu0 0.0
        %5244 = vmatpush1.msra.mxu0 %v4999
        %5245 = vmatprep.subr.mxu0 0.0
        %5246 = vmatpush1.msra.mxu0 %v5000
        %5247 = vmatprep.subr.mxu0 0.0
        %5248 = vmatpush1.msra.mxu0 %v5001
        %5249 = vmatprep.subr.mxu0 0.0
        %5250 = vmatpush1.msra.mxu0 %v5002
        %5251 = vmatprep.subr.mxu0 0.0
        %5252 = vmatpush1.msra.mxu0 %v5003
        %5253 = vmatprep.subr.mxu0 0.0
        %5254 = vmatpush1.msra.mxu0 %v5004
        %5255 = vmatprep.subr.mxu0 0.0
        %5256 = vmatpush1.msra.mxu0 %v5005
        %5257 = vmatprep.subr.mxu0 0.0
        %5258 = vmatpush1.msra.mxu0 %v5006
        %5259 = vmatprep.subr.mxu0 0.0
        %5260 = vmatpush1.msra.mxu0 0.0
        %5261 = vmatprep.subr.mxu0 0.0
        %5262 = vmatpush1.msra.mxu0 0.0
        %5263 = vmatprep.subr.mxu0 0.0
        %5264 = vmatpush1.msra.mxu0 0.0
        %5265 = vmatprep.subr.mxu0 0.0
        %5266 = vmatpush1.msra.mxu0 0.0
        %5267 = vmatprep.subr.mxu0 0.0
        %5268 = vmatpush1.msra.mxu0 0.0
        %5269 = vmatprep.subr.mxu0 0.0
        %5270 = vmatpush1.msra.mxu0 0.0
        %5271 = vmatprep.subr.mxu0 0.0
        %5272 = vmatpush1.msra.mxu0 0.0
        %5273 = vmatprep.subr.mxu0 0.0
        %5274 = vmatpush1.msra.mxu0 0.0
        %5275 = vmatprep.subr.mxu0 0.0
        %5276 = vmatpush1.msra.mxu0 0.0
        %5277 = vmatprep.subr.mxu0 0.0
        %5278 = vmatpush1.msra.mxu0 0.0
        %5279 = vmatprep.subr.mxu0 0.0
        %5280 = vmatpush1.msra.mxu0 0.0
        %5281 = vmatprep.subr.mxu0 0.0
        %5282 = vmatpush1.msra.mxu0 0.0
        %5283 = vmatprep.subr.mxu0 0.0
        %5284 = vmatpush1.msra.mxu0 0.0
        %5285 = vmatprep.subr.mxu0 0.0
        %5286 = vmatpush1.msra.mxu0 0.0
        %5287 = vmatprep.subr.mxu0 0.0
        %5288 = vmatpush1.msra.mxu0 0.0
        %5289 = vmatprep.subr.mxu0 0.0
        %5290 = vmatpush1.msra.mxu0 0.0
        %5291 = vmatprep.subr.mxu0 0.0
        %5292 = vmatpush1.msra.mxu0 0.0
        %5293 = vmatprep.subr.mxu0 0.0
        %5294 = vmatpush1.msra.mxu0 0.0
        %5295 = vmatprep.subr.mxu0 0.0
        %5296 = vmatpush1.msra.mxu0 0.0
        %5297 = vmatprep.subr.mxu0 0.0
        %5298 = vmatpush1.msra.mxu0 0.0
        %5299 = vmatprep.mubr.f32.mxu0 0.0
        %5300 = vmatmul.mubr.f32.gmra.mrb[0].mxu0 %v5056
        %v5301 = vpop.f32.mrb[0].mxu0
        %v5302 = vadd.f32 0.0, %v5301
        %v5303 = vpop.f32.mrb[0].mxu0
        %5304 = vmatprep.mubr.f32.mxu0 0.0
        %5305 = vmatmul.mubr.f32.gmra.mrb[0].mxu0 %v5059
        %v5306 = vpop.f32.mrb[0].mxu0
        %v5307 = vadd.f32 0.0, %v5306
        %v5308 = vpop.f32.mrb[0].mxu0
        %5309 = vmatprep.mubr.f32.mxu0 0.0
        %5310 = vmatmul.mubr.f32.gmra.mrb[0].mxu0 %v5062
        %v5311 = vpop.f32.mrb[0].mxu0
        %v5312 = vadd.f32 0.0, %v5311
        %v5313 = vpop.f32.mrb[0].mxu0
        %5314 = vmatprep.mubr.f32.mxu0 0.0
        %5315 = vmatmul.mubr.f32.gmra.mrb[0].mxu0 %v5065
        %v5316 = vpop.f32.mrb[0].mxu0
        %v5317 = vadd.f32 0.0, %v5316
        %v5318 = vpop.f32.mrb[0].mxu0
        %5319 = vmatprep.mubr.f32.mxu0 0.0
        %5320 = vmatmul.mubr.f32.gmra.mrb[0].mxu0 %v5068
        %v5321 = vpop.f32.mrb[0].mxu0
        %v5322 = vadd.f32 0.0, %v5321
        %v5323 = vpop.f32.mrb[0].mxu0
        %5324 = vmatprep.mubr.f32.mxu0 0.0
        %5325 = vmatmul.mubr.f32.gmra.mrb[0].mxu0 %v5071
        %v5326 = vpop.f32.mrb[0].mxu0
        %v5327 = vadd.f32 0.0, %v5326
        %v5328 = vpop.f32.mrb[0].mxu0
        %5329 = vmatprep.mubr.f32.mxu0 0.0
        %5330 = vmatmul.mubr.f32.gmra.mrb[0].mxu0 %v5074
        %v5331 = vpop.f32.mrb[0].mxu0
        %v5332 = vadd.f32 0.0, %v5331
        %v5333 = vpop.f32.mrb[0].mxu0
        %5334 = vmatprep.mubr.f32.mxu0 0.0
        %5335 = vmatmul.mubr.f32.gmra.mrb[0].mxu0 %v5077
        %v5336 = vpop.f32.mrb[0].mxu0
        %v5337 = vadd.f32 0.0, %v5336
        %v5338 = vpop.f32.mrb[0].mxu0
        %5339 = vmatprep.mubr.f32.mxu0 0.0
        %5340 = vmatmul.mubr.f32.gmra.mrb[0].mxu0 %v5080
        %v5341 = vpop.f32.mrb[0].mxu0
        %v5342 = vadd.f32 0.0, %v5341
        %v5343 = vpop.f32.mrb[0].mxu0
        %5344 = vmatprep.mubr.f32.mxu0 0.0
        %5345 = vmatmul.mubr.f32.gmra.mrb[0].mxu0 %v5083
        %v5346 = vpop.f32.mrb[0].mxu0
        %v5347 = vadd.f32 0.0, %v5346
        %v5348 = vpop.f32.mrb[0].mxu0
        %5349 = vmatprep.mubr.f32.mxu0 0.0
        %5350 = vmatmul.mubr.f32.gmra.mrb[0].mxu0 %v5086
        %v5351 = vpop.f32.mrb[0].mxu0
        %v5352 = vadd.f32 0.0, %v5351
        %v5353 = vpop.f32.mrb[0].mxu0
        %5354 = vmatprep.mubr.f32.mxu0 0.0
        %5355 = vmatmul.mubr.f32.gmra.mrb[0].mxu0 %v5089
        %v5356 = vpop.f32.mrb[0].mxu0
        %v5357 = vadd.f32 0.0, %v5356
        %v5358 = vpop.f32.mrb[0].mxu0
        %5359 = vmatprep.mubr.f32.mxu0 0.0
        %5360 = vmatmul.mubr.f32.gmra.mrb[0].mxu0 %v5092
        %v5361 = vpop.f32.mrb[0].mxu0
        %v5362 = vadd.f32 0.0, %v5361
        %v5363 = vpop.f32.mrb[0].mxu0
        %5364 = vmatprep.mubr.f32.mxu0 0.0
        %5365 = vmatmul.mubr.f32.gmra.mrb[0].mxu0 %v5095
        %v5366 = vpop.f32.mrb[0].mxu0
        %v5367 = vadd.f32 0.0, %v5366
        %v5368 = vpop.f32.mrb[0].mxu0
        %5369 = vmatprep.mubr.f32.mxu0 0.0
        %5370 = vmatmul.mubr.f32.gmra.mrb[0].mxu0 %v5098
        %v5371 = vpop.f32.mrb[0].mxu0
        %v5372 = vadd.f32 0.0, %v5371
        %v5373 = vpop.f32.mrb[0].mxu0
        %5374 = vmatprep.mubr.f32.mxu0 0.0
        %5375 = vmatmul.mubr.f32.gmra.mrb[0].mxu0 %v5101
        %v5376 = vpop.f32.mrb[0].mxu0
        %v5377 = vadd.f32 0.0, %v5376
        %v5378 = vpop.f32.mrb[0].mxu0
        %5379 = vmatprep.mubr.f32.mxu0 0.0
        %5380 = vmatmul.mubr.f32.gmra.mrb[0].mxu0 %v5104
        %v5381 = vpop.f32.mrb[0].mxu0
        %v5382 = vadd.f32 0.0, %v5381
        %v5383 = vpop.f32.mrb[0].mxu0
        %5384 = vmatprep.mubr.f32.mxu0 0.0
        %5385 = vmatmul.mubr.f32.gmra.mrb[0].mxu0 %v5107
        %v5386 = vpop.f32.mrb[0].mxu0
        %v5387 = vadd.f32 0.0, %v5386
        %v5388 = vpop.f32.mrb[0].mxu0
        %5389 = vmatprep.mubr.f32.mxu0 0.0
        %5390 = vmatmul.mubr.f32.gmra.mrb[0].mxu0 %v5110
        %v5391 = vpop.f32.mrb[0].mxu0
        %v5392 = vadd.f32 0.0, %v5391
        %v5393 = vpop.f32.mrb[0].mxu0
        %5394 = vmatprep.mubr.f32.mxu0 0.0
        %5395 = vmatmul.mubr.f32.gmra.mrb[0].mxu0 %v5113
        %v5396 = vpop.f32.mrb[0].mxu0
        %v5397 = vadd.f32 0.0, %v5396
        %v5398 = vpop.f32.mrb[0].mxu0
        %5399 = vmatprep.mubr.f32.mxu0 0.0
        %5400 = vmatmul.mubr.f32.gmra.mrb[0].mxu0 %v5116
        %v5401 = vpop.f32.mrb[0].mxu0
        %v5402 = vadd.f32 0.0, %v5401
        %v5403 = vpop.f32.mrb[0].mxu0
        %5404 = vmatprep.mubr.f32.mxu0 0.0
        %5405 = vmatmul.mubr.f32.gmra.mrb[0].mxu0 %v5119
        %v5406 = vpop.f32.mrb[0].mxu0
        %v5407 = vadd.f32 0.0, %v5406
        %v5408 = vpop.f32.mrb[0].mxu0
        %5409 = vmatprep.mubr.f32.mxu0 0.0
        %5410 = vmatmul.mubr.f32.gmra.mrb[0].mxu0 %v5122
        %v5411 = vpop.f32.mrb[0].mxu0
        %v5412 = vadd.f32 0.0, %v5411
        %v5413 = vpop.f32.mrb[0].mxu0
        %5414 = vmatprep.mubr.f32.mxu0 0.0
        %5415 = vmatmul.mubr.f32.gmra.mrb[0].mxu0 %v5125
        %v5416 = vpop.f32.mrb[0].mxu0
        %v5417 = vadd.f32 0.0, %v5416
        %v5418 = vpop.f32.mrb[0].mxu0
        %5419 = vmatprep.mubr.f32.mxu0 0.0
        %5420 = vmatmul.mubr.f32.gmra.mrb[0].mxu0 %v5128
        %v5421 = vpop.f32.mrb[0].mxu0
        %v5422 = vadd.f32 0.0, %v5421
        %v5423 = vpop.f32.mrb[0].mxu0
        %5424 = vmatprep.mubr.f32.mxu0 0.0
        %5425 = vmatmul.mubr.f32.gmra.mrb[0].mxu0 %v5131
        %v5426 = vpop.f32.mrb[0].mxu0
        %v5427 = vadd.f32 0.0, %v5426
        %v5428 = vpop.f32.mrb[0].mxu0
        %5429 = vmatprep.mubr.f32.mxu0 0.0
        %5430 = vmatmul.mubr.f32.gmra.mrb[0].mxu0 %v5134
        %v5431 = vpop.f32.mrb[0].mxu0
        %v5432 = vadd.f32 0.0, %v5431
        %v5433 = vpop.f32.mrb[0].mxu0
        %5434 = vmatprep.mubr.f32.mxu0 0.0
        %5435 = vmatmul.mubr.f32.gmra.mrb[0].mxu0 %v5137
        %v5436 = vpop.f32.mrb[0].mxu0
        %v5437 = vadd.f32 0.0, %v5436
        %v5438 = vpop.f32.mrb[0].mxu0
        %5439 = vmatprep.mubr.f32.mxu0 0.0
        %5440 = vmatmul.mubr.f32.gmra.mrb[0].mxu0 %v5140
        %v5441 = vpop.f32.mrb[0].mxu0
        %v5442 = vadd.f32 0.0, %v5441
        %v5443 = vpop.f32.mrb[0].mxu0
        %5444 = vmatprep.mubr.f32.mxu0 0.0
        %5445 = vmatmul.mubr.f32.gmra.mrb[0].mxu0 %v5143
        %v5446 = vpop.f32.mrb[0].mxu0
        %v5447 = vadd.f32 0.0, %v5446
        %v5448 = vpop.f32.mrb[0].mxu0
        %5449 = vmatprep.mubr.f32.mxu0 0.0
        %5450 = vmatmul.mubr.f32.gmra.mrb[0].mxu0 %v5146
        %v5451 = vpop.f32.mrb[0].mxu0
        %v5452 = vadd.f32 0.0, %v5451
        %v5453 = vpop.f32.mrb[0].mxu0
        %5454 = vmatprep.mubr.f32.mxu0 0.0
        %5455 = vmatmul.mubr.f32.gmra.mrb[0].mxu0 %v5149
        %v5456 = vpop.f32.mrb[0].mxu0
        %v5457 = vadd.f32 0.0, %v5456
        %v5458 = vpop.f32.mrb[0].mxu0
        %5459 = vmatprep.mubr.f32.mxu0 0.0
        %5460 = vmatmul.mubr.f32.gmra.mrb[0].mxu0 %v5152
        %v5461 = vpop.f32.mrb[0].mxu0
        %v5462 = vadd.f32 0.0, %v5461
        %v5463 = vpop.f32.mrb[0].mxu0
        %5464 = vmatprep.mubr.f32.mxu0 0.0
        %5465 = vmatmul.mubr.f32.gmra.mrb[0].mxu0 %v5155
        %v5466 = vpop.f32.mrb[0].mxu0
        %v5467 = vadd.f32 0.0, %v5466
        %v5468 = vpop.f32.mrb[0].mxu0
        %5469 = vmatprep.mubr.f32.mxu0 0.0
        %5470 = vmatmul.mubr.f32.gmra.mrb[0].mxu0 %v5158
        %v5471 = vpop.f32.mrb[0].mxu0
        %v5472 = vadd.f32 0.0, %v5471
        %v5473 = vpop.f32.mrb[0].mxu0
        %5474 = vmatprep.mubr.f32.mxu0 0.0
        %5475 = vmatmul.mubr.f32.gmra.mrb[0].mxu0 %v5161
        %v5476 = vpop.f32.mrb[0].mxu0
        %v5477 = vadd.f32 0.0, %v5476
        %v5478 = vpop.f32.mrb[0].mxu0
        %5479 = vmatprep.mubr.f32.mxu0 0.0
        %5480 = vmatmul.mubr.f32.gmra.mrb[0].mxu0 %v5164
        %v5481 = vpop.f32.mrb[0].mxu0
        %v5482 = vadd.f32 0.0, %v5481
        %v5483 = vpop.f32.mrb[0].mxu0
        %5484 = vmatprep.mubr.f32.mxu0 0.0
        %5485 = vmatmul.mubr.f32.gmra.mrb[0].mxu0 %v5167
        %v5486 = vpop.f32.mrb[0].mxu0
        %v5487 = vadd.f32 0.0, %v5486
        %v5488 = vpop.f32.mrb[0].mxu0
        %5489 = vmatprep.mubr.f32.mxu0 0.0
        %5490 = vmatmul.mubr.f32.gmra.mrb[0].mxu0 %v5170
        %v5491 = vpop.f32.mrb[0].mxu0
        %v5492 = vadd.f32 0.0, %v5491
        %v5493 = vpop.f32.mrb[0].mxu0
        %5494 = vmatprep.mubr.f32.mxu0 0.0
        %5495 = vmatmul.mubr.f32.gmra.mrb[0].mxu0 %v5173
        %v5496 = vpop.f32.mrb[0].mxu0
        %v5497 = vadd.f32 0.0, %v5496
        %v5498 = vpop.f32.mrb[0].mxu0
        %5499 = vmatprep.mubr.f32.mxu0 0.0
        %5500 = vmatmul.mubr.f32.gmra.mrb[0].mxu0 %v5176
        %v5501 = vpop.f32.mrb[0].mxu0
        %v5502 = vadd.f32 0.0, %v5501
        %v5503 = vpop.f32.mrb[0].mxu0
        %5504 = vmatprep.mubr.f32.mxu0 0.0
        %5505 = vmatmul.mubr.f32.gmra.mrb[0].mxu0 %v5179
        %v5506 = vpop.f32.mrb[0].mxu0
        %v5507 = vadd.f32 0.0, %v5506
        %v5508 = vpop.f32.mrb[0].mxu0
        %5509 = vmatprep.mubr.f32.mxu0 0.0
        %5510 = vmatmul.mubr.f32.gmra.mrb[0].mxu0 %v5182
        %v5511 = vpop.f32.mrb[0].mxu0
        %v5512 = vadd.f32 0.0, %v5511
        %v5513 = vpop.f32.mrb[0].mxu0
        %5514 = vmatprep.mubr.f32.mxu0 0.0
        %5515 = vmatmul.mubr.f32.gmra.mrb[0].mxu0 %v5185
        %v5516 = vpop.f32.mrb[0].mxu0
        %v5517 = vadd.f32 0.0, %v5516
        %v5518 = vpop.f32.mrb[0].mxu0
        %5519 = vmatprep.mubr.f32.mxu0 0.0
        %5520 = vmatmul.mubr.f32.gmra.mrb[0].mxu0 %v5188
        %v5521 = vpop.f32.mrb[0].mxu0
        %v5522 = vadd.f32 0.0, %v5521
        %v5523 = vpop.f32.mrb[0].mxu0
        %5524 = vmatprep.mubr.f32.mxu0 0.0
        %5525 = vmatmul.mubr.f32.gmra.mrb[0].mxu0 %v5191
        %v5526 = vpop.f32.mrb[0].mxu0
        %v5527 = vadd.f32 0.0, %v5526
        %v5528 = vpop.f32.mrb[0].mxu0
        %5529 = vmatprep.mubr.f32.mxu0 0.0
        %5530 = vmatmul.mubr.f32.gmra.mrb[0].mxu0 %v5194
        %v5531 = vpop.f32.mrb[0].mxu0
        %v5532 = vadd.f32 0.0, %v5531
        %v5533 = vpop.f32.mrb[0].mxu0
        %5534 = vmatprep.mubr.f32.mxu0 0.0
        %5535 = vmatmul.mubr.f32.gmra.mrb[0].mxu0 %v5197
        %v5536 = vpop.f32.mrb[0].mxu0
        %v5537 = vadd.f32 0.0, %v5536
        %v5538 = vpop.f32.mrb[0].mxu0
        %5539 = vmatprep.mubr.f32.mxu0 0.0
        %5540 = vmatmul.mubr.f32.gmra.mrb[0].mxu0 %v5200
        %v5541 = vpop.f32.mrb[0].mxu0
        %v5542 = vadd.f32 0.0, %v5541
        %v5543 = vpop.f32.mrb[0].mxu0
        %5544 = vmatprep.mubr.f32.mxu0 0.0
        %5545 = vmatmul.mubr.f32.gmra.mrb[0].mxu0 %v5203
        %v5546 = vpop.f32.mrb[0].mxu0
        %v5547 = vadd.f32 0.0, %v5546
        %v5548 = vpop.f32.mrb[0].mxu0
        %5549 = vmatprep.mubr.f32.mxu0 0.0
        %5550 = vmatmul.mubr.f32.gmra.mrb[0].mxu0 %v5206
        %v5551 = vpop.f32.mrb[0].mxu0
        %v5552 = vadd.f32 0.0, %v5551
        %v5553 = vpop.f32.mrb[0].mxu0
        %5554 = vmatprep.mubr.f32.mxu0 0.0
        %5555 = vmatmul.mubr.f32.gmra.mrb[0].mxu0 %v5209
        %v5556 = vpop.f32.mrb[0].mxu0
        %v5557 = vadd.f32 0.0, %v5556
        %v5558 = vpop.f32.mrb[0].mxu0
        %5559 = vmatprep.mubr.f32.mxu0 0.0
        %5560 = vmatmul.mubr.f32.gmra.mrb[0].mxu0 %v5212
        %v5561 = vpop.f32.mrb[0].mxu0
        %v5562 = vadd.f32 0.0, %v5561
        %v5563 = vpop.f32.mrb[0].mxu0
        %5564 = vmatprep.mubr.f32.mxu0 0.0
        %5565 = vmatmul.mubr.f32.gmra.mrb[0].mxu0 %v5215
        %v5566 = vpop.f32.mrb[0].mxu0
        %v5567 = vadd.f32 0.0, %v5566
        %v5568 = vpop.f32.mrb[0].mxu0
        %5569 = vmatprep.mubr.f32.mxu0 0.0
        %5570 = vmatmul.mubr.f32.gmra.mrb[0].mxu0 %v5218
        %v5571 = vpop.f32.mrb[0].mxu0
        %v5572 = vadd.f32 0.0, %v5571
        %v5573 = vpop.f32.mrb[0].mxu0
        %5574 = vmatprep.mubr.f32.mxu0 0.0
        %5575 = vmatmul.mubr.f32.gmra.mrb[0].mxu0 %v5221
        %v5576 = vpop.f32.mrb[0].mxu0
        %v5577 = vadd.f32 0.0, %v5576
        %v5578 = vpop.f32.mrb[0].mxu0
        %5579 = vmatprep.mubr.f32.mxu0 0.0
        %5580 = vmatmul.mubr.f32.gmra.mrb[0].mxu0 %v5224
        %v5581 = vpop.f32.mrb[0].mxu0
        %v5582 = vadd.f32 0.0, %v5581
        %v5583 = vpop.f32.mrb[0].mxu0
        %5584 = vmatprep.mubr.f32.mxu0 0.0
        %5585 = vmatmul.mubr.f32.gmra.mrb[0].mxu0 %v5227
        %v5586 = vpop.f32.mrb[0].mxu0
        %v5587 = vadd.f32 0.0, %v5586
        %v5588 = vpop.f32.mrb[0].mxu0
        %5589 = vmatprep.mubr.f32.mxu0 0.0
        %5590 = vmatmul.mubr.f32.gmra.mrb[0].mxu0 %v5230
        %v5591 = vpop.f32.mrb[0].mxu0
        %v5592 = vadd.f32 0.0, %v5591
        %v5593 = vpop.f32.mrb[0].mxu0
        %5594 = vmatprep.mubr.f32.mxu0 0.0
        %5595 = vmatmul.mubr.f32.gmra.mrb[0].mxu0 %v5233
        %v5596 = vpop.f32.mrb[0].mxu0
        %v5597 = vadd.f32 0.0, %v5596
        %v5598 = vpop.f32.mrb[0].mxu0
        %5599 = vdwg.mxu0
        %v5601 = vsel %vm5054, %v5007, 0
        %v5604 = vsel %vm5054, %v5008, 0
        %v5607 = vsel %vm5054, %v5009, 0
        %v5610 = vsel %vm5054, %v5010, 0
        %v5613 = vsel %vm5054, %v5011, 0
        %v5616 = vsel %vm5054, %v5012, 0
        %v5619 = vsel %vm5054, %v5013, 0
        %v5622 = vsel %vm5054, %v5014, 0
        %v5625 = vsel %vm5054, %v5015, 0
        %v5628 = vsel %vm5054, %v5016, 0
        %v5631 = vsel %vm5054, %v5017, 0
        %5633 = vmatprep.subr.mxu0 0.0
        %5634 = vmatpush1.msra.mxu0 %v5302
        %5635 = vmatprep.subr.mxu0 0.0
        %5636 = vmatpush1.msra.mxu0 %v5307
        %5637 = vmatprep.subr.mxu0 0.0
        %5638 = vmatpush1.msra.mxu0 %v5312
        %5639 = vmatprep.subr.mxu0 0.0
        %5640 = vmatpush1.msra.mxu0 %v5317
        %5641 = vmatprep.subr.mxu0 0.0
        %5642 = vmatpush1.msra.mxu0 %v5322
        %5643 = vmatprep.subr.mxu0 0.0
        %5644 = vmatpush1.msra.mxu0 %v5327
        %5645 = vmatprep.subr.mxu0 0.0
        %5646 = vmatpush1.msra.mxu0 %v5332
        %5647 = vmatprep.subr.mxu0 0.0
        %5648 = vmatpush1.msra.mxu0 %v5337
        %5649 = vmatprep.subr.mxu0 0.0
        %5650 = vmatpush1.msra.mxu0 %v5342
        %5651 = vmatprep.subr.mxu0 0.0
        %5652 = vmatpush1.msra.mxu0 %v5347
        %5653 = vmatprep.subr.mxu0 0.0
        %5654 = vmatpush1.msra.mxu0 %v5352
        %5655 = vmatprep.subr.mxu0 0.0
        %5656 = vmatpush1.msra.mxu0 %v5357
        %5657 = vmatprep.subr.mxu0 0.0
        %5658 = vmatpush1.msra.mxu0 0.0
        %5659 = vmatprep.subr.mxu0 0.0
        %5660 = vmatpush1.msra.mxu0 0.0
        %5661 = vmatprep.subr.mxu0 0.0
        %5662 = vmatpush1.msra.mxu0 0.0
        %5663 = vmatprep.subr.mxu0 0.0
        %5664 = vmatpush1.msra.mxu0 0.0
        %5665 = vmatprep.subr.mxu0 0.0
        %5666 = vmatpush1.msra.mxu0 0.0
        %5667 = vmatprep.subr.mxu0 0.0
        %5668 = vmatpush1.msra.mxu0 0.0
        %5669 = vmatprep.subr.mxu0 0.0
        %5670 = vmatpush1.msra.mxu0 0.0
        %5671 = vmatprep.subr.mxu0 0.0
        %5672 = vmatpush1.msra.mxu0 0.0
        %5673 = vmatprep.subr.mxu0 0.0
        %5674 = vmatpush1.msra.mxu0 0.0
        %5675 = vmatprep.subr.mxu0 0.0
        %5676 = vmatpush1.msra.mxu0 0.0
        %5677 = vmatprep.subr.mxu0 0.0
        %5678 = vmatpush1.msra.mxu0 0.0
        %5679 = vmatprep.subr.mxu0 0.0
        %5680 = vmatpush1.msra.mxu0 0.0
        %5681 = vmatprep.subr.mxu0 0.0
        %5682 = vmatpush1.msra.mxu0 0.0
        %5683 = vmatprep.subr.mxu0 0.0
        %5684 = vmatpush1.msra.mxu0 0.0
        %5685 = vmatprep.subr.mxu0 0.0
        %5686 = vmatpush1.msra.mxu0 0.0
        %5687 = vmatprep.subr.mxu0 0.0
        %5688 = vmatpush1.msra.mxu0 0.0
        %5689 = vmatprep.subr.mxu0 0.0
        %5690 = vmatpush1.msra.mxu0 0.0
        %5691 = vmatprep.subr.mxu0 0.0
        %5692 = vmatpush1.msra.mxu0 0.0
        %5693 = vmatprep.subr.mxu0 0.0
        %5694 = vmatpush1.msra.mxu0 0.0
        %5695 = vmatprep.subr.mxu0 0.0
        %5696 = vmatpush1.msra.mxu0 0.0
        %5697 = vmatprep.mubr.f32.mxu0 0.0
        %5698 = vmatmul.mubr.f32.gmra.mrb[0].mxu0 %v5601
        %v5699 = vpop.f32.mrb[0].mxu0
        %v5700 = vadd.f32 0.0, %v5699
        %v5701 = vpop.f32.mrb[0].mxu0
        %5702 = vmatprep.mubr.f32.mxu0 0.0
        %5703 = vmatmul.mubr.f32.gmra.mrb[0].mxu0 %v5604
        %v5704 = vpop.f32.mrb[0].mxu0
        %v5705 = vadd.f32 0.0, %v5704
        %v5706 = vpop.f32.mrb[0].mxu0
        %5707 = vmatprep.mubr.f32.mxu0 0.0
        %5708 = vmatmul.mubr.f32.gmra.mrb[0].mxu0 %v5607
        %v5709 = vpop.f32.mrb[0].mxu0
        %v5710 = vadd.f32 0.0, %v5709
        %v5711 = vpop.f32.mrb[0].mxu0
        %5712 = vmatprep.mubr.f32.mxu0 0.0
        %5713 = vmatmul.mubr.f32.gmra.mrb[0].mxu0 %v5610
        %v5714 = vpop.f32.mrb[0].mxu0
        %v5715 = vadd.f32 0.0, %v5714
        %v5716 = vpop.f32.mrb[0].mxu0
        %5717 = vmatprep.mubr.f32.mxu0 0.0
        %5718 = vmatmul.mubr.f32.gmra.mrb[0].mxu0 %v5613
        %v5719 = vpop.f32.mrb[0].mxu0
        %v5720 = vadd.f32 0.0, %v5719
        %v5721 = vpop.f32.mrb[0].mxu0
        %5722 = vmatprep.mubr.f32.mxu0 0.0
        %5723 = vmatmul.mubr.f32.gmra.mrb[0].mxu0 %v5616
        %v5724 = vpop.f32.mrb[0].mxu0
        %v5725 = vadd.f32 0.0, %v5724
        %v5726 = vpop.f32.mrb[0].mxu0
        %5727 = vmatprep.mubr.f32.mxu0 0.0
        %5728 = vmatmul.mubr.f32.gmra.mrb[0].mxu0 %v5619
        %v5729 = vpop.f32.mrb[0].mxu0
        %v5730 = vadd.f32 0.0, %v5729
        %v5731 = vpop.f32.mrb[0].mxu0
        %5732 = vmatprep.mubr.f32.mxu0 0.0
        %5733 = vmatmul.mubr.f32.gmra.mrb[0].mxu0 %v5622
        %v5734 = vpop.f32.mrb[0].mxu0
        %v5735 = vadd.f32 0.0, %v5734
        %v5736 = vpop.f32.mrb[0].mxu0
        %5737 = vmatprep.mubr.f32.mxu0 0.0
        %5738 = vmatmul.mubr.f32.gmra.mrb[0].mxu0 %v5625
        %v5739 = vpop.f32.mrb[0].mxu0
        %v5740 = vadd.f32 0.0, %v5739
        %v5741 = vpop.f32.mrb[0].mxu0
        %5742 = vmatprep.mubr.f32.mxu0 0.0
        %5743 = vmatmul.mubr.f32.gmra.mrb[0].mxu0 %v5628
        %v5744 = vpop.f32.mrb[0].mxu0
        %v5745 = vadd.f32 0.0, %v5744
        %v5746 = vpop.f32.mrb[0].mxu0
        %5747 = vmatprep.mubr.f32.mxu0 0.0
        %5748 = vmatmul.mubr.f32.gmra.mrb[0].mxu0 %v5631
        %v5749 = vpop.f32.mrb[0].mxu0
        %v5750 = vadd.f32 0.0, %v5749
        %v5751 = vpop.f32.mrb[0].mxu0
        %5752 = vdwg.mxu0
        %5753 = vmatprep.subr.mxu0 0.0
        %5754 = vmatpush1.msra.mxu0 %v5362
        %5755 = vmatprep.subr.mxu0 0.0
        %5756 = vmatpush1.msra.mxu0 %v5367
        %5757 = vmatprep.subr.mxu0 0.0
        %5758 = vmatpush1.msra.mxu0 %v5372
        %5759 = vmatprep.subr.mxu0 0.0
        %5760 = vmatpush1.msra.mxu0 %v5377
        %5761 = vmatprep.subr.mxu0 0.0
        %5762 = vmatpush1.msra.mxu0 %v5382
        %5763 = vmatprep.subr.mxu0 0.0
        %5764 = vmatpush1.msra.mxu0 %v5387
        %5765 = vmatprep.subr.mxu0 0.0
        %5766 = vmatpush1.msra.mxu0 %v5392
        %5767 = vmatprep.subr.mxu0 0.0
        %5768 = vmatpush1.msra.mxu0 %v5397
        %5769 = vmatprep.subr.mxu0 0.0
        %5770 = vmatpush1.msra.mxu0 %v5402
        %5771 = vmatprep.subr.mxu0 0.0
        %5772 = vmatpush1.msra.mxu0 %v5407
        %5773 = vmatprep.subr.mxu0 0.0
        %5774 = vmatpush1.msra.mxu0 %v5412
        %5775 = vmatprep.subr.mxu0 0.0
        %5776 = vmatpush1.msra.mxu0 %v5417
        %5777 = vmatprep.subr.mxu0 0.0
        %5778 = vmatpush1.msra.mxu0 0.0
        %5779 = vmatprep.subr.mxu0 0.0
        %5780 = vmatpush1.msra.mxu0 0.0
        %5781 = vmatprep.subr.mxu0 0.0
        %5782 = vmatpush1.msra.mxu0 0.0
        %5783 = vmatprep.subr.mxu0 0.0
        %5784 = vmatpush1.msra.mxu0 0.0
        %5785 = vmatprep.subr.mxu0 0.0
        %5786 = vmatpush1.msra.mxu0 0.0
        %5787 = vmatprep.subr.mxu0 0.0
        %5788 = vmatpush1.msra.mxu0 0.0
        %5789 = vmatprep.subr.mxu0 0.0
        %5790 = vmatpush1.msra.mxu0 0.0
        %5791 = vmatprep.subr.mxu0 0.0
        %5792 = vmatpush1.msra.mxu0 0.0
        %5793 = vmatprep.subr.mxu0 0.0
        %5794 = vmatpush1.msra.mxu0 0.0
        %5795 = vmatprep.subr.mxu0 0.0
        %5796 = vmatpush1.msra.mxu0 0.0
        %5797 = vmatprep.subr.mxu0 0.0
        %5798 = vmatpush1.msra.mxu0 0.0
        %5799 = vmatprep.subr.mxu0 0.0
        %5800 = vmatpush1.msra.mxu0 0.0
        %5801 = vmatprep.subr.mxu0 0.0
        %5802 = vmatpush1.msra.mxu0 0.0
        %5803 = vmatprep.subr.mxu0 0.0
        %5804 = vmatpush1.msra.mxu0 0.0
        %5805 = vmatprep.subr.mxu0 0.0
        %5806 = vmatpush1.msra.mxu0 0.0
        %5807 = vmatprep.subr.mxu0 0.0
        %5808 = vmatpush1.msra.mxu0 0.0
        %5809 = vmatprep.subr.mxu0 0.0
        %5810 = vmatpush1.msra.mxu0 0.0
        %5811 = vmatprep.subr.mxu0 0.0
        %5812 = vmatpush1.msra.mxu0 0.0
        %5813 = vmatprep.subr.mxu0 0.0
        %5814 = vmatpush1.msra.mxu0 0.0
        %5815 = vmatprep.subr.mxu0 0.0
        %5816 = vmatpush1.msra.mxu0 0.0
        %5817 = vmatprep.mubr.f32.mxu0 0.0
        %5818 = vmatmul.mubr.f32.gmra.mrb[0].mxu0 %v5601
        %v5819 = vpop.f32.mrb[0].mxu0
        %v5820 = vadd.f32 0.0, %v5819
        %v5821 = vpop.f32.mrb[0].mxu0
        %5822 = vmatprep.mubr.f32.mxu0 0.0
        %5823 = vmatmul.mubr.f32.gmra.mrb[0].mxu0 %v5604
        %v5824 = vpop.f32.mrb[0].mxu0
        %v5825 = vadd.f32 0.0, %v5824
        %v5826 = vpop.f32.mrb[0].mxu0
        %5827 = vmatprep.mubr.f32.mxu0 0.0
        %5828 = vmatmul.mubr.f32.gmra.mrb[0].mxu0 %v5607
        %v5829 = vpop.f32.mrb[0].mxu0
        %v5830 = vadd.f32 0.0, %v5829
        %v5831 = vpop.f32.mrb[0].mxu0
        %5832 = vmatprep.mubr.f32.mxu0 0.0
        %5833 = vmatmul.mubr.f32.gmra.mrb[0].mxu0 %v5610
        %v5834 = vpop.f32.mrb[0].mxu0
        %v5835 = vadd.f32 0.0, %v5834
        %v5836 = vpop.f32.mrb[0].mxu0
        %5837 = vmatprep.mubr.f32.mxu0 0.0
        %5838 = vmatmul.mubr.f32.gmra.mrb[0].mxu0 %v5613
        %v5839 = vpop.f32.mrb[0].mxu0
        %v5840 = vadd.f32 0.0, %v5839
        %v5841 = vpop.f32.mrb[0].mxu0
        %5842 = vmatprep.mubr.f32.mxu0 0.0
        %5843 = vmatmul.mubr.f32.gmra.mrb[0].mxu0 %v5616
        %v5844 = vpop.f32.mrb[0].mxu0
        %v5845 = vadd.f32 0.0, %v5844
        %v5846 = vpop.f32.mrb[0].mxu0
        %5847 = vmatprep.mubr.f32.mxu0 0.0
        %5848 = vmatmul.mubr.f32.gmra.mrb[0].mxu0 %v5619
        %v5849 = vpop.f32.mrb[0].mxu0
        %v5850 = vadd.f32 0.0, %v5849
        %v5851 = vpop.f32.mrb[0].mxu0
        %5852 = vmatprep.mubr.f32.mxu0 0.0
        %5853 = vmatmul.mubr.f32.gmra.mrb[0].mxu0 %v5622
        %v5854 = vpop.f32.mrb[0].mxu0
        %v5855 = vadd.f32 0.0, %v5854
        %v5856 = vpop.f32.mrb[0].mxu0
        %5857 = vmatprep.mubr.f32.mxu0 0.0
        %5858 = vmatmul.mubr.f32.gmra.mrb[0].mxu0 %v5625
        %v5859 = vpop.f32.mrb[0].mxu0
        %v5860 = vadd.f32 0.0, %v5859
        %v5861 = vpop.f32.mrb[0].mxu0
        %5862 = vmatprep.mubr.f32.mxu0 0.0
        %5863 = vmatmul.mubr.f32.gmra.mrb[0].mxu0 %v5628
        %v5864 = vpop.f32.mrb[0].mxu0
        %v5865 = vadd.f32 0.0, %v5864
        %v5866 = vpop.f32.mrb[0].mxu0
        %5867 = vmatprep.mubr.f32.mxu0 0.0
        %5868 = vmatmul.mubr.f32.gmra.mrb[0].mxu0 %v5631
        %v5869 = vpop.f32.mrb[0].mxu0
        %v5870 = vadd.f32 0.0, %v5869
        %v5871 = vpop.f32.mrb[0].mxu0
        %5872 = vdwg.mxu0
        %5873 = vmatprep.subr.mxu0 0.0
        %5874 = vmatpush1.msra.mxu0 %v5422
        %5875 = vmatprep.subr.mxu0 0.0
        %5876 = vmatpush1.msra.mxu0 %v5427
        %5877 = vmatprep.subr.mxu0 0.0
        %5878 = vmatpush1.msra.mxu0 %v5432
        %5879 = vmatprep.subr.mxu0 0.0
        %5880 = vmatpush1.msra.mxu0 %v5437
        %5881 = vmatprep.subr.mxu0 0.0
        %5882 = vmatpush1.msra.mxu0 %v5442
        %5883 = vmatprep.subr.mxu0 0.0
        %5884 = vmatpush1.msra.mxu0 %v5447
        %5885 = vmatprep.subr.mxu0 0.0
        %5886 = vmatpush1.msra.mxu0 %v5452
        %5887 = vmatprep.subr.mxu0 0.0
        %5888 = vmatpush1.msra.mxu0 %v5457
        %5889 = vmatprep.subr.mxu0 0.0
        %5890 = vmatpush1.msra.mxu0 %v5462
        %5891 = vmatprep.subr.mxu0 0.0
        %5892 = vmatpush1.msra.mxu0 %v5467
        %5893 = vmatprep.subr.mxu0 0.0
        %5894 = vmatpush1.msra.mxu0 %v5472
        %5895 = vmatprep.subr.mxu0 0.0
        %5896 = vmatpush1.msra.mxu0 %v5477
        %5897 = vmatprep.subr.mxu0 0.0
        %5898 = vmatpush1.msra.mxu0 0.0
        %5899 = vmatprep.subr.mxu0 0.0
        %5900 = vmatpush1.msra.mxu0 0.0
        %5901 = vmatprep.subr.mxu0 0.0
        %5902 = vmatpush1.msra.mxu0 0.0
        %5903 = vmatprep.subr.mxu0 0.0
        %5904 = vmatpush1.msra.mxu0 0.0
        %5905 = vmatprep.subr.mxu0 0.0
        %5906 = vmatpush1.msra.mxu0 0.0
        %5907 = vmatprep.subr.mxu0 0.0
        %5908 = vmatpush1.msra.mxu0 0.0
        %5909 = vmatprep.subr.mxu0 0.0
        %5910 = vmatpush1.msra.mxu0 0.0
        %5911 = vmatprep.subr.mxu0 0.0
        %5912 = vmatpush1.msra.mxu0 0.0
        %5913 = vmatprep.subr.mxu0 0.0
        %5914 = vmatpush1.msra.mxu0 0.0
        %5915 = vmatprep.subr.mxu0 0.0
        %5916 = vmatpush1.msra.mxu0 0.0
        %5917 = vmatprep.subr.mxu0 0.0
        %5918 = vmatpush1.msra.mxu0 0.0
        %5919 = vmatprep.subr.mxu0 0.0
        %5920 = vmatpush1.msra.mxu0 0.0
        %5921 = vmatprep.subr.mxu0 0.0
        %5922 = vmatpush1.msra.mxu0 0.0
        %5923 = vmatprep.subr.mxu0 0.0
        %5924 = vmatpush1.msra.mxu0 0.0
        %5925 = vmatprep.subr.mxu0 0.0
        %5926 = vmatpush1.msra.mxu0 0.0
        %5927 = vmatprep.subr.mxu0 0.0
        %5928 = vmatpush1.msra.mxu0 0.0
        %5929 = vmatprep.subr.mxu0 0.0
        %5930 = vmatpush1.msra.mxu0 0.0
        %5931 = vmatprep.subr.mxu0 0.0
        %5932 = vmatpush1.msra.mxu0 0.0
        %5933 = vmatprep.subr.mxu0 0.0
        %5934 = vmatpush1.msra.mxu0 0.0
        %5935 = vmatprep.subr.mxu0 0.0
        %5936 = vmatpush1.msra.mxu0 0.0
        %5937 = vmatprep.mubr.f32.mxu0 0.0
        %5938 = vmatmul.mubr.f32.gmra.mrb[0].mxu0 %v5601
        %v5939 = vpop.f32.mrb[0].mxu0
        %v5940 = vadd.f32 0.0, %v5939
        %v5941 = vpop.f32.mrb[0].mxu0
        %5942 = vmatprep.mubr.f32.mxu0 0.0
        %5943 = vmatmul.mubr.f32.gmra.mrb[0].mxu0 %v5604
        %v5944 = vpop.f32.mrb[0].mxu0
        %v5945 = vadd.f32 0.0, %v5944
        %v5946 = vpop.f32.mrb[0].mxu0
        %5947 = vmatprep.mubr.f32.mxu0 0.0
        %5948 = vmatmul.mubr.f32.gmra.mrb[0].mxu0 %v5607
        %v5949 = vpop.f32.mrb[0].mxu0
        %v5950 = vadd.f32 0.0, %v5949
        %v5951 = vpop.f32.mrb[0].mxu0
        %5952 = vmatprep.mubr.f32.mxu0 0.0
        %5953 = vmatmul.mubr.f32.gmra.mrb[0].mxu0 %v5610
        %v5954 = vpop.f32.mrb[0].mxu0
        %v5955 = vadd.f32 0.0, %v5954
        %v5956 = vpop.f32.mrb[0].mxu0
        %5957 = vmatprep.mubr.f32.mxu0 0.0
        %5958 = vmatmul.mubr.f32.gmra.mrb[0].mxu0 %v5613
        %v5959 = vpop.f32.mrb[0].mxu0
        %v5960 = vadd.f32 0.0, %v5959
        %v5961 = vpop.f32.mrb[0].mxu0
        %5962 = vmatprep.mubr.f32.mxu0 0.0
        %5963 = vmatmul.mubr.f32.gmra.mrb[0].mxu0 %v5616
        %v5964 = vpop.f32.mrb[0].mxu0
        %v5965 = vadd.f32 0.0, %v5964
        %v5966 = vpop.f32.mrb[0].mxu0
        %5967 = vmatprep.mubr.f32.mxu0 0.0
        %5968 = vmatmul.mubr.f32.gmra.mrb[0].mxu0 %v5619
        %v5969 = vpop.f32.mrb[0].mxu0
        %v5970 = vadd.f32 0.0, %v5969
        %v5971 = vpop.f32.mrb[0].mxu0
        %5972 = vmatprep.mubr.f32.mxu0 0.0
        %5973 = vmatmul.mubr.f32.gmra.mrb[0].mxu0 %v5622
        %v5974 = vpop.f32.mrb[0].mxu0
        %v5975 = vadd.f32 0.0, %v5974
        %v5976 = vpop.f32.mrb[0].mxu0
        %5977 = vmatprep.mubr.f32.mxu0 0.0
        %5978 = vmatmul.mubr.f32.gmra.mrb[0].mxu0 %v5625
        %v5979 = vpop.f32.mrb[0].mxu0
        %v5980 = vadd.f32 0.0, %v5979
        %v5981 = vpop.f32.mrb[0].mxu0
        %5982 = vmatprep.mubr.f32.mxu0 0.0
        %5983 = vmatmul.mubr.f32.gmra.mrb[0].mxu0 %v5628
        %v5984 = vpop.f32.mrb[0].mxu0
        %v5985 = vadd.f32 0.0, %v5984
        %v5986 = vpop.f32.mrb[0].mxu0
        %5987 = vmatprep.mubr.f32.mxu0 0.0
        %5988 = vmatmul.mubr.f32.gmra.mrb[0].mxu0 %v5631
        %v5989 = vpop.f32.mrb[0].mxu0
        %v5990 = vadd.f32 0.0, %v5989
        %v5991 = vpop.f32.mrb[0].mxu0
        %5992 = vdwg.mxu0
        %5993 = vmatprep.subr.mxu0 0.0
        %5994 = vmatpush1.msra.mxu0 %v5482
        %5995 = vmatprep.subr.mxu0 0.0
        %5996 = vmatpush1.msra.mxu0 %v5487
        %5997 = vmatprep.subr.mxu0 0.0
        %5998 = vmatpush1.msra.mxu0 %v5492
        %5999 = vmatprep.subr.mxu0 0.0
        %6000 = vmatpush1.msra.mxu0 %v5497
        %6001 = vmatprep.subr.mxu0 0.0
        %6002 = vmatpush1.msra.mxu0 %v5502
        %6003 = vmatprep.subr.mxu0 0.0
        %6004 = vmatpush1.msra.mxu0 %v5507
        %6005 = vmatprep.subr.mxu0 0.0
        %6006 = vmatpush1.msra.mxu0 %v5512
        %6007 = vmatprep.subr.mxu0 0.0
        %6008 = vmatpush1.msra.mxu0 %v5517
        %6009 = vmatprep.subr.mxu0 0.0
        %6010 = vmatpush1.msra.mxu0 %v5522
        %6011 = vmatprep.subr.mxu0 0.0
        %6012 = vmatpush1.msra.mxu0 %v5527
        %6013 = vmatprep.subr.mxu0 0.0
        %6014 = vmatpush1.msra.mxu0 %v5532
        %6015 = vmatprep.subr.mxu0 0.0
        %6016 = vmatpush1.msra.mxu0 %v5537
        %6017 = vmatprep.subr.mxu0 0.0
        %6018 = vmatpush1.msra.mxu0 0.0
        %6019 = vmatprep.subr.mxu0 0.0
        %6020 = vmatpush1.msra.mxu0 0.0
        %6021 = vmatprep.subr.mxu0 0.0
        %6022 = vmatpush1.msra.mxu0 0.0
        %6023 = vmatprep.subr.mxu0 0.0
        %6024 = vmatpush1.msra.mxu0 0.0
        %6025 = vmatprep.subr.mxu0 0.0
        %6026 = vmatpush1.msra.mxu0 0.0
        %6027 = vmatprep.subr.mxu0 0.0
        %6028 = vmatpush1.msra.mxu0 0.0
        %6029 = vmatprep.subr.mxu0 0.0
        %6030 = vmatpush1.msra.mxu0 0.0
        %6031 = vmatprep.subr.mxu0 0.0
        %6032 = vmatpush1.msra.mxu0 0.0
        %6033 = vmatprep.subr.mxu0 0.0
        %6034 = vmatpush1.msra.mxu0 0.0
        %6035 = vmatprep.subr.mxu0 0.0
        %6036 = vmatpush1.msra.mxu0 0.0
        %6037 = vmatprep.subr.mxu0 0.0
        %6038 = vmatpush1.msra.mxu0 0.0
        %6039 = vmatprep.subr.mxu0 0.0
        %6040 = vmatpush1.msra.mxu0 0.0
        %6041 = vmatprep.subr.mxu0 0.0
        %6042 = vmatpush1.msra.mxu0 0.0
        %6043 = vmatprep.subr.mxu0 0.0
        %6044 = vmatpush1.msra.mxu0 0.0
        %6045 = vmatprep.subr.mxu0 0.0
        %6046 = vmatpush1.msra.mxu0 0.0
        %6047 = vmatprep.subr.mxu0 0.0
        %6048 = vmatpush1.msra.mxu0 0.0
        %6049 = vmatprep.subr.mxu0 0.0
        %6050 = vmatpush1.msra.mxu0 0.0
        %6051 = vmatprep.subr.mxu0 0.0
        %6052 = vmatpush1.msra.mxu0 0.0
        %6053 = vmatprep.subr.mxu0 0.0
        %6054 = vmatpush1.msra.mxu0 0.0
        %6055 = vmatprep.subr.mxu0 0.0
        %6056 = vmatpush1.msra.mxu0 0.0
        %6057 = vmatprep.mubr.f32.mxu0 0.0
        %6058 = vmatmul.mubr.f32.gmra.mrb[0].mxu0 %v5601
        %v6059 = vpop.f32.mrb[0].mxu0
        %v6060 = vadd.f32 0.0, %v6059
        %v6061 = vpop.f32.mrb[0].mxu0
        %6062 = vmatprep.mubr.f32.mxu0 0.0
        %6063 = vmatmul.mubr.f32.gmra.mrb[0].mxu0 %v5604
        %v6064 = vpop.f32.mrb[0].mxu0
        %v6065 = vadd.f32 0.0, %v6064
        %v6066 = vpop.f32.mrb[0].mxu0
        %6067 = vmatprep.mubr.f32.mxu0 0.0
        %6068 = vmatmul.mubr.f32.gmra.mrb[0].mxu0 %v5607
        %v6069 = vpop.f32.mrb[0].mxu0
        %v6070 = vadd.f32 0.0, %v6069
        %v6071 = vpop.f32.mrb[0].mxu0
        %6072 = vmatprep.mubr.f32.mxu0 0.0
        %6073 = vmatmul.mubr.f32.gmra.mrb[0].mxu0 %v5610
        %v6074 = vpop.f32.mrb[0].mxu0
        %v6075 = vadd.f32 0.0, %v6074
        %v6076 = vpop.f32.mrb[0].mxu0
        %6077 = vmatprep.mubr.f32.mxu0 0.0
        %6078 = vmatmul.mubr.f32.gmra.mrb[0].mxu0 %v5613
        %v6079 = vpop.f32.mrb[0].mxu0
        %v6080 = vadd.f32 0.0, %v6079
        %v6081 = vpop.f32.mrb[0].mxu0
        %6082 = vmatprep.mubr.f32.mxu0 0.0
        %6083 = vmatmul.mubr.f32.gmra.mrb[0].mxu0 %v5616
        %v6084 = vpop.f32.mrb[0].mxu0
        %v6085 = vadd.f32 0.0, %v6084
        %v6086 = vpop.f32.mrb[0].mxu0
        %6087 = vmatprep.mubr.f32.mxu0 0.0
        %6088 = vmatmul.mubr.f32.gmra.mrb[0].mxu0 %v5619
        %v6089 = vpop.f32.mrb[0].mxu0
        %v6090 = vadd.f32 0.0, %v6089
        %v6091 = vpop.f32.mrb[0].mxu0
        %6092 = vmatprep.mubr.f32.mxu0 0.0
        %6093 = vmatmul.mubr.f32.gmra.mrb[0].mxu0 %v5622
        %v6094 = vpop.f32.mrb[0].mxu0
        %v6095 = vadd.f32 0.0, %v6094
        %v6096 = vpop.f32.mrb[0].mxu0
        %6097 = vmatprep.mubr.f32.mxu0 0.0
        %6098 = vmatmul.mubr.f32.gmra.mrb[0].mxu0 %v5625
        %v6099 = vpop.f32.mrb[0].mxu0
        %v6100 = vadd.f32 0.0, %v6099
        %v6101 = vpop.f32.mrb[0].mxu0
        %6102 = vmatprep.mubr.f32.mxu0 0.0
        %6103 = vmatmul.mubr.f32.gmra.mrb[0].mxu0 %v5628
        %v6104 = vpop.f32.mrb[0].mxu0
        %v6105 = vadd.f32 0.0, %v6104
        %v6106 = vpop.f32.mrb[0].mxu0
        %6107 = vmatprep.mubr.f32.mxu0 0.0
        %6108 = vmatmul.mubr.f32.gmra.mrb[0].mxu0 %v5631
        %v6109 = vpop.f32.mrb[0].mxu0
        %v6110 = vadd.f32 0.0, %v6109
        %v6111 = vpop.f32.mrb[0].mxu0
        %6112 = vdwg.mxu0
        %6113 = vmatprep.subr.mxu0 0.0
        %6114 = vmatpush1.msra.mxu0 %v5542
        %6115 = vmatprep.subr.mxu0 0.0
        %6116 = vmatpush1.msra.mxu0 %v5547
        %6117 = vmatprep.subr.mxu0 0.0
        %6118 = vmatpush1.msra.mxu0 %v5552
        %6119 = vmatprep.subr.mxu0 0.0
        %6120 = vmatpush1.msra.mxu0 %v5557
        %6121 = vmatprep.subr.mxu0 0.0
        %6122 = vmatpush1.msra.mxu0 %v5562
        %6123 = vmatprep.subr.mxu0 0.0
        %6124 = vmatpush1.msra.mxu0 %v5567
        %6125 = vmatprep.subr.mxu0 0.0
        %6126 = vmatpush1.msra.mxu0 %v5572
        %6127 = vmatprep.subr.mxu0 0.0
        %6128 = vmatpush1.msra.mxu0 %v5577
        %6129 = vmatprep.subr.mxu0 0.0
        %6130 = vmatpush1.msra.mxu0 %v5582
        %6131 = vmatprep.subr.mxu0 0.0
        %6132 = vmatpush1.msra.mxu0 %v5587
        %6133 = vmatprep.subr.mxu0 0.0
        %6134 = vmatpush1.msra.mxu0 %v5592
        %6135 = vmatprep.subr.mxu0 0.0
        %6136 = vmatpush1.msra.mxu0 %v5597
        %6137 = vmatprep.subr.mxu0 0.0
        %6138 = vmatpush1.msra.mxu0 0.0
        %6139 = vmatprep.subr.mxu0 0.0
        %6140 = vmatpush1.msra.mxu0 0.0
        %6141 = vmatprep.subr.mxu0 0.0
        %6142 = vmatpush1.msra.mxu0 0.0
        %6143 = vmatprep.subr.mxu0 0.0
        %6144 = vmatpush1.msra.mxu0 0.0
        %6145 = vmatprep.subr.mxu0 0.0
        %6146 = vmatpush1.msra.mxu0 0.0
        %6147 = vmatprep.subr.mxu0 0.0
        %6148 = vmatpush1.msra.mxu0 0.0
        %6149 = vmatprep.subr.mxu0 0.0
        %6150 = vmatpush1.msra.mxu0 0.0
        %6151 = vmatprep.subr.mxu0 0.0
        %6152 = vmatpush1.msra.mxu0 0.0
        %6153 = vmatprep.subr.mxu0 0.0
        %6154 = vmatpush1.msra.mxu0 0.0
        %6155 = vmatprep.subr.mxu0 0.0
        %6156 = vmatpush1.msra.mxu0 0.0
        %6157 = vmatprep.subr.mxu0 0.0
        %6158 = vmatpush1.msra.mxu0 0.0
        %6159 = vmatprep.subr.mxu0 0.0
        %6160 = vmatpush1.msra.mxu0 0.0
        %6161 = vmatprep.subr.mxu0 0.0
        %6162 = vmatpush1.msra.mxu0 0.0
        %6163 = vmatprep.subr.mxu0 0.0
        %6164 = vmatpush1.msra.mxu0 0.0
        %6165 = vmatprep.subr.mxu0 0.0
        %6166 = vmatpush1.msra.mxu0 0.0
        %6167 = vmatprep.subr.mxu0 0.0
        %6168 = vmatpush1.msra.mxu0 0.0
        %6169 = vmatprep.subr.mxu0 0.0
        %6170 = vmatpush1.msra.mxu0 0.0
        %6171 = vmatprep.subr.mxu0 0.0
        %6172 = vmatpush1.msra.mxu0 0.0
        %6173 = vmatprep.subr.mxu0 0.0
        %6174 = vmatpush1.msra.mxu0 0.0
        %6175 = vmatprep.subr.mxu0 0.0
        %6176 = vmatpush1.msra.mxu0 0.0
        %6177 = vmatprep.mubr.f32.mxu0 0.0
        %6178 = vmatmul.mubr.f32.gmra.mrb[0].mxu0 %v5601
        %v6179 = vpop.f32.mrb[0].mxu0
        %v6180 = vadd.f32 0.0, %v6179
        %v6181 = vpop.f32.mrb[0].mxu0
        %6182 = vmatprep.mubr.f32.mxu0 0.0
        %6183 = vmatmul.mubr.f32.gmra.mrb[0].mxu0 %v5604
        %v6184 = vpop.f32.mrb[0].mxu0
        %v6185 = vadd.f32 0.0, %v6184
        %v6186 = vpop.f32.mrb[0].mxu0
        %6187 = vmatprep.mubr.f32.mxu0 0.0
        %6188 = vmatmul.mubr.f32.gmra.mrb[0].mxu0 %v5607
        %v6189 = vpop.f32.mrb[0].mxu0
        %v6190 = vadd.f32 0.0, %v6189
        %v6191 = vpop.f32.mrb[0].mxu0
        %6192 = vmatprep.mubr.f32.mxu0 0.0
        %6193 = vmatmul.mubr.f32.gmra.mrb[0].mxu0 %v5610
        %v6194 = vpop.f32.mrb[0].mxu0
        %v6195 = vadd.f32 0.0, %v6194
        %v6196 = vpop.f32.mrb[0].mxu0
        %6197 = vmatprep.mubr.f32.mxu0 0.0
        %6198 = vmatmul.mubr.f32.gmra.mrb[0].mxu0 %v5613
        %v6199 = vpop.f32.mrb[0].mxu0
        %v6200 = vadd.f32 0.0, %v6199
        %v6201 = vpop.f32.mrb[0].mxu0
        %6202 = vmatprep.mubr.f32.mxu0 0.0
        %6203 = vmatmul.mubr.f32.gmra.mrb[0].mxu0 %v5616
        %v6204 = vpop.f32.mrb[0].mxu0
        %v6205 = vadd.f32 0.0, %v6204
        %v6206 = vpop.f32.mrb[0].mxu0
        %6207 = vmatprep.mubr.f32.mxu0 0.0
        %6208 = vmatmul.mubr.f32.gmra.mrb[0].mxu0 %v5619
        %v6209 = vpop.f32.mrb[0].mxu0
        %v6210 = vadd.f32 0.0, %v6209
        %v6211 = vpop.f32.mrb[0].mxu0
        %6212 = vmatprep.mubr.f32.mxu0 0.0
        %6213 = vmatmul.mubr.f32.gmra.mrb[0].mxu0 %v5622
        %v6214 = vpop.f32.mrb[0].mxu0
        %v6215 = vadd.f32 0.0, %v6214
        %v6216 = vpop.f32.mrb[0].mxu0
        %6217 = vmatprep.mubr.f32.mxu0 0.0
        %6218 = vmatmul.mubr.f32.gmra.mrb[0].mxu0 %v5625
        %v6219 = vpop.f32.mrb[0].mxu0
        %v6220 = vadd.f32 0.0, %v6219
        %v6221 = vpop.f32.mrb[0].mxu0
        %6222 = vmatprep.mubr.f32.mxu0 0.0
        %6223 = vmatmul.mubr.f32.gmra.mrb[0].mxu0 %v5628
        %v6224 = vpop.f32.mrb[0].mxu0
        %v6225 = vadd.f32 0.0, %v6224
        %v6226 = vpop.f32.mrb[0].mxu0
        %6227 = vmatprep.mubr.f32.mxu0 0.0
        %6228 = vmatmul.mubr.f32.gmra.mrb[0].mxu0 %v5631
        %v6229 = vpop.f32.mrb[0].mxu0
        %v6230 = vadd.f32 0.0, %v6229
        %v6231 = vpop.f32.mrb[0].mxu0
        %6232 = vdwg.mxu0
        %v6233 = vmul.f32 %v5700, %v5700
        %v6234 = vmul.f32 %v5705, %v5705
        %v6235 = vmul.f32 %v5710, %v5710
        %v6236 = vmul.f32 %v5715, %v5715
        %v6237 = vmul.f32 %v5720, %v5720
        %v6238 = vmul.f32 %v5725, %v5725
        %v6239 = vmul.f32 %v5730, %v5730
        %v6240 = vmul.f32 %v5735, %v5735
        %v6241 = vmul.f32 %v5740, %v5740
        %v6242 = vmul.f32 %v5745, %v5745
        %v6243 = vmul.f32 %v5750, %v5750
        %v6244 = vmul.f32 %v5820, %v5820
        %v6245 = vmul.f32 %v5825, %v5825
        %v6246 = vmul.f32 %v5830, %v5830
        %v6247 = vmul.f32 %v5835, %v5835
        %v6248 = vmul.f32 %v5840, %v5840
        %v6249 = vmul.f32 %v5845, %v5845
        %v6250 = vmul.f32 %v5850, %v5850
        %v6251 = vmul.f32 %v5855, %v5855
        %v6252 = vmul.f32 %v5860, %v5860
        %v6253 = vmul.f32 %v5865, %v5865
        %v6254 = vmul.f32 %v5870, %v5870
        %v6255 = vmul.f32 %v5700, %v5820
        %v6256 = vmul.f32 %v5705, %v5825
        %v6257 = vmul.f32 %v5710, %v5830
        %v6258 = vmul.f32 %v5715, %v5835
        %v6259 = vmul.f32 %v5720, %v5840
        %v6260 = vmul.f32 %v5725, %v5845
        %v6261 = vmul.f32 %v5730, %v5850
        %v6262 = vmul.f32 %v5735, %v5855
        %v6263 = vmul.f32 %v5740, %v5860
        %v6264 = vmul.f32 %v5745, %v5865
        %v6265 = vmul.f32 %v5750, %v5870
        %v6266 = vsub.f32 %v5940, %v6233
        %v6267 = vsub.f32 %v5945, %v6234
        %v6268 = vsub.f32 %v5950, %v6235
        %v6269 = vsub.f32 %v5955, %v6236
        %v6270 = vsub.f32 %v5960, %v6237
        %v6271 = vsub.f32 %v5965, %v6238
        %v6272 = vsub.f32 %v5970, %v6239
        %v6273 = vsub.f32 %v5975, %v6240
        %v6274 = vsub.f32 %v5980, %v6241
        %v6275 = vsub.f32 %v5985, %v6242
        %v6276 = vsub.f32 %v5990, %v6243
        %v6277 = vsub.f32 %v6060, %v6244
        %v6278 = vsub.f32 %v6065, %v6245
        %v6279 = vsub.f32 %v6070, %v6246
        %v6280 = vsub.f32 %v6075, %v6247
        %v6281 = vsub.f32 %v6080, %v6248
        %v6282 = vsub.f32 %v6085, %v6249
        %v6283 = vsub.f32 %v6090, %v6250
        %v6284 = vsub.f32 %v6095, %v6251
        %v6285 = vsub.f32 %v6100, %v6252
        %v6286 = vsub.f32 %v6105, %v6253
        %v6287 = vsub.f32 %v6110, %v6254
        %v6288 = vsub.f32 %v6180, %v6255
        %v6289 = vsub.f32 %v6185, %v6256
        %v6290 = vsub.f32 %v6190, %v6257
        %v6291 = vsub.f32 %v6195, %v6258
        %v6292 = vsub.f32 %v6200, %v6259
        %v6293 = vsub.f32 %v6205, %v6260
        %v6294 = vsub.f32 %v6210, %v6261
        %v6295 = vsub.f32 %v6215, %v6262
        %v6296 = vsub.f32 %v6220, %v6263
        %v6297 = vsub.f32 %v6225, %v6264
        %v6298 = vsub.f32 %v6230, %v6265
        %v6299 = vmul.f32 %v6288, 2.0
        %v6300 = vmul.f32 %v6289, 2.0
        %v6301 = vmul.f32 %v6290, 2.0
        %v6302 = vmul.f32 %v6291, 2.0
        %v6303 = vmul.f32 %v6292, 2.0
        %v6304 = vmul.f32 %v6293, 2.0
        %v6305 = vmul.f32 %v6294, 2.0
        %v6306 = vmul.f32 %v6295, 2.0
        %v6307 = vmul.f32 %v6296, 2.0
        %v6308 = vmul.f32 %v6297, 2.0
        %v6309 = vmul.f32 %v6298, 2.0
        %v6310 = vadd.f32 %v6299, 0.0009
        %v6311 = vadd.f32 %v6300, 0.0009
        %v6312 = vadd.f32 %v6301, 0.0009
        %v6313 = vadd.f32 %v6302, 0.0009
        %v6314 = vadd.f32 %v6303, 0.0009
        %v6315 = vadd.f32 %v6304, 0.0009
        %v6316 = vadd.f32 %v6305, 0.0009
        %v6317 = vadd.f32 %v6306, 0.0009
        %v6318 = vadd.f32 %v6307, 0.0009
        %v6319 = vadd.f32 %v6308, 0.0009
        %v6320 = vadd.f32 %v6309, 0.0009
        %v6321 = vadd.f32 %v6266, %v6277
        %v6322 = vadd.f32 %v6267, %v6278
        %v6323 = vadd.f32 %v6268, %v6279
        %v6324 = vadd.f32 %v6269, %v6280
        %v6325 = vadd.f32 %v6270, %v6281
        %v6326 = vadd.f32 %v6271, %v6282
        %v6327 = vadd.f32 %v6272, %v6283
        %v6328 = vadd.f32 %v6273, %v6284
        %v6329 = vadd.f32 %v6274, %v6285
        %v6330 = vadd.f32 %v6275, %v6286
        %v6331 = vadd.f32 %v6276, %v6287
        %v6332 = vadd.f32 %v6321, 0.0009
        %v6333 = vadd.f32 %v6322, 0.0009
        %v6334 = vadd.f32 %v6323, 0.0009
        %v6335 = vadd.f32 %v6324, 0.0009
        %v6336 = vadd.f32 %v6325, 0.0009
        %v6337 = vadd.f32 %v6326, 0.0009
        %v6338 = vadd.f32 %v6327, 0.0009
        %v6339 = vadd.f32 %v6328, 0.0009
        %v6340 = vadd.f32 %v6329, 0.0009
        %v6341 = vadd.f32 %v6330, 0.0009
        %v6342 = vadd.f32 %v6331, 0.0009
        %v6343 = vrcp.pop %v6332
        %v6344 = vmul.f32 %v6310, %v6343
        %v6345 = vrcp.pop %v6333
        %v6346 = vmul.f32 %v6311, %v6345
        %v6347 = vrcp.pop %v6334
        %v6348 = vmul.f32 %v6312, %v6347
        %v6349 = vrcp.pop %v6335
        %v6350 = vmul.f32 %v6313, %v6349
        %v6351 = vrcp.pop %v6336
        %v6352 = vmul.f32 %v6314, %v6351
        %v6353 = vrcp.pop %v6337
        %v6354 = vmul.f32 %v6315, %v6353
        %v6355 = vrcp.pop %v6338
        %v6356 = vmul.f32 %v6316, %v6355
        %v6357 = vrcp.pop %v6339
        %v6358 = vmul.f32 %v6317, %v6357
        %v6359 = vrcp.pop %v6340
        %v6360 = vmul.f32 %v6318, %v6359
        %v6361 = vrcp.pop %v6341
        %v6362 = vmul.f32 %v6319, %v6361
        %v6363 = vrcp.pop %v6342
        %v6364 = vmul.f32 %v6320, %v6363
        %vm6365 = vcmask 703488
        %v6366 = vsel %vm6365, %v6344, 0.0
        %v6367 = vsel %vm6365, %v6346, 0.0
        %v6368 = vadd.f32 %v6366, %v6367
        %v6369 = vsel %vm6365, %v6348, 0.0
        %v6370 = vadd.f32 %v6368, %v6369
        %v6371 = vsel %vm6365, %v6350, 0.0
        %v6372 = vadd.f32 %v6370, %v6371
        %v6373 = vsel %vm6365, %v6352, 0.0
        %v6374 = vadd.f32 %v6372, %v6373
        %v6375 = vsel %vm6365, %v6354, 0.0
        %v6376 = vadd.f32 %v6374, %v6375
        %v6377 = vsel %vm6365, %v6356, 0.0
        %v6378 = vadd.f32 %v6376, %v6377
        %v6379 = vsel %vm6365, %v6358, 0.0
        %v6380 = vadd.f32 %v6378, %v6379
        %v6381 = vsel %vm6365, %v6360, 0.0
        %v6382 = vadd.f32 %v6380, %v6381
        %v6383 = vsel %vm6365, %v6362, 0.0
        %v6384 = vadd.f32 %v6382, %v6383
        %vm6385 = vcmask 701440
        %v6386 = vsel %vm6385, %v6364, 0.0
        %v6387 = vadd.f32 %v6384, %v6386
        %6388 = vadd.xlane.f32.xlu0 %v6387
        %v6389 = vpop.xlane.xlu0 %6388
        %v6390 = vrot.slane %v6389, 4
        %v6391 = vadd.f32 %v6389, %v6390
        %v6392 = vrot.slane %v6391, 2
        %v6393 = vadd.f32 %v6391, %v6392
        %v6394 = vrot.slane %v6393, 1
        %v6395 = vadd.f32 %v6393, %v6394
        %s6396 = vtos %v6395
        %v6397 = vrcp.pop 7396.0
        %s6398 = vtos %v6397
        %s6399 = smul.f32 %s6396, %s6398
        %v6400 = vld [vmem:[#allocation22] sm:$0xff]
        %v6401 = vld [vmem:[#allocation22 + $0x8] sm:$0xff]
        %v6402 = vld [vmem:[#allocation22 + $0x10] sm:$0xff]
        %v6403 = vld [vmem:[#allocation22 + $0x18] sm:$0xff]
        %v6404 = vld [vmem:[#allocation22 + $0x20] sm:$0xff]
        %v6405 = vld [vmem:[#allocation22 + $0x28] sm:$0xff]
        %v6406 = vld [vmem:[#allocation22 + $0x30] sm:$0xff]
        %v6407 = vld [vmem:[#allocation22 + $0x38] sm:$0xff]
        %v6408 = vld [vmem:[#allocation22 + $0x40] sm:$0xff]
        %v6409 = vld [vmem:[#allocation22 + $0x48] sm:$0xff]
        %v6410 = vld [vmem:[#allocation22 + $0x50] sm:$0xff]
        %v6411 = vld [vmem:[#allocation22 + $0x58] sm:$0xff]
        %v6412 = vld [vmem:[#allocation28] sm:$0xff]
        %v6413 = vld [vmem:[#allocation28 + $0x8] sm:$0xff]
        %v6414 = vld [vmem:[#allocation28 + $0x10] sm:$0xff]
        %v6415 = vld [vmem:[#allocation28 + $0x18] sm:$0xff]
        %v6416 = vld [vmem:[#allocation28 + $0x20] sm:$0xff]
        %v6417 = vld [vmem:[#allocation28 + $0x28] sm:$0xff]
        %6418 = vmatprep.subr.mxu0 0.0
        %6419 = vmatpush1.msra.mxu0 %v6400
        %6420 = vmatprep.subr.mxu0 0.0
        %6421 = vmatpush1.msra.mxu0 %v6401
        %6422 = vmatprep.subr.mxu0 0.0
        %6423 = vmatpush1.msra.mxu0 %v6402
        %6424 = vmatprep.subr.mxu0 0.0
        %6425 = vmatpush1.msra.mxu0 %v6403
        %6426 = vmatprep.subr.mxu0 0.0
        %6427 = vmatpush1.msra.mxu0 %v6404
        %6428 = vmatprep.subr.mxu0 0.0
        %6429 = vmatpush1.msra.mxu0 %v6405
        %6430 = vmatprep.subr.mxu0 0.0
        %6431 = vmatpush1.msra.mxu0 %v6406
        %6432 = vmatprep.subr.mxu0 0.0
        %6433 = vmatpush1.msra.mxu0 %v6407
        %6434 = vmatprep.subr.mxu0 0.0
        %6435 = vmatpush1.msra.mxu0 %v6408
        %6436 = vmatprep.subr.mxu0 0.0
        %6437 = vmatpush1.msra.mxu0 %v6409
        %6438 = vmatprep.subr.mxu0 0.0
        %6439 = vmatpush1.msra.mxu0 %v6410
        %6440 = vmatprep.subr.mxu0 0.0
        %6441 = vmatpush1.msra.mxu0 %v6411
        %6442 = vmatprep.subr.mxu0 0.0
        %6443 = vmatpush1.msra.mxu0 0.0
        %6444 = vmatprep.subr.mxu0 0.0
        %6445 = vmatpush1.msra.mxu0 0.0
        %6446 = vmatprep.subr.mxu0 0.0
        %6447 = vmatpush1.msra.mxu0 0.0
        %6448 = vmatprep.subr.mxu0 0.0
        %6449 = vmatpush1.msra.mxu0 0.0
        %6450 = vmatprep.subr.mxu0 0.0
        %6451 = vmatpush1.msra.mxu0 0.0
        %6452 = vmatprep.subr.mxu0 0.0
        %6453 = vmatpush1.msra.mxu0 0.0
        %6454 = vmatprep.subr.mxu0 0.0
        %6455 = vmatpush1.msra.mxu0 0.0
        %6456 = vmatprep.subr.mxu0 0.0
        %6457 = vmatpush1.msra.mxu0 0.0
        %6458 = vmatprep.subr.mxu0 0.0
        %6459 = vmatpush1.msra.mxu0 0.0
        %6460 = vmatprep.subr.mxu0 0.0
        %6461 = vmatpush1.msra.mxu0 0.0
        %6462 = vmatprep.subr.mxu0 0.0
        %6463 = vmatpush1.msra.mxu0 0.0
        %6464 = vmatprep.subr.mxu0 0.0
        %6465 = vmatpush1.msra.mxu0 0.0
        %6466 = vmatprep.subr.mxu0 0.0
        %6467 = vmatpush1.msra.mxu0 0.0
        %6468 = vmatprep.subr.mxu0 0.0
        %6469 = vmatpush1.msra.mxu0 0.0
        %6470 = vmatprep.subr.mxu0 0.0
        %6471 = vmatpush1.msra.mxu0 0.0
        %6472 = vmatprep.subr.mxu0 0.0
        %6473 = vmatpush1.msra.mxu0 0.0
        %6474 = vmatprep.subr.mxu0 0.0
        %6475 = vmatpush1.msra.mxu0 0.0
        %6476 = vmatprep.subr.mxu0 0.0
        %6477 = vmatpush1.msra.mxu0 0.0
        %6478 = vmatprep.subr.mxu0 0.0
        %6479 = vmatpush1.msra.mxu0 0.0
        %6480 = vmatprep.subr.mxu0 0.0
        %6481 = vmatpush1.msra.mxu0 0.0
        %6482 = vmatprep.mubr.f32.mxu0 0.0
        %6483 = vmatmul.mubr.f32.gmra.mrb[0].mxu0 %v5056
        %v6484 = vpop.f32.mrb[0].mxu0
        %v6485 = vadd.f32 0.0, %v6484
        %v6486 = vpop.f32.mrb[0].mxu0
        %6487 = vmatprep.mubr.f32.mxu0 0.0
        %6488 = vmatmul.mubr.f32.gmra.mrb[0].mxu0 %v5059
        %v6489 = vpop.f32.mrb[0].mxu0
        %v6490 = vadd.f32 0.0, %v6489
        %v6491 = vpop.f32.mrb[0].mxu0
        %6492 = vmatprep.mubr.f32.mxu0 0.0
        %6493 = vmatmul.mubr.f32.gmra.mrb[0].mxu0 %v5062
        %v6494 = vpop.f32.mrb[0].mxu0
        %v6495 = vadd.f32 0.0, %v6494
        %v6496 = vpop.f32.mrb[0].mxu0
        %6497 = vmatprep.mubr.f32.mxu0 0.0
        %6498 = vmatmul.mubr.f32.gmra.mrb[0].mxu0 %v5065
        %v6499 = vpop.f32.mrb[0].mxu0
        %v6500 = vadd.f32 0.0, %v6499
        %v6501 = vpop.f32.mrb[0].mxu0
        %6502 = vmatprep.mubr.f32.mxu0 0.0
        %6503 = vmatmul.mubr.f32.gmra.mrb[0].mxu0 %v5068
        %v6504 = vpop.f32.mrb[0].mxu0
        %v6505 = vadd.f32 0.0, %v6504
        %v6506 = vpop.f32.mrb[0].mxu0
        %6507 = vmatprep.mubr.f32.mxu0 0.0
        %6508 = vmatmul.mubr.f32.gmra.mrb[0].mxu0 %v5071
        %v6509 = vpop.f32.mrb[0].mxu0
        %v6510 = vadd.f32 0.0, %v6509
        %v6511 = vpop.f32.mrb[0].mxu0
        %6512 = vmatprep.mubr.f32.mxu0 0.0
        %6513 = vmatmul.mubr.f32.gmra.mrb[0].mxu0 %v5074
        %v6514 = vpop.f32.mrb[0].mxu0
        %v6515 = vadd.f32 0.0, %v6514
        %v6516 = vpop.f32.mrb[0].mxu0
        %6517 = vmatprep.mubr.f32.mxu0 0.0
        %6518 = vmatmul.mubr.f32.gmra.mrb[0].mxu0 %v5077
        %v6519 = vpop.f32.mrb[0].mxu0
        %v6520 = vadd.f32 0.0, %v6519
        %v6521 = vpop.f32.mrb[0].mxu0
        %6522 = vmatprep.mubr.f32.mxu0 0.0
        %6523 = vmatmul.mubr.f32.gmra.mrb[0].mxu0 %v5080
        %v6524 = vpop.f32.mrb[0].mxu0
        %v6525 = vadd.f32 0.0, %v6524
        %v6526 = vpop.f32.mrb[0].mxu0
        %6527 = vmatprep.mubr.f32.mxu0 0.0
        %6528 = vmatmul.mubr.f32.gmra.mrb[0].mxu0 %v5083
        %v6529 = vpop.f32.mrb[0].mxu0
        %v6530 = vadd.f32 0.0, %v6529
        %v6531 = vpop.f32.mrb[0].mxu0
        %6532 = vmatprep.mubr.f32.mxu0 0.0
        %6533 = vmatmul.mubr.f32.gmra.mrb[0].mxu0 %v5086
        %v6534 = vpop.f32.mrb[0].mxu0
        %v6535 = vadd.f32 0.0, %v6534
        %v6536 = vpop.f32.mrb[0].mxu0
        %6537 = vmatprep.mubr.f32.mxu0 0.0
        %6538 = vmatmul.mubr.f32.gmra.mrb[0].mxu0 %v5089
        %v6539 = vpop.f32.mrb[0].mxu0
        %v6540 = vadd.f32 0.0, %v6539
        %v6541 = vpop.f32.mrb[0].mxu0
        %6542 = vmatprep.mubr.f32.mxu0 0.0
        %6543 = vmatmul.mubr.f32.gmra.mrb[0].mxu0 %v5092
        %v6544 = vpop.f32.mrb[0].mxu0
        %v6545 = vadd.f32 0.0, %v6544
        %v6546 = vpop.f32.mrb[0].mxu0
        %6547 = vmatprep.mubr.f32.mxu0 0.0
        %6548 = vmatmul.mubr.f32.gmra.mrb[0].mxu0 %v5095
        %v6549 = vpop.f32.mrb[0].mxu0
        %v6550 = vadd.f32 0.0, %v6549
        %v6551 = vpop.f32.mrb[0].mxu0
        %6552 = vmatprep.mubr.f32.mxu0 0.0
        %6553 = vmatmul.mubr.f32.gmra.mrb[0].mxu0 %v5098
        %v6554 = vpop.f32.mrb[0].mxu0
        %v6555 = vadd.f32 0.0, %v6554
        %v6556 = vpop.f32.mrb[0].mxu0
        %6557 = vmatprep.mubr.f32.mxu0 0.0
        %6558 = vmatmul.mubr.f32.gmra.mrb[0].mxu0 %v5101
        %v6559 = vpop.f32.mrb[0].mxu0
        %v6560 = vadd.f32 0.0, %v6559
        %v6561 = vpop.f32.mrb[0].mxu0
        %6562 = vmatprep.mubr.f32.mxu0 0.0
        %6563 = vmatmul.mubr.f32.gmra.mrb[0].mxu0 %v5104
        %v6564 = vpop.f32.mrb[0].mxu0
        %v6565 = vadd.f32 0.0, %v6564
        %v6566 = vpop.f32.mrb[0].mxu0
        %6567 = vmatprep.mubr.f32.mxu0 0.0
        %6568 = vmatmul.mubr.f32.gmra.mrb[0].mxu0 %v5107
        %v6569 = vpop.f32.mrb[0].mxu0
        %v6570 = vadd.f32 0.0, %v6569
        %v6571 = vpop.f32.mrb[0].mxu0
        %6572 = vmatprep.mubr.f32.mxu0 0.0
        %6573 = vmatmul.mubr.f32.gmra.mrb[0].mxu0 %v5110
        %v6574 = vpop.f32.mrb[0].mxu0
        %v6575 = vadd.f32 0.0, %v6574
        %v6576 = vpop.f32.mrb[0].mxu0
        %6577 = vmatprep.mubr.f32.mxu0 0.0
        %6578 = vmatmul.mubr.f32.gmra.mrb[0].mxu0 %v5113
        %v6579 = vpop.f32.mrb[0].mxu0
        %v6580 = vadd.f32 0.0, %v6579
        %v6581 = vpop.f32.mrb[0].mxu0
        %6582 = vmatprep.mubr.f32.mxu0 0.0
        %6583 = vmatmul.mubr.f32.gmra.mrb[0].mxu0 %v5116
        %v6584 = vpop.f32.mrb[0].mxu0
        %v6585 = vadd.f32 0.0, %v6584
        %v6586 = vpop.f32.mrb[0].mxu0
        %6587 = vmatprep.mubr.f32.mxu0 0.0
        %6588 = vmatmul.mubr.f32.gmra.mrb[0].mxu0 %v5119
        %v6589 = vpop.f32.mrb[0].mxu0
        %v6590 = vadd.f32 0.0, %v6589
        %v6591 = vpop.f32.mrb[0].mxu0
        %6592 = vmatprep.mubr.f32.mxu0 0.0
        %6593 = vmatmul.mubr.f32.gmra.mrb[0].mxu0 %v5122
        %v6594 = vpop.f32.mrb[0].mxu0
        %v6595 = vadd.f32 0.0, %v6594
        %v6596 = vpop.f32.mrb[0].mxu0
        %6597 = vmatprep.mubr.f32.mxu0 0.0
        %6598 = vmatmul.mubr.f32.gmra.mrb[0].mxu0 %v5125
        %v6599 = vpop.f32.mrb[0].mxu0
        %v6600 = vadd.f32 0.0, %v6599
        %v6601 = vpop.f32.mrb[0].mxu0
        %6602 = vdwg.mxu0
        %v6604 = vsel %vm5054, %v6412, 0
        %v6607 = vsel %vm5054, %v6413, 0
        %v6610 = vsel %vm5054, %v6414, 0
        %v6613 = vsel %vm5054, %v6415, 0
        %v6616 = vsel %vm5054, %v6416, 0
        %v6619 = vsel %vm5054, %v6417, 0
        %6621 = vmatprep.subr.mxu0 0.0
        %6622 = vmatpush1.msra.mxu0 %v6485
        %6623 = vmatprep.subr.mxu0 0.0
        %6624 = vmatpush1.msra.mxu0 %v6490
        %6625 = vmatprep.subr.mxu0 0.0
        %6626 = vmatpush1.msra.mxu0 %v6495
        %6627 = vmatprep.subr.mxu0 0.0
        %6628 = vmatpush1.msra.mxu0 %v6500
        %6629 = vmatprep.subr.mxu0 0.0
        %6630 = vmatpush1.msra.mxu0 %v6505
        %6631 = vmatprep.subr.mxu0 0.0
        %6632 = vmatpush1.msra.mxu0 %v6510
        %6633 = vmatprep.subr.mxu0 0.0
        %6634 = vmatpush1.msra.mxu0 %v6515
        %6635 = vmatprep.subr.mxu0 0.0
        %6636 = vmatpush1.msra.mxu0 %v6520
        %6637 = vmatprep.subr.mxu0 0.0
        %6638 = vmatpush1.msra.mxu0 %v6525
        %6639 = vmatprep.subr.mxu0 0.0
        %6640 = vmatpush1.msra.mxu0 %v6530
        %6641 = vmatprep.subr.mxu0 0.0
        %6642 = vmatpush1.msra.mxu0 %v6535
        %6643 = vmatprep.subr.mxu0 0.0
        %6644 = vmatpush1.msra.mxu0 %v6540
        %6645 = vmatprep.subr.mxu0 0.0
        %6646 = vmatpush1.msra.mxu0 0.0
        %6647 = vmatprep.subr.mxu0 0.0
        %6648 = vmatpush1.msra.mxu0 0.0
        %6649 = vmatprep.subr.mxu0 0.0
        %6650 = vmatpush1.msra.mxu0 0.0
        %6651 = vmatprep.subr.mxu0 0.0
        %6652 = vmatpush1.msra.mxu0 0.0
        %6653 = vmatprep.subr.mxu0 0.0
        %6654 = vmatpush1.msra.mxu0 0.0
        %6655 = vmatprep.subr.mxu0 0.0
        %6656 = vmatpush1.msra.mxu0 0.0
        %6657 = vmatprep.subr.mxu0 0.0
        %6658 = vmatpush1.msra.mxu0 0.0
        %6659 = vmatprep.subr.mxu0 0.0
        %6660 = vmatpush1.msra.mxu0 0.0
        %6661 = vmatprep.subr.mxu0 0.0
        %6662 = vmatpush1.msra.mxu0 0.0
        %6663 = vmatprep.subr.mxu0 0.0
        %6664 = vmatpush1.msra.mxu0 0.0
        %6665 = vmatprep.subr.mxu0 0.0
        %6666 = vmatpush1.msra.mxu0 0.0
        %6667 = vmatprep.subr.mxu0 0.0
        %6668 = vmatpush1.msra.mxu0 0.0
        %6669 = vmatprep.subr.mxu0 0.0
        %6670 = vmatpush1.msra.mxu0 0.0
        %6671 = vmatprep.subr.mxu0 0.0
        %6672 = vmatpush1.msra.mxu0 0.0
        %6673 = vmatprep.subr.mxu0 0.0
        %6674 = vmatpush1.msra.mxu0 0.0
        %6675 = vmatprep.subr.mxu0 0.0
        %6676 = vmatpush1.msra.mxu0 0.0
        %6677 = vmatprep.subr.mxu0 0.0
        %6678 = vmatpush1.msra.mxu0 0.0
        %6679 = vmatprep.subr.mxu0 0.0
        %6680 = vmatpush1.msra.mxu0 0.0
        %6681 = vmatprep.subr.mxu0 0.0
        %6682 = vmatpush1.msra.mxu0 0.0
        %6683 = vmatprep.subr.mxu0 0.0
        %6684 = vmatpush1.msra.mxu0 0.0
        %6685 = vmatprep.mubr.f32.mxu0 0.0
        %6686 = vmatmul.mubr.f32.gmra.mrb[0].mxu0 %v6604
        %v6687 = vpop.f32.mrb[0].mxu0
        %v6688 = vadd.f32 0.0, %v6687
        %v6689 = vpop.f32.mrb[0].mxu0
        %6690 = vmatprep.mubr.f32.mxu0 0.0
        %6691 = vmatmul.mubr.f32.gmra.mrb[0].mxu0 %v6607
        %v6692 = vpop.f32.mrb[0].mxu0
        %v6693 = vadd.f32 0.0, %v6692
        %v6694 = vpop.f32.mrb[0].mxu0
        %6695 = vmatprep.mubr.f32.mxu0 0.0
        %6696 = vmatmul.mubr.f32.gmra.mrb[0].mxu0 %v6610
        %v6697 = vpop.f32.mrb[0].mxu0
        %v6698 = vadd.f32 0.0, %v6697
        %v6699 = vpop.f32.mrb[0].mxu0
        %6700 = vmatprep.mubr.f32.mxu0 0.0
        %6701 = vmatmul.mubr.f32.gmra.mrb[0].mxu0 %v6613
        %v6702 = vpop.f32.mrb[0].mxu0
        %v6703 = vadd.f32 0.0, %v6702
        %v6704 = vpop.f32.mrb[0].mxu0
        %6705 = vmatprep.mubr.f32.mxu0 0.0
        %6706 = vmatmul.mubr.f32.gmra.mrb[0].mxu0 %v6616
        %v6707 = vpop.f32.mrb[0].mxu0
        %v6708 = vadd.f32 0.0, %v6707
        %v6709 = vpop.f32.mrb[0].mxu0
        %6710 = vmatprep.mubr.f32.mxu0 0.0
        %6711 = vmatmul.mubr.f32.gmra.mrb[0].mxu0 %v6619
        %v6712 = vpop.f32.mrb[0].mxu0
        %v6713 = vadd.f32 0.0, %v6712
        %v6714 = vpop.f32.mrb[0].mxu0
        %6715 = vdwg.mxu0
        %6716 = vmatprep.subr.mxu0 0.0
        %6717 = vmatpush1.msra.mxu0 %v6545
        %6718 = vmatprep.subr.mxu0 0.0
        %6719 = vmatpush1.msra.mxu0 %v6550
        %6720 = vmatprep.subr.mxu0 0.0
        %6721 = vmatpush1.msra.mxu0 %v6555
        %6722 = vmatprep.subr.mxu0 0.0
        %6723 = vmatpush1.msra.mxu0 %v6560
        %6724 = vmatprep.subr.mxu0 0.0
        %6725 = vmatpush1.msra.mxu0 %v6565
        %6726 = vmatprep.subr.mxu0 0.0
        %6727 = vmatpush1.msra.mxu0 %v6570
        %6728 = vmatprep.subr.mxu0 0.0
        %6729 = vmatpush1.msra.mxu0 %v6575
        %6730 = vmatprep.subr.mxu0 0.0
        %6731 = vmatpush1.msra.mxu0 %v6580
        %6732 = vmatprep.subr.mxu0 0.0
        %6733 = vmatpush1.msra.mxu0 %v6585
        %6734 = vmatprep.subr.mxu0 0.0
        %6735 = vmatpush1.msra.mxu0 %v6590
        %6736 = vmatprep.subr.mxu0 0.0
        %6737 = vmatpush1.msra.mxu0 %v6595
        %6738 = vmatprep.subr.mxu0 0.0
        %6739 = vmatpush1.msra.mxu0 %v6600
        %6740 = vmatprep.subr.mxu0 0.0
        %6741 = vmatpush1.msra.mxu0 0.0
        %6742 = vmatprep.subr.mxu0 0.0
        %6743 = vmatpush1.msra.mxu0 0.0
        %6744 = vmatprep.subr.mxu0 0.0
        %6745 = vmatpush1.msra.mxu0 0.0
        %6746 = vmatprep.subr.mxu0 0.0
        %6747 = vmatpush1.msra.mxu0 0.0
        %6748 = vmatprep.subr.mxu0 0.0
        %6749 = vmatpush1.msra.mxu0 0.0
        %6750 = vmatprep.subr.mxu0 0.0
        %6751 = vmatpush1.msra.mxu0 0.0
        %6752 = vmatprep.subr.mxu0 0.0
        %6753 = vmatpush1.msra.mxu0 0.0
        %6754 = vmatprep.subr.mxu0 0.0
        %6755 = vmatpush1.msra.mxu0 0.0
        %6756 = vmatprep.subr.mxu0 0.0
        %6757 = vmatpush1.msra.mxu0 0.0
        %6758 = vmatprep.subr.mxu0 0.0
        %6759 = vmatpush1.msra.mxu0 0.0
        %6760 = vmatprep.subr.mxu0 0.0
        %6761 = vmatpush1.msra.mxu0 0.0
        %6762 = vmatprep.subr.mxu0 0.0
        %6763 = vmatpush1.msra.mxu0 0.0
        %6764 = vmatprep.subr.mxu0 0.0
        %6765 = vmatpush1.msra.mxu0 0.0
        %6766 = vmatprep.subr.mxu0 0.0
        %6767 = vmatpush1.msra.mxu0 0.0
        %6768 = vmatprep.subr.mxu0 0.0
        %6769 = vmatpush1.msra.mxu0 0.0
        %6770 = vmatprep.subr.mxu0 0.0
        %6771 = vmatpush1.msra.mxu0 0.0
        %6772 = vmatprep.subr.mxu0 0.0
        %6773 = vmatpush1.msra.mxu0 0.0
        %6774 = vmatprep.subr.mxu0 0.0
        %6775 = vmatpush1.msra.mxu0 0.0
        %6776 = vmatprep.subr.mxu0 0.0
        %6777 = vmatpush1.msra.mxu0 0.0
        %6778 = vmatprep.subr.mxu0 0.0
        %6779 = vmatpush1.msra.mxu0 0.0
        %6780 = vmatprep.mubr.f32.mxu0 0.0
        %6781 = vmatmul.mubr.f32.gmra.mrb[0].mxu0 %v6604
        %v6782 = vpop.f32.mrb[0].mxu0
        %v6783 = vadd.f32 0.0, %v6782
        %v6784 = vpop.f32.mrb[0].mxu0
        %6785 = vmatprep.mubr.f32.mxu0 0.0
        %6786 = vmatmul.mubr.f32.gmra.mrb[0].mxu0 %v6607
        %v6787 = vpop.f32.mrb[0].mxu0
        %v6788 = vadd.f32 0.0, %v6787
        %v6789 = vpop.f32.mrb[0].mxu0
        %6790 = vmatprep.mubr.f32.mxu0 0.0
        %6791 = vmatmul.mubr.f32.gmra.mrb[0].mxu0 %v6610
        %v6792 = vpop.f32.mrb[0].mxu0
        %v6793 = vadd.f32 0.0, %v6792
        %v6794 = vpop.f32.mrb[0].mxu0
        %6795 = vmatprep.mubr.f32.mxu0 0.0
        %6796 = vmatmul.mubr.f32.gmra.mrb[0].mxu0 %v6613
        %v6797 = vpop.f32.mrb[0].mxu0
        %v6798 = vadd.f32 0.0, %v6797
        %v6799 = vpop.f32.mrb[0].mxu0
        %6800 = vmatprep.mubr.f32.mxu0 0.0
        %6801 = vmatmul.mubr.f32.gmra.mrb[0].mxu0 %v6616
        %v6802 = vpop.f32.mrb[0].mxu0
        %v6803 = vadd.f32 0.0, %v6802
        %v6804 = vpop.f32.mrb[0].mxu0
        %6805 = vmatprep.mubr.f32.mxu0 0.0
        %6806 = vmatmul.mubr.f32.gmra.mrb[0].mxu0 %v6619
        %v6807 = vpop.f32.mrb[0].mxu0
        %v6808 = vadd.f32 0.0, %v6807
        %v6809 = vpop.f32.mrb[0].mxu0
        %6810 = vdwg.mxu0
        %v6811 = vld [vmem:[#allocation9] sm:$0xff]
        %v6812 = vld [vmem:[#allocation9 + $0x8] sm:$0xff]
        %v6813 = vld [vmem:[#allocation9 + $0x10] sm:$0xff]
        %v6814 = vld [vmem:[#allocation9 + $0x18] sm:$0xff]
        %v6815 = vld [vmem:[#allocation9 + $0x20] sm:$0xff]
        %v6816 = vld [vmem:[#allocation9 + $0x28] sm:$0xff]
        %v6817 = vld [vmem:[#allocation16] sm:$0xff]
        %v6818 = vld [vmem:[#allocation16 + $0x8] sm:$0xff]
        %v6819 = vld [vmem:[#allocation16 + $0x10] sm:$0xff]
        %v6820 = vld [vmem:[#allocation16 + $0x18] sm:$0xff]
        %v6821 = vld [vmem:[#allocation16 + $0x20] sm:$0x3f]
        %v6822 = vmul.f32 %v6688, %v6688
        %v6823 = vmul.f32 %v6693, %v6693
        %v6824 = vmul.f32 %v6698, %v6698
        %v6825 = vmul.f32 %v6703, %v6703
        %v6826 = vmul.f32 %v6708, %v6708
        %v6827 = vmul.f32 %v6713, %v6713
        %v6828 = vmul.f32 %v6783, %v6783
        %v6829 = vmul.f32 %v6788, %v6788
        %v6830 = vmul.f32 %v6793, %v6793
        %v6831 = vmul.f32 %v6798, %v6798
        %v6832 = vmul.f32 %v6803, %v6803
        %v6833 = vmul.f32 %v6808, %v6808
        %v6834 = vmul.f32 %v6688, %v6783
        %v6835 = vmul.f32 %v6693, %v6788
        %v6836 = vmul.f32 %v6698, %v6793
        %v6837 = vmul.f32 %v6703, %v6798
        %v6838 = vmul.f32 %v6708, %v6803
        %v6839 = vmul.f32 %v6713, %v6808
        %vm6840 = vcmask 392192
        %v6842 = vsel %vm6840, %v6688, 0
        %v6845 = vsel %vm6840, %v6693, 0
        %v6848 = vsel %vm6840, %v6698, 0
        %v6851 = vsel %vm6840, %v6703, 0
        %v6854 = vsel %vm6840, %v6708, 0
        %v6857 = vsel %vm6840, %v6713, 0
        %v6860 = vsel %vm6840, %v6783, 0
        %v6863 = vsel %vm6840, %v6788, 0
        %v6866 = vsel %vm6840, %v6793, 0
        %v6869 = vsel %vm6840, %v6798, 0
        %v6872 = vsel %vm6840, %v6803, 0
        %v6875 = vsel %vm6840, %v6808, 0
        %v6878 = vsel %vm6840, %v6822, 0
        %v6881 = vsel %vm6840, %v6823, 0
        %v6884 = vsel %vm6840, %v6824, 0
        %v6887 = vsel %vm6840, %v6825, 0
        %v6890 = vsel %vm6840, %v6826, 0
        %v6893 = vsel %vm6840, %v6827, 0
        %v6896 = vsel %vm6840, %v6828, 0
        %v6899 = vsel %vm6840, %v6829, 0
        %v6902 = vsel %vm6840, %v6830, 0
        %v6905 = vsel %vm6840, %v6831, 0
        %v6908 = vsel %vm6840, %v6832, 0
        %v6911 = vsel %vm6840, %v6833, 0
        %v6914 = vsel %vm6840, %v6834, 0
        %v6917 = vsel %vm6840, %v6835, 0
        %v6920 = vsel %vm6840, %v6836, 0
        %v6923 = vsel %vm6840, %v6837, 0
        %v6926 = vsel %vm6840, %v6838, 0
        %v6929 = vsel %vm6840, %v6839, 0
        %6931 = vmatprep.subr.mxu0 0.0
        %6932 = vmatpush1.msra.mxu0 %v6811
        %6933 = vmatprep.subr.mxu0 0.0
        %6934 = vmatpush1.msra.mxu0 %v6812
        %6935 = vmatprep.subr.mxu0 0.0
        %6936 = vmatpush1.msra.mxu0 %v6813
        %6937 = vmatprep.subr.mxu0 0.0
        %6938 = vmatpush1.msra.mxu0 %v6814
        %6939 = vmatprep.subr.mxu0 0.0
        %6940 = vmatpush1.msra.mxu0 %v6815
        %6941 = vmatprep.subr.mxu0 0.0
        %6942 = vmatpush1.msra.mxu0 %v6816
        %6943 = vmatprep.subr.mxu0 0.0
        %6944 = vmatpush1.msra.mxu0 0.0
        %6945 = vmatprep.subr.mxu0 0.0
        %6946 = vmatpush1.msra.mxu0 0.0
        %6947 = vmatprep.subr.mxu0 0.0
        %6948 = vmatpush1.msra.mxu0 0.0
        %6949 = vmatprep.subr.mxu0 0.0
        %6950 = vmatpush1.msra.mxu0 0.0
        %6951 = vmatprep.subr.mxu0 0.0
        %6952 = vmatpush1.msra.mxu0 0.0
        %6953 = vmatprep.subr.mxu0 0.0
        %6954 = vmatpush1.msra.mxu0 0.0
        %6955 = vmatprep.subr.mxu0 0.0
        %6956 = vmatpush1.msra.mxu0 0.0
        %6957 = vmatprep.subr.mxu0 0.0
        %6958 = vmatpush1.msra.mxu0 0.0
        %6959 = vmatprep.subr.mxu0 0.0
        %6960 = vmatpush1.msra.mxu0 0.0
        %6961 = vmatprep.subr.mxu0 0.0
        %6962 = vmatpush1.msra.mxu0 0.0
        %6963 = vmatprep.subr.mxu0 0.0
        %6964 = vmatpush1.msra.mxu0 0.0
        %6965 = vmatprep.subr.mxu0 0.0
        %6966 = vmatpush1.msra.mxu0 0.0
        %6967 = vmatprep.subr.mxu0 0.0
        %6968 = vmatpush1.msra.mxu0 0.0
        %6969 = vmatprep.subr.mxu0 0.0
        %6970 = vmatpush1.msra.mxu0 0.0
        %6971 = vmatprep.subr.mxu0 0.0
        %6972 = vmatpush1.msra.mxu0 0.0
        %6973 = vmatprep.subr.mxu0 0.0
        %6974 = vmatpush1.msra.mxu0 0.0
        %6975 = vmatprep.subr.mxu0 0.0
        %6976 = vmatpush1.msra.mxu0 0.0
        %6977 = vmatprep.subr.mxu0 0.0
        %6978 = vmatpush1.msra.mxu0 0.0
        %6979 = vmatprep.subr.mxu0 0.0
        %6980 = vmatpush1.msra.mxu0 0.0
        %6981 = vmatprep.subr.mxu0 0.0
        %6982 = vmatpush1.msra.mxu0 0.0
        %6983 = vmatprep.subr.mxu0 0.0
        %6984 = vmatpush1.msra.mxu0 0.0
        %6985 = vmatprep.subr.mxu0 0.0
        %6986 = vmatpush1.msra.mxu0 0.0
        %6987 = vmatprep.subr.mxu0 0.0
        %6988 = vmatpush1.msra.mxu0 0.0
        %6989 = vmatprep.subr.mxu0 0.0
        %6990 = vmatpush1.msra.mxu0 0.0
        %6991 = vmatprep.subr.mxu0 0.0
        %6992 = vmatpush1.msra.mxu0 0.0
        %6993 = vmatprep.subr.mxu0 0.0
        %6994 = vmatpush1.msra.mxu0 0.0
        %6995 = vmatprep.mubr.f32.mxu0 0.0
        %6996 = vmatmul.mubr.f32.gmra.mrb[0].mxu0 %v6842
        %v6997 = vpop.f32.mrb[0].mxu0
        %v6998 = vadd.f32 0.0, %v6997
        %v6999 = vpop.f32.mrb[0].mxu0
        %7000 = vmatprep.mubr.f32.mxu0 0.0
        %7001 = vmatmul.mubr.f32.gmra.mrb[0].mxu0 %v6845
        %v7002 = vpop.f32.mrb[0].mxu0
        %v7003 = vadd.f32 0.0, %v7002
        %v7004 = vpop.f32.mrb[0].mxu0
        %7005 = vmatprep.mubr.f32.mxu0 0.0
        %7006 = vmatmul.mubr.f32.gmra.mrb[0].mxu0 %v6848
        %v7007 = vpop.f32.mrb[0].mxu0
        %v7008 = vadd.f32 0.0, %v7007
        %v7009 = vpop.f32.mrb[0].mxu0
        %7010 = vmatprep.mubr.f32.mxu0 0.0
        %7011 = vmatmul.mubr.f32.gmra.mrb[0].mxu0 %v6851
        %v7012 = vpop.f32.mrb[0].mxu0
        %v7013 = vadd.f32 0.0, %v7012
        %v7014 = vpop.f32.mrb[0].mxu0
        %7015 = vmatprep.mubr.f32.mxu0 0.0
        %7016 = vmatmul.mubr.f32.gmra.mrb[0].mxu0 %v6854
        %v7017 = vpop.f32.mrb[0].mxu0
        %v7018 = vadd.f32 0.0, %v7017
        %v7019 = vpop.f32.mrb[0].mxu0
        %7020 = vmatprep.mubr.f32.mxu0 0.0
        %7021 = vmatmul.mubr.f32.gmra.mrb[0].mxu0 %v6857
        %v7022 = vpop.f32.mrb[0].mxu0
        %v7023 = vadd.f32 0.0, %v7022
        %v7024 = vpop.f32.mrb[0].mxu0
        %7025 = vmatprep.mubr.f32.mxu0 0.0
        %7026 = vmatmul.mubr.f32.gmra.mrb[0].mxu0 %v6860
        %v7027 = vpop.f32.mrb[0].mxu0
        %v7028 = vadd.f32 0.0, %v7027
        %v7029 = vpop.f32.mrb[0].mxu0
        %7030 = vmatprep.mubr.f32.mxu0 0.0
        %7031 = vmatmul.mubr.f32.gmra.mrb[0].mxu0 %v6863
        %v7032 = vpop.f32.mrb[0].mxu0
        %v7033 = vadd.f32 0.0, %v7032
        %v7034 = vpop.f32.mrb[0].mxu0
        %7035 = vmatprep.mubr.f32.mxu0 0.0
        %7036 = vmatmul.mubr.f32.gmra.mrb[0].mxu0 %v6866
        %v7037 = vpop.f32.mrb[0].mxu0
        %v7038 = vadd.f32 0.0, %v7037
        %v7039 = vpop.f32.mrb[0].mxu0
        %7040 = vmatprep.mubr.f32.mxu0 0.0
        %7041 = vmatmul.mubr.f32.gmra.mrb[0].mxu0 %v6869
        %v7042 = vpop.f32.mrb[0].mxu0
        %v7043 = vadd.f32 0.0, %v7042
        %v7044 = vpop.f32.mrb[0].mxu0
        %7045 = vmatprep.mubr.f32.mxu0 0.0
        %7046 = vmatmul.mubr.f32.gmra.mrb[0].mxu0 %v6872
        %v7047 = vpop.f32.mrb[0].mxu0
        %v7048 = vadd.f32 0.0, %v7047
        %v7049 = vpop.f32.mrb[0].mxu0
        %7050 = vmatprep.mubr.f32.mxu0 0.0
        %7051 = vmatmul.mubr.f32.gmra.mrb[0].mxu0 %v6875
        %v7052 = vpop.f32.mrb[0].mxu0
        %v7053 = vadd.f32 0.0, %v7052
        %v7054 = vpop.f32.mrb[0].mxu0
        %7055 = vmatprep.mubr.f32.mxu0 0.0
        %7056 = vmatmul.mubr.f32.gmra.mrb[0].mxu0 %v6878
        %v7057 = vpop.f32.mrb[0].mxu0
        %v7058 = vadd.f32 0.0, %v7057
        %v7059 = vpop.f32.mrb[0].mxu0
        %7060 = vmatprep.mubr.f32.mxu0 0.0
        %7061 = vmatmul.mubr.f32.gmra.mrb[0].mxu0 %v6881
        %v7062 = vpop.f32.mrb[0].mxu0
        %v7063 = vadd.f32 0.0, %v7062
        %v7064 = vpop.f32.mrb[0].mxu0
        %7065 = vmatprep.mubr.f32.mxu0 0.0
        %7066 = vmatmul.mubr.f32.gmra.mrb[0].mxu0 %v6884
        %v7067 = vpop.f32.mrb[0].mxu0
        %v7068 = vadd.f32 0.0, %v7067
        %v7069 = vpop.f32.mrb[0].mxu0
        %7070 = vmatprep.mubr.f32.mxu0 0.0
        %7071 = vmatmul.mubr.f32.gmra.mrb[0].mxu0 %v6887
        %v7072 = vpop.f32.mrb[0].mxu0
        %v7073 = vadd.f32 0.0, %v7072
        %v7074 = vpop.f32.mrb[0].mxu0
        %7075 = vmatprep.mubr.f32.mxu0 0.0
        %7076 = vmatmul.mubr.f32.gmra.mrb[0].mxu0 %v6890
        %v7077 = vpop.f32.mrb[0].mxu0
        %v7078 = vadd.f32 0.0, %v7077
        %v7079 = vpop.f32.mrb[0].mxu0
        %7080 = vmatprep.mubr.f32.mxu0 0.0
        %7081 = vmatmul.mubr.f32.gmra.mrb[0].mxu0 %v6893
        %v7082 = vpop.f32.mrb[0].mxu0
        %v7083 = vadd.f32 0.0, %v7082
        %v7084 = vpop.f32.mrb[0].mxu0
        %7085 = vmatprep.mubr.f32.mxu0 0.0
        %7086 = vmatmul.mubr.f32.gmra.mrb[0].mxu0 %v6896
        %v7087 = vpop.f32.mrb[0].mxu0
        %v7088 = vadd.f32 0.0, %v7087
        %v7089 = vpop.f32.mrb[0].mxu0
        %7090 = vmatprep.mubr.f32.mxu0 0.0
        %7091 = vmatmul.mubr.f32.gmra.mrb[0].mxu0 %v6899
        %v7092 = vpop.f32.mrb[0].mxu0
        %v7093 = vadd.f32 0.0, %v7092
        %v7094 = vpop.f32.mrb[0].mxu0
        %7095 = vmatprep.mubr.f32.mxu0 0.0
        %7096 = vmatmul.mubr.f32.gmra.mrb[0].mxu0 %v6902
        %v7097 = vpop.f32.mrb[0].mxu0
        %v7098 = vadd.f32 0.0, %v7097
        %v7099 = vpop.f32.mrb[0].mxu0
        %7100 = vmatprep.mubr.f32.mxu0 0.0
        %7101 = vmatmul.mubr.f32.gmra.mrb[0].mxu0 %v6905
        %v7102 = vpop.f32.mrb[0].mxu0
        %v7103 = vadd.f32 0.0, %v7102
        %v7104 = vpop.f32.mrb[0].mxu0
        %7105 = vmatprep.mubr.f32.mxu0 0.0
        %7106 = vmatmul.mubr.f32.gmra.mrb[0].mxu0 %v6908
        %v7107 = vpop.f32.mrb[0].mxu0
        %v7108 = vadd.f32 0.0, %v7107
        %v7109 = vpop.f32.mrb[0].mxu0
        %7110 = vmatprep.mubr.f32.mxu0 0.0
        %7111 = vmatmul.mubr.f32.gmra.mrb[0].mxu0 %v6911
        %v7112 = vpop.f32.mrb[0].mxu0
        %v7113 = vadd.f32 0.0, %v7112
        %v7114 = vpop.f32.mrb[0].mxu0
        %7115 = vmatprep.mubr.f32.mxu0 0.0
        %7116 = vmatmul.mubr.f32.gmra.mrb[0].mxu0 %v6914
        %v7117 = vpop.f32.mrb[0].mxu0
        %v7118 = vadd.f32 0.0, %v7117
        %v7119 = vpop.f32.mrb[0].mxu0
        %7120 = vmatprep.mubr.f32.mxu0 0.0
        %7121 = vmatmul.mubr.f32.gmra.mrb[0].mxu0 %v6917
        %v7122 = vpop.f32.mrb[0].mxu0
        %v7123 = vadd.f32 0.0, %v7122
        %v7124 = vpop.f32.mrb[0].mxu0
        %7125 = vmatprep.mubr.f32.mxu0 0.0
        %7126 = vmatmul.mubr.f32.gmra.mrb[0].mxu0 %v6920
        %v7127 = vpop.f32.mrb[0].mxu0
        %v7128 = vadd.f32 0.0, %v7127
        %v7129 = vpop.f32.mrb[0].mxu0
        %7130 = vmatprep.mubr.f32.mxu0 0.0
        %7131 = vmatmul.mubr.f32.gmra.mrb[0].mxu0 %v6923
        %v7132 = vpop.f32.mrb[0].mxu0
        %v7133 = vadd.f32 0.0, %v7132
        %v7134 = vpop.f32.mrb[0].mxu0
        %7135 = vmatprep.mubr.f32.mxu0 0.0
        %7136 = vmatmul.mubr.f32.gmra.mrb[0].mxu0 %v6926
        %v7137 = vpop.f32.mrb[0].mxu0
        %v7138 = vadd.f32 0.0, %v7137
        %v7139 = vpop.f32.mrb[0].mxu0
        %7140 = vmatprep.mubr.f32.mxu0 0.0
        %7141 = vmatmul.mubr.f32.gmra.mrb[0].mxu0 %v6929
        %v7142 = vpop.f32.mrb[0].mxu0
        %v7143 = vadd.f32 0.0, %v7142
        %v7144 = vpop.f32.mrb[0].mxu0
        %7145 = vdwg.mxu0
        %v7147 = vsel %vm6840, %v6817, 0
        %v7150 = vsel %vm6840, %v6818, 0
        %v7153 = vsel %vm6840, %v6819, 0
        %v7156 = vsel %vm6840, %v6820, 0
        %v7159 = vsel %vm6840, %v6821, 0
        %7161 = vmatprep.subr.mxu0 0.0
        %7162 = vmatpush1.msra.mxu0 %v6998
        %7163 = vmatprep.subr.mxu0 0.0
        %7164 = vmatpush1.msra.mxu0 %v7003
        %7165 = vmatprep.subr.mxu0 0.0
        %7166 = vmatpush1.msra.mxu0 %v7008
        %7167 = vmatprep.subr.mxu0 0.0
        %7168 = vmatpush1.msra.mxu0 %v7013
        %7169 = vmatprep.subr.mxu0 0.0
        %7170 = vmatpush1.msra.mxu0 %v7018
        %7171 = vmatprep.subr.mxu0 0.0
        %7172 = vmatpush1.msra.mxu0 %v7023
        %7173 = vmatprep.subr.mxu0 0.0
        %7174 = vmatpush1.msra.mxu0 0.0
        %7175 = vmatprep.subr.mxu0 0.0
        %7176 = vmatpush1.msra.mxu0 0.0
        %7177 = vmatprep.subr.mxu0 0.0
        %7178 = vmatpush1.msra.mxu0 0.0
        %7179 = vmatprep.subr.mxu0 0.0
        %7180 = vmatpush1.msra.mxu0 0.0
        %7181 = vmatprep.subr.mxu0 0.0
        %7182 = vmatpush1.msra.mxu0 0.0
        %7183 = vmatprep.subr.mxu0 0.0
        %7184 = vmatpush1.msra.mxu0 0.0
        %7185 = vmatprep.subr.mxu0 0.0
        %7186 = vmatpush1.msra.mxu0 0.0
        %7187 = vmatprep.subr.mxu0 0.0
        %7188 = vmatpush1.msra.mxu0 0.0
        %7189 = vmatprep.subr.mxu0 0.0
        %7190 = vmatpush1.msra.mxu0 0.0
        %7191 = vmatprep.subr.mxu0 0.0
        %7192 = vmatpush1.msra.mxu0 0.0
        %7193 = vmatprep.subr.mxu0 0.0
        %7194 = vmatpush1.msra.mxu0 0.0
        %7195 = vmatprep.subr.mxu0 0.0
        %7196 = vmatpush1.msra.mxu0 0.0
        %7197 = vmatprep.subr.mxu0 0.0
        %7198 = vmatpush1.msra.mxu0 0.0
        %7199 = vmatprep.subr.mxu0 0.0
        %7200 = vmatpush1.msra.mxu0 0.0
        %7201 = vmatprep.subr.mxu0 0.0
        %7202 = vmatpush1.msra.mxu0 0.0
        %7203 = vmatprep.subr.mxu0 0.0
        %7204 = vmatpush1.msra.mxu0 0.0
        %7205 = vmatprep.subr.mxu0 0.0
        %7206 = vmatpush1.msra.mxu0 0.0
        %7207 = vmatprep.subr.mxu0 0.0
        %7208 = vmatpush1.msra.mxu0 0.0
        %7209 = vmatprep.subr.mxu0 0.0
        %7210 = vmatpush1.msra.mxu0 0.0
        %7211 = vmatprep.subr.mxu0 0.0
        %7212 = vmatpush1.msra.mxu0 0.0
        %7213 = vmatprep.subr.mxu0 0.0
        %7214 = vmatpush1.msra.mxu0 0.0
        %7215 = vmatprep.subr.mxu0 0.0
        %7216 = vmatpush1.msra.mxu0 0.0
        %7217 = vmatprep.subr.mxu0 0.0
        %7218 = vmatpush1.msra.mxu0 0.0
        %7219 = vmatprep.subr.mxu0 0.0
        %7220 = vmatpush1.msra.mxu0 0.0
        %7221 = vmatprep.subr.mxu0 0.0
        %7222 = vmatpush1.msra.mxu0 0.0
        %7223 = vmatprep.subr.mxu0 0.0
        %7224 = vmatpush1.msra.mxu0 0.0
        %7225 = vmatprep.mubr.f32.mxu0 0.0
        %7226 = vmatmul.mubr.f32.gmra.mrb[0].mxu0 %v7147
        %v7227 = vpop.f32.mrb[0].mxu0
        %v7228 = vadd.f32 0.0, %v7227
        %v7229 = vpop.f32.mrb[0].mxu0
        %7230 = vmatprep.mubr.f32.mxu0 0.0
        %7231 = vmatmul.mubr.f32.gmra.mrb[0].mxu0 %v7150
        %v7232 = vpop.f32.mrb[0].mxu0
        %v7233 = vadd.f32 0.0, %v7232
        %v7234 = vpop.f32.mrb[0].mxu0
        %7235 = vmatprep.mubr.f32.mxu0 0.0
        %7236 = vmatmul.mubr.f32.gmra.mrb[0].mxu0 %v7153
        %v7237 = vpop.f32.mrb[0].mxu0
        %v7238 = vadd.f32 0.0, %v7237
        %v7239 = vpop.f32.mrb[0].mxu0
        %7240 = vmatprep.mubr.f32.mxu0 0.0
        %7241 = vmatmul.mubr.f32.gmra.mrb[0].mxu0 %v7156
        %v7242 = vpop.f32.mrb[0].mxu0
        %v7243 = vadd.f32 0.0, %v7242
        %v7244 = vpop.f32.mrb[0].mxu0
        %7245 = vmatprep.mubr.f32.mxu0 0.0
        %7246 = vmatmul.mubr.f32.gmra.mrb[0].mxu0 %v7159
        %v7247 = vpop.f32.mrb[0].mxu0
        %v7248 = vadd.f32 0.0, %v7247
        %v7249 = vpop.f32.mrb[0].mxu0
        %7250 = vdwg.mxu0
        %7251 = vmatprep.subr.mxu0 0.0
        %7252 = vmatpush1.msra.mxu0 %v7028
        %7253 = vmatprep.subr.mxu0 0.0
        %7254 = vmatpush1.msra.mxu0 %v7033
        %7255 = vmatprep.subr.mxu0 0.0
        %7256 = vmatpush1.msra.mxu0 %v7038
        %7257 = vmatprep.subr.mxu0 0.0
        %7258 = vmatpush1.msra.mxu0 %v7043
        %7259 = vmatprep.subr.mxu0 0.0
        %7260 = vmatpush1.msra.mxu0 %v7048
        %7261 = vmatprep.subr.mxu0 0.0
        %7262 = vmatpush1.msra.mxu0 %v7053
        %7263 = vmatprep.subr.mxu0 0.0
        %7264 = vmatpush1.msra.mxu0 0.0
        %7265 = vmatprep.subr.mxu0 0.0
        %7266 = vmatpush1.msra.mxu0 0.0
        %7267 = vmatprep.subr.mxu0 0.0
        %7268 = vmatpush1.msra.mxu0 0.0
        %7269 = vmatprep.subr.mxu0 0.0
        %7270 = vmatpush1.msra.mxu0 0.0
        %7271 = vmatprep.subr.mxu0 0.0
        %7272 = vmatpush1.msra.mxu0 0.0
        %7273 = vmatprep.subr.mxu0 0.0
        %7274 = vmatpush1.msra.mxu0 0.0
        %7275 = vmatprep.subr.mxu0 0.0
        %7276 = vmatpush1.msra.mxu0 0.0
        %7277 = vmatprep.subr.mxu0 0.0
        %7278 = vmatpush1.msra.mxu0 0.0
        %7279 = vmatprep.subr.mxu0 0.0
        %7280 = vmatpush1.msra.mxu0 0.0
        %7281 = vmatprep.subr.mxu0 0.0
        %7282 = vmatpush1.msra.mxu0 0.0
        %7283 = vmatprep.subr.mxu0 0.0
        %7284 = vmatpush1.msra.mxu0 0.0
        %7285 = vmatprep.subr.mxu0 0.0
        %7286 = vmatpush1.msra.mxu0 0.0
        %7287 = vmatprep.subr.mxu0 0.0
        %7288 = vmatpush1.msra.mxu0 0.0
        %7289 = vmatprep.subr.mxu0 0.0
        %7290 = vmatpush1.msra.mxu0 0.0
        %7291 = vmatprep.subr.mxu0 0.0
        %7292 = vmatpush1.msra.mxu0 0.0
        %7293 = vmatprep.subr.mxu0 0.0
        %7294 = vmatpush1.msra.mxu0 0.0
        %7295 = vmatprep.subr.mxu0 0.0
        %7296 = vmatpush1.msra.mxu0 0.0
        %7297 = vmatprep.subr.mxu0 0.0
        %7298 = vmatpush1.msra.mxu0 0.0
        %7299 = vmatprep.subr.mxu0 0.0
        %7300 = vmatpush1.msra.mxu0 0.0
        %7301 = vmatprep.subr.mxu0 0.0
        %7302 = vmatpush1.msra.mxu0 0.0
        %7303 = vmatprep.subr.mxu0 0.0
        %7304 = vmatpush1.msra.mxu0 0.0
        %7305 = vmatprep.subr.mxu0 0.0
        %7306 = vmatpush1.msra.mxu0 0.0
        %7307 = vmatprep.subr.mxu0 0.0
        %7308 = vmatpush1.msra.mxu0 0.0
        %7309 = vmatprep.subr.mxu0 0.0
        %7310 = vmatpush1.msra.mxu0 0.0
        %7311 = vmatprep.subr.mxu0 0.0
        %7312 = vmatpush1.msra.mxu0 0.0
        %7313 = vmatprep.subr.mxu0 0.0
        %7314 = vmatpush1.msra.mxu0 0.0
        %7315 = vmatprep.mubr.f32.mxu0 0.0
        %7316 = vmatmul.mubr.f32.gmra.mrb[0].mxu0 %v7147
        %v7317 = vpop.f32.mrb[0].mxu0
        %v7318 = vadd.f32 0.0, %v7317
        %v7319 = vpop.f32.mrb[0].mxu0
        %7320 = vmatprep.mubr.f32.mxu0 0.0
        %7321 = vmatmul.mubr.f32.gmra.mrb[0].mxu0 %v7150
        %v7322 = vpop.f32.mrb[0].mxu0
        %v7323 = vadd.f32 0.0, %v7322
        %v7324 = vpop.f32.mrb[0].mxu0
        %7325 = vmatprep.mubr.f32.mxu0 0.0
        %7326 = vmatmul.mubr.f32.gmra.mrb[0].mxu0 %v7153
        %v7327 = vpop.f32.mrb[0].mxu0
        %v7328 = vadd.f32 0.0, %v7327
        %v7329 = vpop.f32.mrb[0].mxu0
        %7330 = vmatprep.mubr.f32.mxu0 0.0
        %7331 = vmatmul.mubr.f32.gmra.mrb[0].mxu0 %v7156
        %v7332 = vpop.f32.mrb[0].mxu0
        %v7333 = vadd.f32 0.0, %v7332
        %v7334 = vpop.f32.mrb[0].mxu0
        %7335 = vmatprep.mubr.f32.mxu0 0.0
        %7336 = vmatmul.mubr.f32.gmra.mrb[0].mxu0 %v7159
        %v7337 = vpop.f32.mrb[0].mxu0
        %v7338 = vadd.f32 0.0, %v7337
        %v7339 = vpop.f32.mrb[0].mxu0
        %7340 = vdwg.mxu0
        %7341 = vmatprep.subr.mxu0 0.0
        %7342 = vmatpush1.msra.mxu0 %v7058
        %7343 = vmatprep.subr.mxu0 0.0
        %7344 = vmatpush1.msra.mxu0 %v7063
        %7345 = vmatprep.subr.mxu0 0.0
        %7346 = vmatpush1.msra.mxu0 %v7068
        %7347 = vmatprep.subr.mxu0 0.0
        %7348 = vmatpush1.msra.mxu0 %v7073
        %7349 = vmatprep.subr.mxu0 0.0
        %7350 = vmatpush1.msra.mxu0 %v7078
        %7351 = vmatprep.subr.mxu0 0.0
        %7352 = vmatpush1.msra.mxu0 %v7083
        %7353 = vmatprep.subr.mxu0 0.0
        %7354 = vmatpush1.msra.mxu0 0.0
        %7355 = vmatprep.subr.mxu0 0.0
        %7356 = vmatpush1.msra.mxu0 0.0
        %7357 = vmatprep.subr.mxu0 0.0
        %7358 = vmatpush1.msra.mxu0 0.0
        %7359 = vmatprep.subr.mxu0 0.0
        %7360 = vmatpush1.msra.mxu0 0.0
        %7361 = vmatprep.subr.mxu0 0.0
        %7362 = vmatpush1.msra.mxu0 0.0
        %7363 = vmatprep.subr.mxu0 0.0
        %7364 = vmatpush1.msra.mxu0 0.0
        %7365 = vmatprep.subr.mxu0 0.0
        %7366 = vmatpush1.msra.mxu0 0.0
        %7367 = vmatprep.subr.mxu0 0.0
        %7368 = vmatpush1.msra.mxu0 0.0
        %7369 = vmatprep.subr.mxu0 0.0
        %7370 = vmatpush1.msra.mxu0 0.0
        %7371 = vmatprep.subr.mxu0 0.0
        %7372 = vmatpush1.msra.mxu0 0.0
        %7373 = vmatprep.subr.mxu0 0.0
        %7374 = vmatpush1.msra.mxu0 0.0
        %7375 = vmatprep.subr.mxu0 0.0
        %7376 = vmatpush1.msra.mxu0 0.0
        %7377 = vmatprep.subr.mxu0 0.0
        %7378 = vmatpush1.msra.mxu0 0.0
        %7379 = vmatprep.subr.mxu0 0.0
        %7380 = vmatpush1.msra.mxu0 0.0
        %7381 = vmatprep.subr.mxu0 0.0
        %7382 = vmatpush1.msra.mxu0 0.0
        %7383 = vmatprep.subr.mxu0 0.0
        %7384 = vmatpush1.msra.mxu0 0.0
        %7385 = vmatprep.subr.mxu0 0.0
        %7386 = vmatpush1.msra.mxu0 0.0
        %7387 = vmatprep.subr.mxu0 0.0
        %7388 = vmatpush1.msra.mxu0 0.0
        %7389 = vmatprep.subr.mxu0 0.0
        %7390 = vmatpush1.msra.mxu0 0.0
        %7391 = vmatprep.subr.mxu0 0.0
        %7392 = vmatpush1.msra.mxu0 0.0
        %7393 = vmatprep.subr.mxu0 0.0
        %7394 = vmatpush1.msra.mxu0 0.0
        %7395 = vmatprep.subr.mxu0 0.0
        %7396 = vmatpush1.msra.mxu0 0.0
        %7397 = vmatprep.subr.mxu0 0.0
        %7398 = vmatpush1.msra.mxu0 0.0
        %7399 = vmatprep.subr.mxu0 0.0
        %7400 = vmatpush1.msra.mxu0 0.0
        %7401 = vmatprep.subr.mxu0 0.0
        %7402 = vmatpush1.msra.mxu0 0.0
        %7403 = vmatprep.subr.mxu0 0.0
        %7404 = vmatpush1.msra.mxu0 0.0
        %7405 = vmatprep.mubr.f32.mxu0 0.0
        %7406 = vmatmul.mubr.f32.gmra.mrb[0].mxu0 %v7147
        %v7407 = vpop.f32.mrb[0].mxu0
        %v7408 = vadd.f32 0.0, %v7407
        %v7409 = vpop.f32.mrb[0].mxu0
        %7410 = vmatprep.mubr.f32.mxu0 0.0
        %7411 = vmatmul.mubr.f32.gmra.mrb[0].mxu0 %v7150
        %v7412 = vpop.f32.mrb[0].mxu0
        %v7413 = vadd.f32 0.0, %v7412
        %v7414 = vpop.f32.mrb[0].mxu0
        %7415 = vmatprep.mubr.f32.mxu0 0.0
        %7416 = vmatmul.mubr.f32.gmra.mrb[0].mxu0 %v7153
        %v7417 = vpop.f32.mrb[0].mxu0
        %v7418 = vadd.f32 0.0, %v7417
        %v7419 = vpop.f32.mrb[0].mxu0
        %7420 = vmatprep.mubr.f32.mxu0 0.0
        %7421 = vmatmul.mubr.f32.gmra.mrb[0].mxu0 %v7156
        %v7422 = vpop.f32.mrb[0].mxu0
        %v7423 = vadd.f32 0.0, %v7422
        %v7424 = vpop.f32.mrb[0].mxu0
        %7425 = vmatprep.mubr.f32.mxu0 0.0
        %7426 = vmatmul.mubr.f32.gmra.mrb[0].mxu0 %v7159
        %v7427 = vpop.f32.mrb[0].mxu0
        %v7428 = vadd.f32 0.0, %v7427
        %v7429 = vpop.f32.mrb[0].mxu0
        %7430 = vdwg.mxu0
        %7431 = vmatprep.subr.mxu0 0.0
        %7432 = vmatpush1.msra.mxu0 %v7088
        %7433 = vmatprep.subr.mxu0 0.0
        %7434 = vmatpush1.msra.mxu0 %v7093
        %7435 = vmatprep.subr.mxu0 0.0
        %7436 = vmatpush1.msra.mxu0 %v7098
        %7437 = vmatprep.subr.mxu0 0.0
        %7438 = vmatpush1.msra.mxu0 %v7103
        %7439 = vmatprep.subr.mxu0 0.0
        %7440 = vmatpush1.msra.mxu0 %v7108
        %7441 = vmatprep.subr.mxu0 0.0
        %7442 = vmatpush1.msra.mxu0 %v7113
        %7443 = vmatprep.subr.mxu0 0.0
        %7444 = vmatpush1.msra.mxu0 0.0
        %7445 = vmatprep.subr.mxu0 0.0
        %7446 = vmatpush1.msra.mxu0 0.0
        %7447 = vmatprep.subr.mxu0 0.0
        %7448 = vmatpush1.msra.mxu0 0.0
        %7449 = vmatprep.subr.mxu0 0.0
        %7450 = vmatpush1.msra.mxu0 0.0
        %7451 = vmatprep.subr.mxu0 0.0
        %7452 = vmatpush1.msra.mxu0 0.0
        %7453 = vmatprep.subr.mxu0 0.0
        %7454 = vmatpush1.msra.mxu0 0.0
        %7455 = vmatprep.subr.mxu0 0.0
        %7456 = vmatpush1.msra.mxu0 0.0
        %7457 = vmatprep.subr.mxu0 0.0
        %7458 = vmatpush1.msra.mxu0 0.0
        %7459 = vmatprep.subr.mxu0 0.0
        %7460 = vmatpush1.msra.mxu0 0.0
        %7461 = vmatprep.subr.mxu0 0.0
        %7462 = vmatpush1.msra.mxu0 0.0
        %7463 = vmatprep.subr.mxu0 0.0
        %7464 = vmatpush1.msra.mxu0 0.0
        %7465 = vmatprep.subr.mxu0 0.0
        %7466 = vmatpush1.msra.mxu0 0.0
        %7467 = vmatprep.subr.mxu0 0.0
        %7468 = vmatpush1.msra.mxu0 0.0
        %7469 = vmatprep.subr.mxu0 0.0
        %7470 = vmatpush1.msra.mxu0 0.0
        %7471 = vmatprep.subr.mxu0 0.0
        %7472 = vmatpush1.msra.mxu0 0.0
        %7473 = vmatprep.subr.mxu0 0.0
        %7474 = vmatpush1.msra.mxu0 0.0
        %7475 = vmatprep.subr.mxu0 0.0
        %7476 = vmatpush1.msra.mxu0 0.0
        %7477 = vmatprep.subr.mxu0 0.0
        %7478 = vmatpush1.msra.mxu0 0.0
        %7479 = vmatprep.subr.mxu0 0.0
        %7480 = vmatpush1.msra.mxu0 0.0
        %7481 = vmatprep.subr.mxu0 0.0
        %7482 = vmatpush1.msra.mxu0 0.0
        %7483 = vmatprep.subr.mxu0 0.0
        %7484 = vmatpush1.msra.mxu0 0.0
        %7485 = vmatprep.subr.mxu0 0.0
        %7486 = vmatpush1.msra.mxu0 0.0
        %7487 = vmatprep.subr.mxu0 0.0
        %7488 = vmatpush1.msra.mxu0 0.0
        %7489 = vmatprep.subr.mxu0 0.0
        %7490 = vmatpush1.msra.mxu0 0.0
        %7491 = vmatprep.subr.mxu0 0.0
        %7492 = vmatpush1.msra.mxu0 0.0
        %7493 = vmatprep.subr.mxu0 0.0
        %7494 = vmatpush1.msra.mxu0 0.0
        %7495 = vmatprep.mubr.f32.mxu0 0.0
        %7496 = vmatmul.mubr.f32.gmra.mrb[0].mxu0 %v7147
        %v7497 = vpop.f32.mrb[0].mxu0
        %v7498 = vadd.f32 0.0, %v7497
        %v7499 = vpop.f32.mrb[0].mxu0
        %7500 = vmatprep.mubr.f32.mxu0 0.0
        %7501 = vmatmul.mubr.f32.gmra.mrb[0].mxu0 %v7150
        %v7502 = vpop.f32.mrb[0].mxu0
        %v7503 = vadd.f32 0.0, %v7502
        %v7504 = vpop.f32.mrb[0].mxu0
        %7505 = vmatprep.mubr.f32.mxu0 0.0
        %7506 = vmatmul.mubr.f32.gmra.mrb[0].mxu0 %v7153
        %v7507 = vpop.f32.mrb[0].mxu0
        %v7508 = vadd.f32 0.0, %v7507
        %v7509 = vpop.f32.mrb[0].mxu0
        %7510 = vmatprep.mubr.f32.mxu0 0.0
        %7511 = vmatmul.mubr.f32.gmra.mrb[0].mxu0 %v7156
        %v7512 = vpop.f32.mrb[0].mxu0
        %v7513 = vadd.f32 0.0, %v7512
        %v7514 = vpop.f32.mrb[0].mxu0
        %7515 = vmatprep.mubr.f32.mxu0 0.0
        %7516 = vmatmul.mubr.f32.gmra.mrb[0].mxu0 %v7159
        %v7517 = vpop.f32.mrb[0].mxu0
        %v7518 = vadd.f32 0.0, %v7517
        %v7519 = vpop.f32.mrb[0].mxu0
        %7520 = vdwg.mxu0
        %7521 = vmatprep.subr.mxu0 0.0
        %7522 = vmatpush1.msra.mxu0 %v7118
        %7523 = vmatprep.subr.mxu0 0.0
        %7524 = vmatpush1.msra.mxu0 %v7123
        %7525 = vmatprep.subr.mxu0 0.0
        %7526 = vmatpush1.msra.mxu0 %v7128
        %7527 = vmatprep.subr.mxu0 0.0
        %7528 = vmatpush1.msra.mxu0 %v7133
        %7529 = vmatprep.subr.mxu0 0.0
        %7530 = vmatpush1.msra.mxu0 %v7138
        %7531 = vmatprep.subr.mxu0 0.0
        %7532 = vmatpush1.msra.mxu0 %v7143
        %7533 = vmatprep.subr.mxu0 0.0
        %7534 = vmatpush1.msra.mxu0 0.0
        %7535 = vmatprep.subr.mxu0 0.0
        %7536 = vmatpush1.msra.mxu0 0.0
        %7537 = vmatprep.subr.mxu0 0.0
        %7538 = vmatpush1.msra.mxu0 0.0
        %7539 = vmatprep.subr.mxu0 0.0
        %7540 = vmatpush1.msra.mxu0 0.0
        %7541 = vmatprep.subr.mxu0 0.0
        %7542 = vmatpush1.msra.mxu0 0.0
        %7543 = vmatprep.subr.mxu0 0.0
        %7544 = vmatpush1.msra.mxu0 0.0
        %7545 = vmatprep.subr.mxu0 0.0
        %7546 = vmatpush1.msra.mxu0 0.0
        %7547 = vmatprep.subr.mxu0 0.0
        %7548 = vmatpush1.msra.mxu0 0.0
        %7549 = vmatprep.subr.mxu0 0.0
        %7550 = vmatpush1.msra.mxu0 0.0
        %7551 = vmatprep.subr.mxu0 0.0
        %7552 = vmatpush1.msra.mxu0 0.0
        %7553 = vmatprep.subr.mxu0 0.0
        %7554 = vmatpush1.msra.mxu0 0.0
        %7555 = vmatprep.subr.mxu0 0.0
        %7556 = vmatpush1.msra.mxu0 0.0
        %7557 = vmatprep.subr.mxu0 0.0
        %7558 = vmatpush1.msra.mxu0 0.0
        %7559 = vmatprep.subr.mxu0 0.0
        %7560 = vmatpush1.msra.mxu0 0.0
        %7561 = vmatprep.subr.mxu0 0.0
        %7562 = vmatpush1.msra.mxu0 0.0
        %7563 = vmatprep.subr.mxu0 0.0
        %7564 = vmatpush1.msra.mxu0 0.0
        %7565 = vmatprep.subr.mxu0 0.0
        %7566 = vmatpush1.msra.mxu0 0.0
        %7567 = vmatprep.subr.mxu0 0.0
        %7568 = vmatpush1.msra.mxu0 0.0
        %7569 = vmatprep.subr.mxu0 0.0
        %7570 = vmatpush1.msra.mxu0 0.0
        %7571 = vmatprep.subr.mxu0 0.0
        %7572 = vmatpush1.msra.mxu0 0.0
        %7573 = vmatprep.subr.mxu0 0.0
        %7574 = vmatpush1.msra.mxu0 0.0
        %7575 = vmatprep.subr.mxu0 0.0
        %7576 = vmatpush1.msra.mxu0 0.0
        %7577 = vmatprep.subr.mxu0 0.0
        %7578 = vmatpush1.msra.mxu0 0.0
        %7579 = vmatprep.subr.mxu0 0.0
        %7580 = vmatpush1.msra.mxu0 0.0
        %7581 = vmatprep.subr.mxu0 0.0
        %7582 = vmatpush1.msra.mxu0 0.0
        %7583 = vmatprep.subr.mxu0 0.0
        %7584 = vmatpush1.msra.mxu0 0.0
        %7585 = vmatprep.mubr.f32.mxu0 0.0
        %7586 = vmatmul.mubr.f32.gmra.mrb[0].mxu0 %v7147
        %v7587 = vpop.f32.mrb[0].mxu0
        %v7588 = vadd.f32 0.0, %v7587
        %v7589 = vpop.f32.mrb[0].mxu0
        %7590 = vmatprep.mubr.f32.mxu0 0.0
        %7591 = vmatmul.mubr.f32.gmra.mrb[0].mxu0 %v7150
        %v7592 = vpop.f32.mrb[0].mxu0
        %v7593 = vadd.f32 0.0, %v7592
        %v7594 = vpop.f32.mrb[0].mxu0
        %7595 = vmatprep.mubr.f32.mxu0 0.0
        %7596 = vmatmul.mubr.f32.gmra.mrb[0].mxu0 %v7153
        %v7597 = vpop.f32.mrb[0].mxu0
        %v7598 = vadd.f32 0.0, %v7597
        %v7599 = vpop.f32.mrb[0].mxu0
        %7600 = vmatprep.mubr.f32.mxu0 0.0
        %7601 = vmatmul.mubr.f32.gmra.mrb[0].mxu0 %v7156
        %v7602 = vpop.f32.mrb[0].mxu0
        %v7603 = vadd.f32 0.0, %v7602
        %v7604 = vpop.f32.mrb[0].mxu0
        %7605 = vmatprep.mubr.f32.mxu0 0.0
        %7606 = vmatmul.mubr.f32.gmra.mrb[0].mxu0 %v7159
        %v7607 = vpop.f32.mrb[0].mxu0
        %v7608 = vadd.f32 0.0, %v7607
        %v7609 = vpop.f32.mrb[0].mxu0
        %7610 = vdwg.mxu0
        %v7611 = vmul.f32 %v7228, %v7228
        %v7612 = vmul.f32 %v7233, %v7233
        %v7613 = vmul.f32 %v7238, %v7238
        %v7614 = vmul.f32 %v7243, %v7243
        %v7615 = vmul.f32 %v7248, %v7248
        %v7616 = vmul.f32 %v7318, %v7318
        %v7617 = vmul.f32 %v7323, %v7323
        %v7618 = vmul.f32 %v7328, %v7328
        %v7619 = vmul.f32 %v7333, %v7333
        %v7620 = vmul.f32 %v7338, %v7338
        %v7621 = vmul.f32 %v7228, %v7318
        %v7622 = vmul.f32 %v7233, %v7323
        %v7623 = vmul.f32 %v7238, %v7328
        %v7624 = vmul.f32 %v7243, %v7333
        %v7625 = vmul.f32 %v7248, %v7338
        %v7626 = vsub.f32 %v7408, %v7611
        %v7627 = vsub.f32 %v7413, %v7612
        %v7628 = vsub.f32 %v7418, %v7613
        %v7629 = vsub.f32 %v7423, %v7614
        %v7630 = vsub.f32 %v7428, %v7615
        %v7631 = vsub.f32 %v7498, %v7616
        %v7632 = vsub.f32 %v7503, %v7617
        %v7633 = vsub.f32 %v7508, %v7618
        %v7634 = vsub.f32 %v7513, %v7619
        %v7635 = vsub.f32 %v7518, %v7620
        %v7636 = vsub.f32 %v7588, %v7621
        %v7637 = vsub.f32 %v7593, %v7622
        %v7638 = vsub.f32 %v7598, %v7623
        %v7639 = vsub.f32 %v7603, %v7624
        %v7640 = vsub.f32 %v7608, %v7625
        %v7641 = vmul.f32 %v7636, 2.0
        %v7642 = vmul.f32 %v7637, 2.0
        %v7643 = vmul.f32 %v7638, 2.0
        %v7644 = vmul.f32 %v7639, 2.0
        %v7645 = vmul.f32 %v7640, 2.0
        %v7646 = vadd.f32 %v7641, 0.0009
        %v7647 = vadd.f32 %v7642, 0.0009
        %v7648 = vadd.f32 %v7643, 0.0009
        %v7649 = vadd.f32 %v7644, 0.0009
        %v7650 = vadd.f32 %v7645, 0.0009
        %v7651 = vadd.f32 %v7626, %v7631
        %v7652 = vadd.f32 %v7627, %v7632
        %v7653 = vadd.f32 %v7628, %v7633
        %v7654 = vadd.f32 %v7629, %v7634
        %v7655 = vadd.f32 %v7630, %v7635
        %v7656 = vadd.f32 %v7651, 0.0009
        %v7657 = vadd.f32 %v7652, 0.0009
        %v7658 = vadd.f32 %v7653, 0.0009
        %v7659 = vadd.f32 %v7654, 0.0009
        %v7660 = vadd.f32 %v7655, 0.0009
        %v7661 = vrcp.pop %v7656
        %v7662 = vmul.f32 %v7646, %v7661
        %v7663 = vrcp.pop %v7657
        %v7664 = vmul.f32 %v7647, %v7663
        %v7665 = vrcp.pop %v7658
        %v7666 = vmul.f32 %v7648, %v7665
        %v7667 = vrcp.pop %v7659
        %v7668 = vmul.f32 %v7649, %v7667
        %v7669 = vrcp.pop %v7660
        %v7670 = vmul.f32 %v7650, %v7669
        %vm7671 = vcmask 310272
        %v7672 = vsel %vm7671, %v7662, 0.0
        %v7673 = vsel %vm7671, %v7664, 0.0
        %v7674 = vadd.f32 %v7672, %v7673
        %v7675 = vsel %vm7671, %v7666, 0.0
        %v7676 = vadd.f32 %v7674, %v7675
        %v7677 = vsel %vm7671, %v7668, 0.0
        %v7678 = vadd.f32 %v7676, %v7677
        %vm7679 = vcmask 308224
        %v7680 = vsel %vm7679, %v7670, 0.0
        %v7681 = vadd.f32 %v7678, %v7680
        %7682 = vadd.xlane.f32.xlu0 %v7681
        %v7683 = vpop.xlane.xlu0 %7682
        %v7684 = vrot.slane %v7683, 4
        %v7685 = vadd.f32 %v7683, %v7684
        %v7686 = vrot.slane %v7685, 2
        %v7687 = vadd.f32 %v7685, %v7686
        %v7688 = vrot.slane %v7687, 1
        %v7689 = vadd.f32 %v7687, %v7688
        %s7690 = vtos %v7689
        %v7691 = vrcp.pop 1444.0
        %s7692 = vtos %v7691
        %s7693 = smul.f32 %s7690, %s7692
        %v7694 = vld [vmem:[#allocation24] sm:$0xff]
        %v7695 = vld [vmem:[#allocation24 + $0x8] sm:$0xff]
        %v7696 = vld [vmem:[#allocation24 + $0x10] sm:$0xff]
        %v7697 = vld [vmem:[#allocation24 + $0x18] sm:$0xff]
        %v7698 = vld [vmem:[#allocation24 + $0x20] sm:$0xff]
        %v7699 = vld [vmem:[#allocation24 + $0x28] sm:$0xff]
        %v7700 = vld [vmem:[#allocation30] sm:$0xff]
        %v7701 = vld [vmem:[#allocation30 + $0x8] sm:$0xff]
        %v7702 = vld [vmem:[#allocation30 + $0x10] sm:$0xff]
        %7703 = vmatprep.subr.mxu0 0.0
        %7704 = vmatpush1.msra.mxu0 %v7694
        %7705 = vmatprep.subr.mxu0 0.0
        %7706 = vmatpush1.msra.mxu0 %v7695
        %7707 = vmatprep.subr.mxu0 0.0
        %7708 = vmatpush1.msra.mxu0 %v7696
        %7709 = vmatprep.subr.mxu0 0.0
        %7710 = vmatpush1.msra.mxu0 %v7697
        %7711 = vmatprep.subr.mxu0 0.0
        %7712 = vmatpush1.msra.mxu0 %v7698
        %7713 = vmatprep.subr.mxu0 0.0
        %7714 = vmatpush1.msra.mxu0 %v7699
        %7715 = vmatprep.subr.mxu0 0.0
        %7716 = vmatpush1.msra.mxu0 0.0
        %7717 = vmatprep.subr.mxu0 0.0
        %7718 = vmatpush1.msra.mxu0 0.0
        %7719 = vmatprep.subr.mxu0 0.0
        %7720 = vmatpush1.msra.mxu0 0.0
        %7721 = vmatprep.subr.mxu0 0.0
        %7722 = vmatpush1.msra.mxu0 0.0
        %7723 = vmatprep.subr.mxu0 0.0
        %7724 = vmatpush1.msra.mxu0 0.0
        %7725 = vmatprep.subr.mxu0 0.0
        %7726 = vmatpush1.msra.mxu0 0.0
        %7727 = vmatprep.subr.mxu0 0.0
        %7728 = vmatpush1.msra.mxu0 0.0
        %7729 = vmatprep.subr.mxu0 0.0
        %7730 = vmatpush1.msra.mxu0 0.0
        %7731 = vmatprep.subr.mxu0 0.0
        %7732 = vmatpush1.msra.mxu0 0.0
        %7733 = vmatprep.subr.mxu0 0.0
        %7734 = vmatpush1.msra.mxu0 0.0
        %7735 = vmatprep.subr.mxu0 0.0
        %7736 = vmatpush1.msra.mxu0 0.0
        %7737 = vmatprep.subr.mxu0 0.0
        %7738 = vmatpush1.msra.mxu0 0.0
        %7739 = vmatprep.subr.mxu0 0.0
        %7740 = vmatpush1.msra.mxu0 0.0
        %7741 = vmatprep.subr.mxu0 0.0
        %7742 = vmatpush1.msra.mxu0 0.0
        %7743 = vmatprep.subr.mxu0 0.0
        %7744 = vmatpush1.msra.mxu0 0.0
        %7745 = vmatprep.subr.mxu0 0.0
        %7746 = vmatpush1.msra.mxu0 0.0
        %7747 = vmatprep.subr.mxu0 0.0
        %7748 = vmatpush1.msra.mxu0 0.0
        %7749 = vmatprep.subr.mxu0 0.0
        %7750 = vmatpush1.msra.mxu0 0.0
        %7751 = vmatprep.subr.mxu0 0.0
        %7752 = vmatpush1.msra.mxu0 0.0
        %7753 = vmatprep.subr.mxu0 0.0
        %7754 = vmatpush1.msra.mxu0 0.0
        %7755 = vmatprep.subr.mxu0 0.0
        %7756 = vmatpush1.msra.mxu0 0.0
        %7757 = vmatprep.subr.mxu0 0.0
        %7758 = vmatpush1.msra.mxu0 0.0
        %7759 = vmatprep.subr.mxu0 0.0
        %7760 = vmatpush1.msra.mxu0 0.0
        %7761 = vmatprep.subr.mxu0 0.0
        %7762 = vmatpush1.msra.mxu0 0.0
        %7763 = vmatprep.subr.mxu0 0.0
        %7764 = vmatpush1.msra.mxu0 0.0
        %7765 = vmatprep.subr.mxu0 0.0
        %7766 = vmatpush1.msra.mxu0 0.0
        %7767 = vmatprep.mubr.f32.mxu0 0.0
        %7768 = vmatmul.mubr.f32.gmra.mrb[0].mxu0 %v6842
        %v7769 = vpop.f32.mrb[0].mxu0
        %v7770 = vadd.f32 0.0, %v7769
        %v7771 = vpop.f32.mrb[0].mxu0
        %7772 = vmatprep.mubr.f32.mxu0 0.0
        %7773 = vmatmul.mubr.f32.gmra.mrb[0].mxu0 %v6845
        %v7774 = vpop.f32.mrb[0].mxu0
        %v7775 = vadd.f32 0.0, %v7774
        %v7776 = vpop.f32.mrb[0].mxu0
        %7777 = vmatprep.mubr.f32.mxu0 0.0
        %7778 = vmatmul.mubr.f32.gmra.mrb[0].mxu0 %v6848
        %v7779 = vpop.f32.mrb[0].mxu0
        %v7780 = vadd.f32 0.0, %v7779
        %v7781 = vpop.f32.mrb[0].mxu0
        %7782 = vmatprep.mubr.f32.mxu0 0.0
        %7783 = vmatmul.mubr.f32.gmra.mrb[0].mxu0 %v6851
        %v7784 = vpop.f32.mrb[0].mxu0
        %v7785 = vadd.f32 0.0, %v7784
        %v7786 = vpop.f32.mrb[0].mxu0
        %7787 = vmatprep.mubr.f32.mxu0 0.0
        %7788 = vmatmul.mubr.f32.gmra.mrb[0].mxu0 %v6854
        %v7789 = vpop.f32.mrb[0].mxu0
        %v7790 = vadd.f32 0.0, %v7789
        %v7791 = vpop.f32.mrb[0].mxu0
        %7792 = vmatprep.mubr.f32.mxu0 0.0
        %7793 = vmatmul.mubr.f32.gmra.mrb[0].mxu0 %v6857
        %v7794 = vpop.f32.mrb[0].mxu0
        %v7795 = vadd.f32 0.0, %v7794
        %v7796 = vpop.f32.mrb[0].mxu0
        %7797 = vmatprep.mubr.f32.mxu0 0.0
        %7798 = vmatmul.mubr.f32.gmra.mrb[0].mxu0 %v6860
        %v7799 = vpop.f32.mrb[0].mxu0
        %v7800 = vadd.f32 0.0, %v7799
        %v7801 = vpop.f32.mrb[0].mxu0
        %7802 = vmatprep.mubr.f32.mxu0 0.0
        %7803 = vmatmul.mubr.f32.gmra.mrb[0].mxu0 %v6863
        %v7804 = vpop.f32.mrb[0].mxu0
        %v7805 = vadd.f32 0.0, %v7804
        %v7806 = vpop.f32.mrb[0].mxu0
        %7807 = vmatprep.mubr.f32.mxu0 0.0
        %7808 = vmatmul.mubr.f32.gmra.mrb[0].mxu0 %v6866
        %v7809 = vpop.f32.mrb[0].mxu0
        %v7810 = vadd.f32 0.0, %v7809
        %v7811 = vpop.f32.mrb[0].mxu0
        %7812 = vmatprep.mubr.f32.mxu0 0.0
        %7813 = vmatmul.mubr.f32.gmra.mrb[0].mxu0 %v6869
        %v7814 = vpop.f32.mrb[0].mxu0
        %v7815 = vadd.f32 0.0, %v7814
        %v7816 = vpop.f32.mrb[0].mxu0
        %7817 = vmatprep.mubr.f32.mxu0 0.0
        %7818 = vmatmul.mubr.f32.gmra.mrb[0].mxu0 %v6872
        %v7819 = vpop.f32.mrb[0].mxu0
        %v7820 = vadd.f32 0.0, %v7819
        %v7821 = vpop.f32.mrb[0].mxu0
        %7822 = vmatprep.mubr.f32.mxu0 0.0
        %7823 = vmatmul.mubr.f32.gmra.mrb[0].mxu0 %v6875
        %v7824 = vpop.f32.mrb[0].mxu0
        %v7825 = vadd.f32 0.0, %v7824
        %v7826 = vpop.f32.mrb[0].mxu0
        %7827 = vdwg.mxu0
        %v7829 = vsel %vm6840, %v7700, 0
        %v7832 = vsel %vm6840, %v7701, 0
        %v7835 = vsel %vm6840, %v7702, 0
        %7837 = vmatprep.subr.mxu0 0.0
        %7838 = vmatpush1.msra.mxu0 %v7770
        %7839 = vmatprep.subr.mxu0 0.0
        %7840 = vmatpush1.msra.mxu0 %v7775
        %7841 = vmatprep.subr.mxu0 0.0
        %7842 = vmatpush1.msra.mxu0 %v7780
        %7843 = vmatprep.subr.mxu0 0.0
        %7844 = vmatpush1.msra.mxu0 %v7785
        %7845 = vmatprep.subr.mxu0 0.0
        %7846 = vmatpush1.msra.mxu0 %v7790
        %7847 = vmatprep.subr.mxu0 0.0
        %7848 = vmatpush1.msra.mxu0 %v7795
        %7849 = vmatprep.subr.mxu0 0.0
        %7850 = vmatpush1.msra.mxu0 0.0
        %7851 = vmatprep.subr.mxu0 0.0
        %7852 = vmatpush1.msra.mxu0 0.0
        %7853 = vmatprep.subr.mxu0 0.0
        %7854 = vmatpush1.msra.mxu0 0.0
        %7855 = vmatprep.subr.mxu0 0.0
        %7856 = vmatpush1.msra.mxu0 0.0
        %7857 = vmatprep.subr.mxu0 0.0
        %7858 = vmatpush1.msra.mxu0 0.0
        %7859 = vmatprep.subr.mxu0 0.0
        %7860 = vmatpush1.msra.mxu0 0.0
        %7861 = vmatprep.subr.mxu0 0.0
        %7862 = vmatpush1.msra.mxu0 0.0
        %7863 = vmatprep.subr.mxu0 0.0
        %7864 = vmatpush1.msra.mxu0 0.0
        %7865 = vmatprep.subr.mxu0 0.0
        %7866 = vmatpush1.msra.mxu0 0.0
        %7867 = vmatprep.subr.mxu0 0.0
        %7868 = vmatpush1.msra.mxu0 0.0
        %7869 = vmatprep.subr.mxu0 0.0
        %7870 = vmatpush1.msra.mxu0 0.0
        %7871 = vmatprep.subr.mxu0 0.0
        %7872 = vmatpush1.msra.mxu0 0.0
        %7873 = vmatprep.subr.mxu0 0.0
        %7874 = vmatpush1.msra.mxu0 0.0
        %7875 = vmatprep.subr.mxu0 0.0
        %7876 = vmatpush1.msra.mxu0 0.0
        %7877 = vmatprep.subr.mxu0 0.0
        %7878 = vmatpush1.msra.mxu0 0.0
        %7879 = vmatprep.subr.mxu0 0.0
        %7880 = vmatpush1.msra.mxu0 0.0
        %7881 = vmatprep.subr.mxu0 0.0
        %7882 = vmatpush1.msra.mxu0 0.0
        %7883 = vmatprep.subr.mxu0 0.0
        %7884 = vmatpush1.msra.mxu0 0.0
        %7885 = vmatprep.subr.mxu0 0.0
        %7886 = vmatpush1.msra.mxu0 0.0
        %7887 = vmatprep.subr.mxu0 0.0
        %7888 = vmatpush1.msra.mxu0 0.0
        %7889 = vmatprep.subr.mxu0 0.0
        %7890 = vmatpush1.msra.mxu0 0.0
        %7891 = vmatprep.subr.mxu0 0.0
        %7892 = vmatpush1.msra.mxu0 0.0
        %7893 = vmatprep.subr.mxu0 0.0
        %7894 = vmatpush1.msra.mxu0 0.0
        %7895 = vmatprep.subr.mxu0 0.0
        %7896 = vmatpush1.msra.mxu0 0.0
        %7897 = vmatprep.subr.mxu0 0.0
        %7898 = vmatpush1.msra.mxu0 0.0
        %7899 = vmatprep.subr.mxu0 0.0
        %7900 = vmatpush1.msra.mxu0 0.0
        %7901 = vmatprep.mubr.f32.mxu0 0.0
        %7902 = vmatmul.mubr.f32.gmra.mrb[0].mxu0 %v7829
        %v7903 = vpop.f32.mrb[0].mxu0
        %v7904 = vadd.f32 0.0, %v7903
        %v7905 = vpop.f32.mrb[0].mxu0
        %7906 = vmatprep.mubr.f32.mxu0 0.0
        %7907 = vmatmul.mubr.f32.gmra.mrb[0].mxu0 %v7832
        %v7908 = vpop.f32.mrb[0].mxu0
        %v7909 = vadd.f32 0.0, %v7908
        %v7910 = vpop.f32.mrb[0].mxu0
        %7911 = vmatprep.mubr.f32.mxu0 0.0
        %7912 = vmatmul.mubr.f32.gmra.mrb[0].mxu0 %v7835
        %v7913 = vpop.f32.mrb[0].mxu0
        %v7914 = vadd.f32 0.0, %v7913
        %v7915 = vpop.f32.mrb[0].mxu0
        %7916 = vdwg.mxu0
        %7917 = vmatprep.subr.mxu0 0.0
        %7918 = vmatpush1.msra.mxu0 %v7800
        %7919 = vmatprep.subr.mxu0 0.0
        %7920 = vmatpush1.msra.mxu0 %v7805
        %7921 = vmatprep.subr.mxu0 0.0
        %7922 = vmatpush1.msra.mxu0 %v7810
        %7923 = vmatprep.subr.mxu0 0.0
        %7924 = vmatpush1.msra.mxu0 %v7815
        %7925 = vmatprep.subr.mxu0 0.0
        %7926 = vmatpush1.msra.mxu0 %v7820
        %7927 = vmatprep.subr.mxu0 0.0
        %7928 = vmatpush1.msra.mxu0 %v7825
        %7929 = vmatprep.subr.mxu0 0.0
        %7930 = vmatpush1.msra.mxu0 0.0
        %7931 = vmatprep.subr.mxu0 0.0
        %7932 = vmatpush1.msra.mxu0 0.0
        %7933 = vmatprep.subr.mxu0 0.0
        %7934 = vmatpush1.msra.mxu0 0.0
        %7935 = vmatprep.subr.mxu0 0.0
        %7936 = vmatpush1.msra.mxu0 0.0
        %7937 = vmatprep.subr.mxu0 0.0
        %7938 = vmatpush1.msra.mxu0 0.0
        %7939 = vmatprep.subr.mxu0 0.0
        %7940 = vmatpush1.msra.mxu0 0.0
        %7941 = vmatprep.subr.mxu0 0.0
        %7942 = vmatpush1.msra.mxu0 0.0
        %7943 = vmatprep.subr.mxu0 0.0
        %7944 = vmatpush1.msra.mxu0 0.0
        %7945 = vmatprep.subr.mxu0 0.0
        %7946 = vmatpush1.msra.mxu0 0.0
        %7947 = vmatprep.subr.mxu0 0.0
        %7948 = vmatpush1.msra.mxu0 0.0
        %7949 = vmatprep.subr.mxu0 0.0
        %7950 = vmatpush1.msra.mxu0 0.0
        %7951 = vmatprep.subr.mxu0 0.0
        %7952 = vmatpush1.msra.mxu0 0.0
        %7953 = vmatprep.subr.mxu0 0.0
        %7954 = vmatpush1.msra.mxu0 0.0
        %7955 = vmatprep.subr.mxu0 0.0
        %7956 = vmatpush1.msra.mxu0 0.0
        %7957 = vmatprep.subr.mxu0 0.0
        %7958 = vmatpush1.msra.mxu0 0.0
        %7959 = vmatprep.subr.mxu0 0.0
        %7960 = vmatpush1.msra.mxu0 0.0
        %7961 = vmatprep.subr.mxu0 0.0
        %7962 = vmatpush1.msra.mxu0 0.0
        %7963 = vmatprep.subr.mxu0 0.0
        %7964 = vmatpush1.msra.mxu0 0.0
        %7965 = vmatprep.subr.mxu0 0.0
        %7966 = vmatpush1.msra.mxu0 0.0
        %7967 = vmatprep.subr.mxu0 0.0
        %7968 = vmatpush1.msra.mxu0 0.0
        %7969 = vmatprep.subr.mxu0 0.0
        %7970 = vmatpush1.msra.mxu0 0.0
        %7971 = vmatprep.subr.mxu0 0.0
        %7972 = vmatpush1.msra.mxu0 0.0
        %7973 = vmatprep.subr.mxu0 0.0
        %7974 = vmatpush1.msra.mxu0 0.0
        %7975 = vmatprep.subr.mxu0 0.0
        %7976 = vmatpush1.msra.mxu0 0.0
        %7977 = vmatprep.subr.mxu0 0.0
        %7978 = vmatpush1.msra.mxu0 0.0
        %7979 = vmatprep.subr.mxu0 0.0
        %7980 = vmatpush1.msra.mxu0 0.0
        %7981 = vmatprep.mubr.f32.mxu0 0.0
        %7982 = vmatmul.mubr.f32.gmra.mrb[0].mxu0 %v7829
        %v7983 = vpop.f32.mrb[0].mxu0
        %v7984 = vadd.f32 0.0, %v7983
        %v7985 = vpop.f32.mrb[0].mxu0
        %7986 = vmatprep.mubr.f32.mxu0 0.0
        %7987 = vmatmul.mubr.f32.gmra.mrb[0].mxu0 %v7832
        %v7988 = vpop.f32.mrb[0].mxu0
        %v7989 = vadd.f32 0.0, %v7988
        %v7990 = vpop.f32.mrb[0].mxu0
        %7991 = vmatprep.mubr.f32.mxu0 0.0
        %7992 = vmatmul.mubr.f32.gmra.mrb[0].mxu0 %v7835
        %v7993 = vpop.f32.mrb[0].mxu0
        %v7994 = vadd.f32 0.0, %v7993
        %v7995 = vpop.f32.mrb[0].mxu0
        %7996 = vdwg.mxu0
        %v7997 = vld [vmem:[#allocation10] sm:$0xff]
        %v7998 = vld [vmem:[#allocation10 + $0x8] sm:$0xff]
        %v7999 = vld [vmem:[#allocation10 + $0x10] sm:$0xff]
        %v8000 = vld [vmem:[#allocation18] sm:$0xff]
        %v8001 = vld [vmem:[#allocation18 + $0x8] sm:$0x3f]
        %v8002 = vmul.f32 %v7904, %v7904
        %v8003 = vmul.f32 %v7909, %v7909
        %v8004 = vmul.f32 %v7914, %v7914
        %v8005 = vmul.f32 %v7984, %v7984
        %v8006 = vmul.f32 %v7989, %v7989
        %v8007 = vmul.f32 %v7994, %v7994
        %v8008 = vmul.f32 %v7904, %v7984
        %v8009 = vmul.f32 %v7909, %v7989
        %v8010 = vmul.f32 %v7914, %v7994
        %vm8011 = vcmask 195584
        %v8013 = vsel %vm8011, %v7904, 0
        %v8016 = vsel %vm8011, %v7909, 0
        %v8019 = vsel %vm8011, %v7914, 0
        %v8022 = vsel %vm8011, %v7984, 0
        %v8025 = vsel %vm8011, %v7989, 0
        %v8028 = vsel %vm8011, %v7994, 0
        %v8031 = vsel %vm8011, %v8002, 0
        %v8034 = vsel %vm8011, %v8003, 0
        %v8037 = vsel %vm8011, %v8004, 0
        %v8040 = vsel %vm8011, %v8005, 0
        %v8043 = vsel %vm8011, %v8006, 0
        %v8046 = vsel %vm8011, %v8007, 0
        %v8049 = vsel %vm8011, %v8008, 0
        %v8052 = vsel %vm8011, %v8009, 0
        %v8055 = vsel %vm8011, %v8010, 0
        %8057 = vmatprep.subr.mxu0 0.0
        %8058 = vmatpush1.msra.mxu0 %v7997
        %8059 = vmatprep.subr.mxu0 0.0
        %8060 = vmatpush1.msra.mxu0 %v7998
        %8061 = vmatprep.subr.mxu0 0.0
        %8062 = vmatpush1.msra.mxu0 %v7999
        %8063 = vmatprep.subr.mxu0 0.0
        %8064 = vmatpush1.msra.mxu0 0.0
        %8065 = vmatprep.subr.mxu0 0.0
        %8066 = vmatpush1.msra.mxu0 0.0
        %8067 = vmatprep.subr.mxu0 0.0
        %8068 = vmatpush1.msra.mxu0 0.0
        %8069 = vmatprep.subr.mxu0 0.0
        %8070 = vmatpush1.msra.mxu0 0.0
        %8071 = vmatprep.subr.mxu0 0.0
        %8072 = vmatpush1.msra.mxu0 0.0
        %8073 = vmatprep.subr.mxu0 0.0
        %8074 = vmatpush1.msra.mxu0 0.0
        %8075 = vmatprep.subr.mxu0 0.0
        %8076 = vmatpush1.msra.mxu0 0.0
        %8077 = vmatprep.subr.mxu0 0.0
        %8078 = vmatpush1.msra.mxu0 0.0
        %8079 = vmatprep.subr.mxu0 0.0
        %8080 = vmatpush1.msra.mxu0 0.0
        %8081 = vmatprep.subr.mxu0 0.0
        %8082 = vmatpush1.msra.mxu0 0.0
        %8083 = vmatprep.subr.mxu0 0.0
        %8084 = vmatpush1.msra.mxu0 0.0
        %8085 = vmatprep.subr.mxu0 0.0
        %8086 = vmatpush1.msra.mxu0 0.0
        %8087 = vmatprep.subr.mxu0 0.0
        %8088 = vmatpush1.msra.mxu0 0.0
        %8089 = vmatprep.subr.mxu0 0.0
        %8090 = vmatpush1.msra.mxu0 0.0
        %8091 = vmatprep.subr.mxu0 0.0
        %8092 = vmatpush1.msra.mxu0 0.0
        %8093 = vmatprep.subr.mxu0 0.0
        %8094 = vmatpush1.msra.mxu0 0.0
        %8095 = vmatprep.subr.mxu0 0.0
        %8096 = vmatpush1.msra.mxu0 0.0
        %8097 = vmatprep.subr.mxu0 0.0
        %8098 = vmatpush1.msra.mxu0 0.0
        %8099 = vmatprep.subr.mxu0 0.0
        %8100 = vmatpush1.msra.mxu0 0.0
        %8101 = vmatprep.subr.mxu0 0.0
        %8102 = vmatpush1.msra.mxu0 0.0
        %8103 = vmatprep.subr.mxu0 0.0
        %8104 = vmatpush1.msra.mxu0 0.0
        %8105 = vmatprep.subr.mxu0 0.0
        %8106 = vmatpush1.msra.mxu0 0.0
        %8107 = vmatprep.subr.mxu0 0.0
        %8108 = vmatpush1.msra.mxu0 0.0
        %8109 = vmatprep.subr.mxu0 0.0
        %8110 = vmatpush1.msra.mxu0 0.0
        %8111 = vmatprep.subr.mxu0 0.0
        %8112 = vmatpush1.msra.mxu0 0.0
        %8113 = vmatprep.subr.mxu0 0.0
        %8114 = vmatpush1.msra.mxu0 0.0
        %8115 = vmatprep.subr.mxu0 0.0
        %8116 = vmatpush1.msra.mxu0 0.0
        %8117 = vmatprep.subr.mxu0 0.0
        %8118 = vmatpush1.msra.mxu0 0.0
        %8119 = vmatprep.subr.mxu0 0.0
        %8120 = vmatpush1.msra.mxu0 0.0
        %8121 = vmatprep.mubr.f32.mxu0 0.0
        %8122 = vmatmul.mubr.f32.gmra.mrb[0].mxu0 %v8013
        %v8123 = vpop.f32.mrb[0].mxu0
        %v8124 = vadd.f32 0.0, %v8123
        %v8125 = vpop.f32.mrb[0].mxu0
        %8126 = vmatprep.mubr.f32.mxu0 0.0
        %8127 = vmatmul.mubr.f32.gmra.mrb[0].mxu0 %v8016
        %v8128 = vpop.f32.mrb[0].mxu0
        %v8129 = vadd.f32 0.0, %v8128
        %v8130 = vpop.f32.mrb[0].mxu0
        %8131 = vmatprep.mubr.f32.mxu0 0.0
        %8132 = vmatmul.mubr.f32.gmra.mrb[0].mxu0 %v8019
        %v8133 = vpop.f32.mrb[0].mxu0
        %v8134 = vadd.f32 0.0, %v8133
        %v8135 = vpop.f32.mrb[0].mxu0
        %8136 = vmatprep.mubr.f32.mxu0 0.0
        %8137 = vmatmul.mubr.f32.gmra.mrb[0].mxu0 %v8022
        %v8138 = vpop.f32.mrb[0].mxu0
        %v8139 = vadd.f32 0.0, %v8138
        %v8140 = vpop.f32.mrb[0].mxu0
        %8141 = vmatprep.mubr.f32.mxu0 0.0
        %8142 = vmatmul.mubr.f32.gmra.mrb[0].mxu0 %v8025
        %v8143 = vpop.f32.mrb[0].mxu0
        %v8144 = vadd.f32 0.0, %v8143
        %v8145 = vpop.f32.mrb[0].mxu0
        %8146 = vmatprep.mubr.f32.mxu0 0.0
        %8147 = vmatmul.mubr.f32.gmra.mrb[0].mxu0 %v8028
        %v8148 = vpop.f32.mrb[0].mxu0
        %v8149 = vadd.f32 0.0, %v8148
        %v8150 = vpop.f32.mrb[0].mxu0
        %8151 = vmatprep.mubr.f32.mxu0 0.0
        %8152 = vmatmul.mubr.f32.gmra.mrb[0].mxu0 %v8031
        %v8153 = vpop.f32.mrb[0].mxu0
        %v8154 = vadd.f32 0.0, %v8153
        %v8155 = vpop.f32.mrb[0].mxu0
        %8156 = vmatprep.mubr.f32.mxu0 0.0
        %8157 = vmatmul.mubr.f32.gmra.mrb[0].mxu0 %v8034
        %v8158 = vpop.f32.mrb[0].mxu0
        %v8159 = vadd.f32 0.0, %v8158
        %v8160 = vpop.f32.mrb[0].mxu0
        %8161 = vmatprep.mubr.f32.mxu0 0.0
        %8162 = vmatmul.mubr.f32.gmra.mrb[0].mxu0 %v8037
        %v8163 = vpop.f32.mrb[0].mxu0
        %v8164 = vadd.f32 0.0, %v8163
        %v8165 = vpop.f32.mrb[0].mxu0
        %8166 = vmatprep.mubr.f32.mxu0 0.0
        %8167 = vmatmul.mubr.f32.gmra.mrb[0].mxu0 %v8040
        %v8168 = vpop.f32.mrb[0].mxu0
        %v8169 = vadd.f32 0.0, %v8168
        %v8170 = vpop.f32.mrb[0].mxu0
        %8171 = vmatprep.mubr.f32.mxu0 0.0
        %8172 = vmatmul.mubr.f32.gmra.mrb[0].mxu0 %v8043
        %v8173 = vpop.f32.mrb[0].mxu0
        %v8174 = vadd.f32 0.0, %v8173
        %v8175 = vpop.f32.mrb[0].mxu0
        %8176 = vmatprep.mubr.f32.mxu0 0.0
        %8177 = vmatmul.mubr.f32.gmra.mrb[0].mxu0 %v8046
        %v8178 = vpop.f32.mrb[0].mxu0
        %v8179 = vadd.f32 0.0, %v8178
        %v8180 = vpop.f32.mrb[0].mxu0
        %8181 = vmatprep.mubr.f32.mxu0 0.0
        %8182 = vmatmul.mubr.f32.gmra.mrb[0].mxu0 %v8049
        %v8183 = vpop.f32.mrb[0].mxu0
        %v8184 = vadd.f32 0.0, %v8183
        %v8185 = vpop.f32.mrb[0].mxu0
        %8186 = vmatprep.mubr.f32.mxu0 0.0
        %8187 = vmatmul.mubr.f32.gmra.mrb[0].mxu0 %v8052
        %v8188 = vpop.f32.mrb[0].mxu0
        %v8189 = vadd.f32 0.0, %v8188
        %v8190 = vpop.f32.mrb[0].mxu0
        %8191 = vmatprep.mubr.f32.mxu0 0.0
        %8192 = vmatmul.mubr.f32.gmra.mrb[0].mxu0 %v8055
        %v8193 = vpop.f32.mrb[0].mxu0
        %v8194 = vadd.f32 0.0, %v8193
        %v8195 = vpop.f32.mrb[0].mxu0
        %8196 = vdwg.mxu0
        %v8198 = vsel %vm8011, %v8000, 0
        %v8201 = vsel %vm8011, %v8001, 0
        %8203 = vmatprep.subr.mxu0 0.0
        %8204 = vmatpush1.msra.mxu0 %v8124
        %8205 = vmatprep.subr.mxu0 0.0
        %8206 = vmatpush1.msra.mxu0 %v8129
        %8207 = vmatprep.subr.mxu0 0.0
        %8208 = vmatpush1.msra.mxu0 %v8134
        %8209 = vmatprep.subr.mxu0 0.0
        %8210 = vmatpush1.msra.mxu0 0.0
        %8211 = vmatprep.subr.mxu0 0.0
        %8212 = vmatpush1.msra.mxu0 0.0
        %8213 = vmatprep.subr.mxu0 0.0
        %8214 = vmatpush1.msra.mxu0 0.0
        %8215 = vmatprep.subr.mxu0 0.0
        %8216 = vmatpush1.msra.mxu0 0.0
        %8217 = vmatprep.subr.mxu0 0.0
        %8218 = vmatpush1.msra.mxu0 0.0
        %8219 = vmatprep.subr.mxu0 0.0
        %8220 = vmatpush1.msra.mxu0 0.0
        %8221 = vmatprep.subr.mxu0 0.0
        %8222 = vmatpush1.msra.mxu0 0.0
        %8223 = vmatprep.subr.mxu0 0.0
        %8224 = vmatpush1.msra.mxu0 0.0
        %8225 = vmatprep.subr.mxu0 0.0
        %8226 = vmatpush1.msra.mxu0 0.0
        %8227 = vmatprep.subr.mxu0 0.0
        %8228 = vmatpush1.msra.mxu0 0.0
        %8229 = vmatprep.subr.mxu0 0.0
        %8230 = vmatpush1.msra.mxu0 0.0
        %8231 = vmatprep.subr.mxu0 0.0
        %8232 = vmatpush1.msra.mxu0 0.0
        %8233 = vmatprep.subr.mxu0 0.0
        %8234 = vmatpush1.msra.mxu0 0.0
        %8235 = vmatprep.subr.mxu0 0.0
        %8236 = vmatpush1.msra.mxu0 0.0
        %8237 = vmatprep.subr.mxu0 0.0
        %8238 = vmatpush1.msra.mxu0 0.0
        %8239 = vmatprep.subr.mxu0 0.0
        %8240 = vmatpush1.msra.mxu0 0.0
        %8241 = vmatprep.subr.mxu0 0.0
        %8242 = vmatpush1.msra.mxu0 0.0
        %8243 = vmatprep.subr.mxu0 0.0
        %8244 = vmatpush1.msra.mxu0 0.0
        %8245 = vmatprep.subr.mxu0 0.0
        %8246 = vmatpush1.msra.mxu0 0.0
        %8247 = vmatprep.subr.mxu0 0.0
        %8248 = vmatpush1.msra.mxu0 0.0
        %8249 = vmatprep.subr.mxu0 0.0
        %8250 = vmatpush1.msra.mxu0 0.0
        %8251 = vmatprep.subr.mxu0 0.0
        %8252 = vmatpush1.msra.mxu0 0.0
        %8253 = vmatprep.subr.mxu0 0.0
        %8254 = vmatpush1.msra.mxu0 0.0
        %8255 = vmatprep.subr.mxu0 0.0
        %8256 = vmatpush1.msra.mxu0 0.0
        %8257 = vmatprep.subr.mxu0 0.0
        %8258 = vmatpush1.msra.mxu0 0.0
        %8259 = vmatprep.subr.mxu0 0.0
        %8260 = vmatpush1.msra.mxu0 0.0
        %8261 = vmatprep.subr.mxu0 0.0
        %8262 = vmatpush1.msra.mxu0 0.0
        %8263 = vmatprep.subr.mxu0 0.0
        %8264 = vmatpush1.msra.mxu0 0.0
        %8265 = vmatprep.subr.mxu0 0.0
        %8266 = vmatpush1.msra.mxu0 0.0
        %8267 = vmatprep.mubr.f32.mxu0 0.0
        %8268 = vmatmul.mubr.f32.gmra.mrb[0].mxu0 %v8198
        %v8269 = vpop.f32.mrb[0].mxu0
        %v8270 = vadd.f32 0.0, %v8269
        %v8271 = vpop.f32.mrb[0].mxu0
        %8272 = vmatprep.mubr.f32.mxu0 0.0
        %8273 = vmatmul.mubr.f32.gmra.mrb[0].mxu0 %v8201
        %v8274 = vpop.f32.mrb[0].mxu0
        %v8275 = vadd.f32 0.0, %v8274
        %v8276 = vpop.f32.mrb[0].mxu0
        %8277 = vdwg.mxu0
        %8278 = vmatprep.subr.mxu0 0.0
        %8279 = vmatpush1.msra.mxu0 %v8139
        %8280 = vmatprep.subr.mxu0 0.0
        %8281 = vmatpush1.msra.mxu0 %v8144
        %8282 = vmatprep.subr.mxu0 0.0
        %8283 = vmatpush1.msra.mxu0 %v8149
        %8284 = vmatprep.subr.mxu0 0.0
        %8285 = vmatpush1.msra.mxu0 0.0
        %8286 = vmatprep.subr.mxu0 0.0
        %8287 = vmatpush1.msra.mxu0 0.0
        %8288 = vmatprep.subr.mxu0 0.0
        %8289 = vmatpush1.msra.mxu0 0.0
        %8290 = vmatprep.subr.mxu0 0.0
        %8291 = vmatpush1.msra.mxu0 0.0
        %8292 = vmatprep.subr.mxu0 0.0
        %8293 = vmatpush1.msra.mxu0 0.0
        %8294 = vmatprep.subr.mxu0 0.0
        %8295 = vmatpush1.msra.mxu0 0.0
        %8296 = vmatprep.subr.mxu0 0.0
        %8297 = vmatpush1.msra.mxu0 0.0
        %8298 = vmatprep.subr.mxu0 0.0
        %8299 = vmatpush1.msra.mxu0 0.0
        %8300 = vmatprep.subr.mxu0 0.0
        %8301 = vmatpush1.msra.mxu0 0.0
        %8302 = vmatprep.subr.mxu0 0.0
        %8303 = vmatpush1.msra.mxu0 0.0
        %8304 = vmatprep.subr.mxu0 0.0
        %8305 = vmatpush1.msra.mxu0 0.0
        %8306 = vmatprep.subr.mxu0 0.0
        %8307 = vmatpush1.msra.mxu0 0.0
        %8308 = vmatprep.subr.mxu0 0.0
        %8309 = vmatpush1.msra.mxu0 0.0
        %8310 = vmatprep.subr.mxu0 0.0
        %8311 = vmatpush1.msra.mxu0 0.0
        %8312 = vmatprep.subr.mxu0 0.0
        %8313 = vmatpush1.msra.mxu0 0.0
        %8314 = vmatprep.subr.mxu0 0.0
        %8315 = vmatpush1.msra.mxu0 0.0
        %8316 = vmatprep.subr.mxu0 0.0
        %8317 = vmatpush1.msra.mxu0 0.0
        %8318 = vmatprep.subr.mxu0 0.0
        %8319 = vmatpush1.msra.mxu0 0.0
        %8320 = vmatprep.subr.mxu0 0.0
        %8321 = vmatpush1.msra.mxu0 0.0
        %8322 = vmatprep.subr.mxu0 0.0
        %8323 = vmatpush1.msra.mxu0 0.0
        %8324 = vmatprep.subr.mxu0 0.0
        %8325 = vmatpush1.msra.mxu0 0.0
        %8326 = vmatprep.subr.mxu0 0.0
        %8327 = vmatpush1.msra.mxu0 0.0
        %8328 = vmatprep.subr.mxu0 0.0
        %8329 = vmatpush1.msra.mxu0 0.0
        %8330 = vmatprep.subr.mxu0 0.0
        %8331 = vmatpush1.msra.mxu0 0.0
        %8332 = vmatprep.subr.mxu0 0.0
        %8333 = vmatpush1.msra.mxu0 0.0
        %8334 = vmatprep.subr.mxu0 0.0
        %8335 = vmatpush1.msra.mxu0 0.0
        %8336 = vmatprep.subr.mxu0 0.0
        %8337 = vmatpush1.msra.mxu0 0.0
        %8338 = vmatprep.subr.mxu0 0.0
        %8339 = vmatpush1.msra.mxu0 0.0
        %8340 = vmatprep.subr.mxu0 0.0
        %8341 = vmatpush1.msra.mxu0 0.0
        %8342 = vmatprep.mubr.f32.mxu0 0.0
        %8343 = vmatmul.mubr.f32.gmra.mrb[0].mxu0 %v8198
        %v8344 = vpop.f32.mrb[0].mxu0
        %v8345 = vadd.f32 0.0, %v8344
        %v8346 = vpop.f32.mrb[0].mxu0
        %8347 = vmatprep.mubr.f32.mxu0 0.0
        %8348 = vmatmul.mubr.f32.gmra.mrb[0].mxu0 %v8201
        %v8349 = vpop.f32.mrb[0].mxu0
        %v8350 = vadd.f32 0.0, %v8349
        %v8351 = vpop.f32.mrb[0].mxu0
        %8352 = vdwg.mxu0
        %8353 = vmatprep.subr.mxu0 0.0
        %8354 = vmatpush1.msra.mxu0 %v8154
        %8355 = vmatprep.subr.mxu0 0.0
        %8356 = vmatpush1.msra.mxu0 %v8159
        %8357 = vmatprep.subr.mxu0 0.0
        %8358 = vmatpush1.msra.mxu0 %v8164
        %8359 = vmatprep.subr.mxu0 0.0
        %8360 = vmatpush1.msra.mxu0 0.0
        %8361 = vmatprep.subr.mxu0 0.0
        %8362 = vmatpush1.msra.mxu0 0.0
        %8363 = vmatprep.subr.mxu0 0.0
        %8364 = vmatpush1.msra.mxu0 0.0
        %8365 = vmatprep.subr.mxu0 0.0
        %8366 = vmatpush1.msra.mxu0 0.0
        %8367 = vmatprep.subr.mxu0 0.0
        %8368 = vmatpush1.msra.mxu0 0.0
        %8369 = vmatprep.subr.mxu0 0.0
        %8370 = vmatpush1.msra.mxu0 0.0
        %8371 = vmatprep.subr.mxu0 0.0
        %8372 = vmatpush1.msra.mxu0 0.0
        %8373 = vmatprep.subr.mxu0 0.0
        %8374 = vmatpush1.msra.mxu0 0.0
        %8375 = vmatprep.subr.mxu0 0.0
        %8376 = vmatpush1.msra.mxu0 0.0
        %8377 = vmatprep.subr.mxu0 0.0
        %8378 = vmatpush1.msra.mxu0 0.0
        %8379 = vmatprep.subr.mxu0 0.0
        %8380 = vmatpush1.msra.mxu0 0.0
        %8381 = vmatprep.subr.mxu0 0.0
        %8382 = vmatpush1.msra.mxu0 0.0
        %8383 = vmatprep.subr.mxu0 0.0
        %8384 = vmatpush1.msra.mxu0 0.0
        %8385 = vmatprep.subr.mxu0 0.0
        %8386 = vmatpush1.msra.mxu0 0.0
        %8387 = vmatprep.subr.mxu0 0.0
        %8388 = vmatpush1.msra.mxu0 0.0
        %8389 = vmatprep.subr.mxu0 0.0
        %8390 = vmatpush1.msra.mxu0 0.0
        %8391 = vmatprep.subr.mxu0 0.0
        %8392 = vmatpush1.msra.mxu0 0.0
        %8393 = vmatprep.subr.mxu0 0.0
        %8394 = vmatpush1.msra.mxu0 0.0
        %8395 = vmatprep.subr.mxu0 0.0
        %8396 = vmatpush1.msra.mxu0 0.0
        %8397 = vmatprep.subr.mxu0 0.0
        %8398 = vmatpush1.msra.mxu0 0.0
        %8399 = vmatprep.subr.mxu0 0.0
        %8400 = vmatpush1.msra.mxu0 0.0
        %8401 = vmatprep.subr.mxu0 0.0
        %8402 = vmatpush1.msra.mxu0 0.0
        %8403 = vmatprep.subr.mxu0 0.0
        %8404 = vmatpush1.msra.mxu0 0.0
        %8405 = vmatprep.subr.mxu0 0.0
        %8406 = vmatpush1.msra.mxu0 0.0
        %8407 = vmatprep.subr.mxu0 0.0
        %8408 = vmatpush1.msra.mxu0 0.0
        %8409 = vmatprep.subr.mxu0 0.0
        %8410 = vmatpush1.msra.mxu0 0.0
        %8411 = vmatprep.subr.mxu0 0.0
        %8412 = vmatpush1.msra.mxu0 0.0
        %8413 = vmatprep.subr.mxu0 0.0
        %8414 = vmatpush1.msra.mxu0 0.0
        %8415 = vmatprep.subr.mxu0 0.0
        %8416 = vmatpush1.msra.mxu0 0.0
        %8417 = vmatprep.mubr.f32.mxu0 0.0
        %8418 = vmatmul.mubr.f32.gmra.mrb[0].mxu0 %v8198
        %v8419 = vpop.f32.mrb[0].mxu0
        %v8420 = vadd.f32 0.0, %v8419
        %v8421 = vpop.f32.mrb[0].mxu0
        %8422 = vmatprep.mubr.f32.mxu0 0.0
        %8423 = vmatmul.mubr.f32.gmra.mrb[0].mxu0 %v8201
        %v8424 = vpop.f32.mrb[0].mxu0
        %v8425 = vadd.f32 0.0, %v8424
        %v8426 = vpop.f32.mrb[0].mxu0
        %8427 = vdwg.mxu0
        %8428 = vmatprep.subr.mxu0 0.0
        %8429 = vmatpush1.msra.mxu0 %v8169
        %8430 = vmatprep.subr.mxu0 0.0
        %8431 = vmatpush1.msra.mxu0 %v8174
        %8432 = vmatprep.subr.mxu0 0.0
        %8433 = vmatpush1.msra.mxu0 %v8179
        %8434 = vmatprep.subr.mxu0 0.0
        %8435 = vmatpush1.msra.mxu0 0.0
        %8436 = vmatprep.subr.mxu0 0.0
        %8437 = vmatpush1.msra.mxu0 0.0
        %8438 = vmatprep.subr.mxu0 0.0
        %8439 = vmatpush1.msra.mxu0 0.0
        %8440 = vmatprep.subr.mxu0 0.0
        %8441 = vmatpush1.msra.mxu0 0.0
        %8442 = vmatprep.subr.mxu0 0.0
        %8443 = vmatpush1.msra.mxu0 0.0
        %8444 = vmatprep.subr.mxu0 0.0
        %8445 = vmatpush1.msra.mxu0 0.0
        %8446 = vmatprep.subr.mxu0 0.0
        %8447 = vmatpush1.msra.mxu0 0.0
        %8448 = vmatprep.subr.mxu0 0.0
        %8449 = vmatpush1.msra.mxu0 0.0
        %8450 = vmatprep.subr.mxu0 0.0
        %8451 = vmatpush1.msra.mxu0 0.0
        %8452 = vmatprep.subr.mxu0 0.0
        %8453 = vmatpush1.msra.mxu0 0.0
        %8454 = vmatprep.subr.mxu0 0.0
        %8455 = vmatpush1.msra.mxu0 0.0
        %8456 = vmatprep.subr.mxu0 0.0
        %8457 = vmatpush1.msra.mxu0 0.0
        %8458 = vmatprep.subr.mxu0 0.0
        %8459 = vmatpush1.msra.mxu0 0.0
        %8460 = vmatprep.subr.mxu0 0.0
        %8461 = vmatpush1.msra.mxu0 0.0
        %8462 = vmatprep.subr.mxu0 0.0
        %8463 = vmatpush1.msra.mxu0 0.0
        %8464 = vmatprep.subr.mxu0 0.0
        %8465 = vmatpush1.msra.mxu0 0.0
        %8466 = vmatprep.subr.mxu0 0.0
        %8467 = vmatpush1.msra.mxu0 0.0
        %8468 = vmatprep.subr.mxu0 0.0
        %8469 = vmatpush1.msra.mxu0 0.0
        %8470 = vmatprep.subr.mxu0 0.0
        %8471 = vmatpush1.msra.mxu0 0.0
        %8472 = vmatprep.subr.mxu0 0.0
        %8473 = vmatpush1.msra.mxu0 0.0
        %8474 = vmatprep.subr.mxu0 0.0
        %8475 = vmatpush1.msra.mxu0 0.0
        %8476 = vmatprep.subr.mxu0 0.0
        %8477 = vmatpush1.msra.mxu0 0.0
        %8478 = vmatprep.subr.mxu0 0.0
        %8479 = vmatpush1.msra.mxu0 0.0
        %8480 = vmatprep.subr.mxu0 0.0
        %8481 = vmatpush1.msra.mxu0 0.0
        %8482 = vmatprep.subr.mxu0 0.0
        %8483 = vmatpush1.msra.mxu0 0.0
        %8484 = vmatprep.subr.mxu0 0.0
        %8485 = vmatpush1.msra.mxu0 0.0
        %8486 = vmatprep.subr.mxu0 0.0
        %8487 = vmatpush1.msra.mxu0 0.0
        %8488 = vmatprep.subr.mxu0 0.0
        %8489 = vmatpush1.msra.mxu0 0.0
        %8490 = vmatprep.subr.mxu0 0.0
        %8491 = vmatpush1.msra.mxu0 0.0
        %8492 = vmatprep.mubr.f32.mxu0 0.0
        %8493 = vmatmul.mubr.f32.gmra.mrb[0].mxu0 %v8198
        %v8494 = vpop.f32.mrb[0].mxu0
        %v8495 = vadd.f32 0.0, %v8494
        %v8496 = vpop.f32.mrb[0].mxu0
        %8497 = vmatprep.mubr.f32.mxu0 0.0
        %8498 = vmatmul.mubr.f32.gmra.mrb[0].mxu0 %v8201
        %v8499 = vpop.f32.mrb[0].mxu0
        %v8500 = vadd.f32 0.0, %v8499
        %v8501 = vpop.f32.mrb[0].mxu0
        %8502 = vdwg.mxu0
        %8503 = vmatprep.subr.mxu0 0.0
        %8504 = vmatpush1.msra.mxu0 %v8184
        %8505 = vmatprep.subr.mxu0 0.0
        %8506 = vmatpush1.msra.mxu0 %v8189
        %8507 = vmatprep.subr.mxu0 0.0
        %8508 = vmatpush1.msra.mxu0 %v8194
        %8509 = vmatprep.subr.mxu0 0.0
        %8510 = vmatpush1.msra.mxu0 0.0
        %8511 = vmatprep.subr.mxu0 0.0
        %8512 = vmatpush1.msra.mxu0 0.0
        %8513 = vmatprep.subr.mxu0 0.0
        %8514 = vmatpush1.msra.mxu0 0.0
        %8515 = vmatprep.subr.mxu0 0.0
        %8516 = vmatpush1.msra.mxu0 0.0
        %8517 = vmatprep.subr.mxu0 0.0
        %8518 = vmatpush1.msra.mxu0 0.0
        %8519 = vmatprep.subr.mxu0 0.0
        %8520 = vmatpush1.msra.mxu0 0.0
        %8521 = vmatprep.subr.mxu0 0.0
        %8522 = vmatpush1.msra.mxu0 0.0
        %8523 = vmatprep.subr.mxu0 0.0
        %8524 = vmatpush1.msra.mxu0 0.0
        %8525 = vmatprep.subr.mxu0 0.0
        %8526 = vmatpush1.msra.mxu0 0.0
        %8527 = vmatprep.subr.mxu0 0.0
        %8528 = vmatpush1.msra.mxu0 0.0
        %8529 = vmatprep.subr.mxu0 0.0
        %8530 = vmatpush1.msra.mxu0 0.0
        %8531 = vmatprep.subr.mxu0 0.0
        %8532 = vmatpush1.msra.mxu0 0.0
        %8533 = vmatprep.subr.mxu0 0.0
        %8534 = vmatpush1.msra.mxu0 0.0
        %8535 = vmatprep.subr.mxu0 0.0
        %8536 = vmatpush1.msra.mxu0 0.0
        %8537 = vmatprep.subr.mxu0 0.0
        %8538 = vmatpush1.msra.mxu0 0.0
        %8539 = vmatprep.subr.mxu0 0.0
        %8540 = vmatpush1.msra.mxu0 0.0
        %8541 = vmatprep.subr.mxu0 0.0
        %8542 = vmatpush1.msra.mxu0 0.0
        %8543 = vmatprep.subr.mxu0 0.0
        %8544 = vmatpush1.msra.mxu0 0.0
        %8545 = vmatprep.subr.mxu0 0.0
        %8546 = vmatpush1.msra.mxu0 0.0
        %8547 = vmatprep.subr.mxu0 0.0
        %8548 = vmatpush1.msra.mxu0 0.0
        %8549 = vmatprep.subr.mxu0 0.0
        %8550 = vmatpush1.msra.mxu0 0.0
        %8551 = vmatprep.subr.mxu0 0.0
        %8552 = vmatpush1.msra.mxu0 0.0
        %8553 = vmatprep.subr.mxu0 0.0
        %8554 = vmatpush1.msra.mxu0 0.0
        %8555 = vmatprep.subr.mxu0 0.0
        %8556 = vmatpush1.msra.mxu0 0.0
        %8557 = vmatprep.subr.mxu0 0.0
        %8558 = vmatpush1.msra.mxu0 0.0
        %8559 = vmatprep.subr.mxu0 0.0
        %8560 = vmatpush1.msra.mxu0 0.0
        %8561 = vmatprep.subr.mxu0 0.0
        %8562 = vmatpush1.msra.mxu0 0.0
        %8563 = vmatprep.subr.mxu0 0.0
        %8564 = vmatpush1.msra.mxu0 0.0
        %8565 = vmatprep.subr.mxu0 0.0
        %8566 = vmatpush1.msra.mxu0 0.0
        %8567 = vmatprep.mubr.f32.mxu0 0.0
        %8568 = vmatmul.mubr.f32.gmra.mrb[0].mxu0 %v8198
        %v8569 = vpop.f32.mrb[0].mxu0
        %v8570 = vadd.f32 0.0, %v8569
        %v8571 = vpop.f32.mrb[0].mxu0
        %8572 = vmatprep.mubr.f32.mxu0 0.0
        %8573 = vmatmul.mubr.f32.gmra.mrb[0].mxu0 %v8201
        %v8574 = vpop.f32.mrb[0].mxu0
        %v8575 = vadd.f32 0.0, %v8574
        %v8576 = vpop.f32.mrb[0].mxu0
        %8577 = vdwg.mxu0
        %v8578 = vmul.f32 %v8270, %v8270
        %v8579 = vmul.f32 %v8275, %v8275
        %v8580 = vmul.f32 %v8345, %v8345
        %v8581 = vmul.f32 %v8350, %v8350
        %v8582 = vmul.f32 %v8270, %v8345
        %v8583 = vmul.f32 %v8275, %v8350
        %v8584 = vsub.f32 %v8420, %v8578
        %v8585 = vsub.f32 %v8425, %v8579
        %v8586 = vsub.f32 %v8495, %v8580
        %v8587 = vsub.f32 %v8500, %v8581
        %v8588 = vsub.f32 %v8570, %v8582
        %v8589 = vsub.f32 %v8575, %v8583
        %v8590 = vmul.f32 %v8588, 2.0
        %v8591 = vmul.f32 %v8589, 2.0
        %v8592 = vadd.f32 %v8590, 0.0009
        %v8593 = vadd.f32 %v8591, 0.0009
        %v8594 = vadd.f32 %v8584, %v8586
        %v8595 = vadd.f32 %v8585, %v8587
        %v8596 = vadd.f32 %v8594, 0.0009
        %v8597 = vadd.f32 %v8595, 0.0009
        %v8598 = vrcp.pop %v8596
        %v8599 = vmul.f32 %v8592, %v8598
        %v8600 = vrcp.pop %v8597
        %v8601 = vmul.f32 %v8593, %v8600
        %vm8602 = vcmask 113664
        %v8603 = vsel %vm8602, %v8599, 0.0
        %vm8604 = vcmask 111616
        %v8605 = vsel %vm8604, %v8601, 0.0
        %v8606 = vadd.f32 %v8603, %v8605
        %8607 = vadd.xlane.f32.xlu0 %v8606
        %v8608 = vpop.xlane.xlu0 %8607
        %v8609 = vrot.slane %v8608, 4
        %v8610 = vadd.f32 %v8608, %v8609
        %v8611 = vrot.slane %v8610, 2
        %v8612 = vadd.f32 %v8610, %v8611
        %v8613 = vrot.slane %v8612, 1
        %v8614 = vadd.f32 %v8612, %v8613
        %s8615 = vtos %v8614
        %v8616 = vrcp.pop 196.0
        %s8617 = vtos %v8616
        %s8618 = smul.f32 %s8615, %s8617
        %v8619 = vld [vmem:[#allocation25] sm:$0xff]
        %v8620 = vld [vmem:[#allocation25 + $0x8] sm:$0xff]
        %v8621 = vld [vmem:[#allocation25 + $0x10] sm:$0xff]
        %v8622 = vld [vmem:[#allocation31] sm:$0xff]
        %v8623 = vld [vmem:[#allocation31 + $0x8] sm:$0xf]
        %8624 = vmatprep.subr.mxu0 0.0
        %8625 = vmatpush1.msra.mxu0 %v8619
        %8626 = vmatprep.subr.mxu0 0.0
        %8627 = vmatpush1.msra.mxu0 %v8620
        %8628 = vmatprep.subr.mxu0 0.0
        %8629 = vmatpush1.msra.mxu0 %v8621
        %8630 = vmatprep.subr.mxu0 0.0
        %8631 = vmatpush1.msra.mxu0 0.0
        %8632 = vmatprep.subr.mxu0 0.0
        %8633 = vmatpush1.msra.mxu0 0.0
        %8634 = vmatprep.subr.mxu0 0.0
        %8635 = vmatpush1.msra.mxu0 0.0
        %8636 = vmatprep.subr.mxu0 0.0
        %8637 = vmatpush1.msra.mxu0 0.0
        %8638 = vmatprep.subr.mxu0 0.0
        %8639 = vmatpush1.msra.mxu0 0.0
        %8640 = vmatprep.subr.mxu0 0.0
        %8641 = vmatpush1.msra.mxu0 0.0
        %8642 = vmatprep.subr.mxu0 0.0
        %8643 = vmatpush1.msra.mxu0 0.0
        %8644 = vmatprep.subr.mxu0 0.0
        %8645 = vmatpush1.msra.mxu0 0.0
        %8646 = vmatprep.subr.mxu0 0.0
        %8647 = vmatpush1.msra.mxu0 0.0
        %8648 = vmatprep.subr.mxu0 0.0
        %8649 = vmatpush1.msra.mxu0 0.0
        %8650 = vmatprep.subr.mxu0 0.0
        %8651 = vmatpush1.msra.mxu0 0.0
        %8652 = vmatprep.subr.mxu0 0.0
        %8653 = vmatpush1.msra.mxu0 0.0
        %8654 = vmatprep.subr.mxu0 0.0
        %8655 = vmatpush1.msra.mxu0 0.0
        %8656 = vmatprep.subr.mxu0 0.0
        %8657 = vmatpush1.msra.mxu0 0.0
        %8658 = vmatprep.subr.mxu0 0.0
        %8659 = vmatpush1.msra.mxu0 0.0
        %8660 = vmatprep.subr.mxu0 0.0
        %8661 = vmatpush1.msra.mxu0 0.0
        %8662 = vmatprep.subr.mxu0 0.0
        %8663 = vmatpush1.msra.mxu0 0.0
        %8664 = vmatprep.subr.mxu0 0.0
        %8665 = vmatpush1.msra.mxu0 0.0
        %8666 = vmatprep.subr.mxu0 0.0
        %8667 = vmatpush1.msra.mxu0 0.0
        %8668 = vmatprep.subr.mxu0 0.0
        %8669 = vmatpush1.msra.mxu0 0.0
        %8670 = vmatprep.subr.mxu0 0.0
        %8671 = vmatpush1.msra.mxu0 0.0
        %8672 = vmatprep.subr.mxu0 0.0
        %8673 = vmatpush1.msra.mxu0 0.0
        %8674 = vmatprep.subr.mxu0 0.0
        %8675 = vmatpush1.msra.mxu0 0.0
        %8676 = vmatprep.subr.mxu0 0.0
        %8677 = vmatpush1.msra.mxu0 0.0
        %8678 = vmatprep.subr.mxu0 0.0
        %8679 = vmatpush1.msra.mxu0 0.0
        %8680 = vmatprep.subr.mxu0 0.0
        %8681 = vmatpush1.msra.mxu0 0.0
        %8682 = vmatprep.subr.mxu0 0.0
        %8683 = vmatpush1.msra.mxu0 0.0
        %8684 = vmatprep.subr.mxu0 0.0
        %8685 = vmatpush1.msra.mxu0 0.0
        %8686 = vmatprep.subr.mxu0 0.0
        %8687 = vmatpush1.msra.mxu0 0.0
        %8688 = vmatprep.mubr.f32.mxu0 0.0
        %8689 = vmatmul.mubr.f32.gmra.mrb[0].mxu0 %v8013
        %v8690 = vpop.f32.mrb[0].mxu0
        %v8691 = vadd.f32 0.0, %v8690
        %v8692 = vpop.f32.mrb[0].mxu0
        %8693 = vmatprep.mubr.f32.mxu0 0.0
        %8694 = vmatmul.mubr.f32.gmra.mrb[0].mxu0 %v8016
        %v8695 = vpop.f32.mrb[0].mxu0
        %v8696 = vadd.f32 0.0, %v8695
        %v8697 = vpop.f32.mrb[0].mxu0
        %8698 = vmatprep.mubr.f32.mxu0 0.0
        %8699 = vmatmul.mubr.f32.gmra.mrb[0].mxu0 %v8019
        %v8700 = vpop.f32.mrb[0].mxu0
        %v8701 = vadd.f32 0.0, %v8700
        %v8702 = vpop.f32.mrb[0].mxu0
        %8703 = vmatprep.mubr.f32.mxu0 0.0
        %8704 = vmatmul.mubr.f32.gmra.mrb[0].mxu0 %v8022
        %v8705 = vpop.f32.mrb[0].mxu0
        %v8706 = vadd.f32 0.0, %v8705
        %v8707 = vpop.f32.mrb[0].mxu0
        %8708 = vmatprep.mubr.f32.mxu0 0.0
        %8709 = vmatmul.mubr.f32.gmra.mrb[0].mxu0 %v8025
        %v8710 = vpop.f32.mrb[0].mxu0
        %v8711 = vadd.f32 0.0, %v8710
        %v8712 = vpop.f32.mrb[0].mxu0
        %8713 = vmatprep.mubr.f32.mxu0 0.0
        %8714 = vmatmul.mubr.f32.gmra.mrb[0].mxu0 %v8028
        %v8715 = vpop.f32.mrb[0].mxu0
        %v8716 = vadd.f32 0.0, %v8715
        %v8717 = vpop.f32.mrb[0].mxu0
        %8718 = vdwg.mxu0
        %v8720 = vsel %vm8011, %v8622, 0
        %v8723 = vsel %vm8011, %v8623, 0
        %8725 = vmatprep.subr.mxu0 0.0
        %8726 = vmatpush1.msra.mxu0 %v8691
        %8727 = vmatprep.subr.mxu0 0.0
        %8728 = vmatpush1.msra.mxu0 %v8696
        %8729 = vmatprep.subr.mxu0 0.0
        %8730 = vmatpush1.msra.mxu0 %v8701
        %8731 = vmatprep.subr.mxu0 0.0
        %8732 = vmatpush1.msra.mxu0 0.0
        %8733 = vmatprep.subr.mxu0 0.0
        %8734 = vmatpush1.msra.mxu0 0.0
        %8735 = vmatprep.subr.mxu0 0.0
        %8736 = vmatpush1.msra.mxu0 0.0
        %8737 = vmatprep.subr.mxu0 0.0
        %8738 = vmatpush1.msra.mxu0 0.0
        %8739 = vmatprep.subr.mxu0 0.0
        %8740 = vmatpush1.msra.mxu0 0.0
        %8741 = vmatprep.subr.mxu0 0.0
        %8742 = vmatpush1.msra.mxu0 0.0
        %8743 = vmatprep.subr.mxu0 0.0
        %8744 = vmatpush1.msra.mxu0 0.0
        %8745 = vmatprep.subr.mxu0 0.0
        %8746 = vmatpush1.msra.mxu0 0.0
        %8747 = vmatprep.subr.mxu0 0.0
        %8748 = vmatpush1.msra.mxu0 0.0
        %8749 = vmatprep.subr.mxu0 0.0
        %8750 = vmatpush1.msra.mxu0 0.0
        %8751 = vmatprep.subr.mxu0 0.0
        %8752 = vmatpush1.msra.mxu0 0.0
        %8753 = vmatprep.subr.mxu0 0.0
        %8754 = vmatpush1.msra.mxu0 0.0
        %8755 = vmatprep.subr.mxu0 0.0
        %8756 = vmatpush1.msra.mxu0 0.0
        %8757 = vmatprep.subr.mxu0 0.0
        %8758 = vmatpush1.msra.mxu0 0.0
        %8759 = vmatprep.subr.mxu0 0.0
        %8760 = vmatpush1.msra.mxu0 0.0
        %8761 = vmatprep.subr.mxu0 0.0
        %8762 = vmatpush1.msra.mxu0 0.0
        %8763 = vmatprep.subr.mxu0 0.0
        %8764 = vmatpush1.msra.mxu0 0.0
        %8765 = vmatprep.subr.mxu0 0.0
        %8766 = vmatpush1.msra.mxu0 0.0
        %8767 = vmatprep.subr.mxu0 0.0
        %8768 = vmatpush1.msra.mxu0 0.0
        %8769 = vmatprep.subr.mxu0 0.0
        %8770 = vmatpush1.msra.mxu0 0.0
        %8771 = vmatprep.subr.mxu0 0.0
        %8772 = vmatpush1.msra.mxu0 0.0
        %8773 = vmatprep.subr.mxu0 0.0
        %8774 = vmatpush1.msra.mxu0 0.0
        %8775 = vmatprep.subr.mxu0 0.0
        %8776 = vmatpush1.msra.mxu0 0.0
        %8777 = vmatprep.subr.mxu0 0.0
        %8778 = vmatpush1.msra.mxu0 0.0
        %8779 = vmatprep.subr.mxu0 0.0
        %8780 = vmatpush1.msra.mxu0 0.0
        %8781 = vmatprep.subr.mxu0 0.0
        %8782 = vmatpush1.msra.mxu0 0.0
        %8783 = vmatprep.subr.mxu0 0.0
        %8784 = vmatpush1.msra.mxu0 0.0
        %8785 = vmatprep.subr.mxu0 0.0
        %8786 = vmatpush1.msra.mxu0 0.0
        %8787 = vmatprep.subr.mxu0 0.0
        %8788 = vmatpush1.msra.mxu0 0.0
        %8789 = vmatprep.mubr.f32.mxu0 0.0
        %8790 = vmatmul.mubr.f32.gmra.mrb[0].mxu0 %v8720
        %v8791 = vpop.f32.mrb[0].mxu0
        %v8792 = vadd.f32 0.0, %v8791
        %v8793 = vpop.f32.mrb[0].mxu0
        %8794 = vmatprep.mubr.f32.mxu0 0.0
        %8795 = vmatmul.mubr.f32.gmra.mrb[0].mxu0 %v8723
        %v8796 = vpop.f32.mrb[0].mxu0
        %v8797 = vadd.f32 0.0, %v8796
        %v8798 = vpop.f32.mrb[0].mxu0
        %8799 = vdwg.mxu0
        %8800 = vmatprep.subr.mxu0 0.0
        %8801 = vmatpush1.msra.mxu0 %v8706
        %8802 = vmatprep.subr.mxu0 0.0
        %8803 = vmatpush1.msra.mxu0 %v8711
        %8804 = vmatprep.subr.mxu0 0.0
        %8805 = vmatpush1.msra.mxu0 %v8716
        %8806 = vmatprep.subr.mxu0 0.0
        %8807 = vmatpush1.msra.mxu0 0.0
        %8808 = vmatprep.subr.mxu0 0.0
        %8809 = vmatpush1.msra.mxu0 0.0
        %8810 = vmatprep.subr.mxu0 0.0
        %8811 = vmatpush1.msra.mxu0 0.0
        %8812 = vmatprep.subr.mxu0 0.0
        %8813 = vmatpush1.msra.mxu0 0.0
        %8814 = vmatprep.subr.mxu0 0.0
        %8815 = vmatpush1.msra.mxu0 0.0
        %8816 = vmatprep.subr.mxu0 0.0
        %8817 = vmatpush1.msra.mxu0 0.0
        %8818 = vmatprep.subr.mxu0 0.0
        %8819 = vmatpush1.msra.mxu0 0.0
        %8820 = vmatprep.subr.mxu0 0.0
        %8821 = vmatpush1.msra.mxu0 0.0
        %8822 = vmatprep.subr.mxu0 0.0
        %8823 = vmatpush1.msra.mxu0 0.0
        %8824 = vmatprep.subr.mxu0 0.0
        %8825 = vmatpush1.msra.mxu0 0.0
        %8826 = vmatprep.subr.mxu0 0.0
        %8827 = vmatpush1.msra.mxu0 0.0
        %8828 = vmatprep.subr.mxu0 0.0
        %8829 = vmatpush1.msra.mxu0 0.0
        %8830 = vmatprep.subr.mxu0 0.0
        %8831 = vmatpush1.msra.mxu0 0.0
        %8832 = vmatprep.subr.mxu0 0.0
        %8833 = vmatpush1.msra.mxu0 0.0
        %8834 = vmatprep.subr.mxu0 0.0
        %8835 = vmatpush1.msra.mxu0 0.0
        %8836 = vmatprep.subr.mxu0 0.0
        %8837 = vmatpush1.msra.mxu0 0.0
        %8838 = vmatprep.subr.mxu0 0.0
        %8839 = vmatpush1.msra.mxu0 0.0
        %8840 = vmatprep.subr.mxu0 0.0
        %8841 = vmatpush1.msra.mxu0 0.0
        %8842 = vmatprep.subr.mxu0 0.0
        %8843 = vmatpush1.msra.mxu0 0.0
        %8844 = vmatprep.subr.mxu0 0.0
        %8845 = vmatpush1.msra.mxu0 0.0
        %8846 = vmatprep.subr.mxu0 0.0
        %8847 = vmatpush1.msra.mxu0 0.0
        %8848 = vmatprep.subr.mxu0 0.0
        %8849 = vmatpush1.msra.mxu0 0.0
        %8850 = vmatprep.subr.mxu0 0.0
        %8851 = vmatpush1.msra.mxu0 0.0
        %8852 = vmatprep.subr.mxu0 0.0
        %8853 = vmatpush1.msra.mxu0 0.0
        %8854 = vmatprep.subr.mxu0 0.0
        %8855 = vmatpush1.msra.mxu0 0.0
        %8856 = vmatprep.subr.mxu0 0.0
        %8857 = vmatpush1.msra.mxu0 0.0
        %8858 = vmatprep.subr.mxu0 0.0
        %8859 = vmatpush1.msra.mxu0 0.0
        %8860 = vmatprep.subr.mxu0 0.0
        %8861 = vmatpush1.msra.mxu0 0.0
        %8862 = vmatprep.subr.mxu0 0.0
        %8863 = vmatpush1.msra.mxu0 0.0
        %8864 = vmatprep.mubr.f32.mxu0 0.0
        %8865 = vmatmul.mubr.f32.gmra.mrb[0].mxu0 %v8720
        %v8866 = vpop.f32.mrb[0].mxu0
        %v8867 = vadd.f32 0.0, %v8866
        %v8868 = vpop.f32.mrb[0].mxu0
        %8869 = vmatprep.mubr.f32.mxu0 0.0
        %8870 = vmatmul.mubr.f32.gmra.mrb[0].mxu0 %v8723
        %v8871 = vpop.f32.mrb[0].mxu0
        %v8872 = vadd.f32 0.0, %v8871
        %v8873 = vpop.f32.mrb[0].mxu0
        %8874 = vdwg.mxu0
        %v8875 = vld [vmem:[#allocation12] sm:$0xff]
        %v8876 = vld [vmem:[#allocation12 + $0x8] sm:$0xf]
        %v8877 = vld [vmem:[#allocation19] sm:$0x3]
        %v8878 = vmul.f32 %v8792, %v8792
        %v8879 = vmul.f32 %v8797, %v8797
        %v8880 = vmul.f32 %v8867, %v8867
        %v8881 = vmul.f32 %v8872, %v8872
        %v8882 = vmul.f32 %v8792, %v8867
        %v8883 = vmul.f32 %v8797, %v8872
        %vm8884 = vcmask 97280
        %v8886 = vsel %vm8884, %v8792, 0
        %v8889 = vsel %vm8884, %v8797, 0
        %vm8891 = vcmask 1043456
        %v8893 = vsel %vm8891, %v8876, 0
        %8895 = vmatprep.subr.mxu0 0.0
        %8896 = vmatpush1.msra.mxu0 %v8875
        %8897 = vmatprep.subr.mxu0 0.0
        %8898 = vmatpush1.msra.mxu0 %v8893
        %8899 = vmatprep.subr.mxu0 0.0
        %8900 = vmatpush1.msra.mxu0 0.0
        %8901 = vmatprep.subr.mxu0 0.0
        %8902 = vmatpush1.msra.mxu0 0.0
        %8903 = vmatprep.subr.mxu0 0.0
        %8904 = vmatpush1.msra.mxu0 0.0
        %8905 = vmatprep.subr.mxu0 0.0
        %8906 = vmatpush1.msra.mxu0 0.0
        %8907 = vmatprep.subr.mxu0 0.0
        %8908 = vmatpush1.msra.mxu0 0.0
        %8909 = vmatprep.subr.mxu0 0.0
        %8910 = vmatpush1.msra.mxu0 0.0
        %8911 = vmatprep.subr.mxu0 0.0
        %8912 = vmatpush1.msra.mxu0 0.0
        %8913 = vmatprep.subr.mxu0 0.0
        %8914 = vmatpush1.msra.mxu0 0.0
        %8915 = vmatprep.subr.mxu0 0.0
        %8916 = vmatpush1.msra.mxu0 0.0
        %8917 = vmatprep.subr.mxu0 0.0
        %8918 = vmatpush1.msra.mxu0 0.0
        %8919 = vmatprep.subr.mxu0 0.0
        %8920 = vmatpush1.msra.mxu0 0.0
        %8921 = vmatprep.subr.mxu0 0.0
        %8922 = vmatpush1.msra.mxu0 0.0
        %8923 = vmatprep.subr.mxu0 0.0
        %8924 = vmatpush1.msra.mxu0 0.0
        %8925 = vmatprep.subr.mxu0 0.0
        %8926 = vmatpush1.msra.mxu0 0.0
        %8927 = vmatprep.subr.mxu0 0.0
        %8928 = vmatpush1.msra.mxu0 0.0
        %8929 = vmatprep.subr.mxu0 0.0
        %8930 = vmatpush1.msra.mxu0 0.0
        %8931 = vmatprep.subr.mxu0 0.0
        %8932 = vmatpush1.msra.mxu0 0.0
        %8933 = vmatprep.subr.mxu0 0.0
        %8934 = vmatpush1.msra.mxu0 0.0
        %8935 = vmatprep.subr.mxu0 0.0
        %8936 = vmatpush1.msra.mxu0 0.0
        %8937 = vmatprep.subr.mxu0 0.0
        %8938 = vmatpush1.msra.mxu0 0.0
        %8939 = vmatprep.subr.mxu0 0.0
        %8940 = vmatpush1.msra.mxu0 0.0
        %8941 = vmatprep.subr.mxu0 0.0
        %8942 = vmatpush1.msra.mxu0 0.0
        %8943 = vmatprep.subr.mxu0 0.0
        %8944 = vmatpush1.msra.mxu0 0.0
        %8945 = vmatprep.subr.mxu0 0.0
        %8946 = vmatpush1.msra.mxu0 0.0
        %8947 = vmatprep.subr.mxu0 0.0
        %8948 = vmatpush1.msra.mxu0 0.0
        %8949 = vmatprep.subr.mxu0 0.0
        %8950 = vmatpush1.msra.mxu0 0.0
        %8951 = vmatprep.subr.mxu0 0.0
        %8952 = vmatpush1.msra.mxu0 0.0
        %8953 = vmatprep.subr.mxu0 0.0
        %8954 = vmatpush1.msra.mxu0 0.0
        %8955 = vmatprep.subr.mxu0 0.0
        %8956 = vmatpush1.msra.mxu0 0.0
        %8957 = vmatprep.subr.mxu0 0.0
        %8958 = vmatpush1.msra.mxu0 0.0
        %8959 = vmatprep.mubr.f32.mxu0 0.0
        %8960 = vmatmul.mubr.f32.gmra.mrb[0].mxu0 %v8886
        %v8961 = vpop.f32.mrb[0].mxu0
        %v8962 = vadd.f32 0.0, %v8961
        %v8963 = vpop.f32.mrb[0].mxu0
        %8964 = vmatprep.mubr.f32.mxu0 0.0
        %8965 = vmatmul.mubr.f32.gmra.mrb[0].mxu0 %v8889
        %v8966 = vpop.f32.mrb[0].mxu0
        %v8967 = vadd.f32 0.0, %v8966
        %v8968 = vpop.f32.mrb[0].mxu0
        %8969 = vdwg.mxu0
        %v8971 = vsel %vm8884, %v8877, 0
        %v8974 = vsel %vm8891, %v8967, 0
        %8976 = vmatprep.subr.mxu0 0.0
        %8977 = vmatpush1.msra.mxu0 %v8962
        %8978 = vmatprep.subr.mxu0 0.0
        %8979 = vmatpush1.msra.mxu0 %v8974
        %8980 = vmatprep.subr.mxu0 0.0
        %8981 = vmatpush1.msra.mxu0 0.0
        %8982 = vmatprep.subr.mxu0 0.0
        %8983 = vmatpush1.msra.mxu0 0.0
        %8984 = vmatprep.subr.mxu0 0.0
        %8985 = vmatpush1.msra.mxu0 0.0
        %8986 = vmatprep.subr.mxu0 0.0
        %8987 = vmatpush1.msra.mxu0 0.0
        %8988 = vmatprep.subr.mxu0 0.0
        %8989 = vmatpush1.msra.mxu0 0.0
        %8990 = vmatprep.subr.mxu0 0.0
        %8991 = vmatpush1.msra.mxu0 0.0
        %8992 = vmatprep.subr.mxu0 0.0
        %8993 = vmatpush1.msra.mxu0 0.0
        %8994 = vmatprep.subr.mxu0 0.0
        %8995 = vmatpush1.msra.mxu0 0.0
        %8996 = vmatprep.subr.mxu0 0.0
        %8997 = vmatpush1.msra.mxu0 0.0
        %8998 = vmatprep.subr.mxu0 0.0
        %8999 = vmatpush1.msra.mxu0 0.0
        %9000 = vmatprep.subr.mxu0 0.0
        %9001 = vmatpush1.msra.mxu0 0.0
        %9002 = vmatprep.subr.mxu0 0.0
        %9003 = vmatpush1.msra.mxu0 0.0
        %9004 = vmatprep.subr.mxu0 0.0
        %9005 = vmatpush1.msra.mxu0 0.0
        %9006 = vmatprep.subr.mxu0 0.0
        %9007 = vmatpush1.msra.mxu0 0.0
        %9008 = vmatprep.subr.mxu0 0.0
        %9009 = vmatpush1.msra.mxu0 0.0
        %9010 = vmatprep.subr.mxu0 0.0
        %9011 = vmatpush1.msra.mxu0 0.0
        %9012 = vmatprep.subr.mxu0 0.0
        %9013 = vmatpush1.msra.mxu0 0.0
        %9014 = vmatprep.subr.mxu0 0.0
        %9015 = vmatpush1.msra.mxu0 0.0
        %9016 = vmatprep.subr.mxu0 0.0
        %9017 = vmatpush1.msra.mxu0 0.0
        %9018 = vmatprep.subr.mxu0 0.0
        %9019 = vmatpush1.msra.mxu0 0.0
        %9020 = vmatprep.subr.mxu0 0.0
        %9021 = vmatpush1.msra.mxu0 0.0
        %9022 = vmatprep.subr.mxu0 0.0
        %9023 = vmatpush1.msra.mxu0 0.0
        %9024 = vmatprep.subr.mxu0 0.0
        %9025 = vmatpush1.msra.mxu0 0.0
        %9026 = vmatprep.subr.mxu0 0.0
        %9027 = vmatpush1.msra.mxu0 0.0
        %9028 = vmatprep.subr.mxu0 0.0
        %9029 = vmatpush1.msra.mxu0 0.0
        %9030 = vmatprep.subr.mxu0 0.0
        %9031 = vmatpush1.msra.mxu0 0.0
        %9032 = vmatprep.subr.mxu0 0.0
        %9033 = vmatpush1.msra.mxu0 0.0
        %9034 = vmatprep.subr.mxu0 0.0
        %9035 = vmatpush1.msra.mxu0 0.0
        %9036 = vmatprep.subr.mxu0 0.0
        %9037 = vmatpush1.msra.mxu0 0.0
        %9038 = vmatprep.subr.mxu0 0.0
        %9039 = vmatpush1.msra.mxu0 0.0
        %9040 = vmatprep.mubr.f32.mxu0 0.0
        %9041 = vmatmul.mubr.f32.gmra.mrb[0].mxu0 %v8971
        %v9042 = vpop.f32.mrb[0].mxu0
        %v9043 = vadd.f32 0.0, %v9042
        %v9044 = vpop.f32.mrb[0].mxu0
        %9045 = vdwg.mxu0
        %v9047 = vsel %vm8884, %v8867, 0
        %v9050 = vsel %vm8884, %v8872, 0
        %9052 = vmatprep.subr.mxu0 0.0
        %9053 = vmatpush1.msra.mxu0 %v8875
        %9054 = vmatprep.subr.mxu0 0.0
        %9055 = vmatpush1.msra.mxu0 %v8893
        %9056 = vmatprep.subr.mxu0 0.0
        %9057 = vmatpush1.msra.mxu0 0.0
        %9058 = vmatprep.subr.mxu0 0.0
        %9059 = vmatpush1.msra.mxu0 0.0
        %9060 = vmatprep.subr.mxu0 0.0
        %9061 = vmatpush1.msra.mxu0 0.0
        %9062 = vmatprep.subr.mxu0 0.0
        %9063 = vmatpush1.msra.mxu0 0.0
        %9064 = vmatprep.subr.mxu0 0.0
        %9065 = vmatpush1.msra.mxu0 0.0
        %9066 = vmatprep.subr.mxu0 0.0
        %9067 = vmatpush1.msra.mxu0 0.0
        %9068 = vmatprep.subr.mxu0 0.0
        %9069 = vmatpush1.msra.mxu0 0.0
        %9070 = vmatprep.subr.mxu0 0.0
        %9071 = vmatpush1.msra.mxu0 0.0
        %9072 = vmatprep.subr.mxu0 0.0
        %9073 = vmatpush1.msra.mxu0 0.0
        %9074 = vmatprep.subr.mxu0 0.0
        %9075 = vmatpush1.msra.mxu0 0.0
        %9076 = vmatprep.subr.mxu0 0.0
        %9077 = vmatpush1.msra.mxu0 0.0
        %9078 = vmatprep.subr.mxu0 0.0
        %9079 = vmatpush1.msra.mxu0 0.0
        %9080 = vmatprep.subr.mxu0 0.0
        %9081 = vmatpush1.msra.mxu0 0.0
        %9082 = vmatprep.subr.mxu0 0.0
        %9083 = vmatpush1.msra.mxu0 0.0
        %9084 = vmatprep.subr.mxu0 0.0
        %9085 = vmatpush1.msra.mxu0 0.0
        %9086 = vmatprep.subr.mxu0 0.0
        %9087 = vmatpush1.msra.mxu0 0.0
        %9088 = vmatprep.subr.mxu0 0.0
        %9089 = vmatpush1.msra.mxu0 0.0
        %9090 = vmatprep.subr.mxu0 0.0
        %9091 = vmatpush1.msra.mxu0 0.0
        %9092 = vmatprep.subr.mxu0 0.0
        %9093 = vmatpush1.msra.mxu0 0.0
        %9094 = vmatprep.subr.mxu0 0.0
        %9095 = vmatpush1.msra.mxu0 0.0
        %9096 = vmatprep.subr.mxu0 0.0
        %9097 = vmatpush1.msra.mxu0 0.0
        %9098 = vmatprep.subr.mxu0 0.0
        %9099 = vmatpush1.msra.mxu0 0.0
        %9100 = vmatprep.subr.mxu0 0.0
        %9101 = vmatpush1.msra.mxu0 0.0
        %9102 = vmatprep.subr.mxu0 0.0
        %9103 = vmatpush1.msra.mxu0 0.0
        %9104 = vmatprep.subr.mxu0 0.0
        %9105 = vmatpush1.msra.mxu0 0.0
        %9106 = vmatprep.subr.mxu0 0.0
        %9107 = vmatpush1.msra.mxu0 0.0
        %9108 = vmatprep.subr.mxu0 0.0
        %9109 = vmatpush1.msra.mxu0 0.0
        %9110 = vmatprep.subr.mxu0 0.0
        %9111 = vmatpush1.msra.mxu0 0.0
        %9112 = vmatprep.subr.mxu0 0.0
        %9113 = vmatpush1.msra.mxu0 0.0
        %9114 = vmatprep.subr.mxu0 0.0
        %9115 = vmatpush1.msra.mxu0 0.0
        %9116 = vmatprep.mubr.f32.mxu0 0.0
        %9117 = vmatmul.mubr.f32.gmra.mrb[0].mxu0 %v9047
        %v9118 = vpop.f32.mrb[0].mxu0
        %v9119 = vadd.f32 0.0, %v9118
        %v9120 = vpop.f32.mrb[0].mxu0
        %9121 = vmatprep.mubr.f32.mxu0 0.0
        %9122 = vmatmul.mubr.f32.gmra.mrb[0].mxu0 %v9050
        %v9123 = vpop.f32.mrb[0].mxu0
        %v9124 = vadd.f32 0.0, %v9123
        %v9125 = vpop.f32.mrb[0].mxu0
        %9126 = vdwg.mxu0
        %v9128 = vsel %vm8891, %v9124, 0
        %9130 = vmatprep.subr.mxu0 0.0
        %9131 = vmatpush1.msra.mxu0 %v9119
        %9132 = vmatprep.subr.mxu0 0.0
        %9133 = vmatpush1.msra.mxu0 %v9128
        %9134 = vmatprep.subr.mxu0 0.0
        %9135 = vmatpush1.msra.mxu0 0.0
        %9136 = vmatprep.subr.mxu0 0.0
        %9137 = vmatpush1.msra.mxu0 0.0
        %9138 = vmatprep.subr.mxu0 0.0
        %9139 = vmatpush1.msra.mxu0 0.0
        %9140 = vmatprep.subr.mxu0 0.0
        %9141 = vmatpush1.msra.mxu0 0.0
        %9142 = vmatprep.subr.mxu0 0.0
        %9143 = vmatpush1.msra.mxu0 0.0
        %9144 = vmatprep.subr.mxu0 0.0
        %9145 = vmatpush1.msra.mxu0 0.0
        %9146 = vmatprep.subr.mxu0 0.0
        %9147 = vmatpush1.msra.mxu0 0.0
        %9148 = vmatprep.subr.mxu0 0.0
        %9149 = vmatpush1.msra.mxu0 0.0
        %9150 = vmatprep.subr.mxu0 0.0
        %9151 = vmatpush1.msra.mxu0 0.0
        %9152 = vmatprep.subr.mxu0 0.0
        %9153 = vmatpush1.msra.mxu0 0.0
        %9154 = vmatprep.subr.mxu0 0.0
        %9155 = vmatpush1.msra.mxu0 0.0
        %9156 = vmatprep.subr.mxu0 0.0
        %9157 = vmatpush1.msra.mxu0 0.0
        %9158 = vmatprep.subr.mxu0 0.0
        %9159 = vmatpush1.msra.mxu0 0.0
        %9160 = vmatprep.subr.mxu0 0.0
        %9161 = vmatpush1.msra.mxu0 0.0
        %9162 = vmatprep.subr.mxu0 0.0
        %9163 = vmatpush1.msra.mxu0 0.0
        %9164 = vmatprep.subr.mxu0 0.0
        %9165 = vmatpush1.msra.mxu0 0.0
        %9166 = vmatprep.subr.mxu0 0.0
        %9167 = vmatpush1.msra.mxu0 0.0
        %9168 = vmatprep.subr.mxu0 0.0
        %9169 = vmatpush1.msra.mxu0 0.0
        %9170 = vmatprep.subr.mxu0 0.0
        %9171 = vmatpush1.msra.mxu0 0.0
        %9172 = vmatprep.subr.mxu0 0.0
        %9173 = vmatpush1.msra.mxu0 0.0
        %9174 = vmatprep.subr.mxu0 0.0
        %9175 = vmatpush1.msra.mxu0 0.0
        %9176 = vmatprep.subr.mxu0 0.0
        %9177 = vmatpush1.msra.mxu0 0.0
        %9178 = vmatprep.subr.mxu0 0.0
        %9179 = vmatpush1.msra.mxu0 0.0
        %9180 = vmatprep.subr.mxu0 0.0
        %9181 = vmatpush1.msra.mxu0 0.0
        %9182 = vmatprep.subr.mxu0 0.0
        %9183 = vmatpush1.msra.mxu0 0.0
        %9184 = vmatprep.subr.mxu0 0.0
        %9185 = vmatpush1.msra.mxu0 0.0
        %9186 = vmatprep.subr.mxu0 0.0
        %9187 = vmatpush1.msra.mxu0 0.0
        %9188 = vmatprep.subr.mxu0 0.0
        %9189 = vmatpush1.msra.mxu0 0.0
        %9190 = vmatprep.subr.mxu0 0.0
        %9191 = vmatpush1.msra.mxu0 0.0
        %9192 = vmatprep.subr.mxu0 0.0
        %9193 = vmatpush1.msra.mxu0 0.0
        %9194 = vmatprep.mubr.f32.mxu0 0.0
        %9195 = vmatmul.mubr.f32.gmra.mrb[0].mxu0 %v8971
        %v9196 = vpop.f32.mrb[0].mxu0
        %v9197 = vadd.f32 0.0, %v9196
        %v9198 = vpop.f32.mrb[0].mxu0
        %9199 = vdwg.mxu0
        %v9201 = vsel %vm8884, %v8878, 0
        %v9204 = vsel %vm8884, %v8879, 0
        %9206 = vmatprep.subr.mxu0 0.0
        %9207 = vmatpush1.msra.mxu0 %v8875
        %9208 = vmatprep.subr.mxu0 0.0
        %9209 = vmatpush1.msra.mxu0 %v8893
        %9210 = vmatprep.subr.mxu0 0.0
        %9211 = vmatpush1.msra.mxu0 0.0
        %9212 = vmatprep.subr.mxu0 0.0
        %9213 = vmatpush1.msra.mxu0 0.0
        %9214 = vmatprep.subr.mxu0 0.0
        %9215 = vmatpush1.msra.mxu0 0.0
        %9216 = vmatprep.subr.mxu0 0.0
        %9217 = vmatpush1.msra.mxu0 0.0
        %9218 = vmatprep.subr.mxu0 0.0
        %9219 = vmatpush1.msra.mxu0 0.0
        %9220 = vmatprep.subr.mxu0 0.0
        %9221 = vmatpush1.msra.mxu0 0.0
        %9222 = vmatprep.subr.mxu0 0.0
        %9223 = vmatpush1.msra.mxu0 0.0
        %9224 = vmatprep.subr.mxu0 0.0
        %9225 = vmatpush1.msra.mxu0 0.0
        %9226 = vmatprep.subr.mxu0 0.0
        %9227 = vmatpush1.msra.mxu0 0.0
        %9228 = vmatprep.subr.mxu0 0.0
        %9229 = vmatpush1.msra.mxu0 0.0
        %9230 = vmatprep.subr.mxu0 0.0
        %9231 = vmatpush1.msra.mxu0 0.0
        %9232 = vmatprep.subr.mxu0 0.0
        %9233 = vmatpush1.msra.mxu0 0.0
        %9234 = vmatprep.subr.mxu0 0.0
        %9235 = vmatpush1.msra.mxu0 0.0
        %9236 = vmatprep.subr.mxu0 0.0
        %9237 = vmatpush1.msra.mxu0 0.0
        %9238 = vmatprep.subr.mxu0 0.0
        %9239 = vmatpush1.msra.mxu0 0.0
        %9240 = vmatprep.subr.mxu0 0.0
        %9241 = vmatpush1.msra.mxu0 0.0
        %9242 = vmatprep.subr.mxu0 0.0
        %9243 = vmatpush1.msra.mxu0 0.0
        %9244 = vmatprep.subr.mxu0 0.0
        %9245 = vmatpush1.msra.mxu0 0.0
        %9246 = vmatprep.subr.mxu0 0.0
        %9247 = vmatpush1.msra.mxu0 0.0
        %9248 = vmatprep.subr.mxu0 0.0
        %9249 = vmatpush1.msra.mxu0 0.0
        %9250 = vmatprep.subr.mxu0 0.0
        %9251 = vmatpush1.msra.mxu0 0.0
        %9252 = vmatprep.subr.mxu0 0.0
        %9253 = vmatpush1.msra.mxu0 0.0
        %9254 = vmatprep.subr.mxu0 0.0
        %9255 = vmatpush1.msra.mxu0 0.0
        %9256 = vmatprep.subr.mxu0 0.0
        %9257 = vmatpush1.msra.mxu0 0.0
        %9258 = vmatprep.subr.mxu0 0.0
        %9259 = vmatpush1.msra.mxu0 0.0
        %9260 = vmatprep.subr.mxu0 0.0
        %9261 = vmatpush1.msra.mxu0 0.0
        %9262 = vmatprep.subr.mxu0 0.0
        %9263 = vmatpush1.msra.mxu0 0.0
        %9264 = vmatprep.subr.mxu0 0.0
        %9265 = vmatpush1.msra.mxu0 0.0
        %9266 = vmatprep.subr.mxu0 0.0
        %9267 = vmatpush1.msra.mxu0 0.0
        %9268 = vmatprep.subr.mxu0 0.0
        %9269 = vmatpush1.msra.mxu0 0.0
        %9270 = vmatprep.mubr.f32.mxu0 0.0
        %9271 = vmatmul.mubr.f32.gmra.mrb[0].mxu0 %v9201
        %v9272 = vpop.f32.mrb[0].mxu0
        %v9273 = vadd.f32 0.0, %v9272
        %v9274 = vpop.f32.mrb[0].mxu0
        %9275 = vmatprep.mubr.f32.mxu0 0.0
        %9276 = vmatmul.mubr.f32.gmra.mrb[0].mxu0 %v9204
        %v9277 = vpop.f32.mrb[0].mxu0
        %v9278 = vadd.f32 0.0, %v9277
        %v9279 = vpop.f32.mrb[0].mxu0
        %9280 = vdwg.mxu0
        %v9282 = vsel %vm8891, %v9278, 0
        %9284 = vmatprep.subr.mxu0 0.0
        %9285 = vmatpush1.msra.mxu0 %v9273
        %9286 = vmatprep.subr.mxu0 0.0
        %9287 = vmatpush1.msra.mxu0 %v9282
        %9288 = vmatprep.subr.mxu0 0.0
        %9289 = vmatpush1.msra.mxu0 0.0
        %9290 = vmatprep.subr.mxu0 0.0
        %9291 = vmatpush1.msra.mxu0 0.0
        %9292 = vmatprep.subr.mxu0 0.0
        %9293 = vmatpush1.msra.mxu0 0.0
        %9294 = vmatprep.subr.mxu0 0.0
        %9295 = vmatpush1.msra.mxu0 0.0
        %9296 = vmatprep.subr.mxu0 0.0
        %9297 = vmatpush1.msra.mxu0 0.0
        %9298 = vmatprep.subr.mxu0 0.0
        %9299 = vmatpush1.msra.mxu0 0.0
        %9300 = vmatprep.subr.mxu0 0.0
        %9301 = vmatpush1.msra.mxu0 0.0
        %9302 = vmatprep.subr.mxu0 0.0
        %9303 = vmatpush1.msra.mxu0 0.0
        %9304 = vmatprep.subr.mxu0 0.0
        %9305 = vmatpush1.msra.mxu0 0.0
        %9306 = vmatprep.subr.mxu0 0.0
        %9307 = vmatpush1.msra.mxu0 0.0
        %9308 = vmatprep.subr.mxu0 0.0
        %9309 = vmatpush1.msra.mxu0 0.0
        %9310 = vmatprep.subr.mxu0 0.0
        %9311 = vmatpush1.msra.mxu0 0.0
        %9312 = vmatprep.subr.mxu0 0.0
        %9313 = vmatpush1.msra.mxu0 0.0
        %9314 = vmatprep.subr.mxu0 0.0
        %9315 = vmatpush1.msra.mxu0 0.0
        %9316 = vmatprep.subr.mxu0 0.0
        %9317 = vmatpush1.msra.mxu0 0.0
        %9318 = vmatprep.subr.mxu0 0.0
        %9319 = vmatpush1.msra.mxu0 0.0
        %9320 = vmatprep.subr.mxu0 0.0
        %9321 = vmatpush1.msra.mxu0 0.0
        %9322 = vmatprep.subr.mxu0 0.0
        %9323 = vmatpush1.msra.mxu0 0.0
        %9324 = vmatprep.subr.mxu0 0.0
        %9325 = vmatpush1.msra.mxu0 0.0
        %9326 = vmatprep.subr.mxu0 0.0
        %9327 = vmatpush1.msra.mxu0 0.0
        %9328 = vmatprep.subr.mxu0 0.0
        %9329 = vmatpush1.msra.mxu0 0.0
        %9330 = vmatprep.subr.mxu0 0.0
        %9331 = vmatpush1.msra.mxu0 0.0
        %9332 = vmatprep.subr.mxu0 0.0
        %9333 = vmatpush1.msra.mxu0 0.0
        %9334 = vmatprep.subr.mxu0 0.0
        %9335 = vmatpush1.msra.mxu0 0.0
        %9336 = vmatprep.subr.mxu0 0.0
        %9337 = vmatpush1.msra.mxu0 0.0
        %9338 = vmatprep.subr.mxu0 0.0
        %9339 = vmatpush1.msra.mxu0 0.0
        %9340 = vmatprep.subr.mxu0 0.0
        %9341 = vmatpush1.msra.mxu0 0.0
        %9342 = vmatprep.subr.mxu0 0.0
        %9343 = vmatpush1.msra.mxu0 0.0
        %9344 = vmatprep.subr.mxu0 0.0
        %9345 = vmatpush1.msra.mxu0 0.0
        %9346 = vmatprep.subr.mxu0 0.0
        %9347 = vmatpush1.msra.mxu0 0.0
        %9348 = vmatprep.mubr.f32.mxu0 0.0
        %9349 = vmatmul.mubr.f32.gmra.mrb[0].mxu0 %v8971
        %v9350 = vpop.f32.mrb[0].mxu0
        %v9351 = vadd.f32 0.0, %v9350
        %v9352 = vpop.f32.mrb[0].mxu0
        %9353 = vdwg.mxu0
        %v9355 = vsel %vm8884, %v8880, 0
        %v9358 = vsel %vm8884, %v8881, 0
        %9360 = vmatprep.subr.mxu0 0.0
        %9361 = vmatpush1.msra.mxu0 %v8875
        %9362 = vmatprep.subr.mxu0 0.0
        %9363 = vmatpush1.msra.mxu0 %v8893
        %9364 = vmatprep.subr.mxu0 0.0
        %9365 = vmatpush1.msra.mxu0 0.0
        %9366 = vmatprep.subr.mxu0 0.0
        %9367 = vmatpush1.msra.mxu0 0.0
        %9368 = vmatprep.subr.mxu0 0.0
        %9369 = vmatpush1.msra.mxu0 0.0
        %9370 = vmatprep.subr.mxu0 0.0
        %9371 = vmatpush1.msra.mxu0 0.0
        %9372 = vmatprep.subr.mxu0 0.0
        %9373 = vmatpush1.msra.mxu0 0.0
        %9374 = vmatprep.subr.mxu0 0.0
        %9375 = vmatpush1.msra.mxu0 0.0
        %9376 = vmatprep.subr.mxu0 0.0
        %9377 = vmatpush1.msra.mxu0 0.0
        %9378 = vmatprep.subr.mxu0 0.0
        %9379 = vmatpush1.msra.mxu0 0.0
        %9380 = vmatprep.subr.mxu0 0.0
        %9381 = vmatpush1.msra.mxu0 0.0
        %9382 = vmatprep.subr.mxu0 0.0
        %9383 = vmatpush1.msra.mxu0 0.0
        %9384 = vmatprep.subr.mxu0 0.0
        %9385 = vmatpush1.msra.mxu0 0.0
        %9386 = vmatprep.subr.mxu0 0.0
        %9387 = vmatpush1.msra.mxu0 0.0
        %9388 = vmatprep.subr.mxu0 0.0
        %9389 = vmatpush1.msra.mxu0 0.0
        %9390 = vmatprep.subr.mxu0 0.0
        %9391 = vmatpush1.msra.mxu0 0.0
        %9392 = vmatprep.subr.mxu0 0.0
        %9393 = vmatpush1.msra.mxu0 0.0
        %9394 = vmatprep.subr.mxu0 0.0
        %9395 = vmatpush1.msra.mxu0 0.0
        %9396 = vmatprep.subr.mxu0 0.0
        %9397 = vmatpush1.msra.mxu0 0.0
        %9398 = vmatprep.subr.mxu0 0.0
        %9399 = vmatpush1.msra.mxu0 0.0
        %9400 = vmatprep.subr.mxu0 0.0
        %9401 = vmatpush1.msra.mxu0 0.0
        %9402 = vmatprep.subr.mxu0 0.0
        %9403 = vmatpush1.msra.mxu0 0.0
        %9404 = vmatprep.subr.mxu0 0.0
        %9405 = vmatpush1.msra.mxu0 0.0
        %9406 = vmatprep.subr.mxu0 0.0
        %9407 = vmatpush1.msra.mxu0 0.0
        %9408 = vmatprep.subr.mxu0 0.0
        %9409 = vmatpush1.msra.mxu0 0.0
        %9410 = vmatprep.subr.mxu0 0.0
        %9411 = vmatpush1.msra.mxu0 0.0
        %9412 = vmatprep.subr.mxu0 0.0
        %9413 = vmatpush1.msra.mxu0 0.0
        %9414 = vmatprep.subr.mxu0 0.0
        %9415 = vmatpush1.msra.mxu0 0.0
        %9416 = vmatprep.subr.mxu0 0.0
        %9417 = vmatpush1.msra.mxu0 0.0
        %9418 = vmatprep.subr.mxu0 0.0
        %9419 = vmatpush1.msra.mxu0 0.0
        %9420 = vmatprep.subr.mxu0 0.0
        %9421 = vmatpush1.msra.mxu0 0.0
        %9422 = vmatprep.subr.mxu0 0.0
        %9423 = vmatpush1.msra.mxu0 0.0
        %9424 = vmatprep.mubr.f32.mxu0 0.0
        %9425 = vmatmul.mubr.f32.gmra.mrb[0].mxu0 %v9355
        %v9426 = vpop.f32.mrb[0].mxu0
        %v9427 = vadd.f32 0.0, %v9426
        %v9428 = vpop.f32.mrb[0].mxu0
        %9429 = vmatprep.mubr.f32.mxu0 0.0
        %9430 = vmatmul.mubr.f32.gmra.mrb[0].mxu0 %v9358
        %v9431 = vpop.f32.mrb[0].mxu0
        %v9432 = vadd.f32 0.0, %v9431
        %v9433 = vpop.f32.mrb[0].mxu0
        %9434 = vdwg.mxu0
        %v9436 = vsel %vm8891, %v9432, 0
        %9438 = vmatprep.subr.mxu0 0.0
        %9439 = vmatpush1.msra.mxu0 %v9427
        %9440 = vmatprep.subr.mxu0 0.0
        %9441 = vmatpush1.msra.mxu0 %v9436
        %9442 = vmatprep.subr.mxu0 0.0
        %9443 = vmatpush1.msra.mxu0 0.0
        %9444 = vmatprep.subr.mxu0 0.0
        %9445 = vmatpush1.msra.mxu0 0.0
        %9446 = vmatprep.subr.mxu0 0.0
        %9447 = vmatpush1.msra.mxu0 0.0
        %9448 = vmatprep.subr.mxu0 0.0
        %9449 = vmatpush1.msra.mxu0 0.0
        %9450 = vmatprep.subr.mxu0 0.0
        %9451 = vmatpush1.msra.mxu0 0.0
        %9452 = vmatprep.subr.mxu0 0.0
        %9453 = vmatpush1.msra.mxu0 0.0
        %9454 = vmatprep.subr.mxu0 0.0
        %9455 = vmatpush1.msra.mxu0 0.0
        %9456 = vmatprep.subr.mxu0 0.0
        %9457 = vmatpush1.msra.mxu0 0.0
        %9458 = vmatprep.subr.mxu0 0.0
        %9459 = vmatpush1.msra.mxu0 0.0
        %9460 = vmatprep.subr.mxu0 0.0
        %9461 = vmatpush1.msra.mxu0 0.0
        %9462 = vmatprep.subr.mxu0 0.0
        %9463 = vmatpush1.msra.mxu0 0.0
        %9464 = vmatprep.subr.mxu0 0.0
        %9465 = vmatpush1.msra.mxu0 0.0
        %9466 = vmatprep.subr.mxu0 0.0
        %9467 = vmatpush1.msra.mxu0 0.0
        %9468 = vmatprep.subr.mxu0 0.0
        %9469 = vmatpush1.msra.mxu0 0.0
        %9470 = vmatprep.subr.mxu0 0.0
        %9471 = vmatpush1.msra.mxu0 0.0
        %9472 = vmatprep.subr.mxu0 0.0
        %9473 = vmatpush1.msra.mxu0 0.0
        %9474 = vmatprep.subr.mxu0 0.0
        %9475 = vmatpush1.msra.mxu0 0.0
        %9476 = vmatprep.subr.mxu0 0.0
        %9477 = vmatpush1.msra.mxu0 0.0
        %9478 = vmatprep.subr.mxu0 0.0
        %9479 = vmatpush1.msra.mxu0 0.0
        %9480 = vmatprep.subr.mxu0 0.0
        %9481 = vmatpush1.msra.mxu0 0.0
        %9482 = vmatprep.subr.mxu0 0.0
        %9483 = vmatpush1.msra.mxu0 0.0
        %9484 = vmatprep.subr.mxu0 0.0
        %9485 = vmatpush1.msra.mxu0 0.0
        %9486 = vmatprep.subr.mxu0 0.0
        %9487 = vmatpush1.msra.mxu0 0.0
        %9488 = vmatprep.subr.mxu0 0.0
        %9489 = vmatpush1.msra.mxu0 0.0
        %9490 = vmatprep.subr.mxu0 0.0
        %9491 = vmatpush1.msra.mxu0 0.0
        %9492 = vmatprep.subr.mxu0 0.0
        %9493 = vmatpush1.msra.mxu0 0.0
        %9494 = vmatprep.subr.mxu0 0.0
        %9495 = vmatpush1.msra.mxu0 0.0
        %9496 = vmatprep.subr.mxu0 0.0
        %9497 = vmatpush1.msra.mxu0 0.0
        %9498 = vmatprep.subr.mxu0 0.0
        %9499 = vmatpush1.msra.mxu0 0.0
        %9500 = vmatprep.subr.mxu0 0.0
        %9501 = vmatpush1.msra.mxu0 0.0
        %9502 = vmatprep.mubr.f32.mxu0 0.0
        %9503 = vmatmul.mubr.f32.gmra.mrb[0].mxu0 %v8971
        %v9504 = vpop.f32.mrb[0].mxu0
        %v9505 = vadd.f32 0.0, %v9504
        %v9506 = vpop.f32.mrb[0].mxu0
        %9507 = vdwg.mxu0
        %v9509 = vsel %vm8884, %v8882, 0
        %v9512 = vsel %vm8884, %v8883, 0
        %9514 = vmatprep.subr.mxu0 0.0
        %9515 = vmatpush1.msra.mxu0 %v8875
        %9516 = vmatprep.subr.mxu0 0.0
        %9517 = vmatpush1.msra.mxu0 %v8893
        %9518 = vmatprep.subr.mxu0 0.0
        %9519 = vmatpush1.msra.mxu0 0.0
        %9520 = vmatprep.subr.mxu0 0.0
        %9521 = vmatpush1.msra.mxu0 0.0
        %9522 = vmatprep.subr.mxu0 0.0
        %9523 = vmatpush1.msra.mxu0 0.0
        %9524 = vmatprep.subr.mxu0 0.0
        %9525 = vmatpush1.msra.mxu0 0.0
        %9526 = vmatprep.subr.mxu0 0.0
        %9527 = vmatpush1.msra.mxu0 0.0
        %9528 = vmatprep.subr.mxu0 0.0
        %9529 = vmatpush1.msra.mxu0 0.0
        %9530 = vmatprep.subr.mxu0 0.0
        %9531 = vmatpush1.msra.mxu0 0.0
        %9532 = vmatprep.subr.mxu0 0.0
        %9533 = vmatpush1.msra.mxu0 0.0
        %9534 = vmatprep.subr.mxu0 0.0
        %9535 = vmatpush1.msra.mxu0 0.0
        %9536 = vmatprep.subr.mxu0 0.0
        %9537 = vmatpush1.msra.mxu0 0.0
        %9538 = vmatprep.subr.mxu0 0.0
        %9539 = vmatpush1.msra.mxu0 0.0
        %9540 = vmatprep.subr.mxu0 0.0
        %9541 = vmatpush1.msra.mxu0 0.0
        %9542 = vmatprep.subr.mxu0 0.0
        %9543 = vmatpush1.msra.mxu0 0.0
        %9544 = vmatprep.subr.mxu0 0.0
        %9545 = vmatpush1.msra.mxu0 0.0
        %9546 = vmatprep.subr.mxu0 0.0
        %9547 = vmatpush1.msra.mxu0 0.0
        %9548 = vmatprep.subr.mxu0 0.0
        %9549 = vmatpush1.msra.mxu0 0.0
        %9550 = vmatprep.subr.mxu0 0.0
        %9551 = vmatpush1.msra.mxu0 0.0
        %9552 = vmatprep.subr.mxu0 0.0
        %9553 = vmatpush1.msra.mxu0 0.0
        %9554 = vmatprep.subr.mxu0 0.0
        %9555 = vmatpush1.msra.mxu0 0.0
        %9556 = vmatprep.subr.mxu0 0.0
        %9557 = vmatpush1.msra.mxu0 0.0
        %9558 = vmatprep.subr.mxu0 0.0
        %9559 = vmatpush1.msra.mxu0 0.0
        %9560 = vmatprep.subr.mxu0 0.0
        %9561 = vmatpush1.msra.mxu0 0.0
        %9562 = vmatprep.subr.mxu0 0.0
        %9563 = vmatpush1.msra.mxu0 0.0
        %9564 = vmatprep.subr.mxu0 0.0
        %9565 = vmatpush1.msra.mxu0 0.0
        %9566 = vmatprep.subr.mxu0 0.0
        %9567 = vmatpush1.msra.mxu0 0.0
        %9568 = vmatprep.subr.mxu0 0.0
        %9569 = vmatpush1.msra.mxu0 0.0
        %9570 = vmatprep.subr.mxu0 0.0
        %9571 = vmatpush1.msra.mxu0 0.0
        %9572 = vmatprep.subr.mxu0 0.0
        %9573 = vmatpush1.msra.mxu0 0.0
        %9574 = vmatprep.subr.mxu0 0.0
        %9575 = vmatpush1.msra.mxu0 0.0
        %9576 = vmatprep.subr.mxu0 0.0
        %9577 = vmatpush1.msra.mxu0 0.0
        %9578 = vmatprep.mubr.f32.mxu0 0.0
        %9579 = vmatmul.mubr.f32.gmra.mrb[0].mxu0 %v9509
        %v9580 = vpop.f32.mrb[0].mxu0
        %v9581 = vadd.f32 0.0, %v9580
        %v9582 = vpop.f32.mrb[0].mxu0
        %9583 = vmatprep.mubr.f32.mxu0 0.0
        %9584 = vmatmul.mubr.f32.gmra.mrb[0].mxu0 %v9512
        %v9585 = vpop.f32.mrb[0].mxu0
        %v9586 = vadd.f32 0.0, %v9585
        %v9587 = vpop.f32.mrb[0].mxu0
        %9588 = vdwg.mxu0
        %v9590 = vsel %vm8891, %v9586, 0
        %9592 = vmatprep.subr.mxu0 0.0
        %9593 = vmatpush1.msra.mxu0 %v9581
        %9594 = vmatprep.subr.mxu0 0.0
        %9595 = vmatpush1.msra.mxu0 %v9590
        %9596 = vmatprep.subr.mxu0 0.0
        %9597 = vmatpush1.msra.mxu0 0.0
        %9598 = vmatprep.subr.mxu0 0.0
        %9599 = vmatpush1.msra.mxu0 0.0
        %9600 = vmatprep.subr.mxu0 0.0
        %9601 = vmatpush1.msra.mxu0 0.0
        %9602 = vmatprep.subr.mxu0 0.0
        %9603 = vmatpush1.msra.mxu0 0.0
        %9604 = vmatprep.subr.mxu0 0.0
        %9605 = vmatpush1.msra.mxu0 0.0
        %9606 = vmatprep.subr.mxu0 0.0
        %9607 = vmatpush1.msra.mxu0 0.0
        %9608 = vmatprep.subr.mxu0 0.0
        %9609 = vmatpush1.msra.mxu0 0.0
        %9610 = vmatprep.subr.mxu0 0.0
        %9611 = vmatpush1.msra.mxu0 0.0
        %9612 = vmatprep.subr.mxu0 0.0
        %9613 = vmatpush1.msra.mxu0 0.0
        %9614 = vmatprep.subr.mxu0 0.0
        %9615 = vmatpush1.msra.mxu0 0.0
        %9616 = vmatprep.subr.mxu0 0.0
        %9617 = vmatpush1.msra.mxu0 0.0
        %9618 = vmatprep.subr.mxu0 0.0
        %9619 = vmatpush1.msra.mxu0 0.0
        %9620 = vmatprep.subr.mxu0 0.0
        %9621 = vmatpush1.msra.mxu0 0.0
        %9622 = vmatprep.subr.mxu0 0.0
        %9623 = vmatpush1.msra.mxu0 0.0
        %9624 = vmatprep.subr.mxu0 0.0
        %9625 = vmatpush1.msra.mxu0 0.0
        %9626 = vmatprep.subr.mxu0 0.0
        %9627 = vmatpush1.msra.mxu0 0.0
        %9628 = vmatprep.subr.mxu0 0.0
        %9629 = vmatpush1.msra.mxu0 0.0
        %9630 = vmatprep.subr.mxu0 0.0
        %9631 = vmatpush1.msra.mxu0 0.0
        %9632 = vmatprep.subr.mxu0 0.0
        %9633 = vmatpush1.msra.mxu0 0.0
        %9634 = vmatprep.subr.mxu0 0.0
        %9635 = vmatpush1.msra.mxu0 0.0
        %9636 = vmatprep.subr.mxu0 0.0
        %9637 = vmatpush1.msra.mxu0 0.0
        %9638 = vmatprep.subr.mxu0 0.0
        %9639 = vmatpush1.msra.mxu0 0.0
        %9640 = vmatprep.subr.mxu0 0.0
        %9641 = vmatpush1.msra.mxu0 0.0
        %9642 = vmatprep.subr.mxu0 0.0
        %9643 = vmatpush1.msra.mxu0 0.0
        %9644 = vmatprep.subr.mxu0 0.0
        %9645 = vmatpush1.msra.mxu0 0.0
        %9646 = vmatprep.subr.mxu0 0.0
        %9647 = vmatpush1.msra.mxu0 0.0
        %9648 = vmatprep.subr.mxu0 0.0
        %9649 = vmatpush1.msra.mxu0 0.0
        %9650 = vmatprep.subr.mxu0 0.0
        %9651 = vmatpush1.msra.mxu0 0.0
        %9652 = vmatprep.subr.mxu0 0.0
        %9653 = vmatpush1.msra.mxu0 0.0
        %9654 = vmatprep.subr.mxu0 0.0
        %9655 = vmatpush1.msra.mxu0 0.0
        %9656 = vmatprep.mubr.f32.mxu0 0.0
        %9657 = vmatmul.mubr.f32.gmra.mrb[0].mxu0 %v8971
        %v9658 = vpop.f32.mrb[0].mxu0
        %v9659 = vadd.f32 0.0, %v9658
        %v9660 = vpop.f32.mrb[0].mxu0
        %9661 = vdwg.mxu0
        %v9662 = vmul.f32 %v9043, %v9043
        %v9663 = vmul.f32 %v9197, %v9197
        %v9664 = vmul.f32 %v9043, %v9197
        %v9665 = vsub.f32 %v9351, %v9662
        %v9666 = vsub.f32 %v9505, %v9663
        %v9667 = vsub.f32 %v9659, %v9664
        %v9668 = vmul.f32 %v9667, 2.0
        %v9669 = vadd.f32 %v9668, 0.0009
        %v9670 = vadd.f32 %v9665, %v9666
        %v9671 = vadd.f32 %v9670, 0.0009
        %v9672 = vrcp.pop %v9671
        %v9673 = vmul.f32 %v9669, %v9672
        %v9674 = vmul.f32 %v9664, 2.0
        %v9675 = vadd.f32 %v9674, 0.0001
        %v9676 = vadd.f32 %v9662, %v9663
        %v9677 = vadd.f32 %v9676, 0.0001
        %v9678 = vrcp.pop %v9677
        %v9679 = vmul.f32 %v9675, %v9678
        %v9680 = vmul.f32 %v9679, %v9673
        %vm9681 = vcmask 9216
        %v9682 = vsel %vm9681, %v9680, 0.0
        %9683 = vadd.xlane.f32.xlu0 %v9682
        %v9684 = vpop.xlane.xlu0 %9683
        %v9685 = vrot.slane %v9684, 4
        %v9686 = vadd.f32 %v9684, %v9685
        %v9687 = vrot.slane %v9686, 2
        %v9688 = vadd.f32 %v9686, %v9687
        %v9689 = vrot.slane %v9688, 1
        %v9690 = vadd.f32 %v9688, %v9689
        %s9691 = vtos %v9690
        %v9692 = vrcp.pop 4.0
        %s9693 = vtos %v9692
        %s9694 = smul.f32 %s9691, %s9693
        %v9695 = vlaneseq
        %v9696 = vshrl.u32 %v9695, 7
        %v9697 = vlaneseq
        %v9698 = vand.u32 %v9697, 127
        %vm9699 = vcmp.eq.s32.totalorder %v9698, 0
        %vm9700 = vcmp.eq.s32.totalorder %v9696, 5
        %vm9701 = vmand %vm9700, %vm9699
        %v9702 = vstv %s4355
        %v9703 = vsel %vm9701, %v9702, 0.0
        %vm9704 = vcmp.eq.s32.totalorder %v9696, 0
        %vm9705 = vmand %vm9704, %vm9699
        %v9706 = vstv %s4176
        %v9707 = vsel %vm9705, %v9706, %v9703
        %vm9708 = vcmp.eq.s32.totalorder %v9696, 1
        %vm9709 = vmand %vm9708, %vm9699
        %v9710 = vstv %s6399
        %v9711 = vsel %vm9709, %v9710, %v9707
        %vm9712 = vcmp.eq.s32.totalorder %v9696, 2
        %vm9713 = vmand %vm9712, %vm9699
        %v9714 = vstv %s7693
        %v9715 = vsel %vm9713, %v9714, %v9711
        %vm9716 = vcmp.eq.s32.totalorder %v9696, 3
        %vm9717 = vmand %vm9716, %vm9699
        %v9718 = vstv %s8618
        %v9719 = vsel %vm9717, %v9718, %v9715
        %vm9720 = vcmp.eq.s32.totalorder %v9696, 4
        %vm9721 = vmand %vm9720, %vm9699
        %v9722 = vstv %s9694
        %v9723 = vsel %vm9721, %v9722, %v9719
        %9724 = vst [vmem:[%s976] sm:$0xff] %v9723
        %p9725 = scmp.lt.s32.totalorder %s50, 1
        %s9726 = scalar_select %p9725, %s50, 1
        %p9727 = scmp.lt.s32.totalorder %s51, 2
        %s9728 = scalar_select %p9727, %s51, 2
        %s9729 = smul.addr %s9726, 3
        %s9730 = sadd.s32 %s9728, %s9729
        %s9731 = smul.addr %s9730, 8
        %s9732 = scalar_lea.vmem %s20, %s9731
        // Predicated region
        $region181: #{mix_reconstruction_loss.1} parent=99 // pred_check
          %p9733 = pneg %p512
        $region182: #{mix_reconstruction_loss.1} parent=99 // pred_check_branch
          %9735 = sbr.rel (%p9733) target = $region184
        $region183: #{mix_reconstruction_loss.1} parent=99 // pred_region
          _
        $region184: #{mix_reconstruction_loss.1} parent=99 // pred_fallthru
          _
      $region100: #{mix_reconstruction_loss.1} parent=5 // pred_fallthru
        _
      %p9736 = scmp.le.s32.totalorder 2, %s41
      // Predicated region
      $region185: #{mix_reconstruction_loss.1} parent=5 // pred_check
        %p9737 = pneg %p9736
      $region186: #{mix_reconstruction_loss.1} parent=5 // pred_check_branch
        %9739 = sbr.rel (%p9737) target = $region188
      $region187: #{mix_reconstruction_loss.1} parent=5 // pred_region
        %s9740 = ssub.s32 %s41, 2
        // Predicated region
        $region189: #{mix_reconstruction_loss.1} parent=187 // pred_check
          %p9741 = pneg %p518
        $region190: #{mix_reconstruction_loss.1} parent=187 // pred_check_branch
          %9743 = sbr.rel (%p9741) target = $region192
        $region191: #{mix_reconstruction_loss.1} parent=187 // pred_region
          %p9744 = scmp.lt.s32.totalorder %s52, 1
          %s9745 = scalar_select %p9744, %s52, 1
          %p9746 = scmp.lt.s32.totalorder %s53, 2
          %s9747 = scalar_select %p9746, %s53, 2
          %s9748 = smul.addr %s9745, 3
          %s9749 = sadd.s32 %s9747, %s9748
          %s9750 = smul.addr %s9749, 8
          %s9751 = scalar_lea.vmem %s20, %s9750
        $region192: #{mix_reconstruction_loss.1} parent=187 // pred_fallthru
          _
      $region188: #{mix_reconstruction_loss.1} parent=5 // pred_fallthru
        _
    $region6: #{mix_reconstruction_loss.1} parent=1 // loop_footer
      %s45 = sadd.s32 1, %s41
    $region7: #{mix_reconstruction_loss.1} parent=1 // loop_footer_branch
      %40 = sbr.rel target = $region3
    $region8: #{mix_reconstruction_loss.1} parent=1 // loop_exit
      _
    %9752 = vsyncpa [#allocation3], 1
    %s9753 = scalar_lea.sflag [#allocation3], 1
    %9754 = vsyncpa %s9753, 1
    %9755 = vsyncpa [#allocation5], 1
    %s9756 = scalar_lea.sflag [#allocation5], 1
    %9757 = vsyncpa %s9756, 1
    %9758 = vsyncpa [#allocation8], 1
    %9759 = vsyncpa [#allocation11], 1
    %9760 = vsyncpa [#allocation14], 1
    %9761 = vsyncpa [#allocation17], 1
    %9762 = vsyncpa [#allocation20], 1
    %9763 = vsyncpa [#allocation23], 1
    %9764 = vsyncpa [#allocation26], 1
    %9765 = vsyncpa [#allocation29], 1
    %9766 = vsyncpa [#allocation32], 1

</llo_original>
